<compile_context>
chip_gen: v6e
topology: v6e:2x2x1
jax: 0.10.0
libtpu: 0.0.40
codegen_flags: <defaults>
</compile_context>

<pallas_src>
import functools
import math

import jax
import jax.numpy as jnp
from jax import lax
from jax.experimental import pallas as pl
from jax.experimental.pallas import tpu as pltpu

# ----------------------------- config (small synthetic shapes) ---------------------------
CFG = dict(
    img_size=64, patch=8, z_img=8, channels=3,       # img_size 64 -> z_img 8, h_dim 32
    token_length=64, group=8, z_txt=8, emb=32,        # token_length 64 -> z_txt 8
    vocab=128,
    cb_dim=32, num_codebook=64, h_dim=32,
    n_bert_layers=2, intermediate=512,                # cb_dim < 128 -> 1 head, inter 512
    beta=0.25,
)


# ----------------------------------- fused Pallas kernel ---------------------------------
def _fused_forward_kernel(
    # per-block (BB samples) inputs
    patches_ref,           # (BB*hw, PD)     f32
    tok_ref,               # (BB*zt, G*E)    f32
    labels_ref,            # (1, G*BB*zt, 1) int32
    # patch / token encoders
    W_pe, b_pe,            # (PD, D) bf16, (1, D) f32
    W_te, b_te,            # (G*E, D) bf16, (1, D) f32
    # stacked BERT weights (leading axis = layer), fused QKV
    wqkv, bqkv,            # (NL, D, 3D) bf16, (NL, 1, 3D) f32
    wo, bo,                # (NL, D, D) bf16,  (NL, 1, D) f32
    g1, b1,                # (NL, 1, D) f32
    wi, bi,                # (NL, D, I) bf16,  (NL, 1, I) f32
    wo2, bo2,              # (NL, I, D) bf16,  (NL, 1, D) f32
    g2, b2,                # (NL, 1, D) f32
    # VQ codebook (+ precomputed row norms)
    cb, cb_sq,             # (K, D) f32, (1, K) f32
    # same-sample additive attention bias for the packed (BB*S) layout
    attn_bias,             # (BB*S, BB*S) f32  (0 within a sample, -1e9 across samples)
    # Layer_img / Layer_txt as block-diagonal (per-sample) weights
    W_liB, b_liB,          # (BB*hw, BB*hw), (BB*hw, 1)
    W_lt1B, b_lt1B,        # (BB*hd, BB*hw), (BB*hd, 1)
    W_lt2B, b_lt2B,        # (BB*zt, BB*hd), (BB*zt, 1)
    # decoders
    W_pd, b_pd,            # (D, PD) bf16, (1, PD) f32
    W_td, b_td,            # (D, G*V) bf16, (1, G*V) f32
    # output: per-block partial sums [vq_sse, img_sse, ce_sum, n_correct, 0...]
    stats_ref,             # (1, 1, 8) f32
    *, n_layers, d_model, bb, hw, zt, vocab, n_groups,
):
    f32 = jnp.float32
    bf16 = jnp.bfloat16
    D = d_model

    def bdot(a, b):                      # bf16 MXU matmul, f32 accumulation
        return jnp.dot(a.astype(bf16), b.astype(bf16), preferred_element_type=f32)

    def bdot_nt(a, b):                   # contract last dims of both: (M,D)x(N,D)->(M,N)
        return lax.dot_general(a.astype(bf16), b.astype(bf16),
                               (((1,), (1,)), ((), ())), preferred_element_type=f32)

    def layernorm(h, g, bias):           # HF BERT eps = 1e-12
        mu = jnp.mean(h, axis=-1, keepdims=True)
        var = jnp.mean((h - mu) ** 2, axis=-1, keepdims=True)
        return (h - mu) * lax.rsqrt(var + 1e-12) * g + bias

    patches = patches_ref[...]                                 # (BB*hw, PD)
    tok = tok_ref[...]                                         # (BB*zt, G*E)

    # ---- patch / token encoders -> packed (BB*S, D) BERT input (no VMEM scratch) ----
    img_tok = bdot(patches, W_pe[...]) + b_pe[...]             # (BB*hw, D)
    txt_tok = bdot(tok, W_te[...]) + b_te[...]                 # (BB*zt, D)
    x = jnp.concatenate([img_tok, txt_tok], axis=0)            # (M, D), M = BB*S

    # ---- BERT encoder: post-LN layers, single head, fused QKV, masked packed attention ----
    scale = 1.0 / math.sqrt(D)
    bias_attn = attn_bias[...]                                 # (M, M)
    for l in range(n_layers):                                  # static unroll (NL = 2)
        qkv = bdot(x, wqkv[l]) + bqkv[l]                       # (M, 3D)
        q = qkv[:, 0:D]
        k = qkv[:, D:2 * D]
        v = qkv[:, 2 * D:3 * D]
        s = bdot_nt(q, k) * scale + bias_attn                  # (M, M)
        s = s - jnp.max(s, axis=-1, keepdims=True)
        p = jnp.exp(s)
        p = p / jnp.sum(p, axis=-1, keepdims=True)             # exact softmax divide
        attn_out = bdot(bdot(p, v), wo[l]) + bo[l]             # (M, D)
        h1 = layernorm(x + attn_out, g1[l], b1[l])
        ff = bdot(h1, wi[l]) + bi[l]                           # (M, I)
        # GELU (tanh approximation) -- elementwise kept in f32 (v5e has no bf16 VPU/EUP)
        gz = 0.5 * ff * (1.0 + jnp.tanh(0.7978845608028654 * (ff + 0.044715 * ff * ff * ff)))
        x = layernorm(h1 + bdot(gz, wo2[l]) + bo2[l], g2[l], b2[l])

    n_img = bb * hw
    z = x[0:n_img, :]                                          # image tokens (BB*hw, D)

    # ---- VQ quantize (kept f32 so codebook selection / gather is exact) ----
    z_sq = jnp.sum(z * z, axis=1, keepdims=True)               # (N, 1)
    cross = lax.dot_general(z, cb[...], (((1,), (1,)), ((), ())),
                            preferred_element_type=f32)        # (N, K)
    dists = z_sq + cb_sq[...] - 2.0 * cross                    # (N, K)
    K = dists.shape[1]
    kcol = lax.broadcasted_iota(jnp.int32, dists.shape, 1).astype(f32)
    d_min = jnp.min(dists, axis=1, keepdims=True)
    idx = jnp.min(jnp.where(dists == d_min, kcol, float(K)), axis=1, keepdims=True)
    one_hot = (kcol == idx).astype(f32)
    z_q = jnp.dot(one_hot, cb[...], preferred_element_type=f32)  # (N, D) exact gather
    dq = z_q - z
    vq_sse = jnp.sum(dq * dq)                                  # fwd loss_vq == loss_commit

    # ---- Layer_img (block-diag over BB samples) -> patch decoder -> image MSE ----
    dec_in = bdot(W_liB[...], z_q) + b_liB[...]                # (N, D)
    dec_patches = bdot(dec_in, W_pd[...]) + b_pd[...]          # (N, PD)
    di = dec_patches - patches
    img_sse = jnp.sum(di * di)

    # ---- Layer_txt (block-diag) -> token decoder -> single-pass CE + accuracy ----
    hid = jnp.maximum(bdot(W_lt1B[...], z_q) + b_lt1B[...], 0.0)   # (BB*hd, D)
    z_q_t = bdot(W_lt2B[...], hid) + b_lt2B[...]                   # (T, D), T = BB*zt
    logits_all = bdot(z_q_t, W_td[...]) + b_td[...]                # (T, G*V)
    V = vocab
    # lane-tile-aligned slices + one concat -> lane-dense (G*T, V) slab, one softmax pass
    lg = jnp.concatenate(
        [logits_all[:, g * V:(g + 1) * V] for g in range(n_groups)], axis=0)  # (G*T, V)
    lab = labels_ref[0].astype(f32)                                            # (G*T, 1)
    m = jnp.max(lg, axis=1, keepdims=True)
    e = jnp.exp(lg - m)
    lse = jnp.log(jnp.sum(e, axis=1, keepdims=True)) + m
    vcol = lax.broadcasted_iota(jnp.int32, lg.shape, 1).astype(f32)
    tgt = jnp.sum(jnp.where(vcol == lab, lg, 0.0), axis=1, keepdims=True)
    ce_sum = jnp.sum(lse - tgt)
    pred = jnp.min(jnp.where(lg == m, vcol, float(V)), axis=1, keepdims=True)  # argmax
    correct = jnp.sum((pred == lab).astype(f32))

    # ---- single vector store of the per-block stats ----
    lane = lax.broadcasted_iota(jnp.int32, (1, 8), 1)
    vec = jnp.where(lane == 0, vq_sse, 0.0)
    vec = jnp.where(lane == 1, img_sse, vec)
    vec = jnp.where(lane == 2, ce_sum, vec)
    vec = jnp.where(lane == 3, correct, vec)
    stats_ref[0] = vec


# ----------------------------------- parameter init --------------------------------------
def init_params(key):
    D = CFG["cb_dim"]; I = CFG["intermediate"]; K = CFG["num_codebook"]
    p = CFG["patch"]; V = CFG["vocab"]; E = CFG["emb"]; G = CFG["group"]
    hw = CFG["z_img"] ** 2; zt = CFG["z_txt"]; hd = CFG["h_dim"]
    NL = CFG["n_bert_layers"]
    PD = 3 * p * p
    keys = iter(jax.random.split(key, 32))

    def w(shape, scale=0.02):
        return scale * jax.random.normal(next(keys), shape, jnp.float32)

    def zeros(shape):
        return jnp.zeros(shape, jnp.float32)

    def ones(shape):
        return jnp.ones(shape, jnp.float32)

    return dict(
        # Img_2D_CNN stand-in (patch embed / patch decode)
        W_pe=w((PD, D)), b_pe=zeros((1, D)),
        W_pd=w((D, PD)), b_pd=zeros((1, PD)),
        # Txt_1D_CNN stand-in (token embedding + grouped encoder / decode head)
        txt_emb=w((V, E)),
        W_te=w((G * E, D)), b_te=zeros((1, D)),
        W_td=w((D, G * V)), b_td=zeros((1, G * V)),
        # codebook
        codebook=w((K, D)),
        # Layer_img / Layer_txt (act on the sequence axis; random stand-in values)
        W_li=w((hw, hw)), b_li=zeros((hw, 1)),
        W_lt1=w((hd, hw)), b_lt1=zeros((hd, 1)),
        W_lt2=w((zt, hd)), b_lt2=zeros((zt, 1)),
        # BERT layers stacked along the leading axis, QKV fused into one (D, 3D) weight
        wqkv=w((NL, D, 3 * D)), bqkv=zeros((NL, 1, 3 * D)),
        wo=w((NL, D, D)), bo=zeros((NL, 1, D)),
        g1=ones((NL, 1, D)), b1=zeros((NL, 1, D)),
        wi=w((NL, D, I)), bi=zeros((NL, 1, I)),
        wo2=w((NL, I, D)), bo2=zeros((NL, 1, D)),
        g2=ones((NL, 1, D)), b2=zeros((NL, 1, D)),
    )


def _pick_batch_block(B):
    # Largest BB (<=8) dividing B such that the grid keeps >=4 steps (megacore +
    # double-buffering); fall back to >=2 steps, then 1.
    for want in (4, 2):
        for bb in (8, 4, 2, 1):
            if B % bb == 0 and B // bb >= want:
                return bb
    return 1


# ------------------------------------- forward pass --------------------------------------
def forward(params, img, original_input_ids, input_ids, attn_masks):
    # TODO(synk): attn_masks unused (reference calls BERT.encoder without a mask).
    B = img.shape[0]
    D = CFG["cb_dim"]; p = CFG["patch"]; zi = CFG["z_img"]; zt = CFG["z_txt"]
    G = CFG["group"]; E = CFG["emb"]; V = CFG["vocab"]; L = CFG["token_length"]
    K = CFG["num_codebook"]; NL = CFG["n_bert_layers"]
    hw = zi * zi
    S = hw + zt
    PD = 3 * p * p

    BB = _pick_batch_block(B)
    NB = B // BB
    T = BB * zt
    bf16 = jnp.bfloat16

    # ---- tiny host-side glue (pure relayout / gather) ----
    patches = img.reshape(B, 3, zi, p, zi, p).transpose(0, 2, 4, 1, 3, 5)
    patches = patches.reshape(B * hw, PD)                          # (B*hw, 3*p*p)
    emb = jnp.take(params["txt_emb"], input_ids, axis=0)           # (B, L, E)
    tok = emb.reshape(B * zt, G * E)                                # (B*zt, G*E)
    labels = original_input_ids.reshape(B, zt, G).astype(jnp.int32)
    lab_host = labels.reshape(NB, BB, zt, G).transpose(0, 3, 1, 2).reshape(NB, G * T, 1)

    cb = params["codebook"]
    cb_sq = jnp.sum(cb * cb, axis=1).reshape(1, K)                  # precomputed row norms

    # ---- batch-block constants (static w.r.t. BB) ----
    eye = jnp.eye(BB, dtype=jnp.float32)
    W_liB = jnp.kron(eye, params["W_li"]);   b_liB = jnp.tile(params["b_li"], (BB, 1))
    W_lt1B = jnp.kron(eye, params["W_lt1"]); b_lt1B = jnp.tile(params["b_lt1"], (BB, 1))
    W_lt2B = jnp.kron(eye, params["W_lt2"]); b_lt2B = jnp.tile(params["b_lt2"], (BB, 1))

    # same-sample additive attention bias for the packed [img tokens..., txt tokens...] order
    sid = jnp.concatenate([jnp.repeat(jnp.arange(BB, dtype=jnp.int32), hw),
                           jnp.repeat(jnp.arange(BB, dtype=jnp.int32), zt)])
    attn_bias = jnp.where(sid[:, None] == sid[None, :], 0.0, -1e9).astype(jnp.float32)

    weights = [
        params["W_pe"].astype(bf16), params["b_pe"],
        params["W_te"].astype(bf16), params["b_te"],
        params["wqkv"].astype(bf16), params["bqkv"],
        params["wo"].astype(bf16), params["bo"],
        params["g1"], params["b1"],
        params["wi"].astype(bf16), params["bi"],
        params["wo2"].astype(bf16), params["bo2"],
        params["g2"], params["b2"],
        cb, cb_sq, attn_bias,
        W_liB, b_liB, W_lt1B, b_lt1B, W_lt2B, b_lt2B,
        params["W_pd"].astype(bf16), params["b_pd"],
        params["W_td"].astype(bf16), params["b_td"],
    ]

    def const_spec(a):
        nd = a.ndim
        return pl.BlockSpec(a.shape, lambda n, _nd=nd: (0,) * _nd)

    in_specs = [
        pl.BlockSpec((BB * hw, PD), lambda n: (n, 0)),
        pl.BlockSpec((BB * zt, G * E), lambda n: (n, 0)),
        pl.BlockSpec((1, G * T, 1), lambda n: (n, 0, 0)),
    ] + [const_spec(a) for a in weights]

    kernel = functools.partial(
        _fused_forward_kernel,
        n_layers=NL, d_model=D, bb=BB, hw=hw, zt=zt, vocab=V, n_groups=G)

    stats = pl.pallas_call(
        kernel,
        grid=(NB,),
        in_specs=in_specs,
        out_specs=pl.BlockSpec((1, 1, 8), lambda n: (n, 0, 0)),
        out_shape=jax.ShapeDtypeStruct((NB, 1, 8), jnp.float32),
        compiler_params=pltpu.CompilerParams(dimension_semantics=("parallel",)),
    )(patches, tok, lab_host, *weights)

    # ---- combine per-block partial sums into the loss dict ----
    vq_sse = jnp.sum(stats[:, 0, 0])
    img_sse = jnp.sum(stats[:, 0, 1])
    ce_sum = jnp.sum(stats[:, 0, 2])
    correct = jnp.sum(stats[:, 0, 3])

    loss_vq = vq_sse / (B * hw * D)
    loss_commit = loss_vq                                         # identical forward value
    recon_loss_i_mse = img_sse / (B * 3 * CFG["img_size"] ** 2)   # patch-space == img-space
    recon_loss_t = ce_sum / (B * L)
    acc_t = correct / (B * L)
    bits_per_dim = recon_loss_t / jnp.log(2.0)                    # TODO(synk): stand-in def

    total_loss = recon_loss_i_mse + recon_loss_t + CFG["beta"] * loss_commit + loss_vq
    return {
        "bits_per_dim": bits_per_dim,
        "matching_acc": acc_t,
        "recon_loss_i": recon_loss_i_mse,
        "recon_loss_t": recon_loss_t,
        "commit_loss": loss_commit * CFG["beta"],
        "embedding_loss": loss_vq,
        "total_loss": total_loss,
    }


# ----------------------------------------- main -------------------------------------------
if __name__ == "__main__":
    key = jax.random.PRNGKey(0)
    k_img, k_ids = jax.random.split(key)
    B = 8  # small batch; batch blocking picks BB=2 -> grid=(4,) (both v7x TCs, pipelined)
    img = jax.random.normal(k_img, (B, 3, CFG["img_size"], CFG["img_size"]), jnp.float32)
    original_input_ids = jax.random.randint(
        k_ids, (B, CFG["token_length"]), 0, CFG["vocab"], dtype=jnp.int32)
    input_ids = original_input_ids
    attn_masks = jnp.ones((B, CFG["token_length"]), jnp.int32)

    params = init_params(jax.random.PRNGKey(42))

    losses = jax.jit(forward)(params, img, original_input_ids, input_ids, attn_masks)
    jax.block_until_ready(losses)
    assert bool(jnp.isfinite(losses["total_loss"]))
    print("KERNEL_OK")
</pallas_src>

<mosaic_0001>
module attributes {stable_mosaic.version = 11 : i64} {
  func.func @_fused_forward_kernel(%arg0: i32, %arg1: memref<128x192xf32, #tpu.memory_space<vmem>>, %arg2: memref<16x256xf32, #tpu.memory_space<vmem>>, %arg3: memref<1x128x1xi32, #tpu.memory_space<vmem>>, %arg4: memref<192x32xbf16, #tpu.memory_space<vmem>>, %arg5: memref<1x32xf32, #tpu.memory_space<vmem>>, %arg6: memref<256x32xbf16, #tpu.memory_space<vmem>>, %arg7: memref<1x32xf32, #tpu.memory_space<vmem>>, %arg8: memref<2x32x96xbf16, #tpu.memory_space<vmem>>, %arg9: memref<2x1x96xf32, #tpu.memory_space<vmem>>, %arg10: memref<2x32x32xbf16, #tpu.memory_space<vmem>>, %arg11: memref<2x1x32xf32, #tpu.memory_space<vmem>>, %arg12: memref<2x1x32xf32, #tpu.memory_space<vmem>>, %arg13: memref<2x1x32xf32, #tpu.memory_space<vmem>>, %arg14: memref<2x32x512xbf16, #tpu.memory_space<vmem>>, %arg15: memref<2x1x512xf32, #tpu.memory_space<vmem>>, %arg16: memref<2x512x32xbf16, #tpu.memory_space<vmem>>, %arg17: memref<2x1x32xf32, #tpu.memory_space<vmem>>, %arg18: memref<2x1x32xf32, #tpu.memory_space<vmem>>, %arg19: memref<2x1x32xf32, #tpu.memory_space<vmem>>, %arg20: memref<64x32xf32, #tpu.memory_space<vmem>>, %arg21: memref<1x64xf32, #tpu.memory_space<vmem>>, %arg22: memref<144x144xf32, #tpu.memory_space<vmem>>, %arg23: memref<128x128xf32, #tpu.memory_space<vmem>>, %arg24: memref<128x1xf32, #tpu.memory_space<vmem>>, %arg25: memref<64x128xf32, #tpu.memory_space<vmem>>, %arg26: memref<64x1xf32, #tpu.memory_space<vmem>>, %arg27: memref<16x64xf32, #tpu.memory_space<vmem>>, %arg28: memref<16x1xf32, #tpu.memory_space<vmem>>, %arg29: memref<32x192xbf16, #tpu.memory_space<vmem>>, %arg30: memref<1x192xf32, #tpu.memory_space<vmem>>, %arg31: memref<32x1024xbf16, #tpu.memory_space<vmem>>, %arg32: memref<1x1024xf32, #tpu.memory_space<vmem>>, %arg33: memref<1x1x8xf32, #tpu.memory_space<vmem>>) attributes {dimension_semantics = [#tpu.dimension_semantics<parallel>], iteration_bounds = array<i64: 4>, scalar_prefetch = 0 : i64, scratch_operands = 0 : i64, tpu.core_type = #tpu.core_type<tc>, window_params = [{transform_indices = @transform_0, window_bounds = array<i64: 128, 192>}, {transform_indices = @transform_1, window_bounds = array<i64: 16, 256>}, {transform_indices = @transform_2, window_bounds = array<i64: 1, 128, 1>}, {pipeline_mode = #tpu.pipeline_mode<synchronous>, transform_indices = @transform_3, window_bounds = array<i64: 192, 32>}, {pipeline_mode = #tpu.pipeline_mode<synchronous>, transform_indices = @transform_4, window_bounds = array<i64: 1, 32>}, {pipeline_mode = #tpu.pipeline_mode<synchronous>, transform_indices = @transform_5, window_bounds = array<i64: 256, 32>}, {pipeline_mode = #tpu.pipeline_mode<synchronous>, transform_indices = @transform_6, window_bounds = array<i64: 1, 32>}, {pipeline_mode = #tpu.pipeline_mode<synchronous>, transform_indices = @transform_7, window_bounds = array<i64: 2, 32, 96>}, {pipeline_mode = #tpu.pipeline_mode<synchronous>, transform_indices = @transform_8, window_bounds = array<i64: 2, 1, 96>}, {pipeline_mode = #tpu.pipeline_mode<synchronous>, transform_indices = @transform_9, window_bounds = array<i64: 2, 32, 32>}, {pipeline_mode = #tpu.pipeline_mode<synchronous>, transform_indices = @transform_10, window_bounds = array<i64: 2, 1, 32>}, {pipeline_mode = #tpu.pipeline_mode<synchronous>, transform_indices = @transform_11, window_bounds = array<i64: 2, 1, 32>}, {pipeline_mode = #tpu.pipeline_mode<synchronous>, transform_indices = @transform_12, window_bounds = array<i64: 2, 1, 32>}, {pipeline_mode = #tpu.pipeline_mode<synchronous>, transform_indices = @transform_13, window_bounds = array<i64: 2, 32, 512>}, {pipeline_mode = #tpu.pipeline_mode<synchronous>, transform_indices = @transform_14, window_bounds = array<i64: 2, 1, 512>}, {pipeline_mode = #tpu.pipeline_mode<synchronous>, transform_indices = @transform_15, window_bounds = array<i64: 2, 512, 32>}, {pipeline_mode = #tpu.pipeline_mode<synchronous>, transform_indices = @transform_16, window_bounds = array<i64: 2, 1, 32>}, {pipeline_mode = #tpu.pipeline_mode<synchronous>, transform_indices = @transform_17, window_bounds = array<i64: 2, 1, 32>}, {pipeline_mode = #tpu.pipeline_mode<synchronous>, transform_indices = @transform_18, window_bounds = array<i64: 2, 1, 32>}, {pipeline_mode = #tpu.pipeline_mode<synchronous>, transform_indices = @transform_19, window_bounds = array<i64: 64, 32>}, {pipeline_mode = #tpu.pipeline_mode<synchronous>, transform_indices = @transform_20, window_bounds = array<i64: 1, 64>}, {pipeline_mode = #tpu.pipeline_mode<synchronous>, transform_indices = @transform_21, window_bounds = array<i64: 144, 144>}, {pipeline_mode = #tpu.pipeline_mode<synchronous>, transform_indices = @transform_22, window_bounds = array<i64: 128, 128>}, {pipeline_mode = #tpu.pipeline_mode<synchronous>, transform_indices = @transform_23, window_bounds = array<i64: 128, 1>}, {pipeline_mode = #tpu.pipeline_mode<synchronous>, transform_indices = @transform_24, window_bounds = array<i64: 64, 128>}, {pipeline_mode = #tpu.pipeline_mode<synchronous>, transform_indices = @transform_25, window_bounds = array<i64: 64, 1>}, {pipeline_mode = #tpu.pipeline_mode<synchronous>, transform_indices = @transform_26, window_bounds = array<i64: 16, 64>}, {pipeline_mode = #tpu.pipeline_mode<synchronous>, transform_indices = @transform_27, window_bounds = array<i64: 16, 1>}, {pipeline_mode = #tpu.pipeline_mode<synchronous>, transform_indices = @transform_28, window_bounds = array<i64: 32, 192>}, {pipeline_mode = #tpu.pipeline_mode<synchronous>, transform_indices = @transform_29, window_bounds = array<i64: 1, 192>}, {pipeline_mode = #tpu.pipeline_mode<synchronous>, transform_indices = @transform_30, window_bounds = array<i64: 32, 1024>}, {pipeline_mode = #tpu.pipeline_mode<synchronous>, transform_indices = @transform_31, window_bounds = array<i64: 1, 1024>}, {transform_indices = @transform_32, window_bounds = array<i64: 1, 1, 8>}]} {
    %c0 = arith.constant 0 : index
    %c0_0 = arith.constant 0 : index
    %0 = vector.load %arg1[%c0, %c0_0] : memref<128x192xf32, #tpu.memory_space<vmem>>, vector<128x192xf32>
    %c0_1 = arith.constant 0 : index
    %c0_2 = arith.constant 0 : index
    %1 = vector.load %arg2[%c0_1, %c0_2] : memref<16x256xf32, #tpu.memory_space<vmem>>, vector<16x256xf32>
    %c0_3 = arith.constant 0 : index
    %c0_4 = arith.constant 0 : index
    %2 = vector.load %arg4[%c0_3, %c0_4] : memref<192x32xbf16, #tpu.memory_space<vmem>>, vector<192x32xbf16>
    %3 = arith.truncf %0 : vector<128x192xf32> to vector<128x192xbf16>
    %cst = arith.constant dense<0.000000e+00> : vector<128x32xf32>
    %4 = tpu.matmul %3, %2, %cst {dimension_numbers = #tpu.dot_dimension_numbers<[1], [0], [0], [1], [0, 0, 1, 1], [], []>} : vector<128x192xbf16>, vector<192x32xbf16>, vector<128x32xf32> -> vector<128x32xf32>
    %c0_5 = arith.constant 0 : index
    %c0_6 = arith.constant 0 : index
    %5 = vector.load %arg5[%c0_5, %c0_6] : memref<1x32xf32, #tpu.memory_space<vmem>>, vector<1x32xf32>
    %6 = vector.broadcast %5 : vector<1x32xf32> to vector<128x32xf32>
    %7 = arith.addf %4, %6 : vector<128x32xf32>
    %c0_7 = arith.constant 0 : index
    %c0_8 = arith.constant 0 : index
    %8 = vector.load %arg6[%c0_7, %c0_8] : memref<256x32xbf16, #tpu.memory_space<vmem>>, vector<256x32xbf16>
    %9 = arith.truncf %1 : vector<16x256xf32> to vector<16x256xbf16>
    %cst_9 = arith.constant dense<0.000000e+00> : vector<16x32xf32>
    %10 = tpu.matmul %9, %8, %cst_9 {dimension_numbers = #tpu.dot_dimension_numbers<[1], [0], [0], [1], [0, 0, 1, 1], [], []>} : vector<16x256xbf16>, vector<256x32xbf16>, vector<16x32xf32> -> vector<16x32xf32>
    %c0_10 = arith.constant 0 : index
    %c0_11 = arith.constant 0 : index
    %11 = vector.load %arg7[%c0_10, %c0_11] : memref<1x32xf32, #tpu.memory_space<vmem>>, vector<1x32xf32>
    %12 = vector.broadcast %11 : vector<1x32xf32> to vector<16x32xf32>
    %13 = arith.addf %10, %12 : vector<16x32xf32>
    %14 = tpu.concatenate %7, %13 in 0 : vector<128x32xf32>, vector<16x32xf32> -> vector<144x32xf32>
    %c0_12 = arith.constant 0 : index
    %c0_13 = arith.constant 0 : index
    %15 = vector.load %arg22[%c0_12, %c0_13] : memref<144x144xf32, #tpu.memory_space<vmem>>, vector<144x144xf32>
    %c0_14 = arith.constant 0 : index
    %c0_15 = arith.constant 0 : index
    %c0_16 = arith.constant 0 : index
    %16 = vector.load %arg8[%c0_14, %c0_15, %c0_16] : memref<2x32x96xbf16, #tpu.memory_space<vmem>>, vector<1x32x96xbf16>
    %17 = vector.shape_cast %16 : vector<1x32x96xbf16> to vector<32x96xbf16>
    %18 = arith.truncf %14 : vector<144x32xf32> to vector<144x32xbf16>
    %cst_17 = arith.constant dense<0.000000e+00> : vector<144x96xf32>
    %19 = tpu.matmul %18, %17, %cst_17 {dimension_numbers = #tpu.dot_dimension_numbers<[1], [0], [0], [1], [0, 0, 1, 1], [], []>} : vector<144x32xbf16>, vector<32x96xbf16>, vector<144x96xf32> -> vector<144x96xf32>
    %c0_18 = arith.constant 0 : index
    %c0_19 = arith.constant 0 : index
    %c0_20 = arith.constant 0 : index
    %20 = vector.load %arg9[%c0_18, %c0_19, %c0_20] : memref<2x1x96xf32, #tpu.memory_space<vmem>>, vector<1x1x96xf32>
    %21 = vector.shape_cast %20 : vector<1x1x96xf32> to vector<1x96xf32>
    %22 = vector.broadcast %21 : vector<1x96xf32> to vector<144x96xf32>
    %23 = arith.addf %19, %22 : vector<144x96xf32>
    %24 = vector.extract_strided_slice %23 {offsets = [0, 0], sizes = [144, 32], strides = [1, 1]} : vector<144x96xf32> to vector<144x32xf32>
    %25 = vector.extract_strided_slice %23 {offsets = [0, 32], sizes = [144, 32], strides = [1, 1]} : vector<144x96xf32> to vector<144x32xf32>
    %26 = vector.extract_strided_slice %23 {offsets = [0, 64], sizes = [144, 32], strides = [1, 1]} : vector<144x96xf32> to vector<144x32xf32>
    %27 = arith.truncf %24 : vector<144x32xf32> to vector<144x32xbf16>
    %28 = arith.truncf %25 : vector<144x32xf32> to vector<144x32xbf16>
    %cst_21 = arith.constant dense<0.000000e+00> : vector<144x144xf32>
    %29 = tpu.matmul %27, %28, %cst_21 {dimension_numbers = #tpu.dot_dimension_numbers<[1], [1], [0], [0], [0, 0, 1, 0], [], []>} : vector<144x32xbf16>, vector<144x32xbf16>, vector<144x144xf32> -> vector<144x144xf32>
    %cst_22 = arith.constant 0.176776692 : f32
    %30 = vector.broadcast %cst_22 : f32 to vector<144x144xf32>
    %31 = arith.mulf %29, %30 : vector<144x144xf32>
    %32 = arith.addf %31, %15 : vector<144x144xf32>
    %cst_23 = arith.constant dense<0xFF800000> : vector<144xf32>
    %33 = vector.multi_reduction <maximumf>, %32, %cst_23 [1] : vector<144x144xf32> to vector<144xf32>
    %34 = vector.shape_cast %33 : vector<144xf32> to vector<144x1xf32>
    %35 = vector.broadcast %34 : vector<144x1xf32> to vector<144x144xf32>
    %36 = arith.subf %32, %35 : vector<144x144xf32>
    %37 = math.exp %36 : vector<144x144xf32>
    %cst_24 = arith.constant dense<0.000000e+00> : vector<144xf32>
    %38 = vector.multi_reduction <add>, %37, %cst_24 [1] : vector<144x144xf32> to vector<144xf32>
    %39 = vector.shape_cast %38 : vector<144xf32> to vector<144x1xf32>
    %40 = vector.broadcast %39 : vector<144x1xf32> to vector<144x144xf32>
    %41 = arith.divf %37, %40 : vector<144x144xf32>
    %42 = arith.truncf %41 : vector<144x144xf32> to vector<144x144xbf16>
    %43 = arith.truncf %26 : vector<144x32xf32> to vector<144x32xbf16>
    %cst_25 = arith.constant dense<0.000000e+00> : vector<144x32xf32>
    %44 = tpu.matmul %42, %43, %cst_25 {dimension_numbers = #tpu.dot_dimension_numbers<[1], [0], [0], [1], [0, 0, 1, 1], [], []>} : vector<144x144xbf16>, vector<144x32xbf16>, vector<144x32xf32> -> vector<144x32xf32>
    %c0_26 = arith.constant 0 : index
    %c0_27 = arith.constant 0 : index
    %c0_28 = arith.constant 0 : index
    %45 = vector.load %arg10[%c0_26, %c0_27, %c0_28] : memref<2x32x32xbf16, #tpu.memory_space<vmem>>, vector<1x32x32xbf16>
    %46 = vector.shape_cast %45 : vector<1x32x32xbf16> to vector<32x32xbf16>
    %47 = arith.truncf %44 : vector<144x32xf32> to vector<144x32xbf16>
    %cst_29 = arith.constant dense<0.000000e+00> : vector<144x32xf32>
    %48 = tpu.matmul %47, %46, %cst_29 {dimension_numbers = #tpu.dot_dimension_numbers<[1], [0], [0], [1], [0, 0, 1, 1], [], []>} : vector<144x32xbf16>, vector<32x32xbf16>, vector<144x32xf32> -> vector<144x32xf32>
    %c0_30 = arith.constant 0 : index
    %c0_31 = arith.constant 0 : index
    %c0_32 = arith.constant 0 : index
    %49 = vector.load %arg11[%c0_30, %c0_31, %c0_32] : memref<2x1x32xf32, #tpu.memory_space<vmem>>, vector<1x1x32xf32>
    %50 = vector.shape_cast %49 : vector<1x1x32xf32> to vector<1x32xf32>
    %51 = vector.broadcast %50 : vector<1x32xf32> to vector<144x32xf32>
    %52 = arith.addf %48, %51 : vector<144x32xf32>
    %53 = arith.addf %14, %52 : vector<144x32xf32>
    %c0_33 = arith.constant 0 : index
    %c0_34 = arith.constant 0 : index
    %c0_35 = arith.constant 0 : index
    %54 = vector.load %arg12[%c0_33, %c0_34, %c0_35] : memref<2x1x32xf32, #tpu.memory_space<vmem>>, vector<1x1x32xf32>
    %55 = vector.shape_cast %54 : vector<1x1x32xf32> to vector<1x32xf32>
    %c0_36 = arith.constant 0 : index
    %c0_37 = arith.constant 0 : index
    %c0_38 = arith.constant 0 : index
    %56 = vector.load %arg13[%c0_36, %c0_37, %c0_38] : memref<2x1x32xf32, #tpu.memory_space<vmem>>, vector<1x1x32xf32>
    %57 = vector.shape_cast %56 : vector<1x1x32xf32> to vector<1x32xf32>
    %cst_39 = arith.constant dense<0.000000e+00> : vector<144xf32>
    %58 = vector.multi_reduction <add>, %53, %cst_39 [1] : vector<144x32xf32> to vector<144xf32>
    %59 = vector.shape_cast %58 : vector<144xf32> to vector<144x1xf32>
    %cst_40 = arith.constant 3.200000e+01 : f32
    %60 = vector.broadcast %cst_40 : f32 to vector<144x1xf32>
    %61 = arith.divf %59, %60 : vector<144x1xf32>
    %62 = vector.broadcast %61 : vector<144x1xf32> to vector<144x32xf32>
    %63 = arith.subf %53, %62 : vector<144x32xf32>
    %64 = arith.mulf %63, %63 : vector<144x32xf32>
    %cst_41 = arith.constant dense<0.000000e+00> : vector<144xf32>
    %65 = vector.multi_reduction <add>, %64, %cst_41 [1] : vector<144x32xf32> to vector<144xf32>
    %66 = vector.shape_cast %65 : vector<144xf32> to vector<144x1xf32>
    %cst_42 = arith.constant 3.200000e+01 : f32
    %67 = vector.broadcast %cst_42 : f32 to vector<144x1xf32>
    %68 = arith.divf %66, %67 : vector<144x1xf32>
    %69 = vector.broadcast %61 : vector<144x1xf32> to vector<144x32xf32>
    %70 = arith.subf %53, %69 : vector<144x32xf32>
    %cst_43 = arith.constant 9.99999996E-13 : f32
    %71 = vector.broadcast %cst_43 : f32 to vector<144x1xf32>
    %72 = arith.addf %68, %71 : vector<144x1xf32>
    %73 = math.rsqrt %72 : vector<144x1xf32>
    %74 = vector.broadcast %73 : vector<144x1xf32> to vector<144x32xf32>
    %75 = arith.mulf %70, %74 : vector<144x32xf32>
    %76 = vector.broadcast %55 : vector<1x32xf32> to vector<144x32xf32>
    %77 = arith.mulf %75, %76 : vector<144x32xf32>
    %78 = vector.broadcast %57 : vector<1x32xf32> to vector<144x32xf32>
    %79 = arith.addf %77, %78 : vector<144x32xf32>
    %c0_44 = arith.constant 0 : index
    %c0_45 = arith.constant 0 : index
    %c0_46 = arith.constant 0 : index
    %80 = vector.load %arg14[%c0_44, %c0_45, %c0_46] : memref<2x32x512xbf16, #tpu.memory_space<vmem>>, vector<1x32x512xbf16>
    %81 = vector.shape_cast %80 : vector<1x32x512xbf16> to vector<32x512xbf16>
    %82 = arith.truncf %79 : vector<144x32xf32> to vector<144x32xbf16>
    %cst_47 = arith.constant dense<0.000000e+00> : vector<144x512xf32>
    %83 = tpu.matmul %82, %81, %cst_47 {dimension_numbers = #tpu.dot_dimension_numbers<[1], [0], [0], [1], [0, 0, 1, 1], [], []>} : vector<144x32xbf16>, vector<32x512xbf16>, vector<144x512xf32> -> vector<144x512xf32>
    %c0_48 = arith.constant 0 : index
    %c0_49 = arith.constant 0 : index
    %c0_50 = arith.constant 0 : index
    %84 = vector.load %arg15[%c0_48, %c0_49, %c0_50] : memref<2x1x512xf32, #tpu.memory_space<vmem>>, vector<1x1x512xf32>
    %85 = vector.shape_cast %84 : vector<1x1x512xf32> to vector<1x512xf32>
    %86 = vector.broadcast %85 : vector<1x512xf32> to vector<144x512xf32>
    %87 = arith.addf %83, %86 : vector<144x512xf32>
    %cst_51 = arith.constant 5.000000e-01 : f32
    %88 = vector.broadcast %cst_51 : f32 to vector<144x512xf32>
    %89 = arith.mulf %88, %87 : vector<144x512xf32>
    %cst_52 = arith.constant 4.471500e-02 : f32
    %90 = vector.broadcast %cst_52 : f32 to vector<144x512xf32>
    %91 = arith.mulf %90, %87 : vector<144x512xf32>
    %92 = arith.mulf %91, %87 : vector<144x512xf32>
    %93 = arith.mulf %92, %87 : vector<144x512xf32>
    %94 = arith.addf %87, %93 : vector<144x512xf32>
    %cst_53 = arith.constant 0.797884583 : f32
    %95 = vector.broadcast %cst_53 : f32 to vector<144x512xf32>
    %96 = arith.mulf %95, %94 : vector<144x512xf32>
    %97 = math.tanh %96 : vector<144x512xf32>
    %cst_54 = arith.constant 1.000000e+00 : f32
    %98 = vector.broadcast %cst_54 : f32 to vector<144x512xf32>
    %99 = arith.addf %98, %97 : vector<144x512xf32>
    %100 = arith.mulf %89, %99 : vector<144x512xf32>
    %c0_55 = arith.constant 0 : index
    %c0_56 = arith.constant 0 : index
    %c0_57 = arith.constant 0 : index
    %101 = vector.load %arg16[%c0_55, %c0_56, %c0_57] : memref<2x512x32xbf16, #tpu.memory_space<vmem>>, vector<1x512x32xbf16>
    %102 = vector.shape_cast %101 : vector<1x512x32xbf16> to vector<512x32xbf16>
    %103 = arith.truncf %100 : vector<144x512xf32> to vector<144x512xbf16>
    %cst_58 = arith.constant dense<0.000000e+00> : vector<144x32xf32>
    %104 = tpu.matmul %103, %102, %cst_58 {dimension_numbers = #tpu.dot_dimension_numbers<[1], [0], [0], [1], [0, 0, 1, 1], [], []>} : vector<144x512xbf16>, vector<512x32xbf16>, vector<144x32xf32> -> vector<144x32xf32>
    %105 = arith.addf %79, %104 : vector<144x32xf32>
    %c0_59 = arith.constant 0 : index
    %c0_60 = arith.constant 0 : index
    %c0_61 = arith.constant 0 : index
    %106 = vector.load %arg17[%c0_59, %c0_60, %c0_61] : memref<2x1x32xf32, #tpu.memory_space<vmem>>, vector<1x1x32xf32>
    %107 = vector.shape_cast %106 : vector<1x1x32xf32> to vector<1x32xf32>
    %108 = vector.broadcast %107 : vector<1x32xf32> to vector<144x32xf32>
    %109 = arith.addf %105, %108 : vector<144x32xf32>
    %c0_62 = arith.constant 0 : index
    %c0_63 = arith.constant 0 : index
    %c0_64 = arith.constant 0 : index
    %110 = vector.load %arg18[%c0_62, %c0_63, %c0_64] : memref<2x1x32xf32, #tpu.memory_space<vmem>>, vector<1x1x32xf32>
    %111 = vector.shape_cast %110 : vector<1x1x32xf32> to vector<1x32xf32>
    %c0_65 = arith.constant 0 : index
    %c0_66 = arith.constant 0 : index
    %c0_67 = arith.constant 0 : index
    %112 = vector.load %arg19[%c0_65, %c0_66, %c0_67] : memref<2x1x32xf32, #tpu.memory_space<vmem>>, vector<1x1x32xf32>
    %113 = vector.shape_cast %112 : vector<1x1x32xf32> to vector<1x32xf32>
    %cst_68 = arith.constant dense<0.000000e+00> : vector<144xf32>
    %114 = vector.multi_reduction <add>, %109, %cst_68 [1] : vector<144x32xf32> to vector<144xf32>
    %115 = vector.shape_cast %114 : vector<144xf32> to vector<144x1xf32>
    %cst_69 = arith.constant 3.200000e+01 : f32
    %116 = vector.broadcast %cst_69 : f32 to vector<144x1xf32>
    %117 = arith.divf %115, %116 : vector<144x1xf32>
    %118 = vector.broadcast %117 : vector<144x1xf32> to vector<144x32xf32>
    %119 = arith.subf %109, %118 : vector<144x32xf32>
    %120 = arith.mulf %119, %119 : vector<144x32xf32>
    %cst_70 = arith.constant dense<0.000000e+00> : vector<144xf32>
    %121 = vector.multi_reduction <add>, %120, %cst_70 [1] : vector<144x32xf32> to vector<144xf32>
    %122 = vector.shape_cast %121 : vector<144xf32> to vector<144x1xf32>
    %cst_71 = arith.constant 3.200000e+01 : f32
    %123 = vector.broadcast %cst_71 : f32 to vector<144x1xf32>
    %124 = arith.divf %122, %123 : vector<144x1xf32>
    %125 = vector.broadcast %117 : vector<144x1xf32> to vector<144x32xf32>
    %126 = arith.subf %109, %125 : vector<144x32xf32>
    %cst_72 = arith.constant 9.99999996E-13 : f32
    %127 = vector.broadcast %cst_72 : f32 to vector<144x1xf32>
    %128 = arith.addf %124, %127 : vector<144x1xf32>
    %129 = math.rsqrt %128 : vector<144x1xf32>
    %130 = vector.broadcast %129 : vector<144x1xf32> to vector<144x32xf32>
    %131 = arith.mulf %126, %130 : vector<144x32xf32>
    %132 = vector.broadcast %111 : vector<1x32xf32> to vector<144x32xf32>
    %133 = arith.mulf %131, %132 : vector<144x32xf32>
    %134 = vector.broadcast %113 : vector<1x32xf32> to vector<144x32xf32>
    %135 = arith.addf %133, %134 : vector<144x32xf32>
    %c1 = arith.constant 1 : index
    %c0_73 = arith.constant 0 : index
    %c0_74 = arith.constant 0 : index
    %136 = vector.load %arg8[%c1, %c0_73, %c0_74] : memref<2x32x96xbf16, #tpu.memory_space<vmem>>, vector<1x32x96xbf16>
    %137 = vector.shape_cast %136 : vector<1x32x96xbf16> to vector<32x96xbf16>
    %138 = arith.truncf %135 : vector<144x32xf32> to vector<144x32xbf16>
    %cst_75 = arith.constant dense<0.000000e+00> : vector<144x96xf32>
    %139 = tpu.matmul %138, %137, %cst_75 {dimension_numbers = #tpu.dot_dimension_numbers<[1], [0], [0], [1], [0, 0, 1, 1], [], []>} : vector<144x32xbf16>, vector<32x96xbf16>, vector<144x96xf32> -> vector<144x96xf32>
    %c1_76 = arith.constant 1 : index
    %c0_77 = arith.constant 0 : index
    %c0_78 = arith.constant 0 : index
    %140 = vector.load %arg9[%c1_76, %c0_77, %c0_78] : memref<2x1x96xf32, #tpu.memory_space<vmem>>, vector<1x1x96xf32>
    %141 = vector.shape_cast %140 : vector<1x1x96xf32> to vector<1x96xf32>
    %142 = vector.broadcast %141 : vector<1x96xf32> to vector<144x96xf32>
    %143 = arith.addf %139, %142 : vector<144x96xf32>
    %144 = vector.extract_strided_slice %143 {offsets = [0, 0], sizes = [144, 32], strides = [1, 1]} : vector<144x96xf32> to vector<144x32xf32>
    %145 = vector.extract_strided_slice %143 {offsets = [0, 32], sizes = [144, 32], strides = [1, 1]} : vector<144x96xf32> to vector<144x32xf32>
    %146 = vector.extract_strided_slice %143 {offsets = [0, 64], sizes = [144, 32], strides = [1, 1]} : vector<144x96xf32> to vector<144x32xf32>
    %147 = arith.truncf %144 : vector<144x32xf32> to vector<144x32xbf16>
    %148 = arith.truncf %145 : vector<144x32xf32> to vector<144x32xbf16>
    %cst_79 = arith.constant dense<0.000000e+00> : vector<144x144xf32>
    %149 = tpu.matmul %147, %148, %cst_79 {dimension_numbers = #tpu.dot_dimension_numbers<[1], [1], [0], [0], [0, 0, 1, 0], [], []>} : vector<144x32xbf16>, vector<144x32xbf16>, vector<144x144xf32> -> vector<144x144xf32>
    %cst_80 = arith.constant 0.176776692 : f32
    %150 = vector.broadcast %cst_80 : f32 to vector<144x144xf32>
    %151 = arith.mulf %149, %150 : vector<144x144xf32>
    %152 = arith.addf %151, %15 : vector<144x144xf32>
    %cst_81 = arith.constant dense<0xFF800000> : vector<144xf32>
    %153 = vector.multi_reduction <maximumf>, %152, %cst_81 [1] : vector<144x144xf32> to vector<144xf32>
    %154 = vector.shape_cast %153 : vector<144xf32> to vector<144x1xf32>
    %155 = vector.broadcast %154 : vector<144x1xf32> to vector<144x144xf32>
    %156 = arith.subf %152, %155 : vector<144x144xf32>
    %157 = math.exp %156 : vector<144x144xf32>
    %cst_82 = arith.constant dense<0.000000e+00> : vector<144xf32>
    %158 = vector.multi_reduction <add>, %157, %cst_82 [1] : vector<144x144xf32> to vector<144xf32>
    %159 = vector.shape_cast %158 : vector<144xf32> to vector<144x1xf32>
    %160 = vector.broadcast %159 : vector<144x1xf32> to vector<144x144xf32>
    %161 = arith.divf %157, %160 : vector<144x144xf32>
    %162 = arith.truncf %161 : vector<144x144xf32> to vector<144x144xbf16>
    %163 = arith.truncf %146 : vector<144x32xf32> to vector<144x32xbf16>
    %cst_83 = arith.constant dense<0.000000e+00> : vector<144x32xf32>
    %164 = tpu.matmul %162, %163, %cst_83 {dimension_numbers = #tpu.dot_dimension_numbers<[1], [0], [0], [1], [0, 0, 1, 1], [], []>} : vector<144x144xbf16>, vector<144x32xbf16>, vector<144x32xf32> -> vector<144x32xf32>
    %c1_84 = arith.constant 1 : index
    %c0_85 = arith.constant 0 : index
    %c0_86 = arith.constant 0 : index
    %165 = vector.load %arg10[%c1_84, %c0_85, %c0_86] : memref<2x32x32xbf16, #tpu.memory_space<vmem>>, vector<1x32x32xbf16>
    %166 = vector.shape_cast %165 : vector<1x32x32xbf16> to vector<32x32xbf16>
    %167 = arith.truncf %164 : vector<144x32xf32> to vector<144x32xbf16>
    %cst_87 = arith.constant dense<0.000000e+00> : vector<144x32xf32>
    %168 = tpu.matmul %167, %166, %cst_87 {dimension_numbers = #tpu.dot_dimension_numbers<[1], [0], [0], [1], [0, 0, 1, 1], [], []>} : vector<144x32xbf16>, vector<32x32xbf16>, vector<144x32xf32> -> vector<144x32xf32>
    %c1_88 = arith.constant 1 : index
    %c0_89 = arith.constant 0 : index
    %c0_90 = arith.constant 0 : index
    %169 = vector.load %arg11[%c1_88, %c0_89, %c0_90] : memref<2x1x32xf32, #tpu.memory_space<vmem>>, vector<1x1x32xf32>
    %170 = vector.shape_cast %169 : vector<1x1x32xf32> to vector<1x32xf32>
    %171 = vector.broadcast %170 : vector<1x32xf32> to vector<144x32xf32>
    %172 = arith.addf %168, %171 : vector<144x32xf32>
    %173 = arith.addf %135, %172 : vector<144x32xf32>
    %c1_91 = arith.constant 1 : index
    %c0_92 = arith.constant 0 : index
    %c0_93 = arith.constant 0 : index
    %174 = vector.load %arg12[%c1_91, %c0_92, %c0_93] : memref<2x1x32xf32, #tpu.memory_space<vmem>>, vector<1x1x32xf32>
    %175 = vector.shape_cast %174 : vector<1x1x32xf32> to vector<1x32xf32>
    %c1_94 = arith.constant 1 : index
    %c0_95 = arith.constant 0 : index
    %c0_96 = arith.constant 0 : index
    %176 = vector.load %arg13[%c1_94, %c0_95, %c0_96] : memref<2x1x32xf32, #tpu.memory_space<vmem>>, vector<1x1x32xf32>
    %177 = vector.shape_cast %176 : vector<1x1x32xf32> to vector<1x32xf32>
    %cst_97 = arith.constant dense<0.000000e+00> : vector<144xf32>
    %178 = vector.multi_reduction <add>, %173, %cst_97 [1] : vector<144x32xf32> to vector<144xf32>
    %179 = vector.shape_cast %178 : vector<144xf32> to vector<144x1xf32>
    %cst_98 = arith.constant 3.200000e+01 : f32
    %180 = vector.broadcast %cst_98 : f32 to vector<144x1xf32>
    %181 = arith.divf %179, %180 : vector<144x1xf32>
    %182 = vector.broadcast %181 : vector<144x1xf32> to vector<144x32xf32>
    %183 = arith.subf %173, %182 : vector<144x32xf32>
    %184 = arith.mulf %183, %183 : vector<144x32xf32>
    %cst_99 = arith.constant dense<0.000000e+00> : vector<144xf32>
    %185 = vector.multi_reduction <add>, %184, %cst_99 [1] : vector<144x32xf32> to vector<144xf32>
    %186 = vector.shape_cast %185 : vector<144xf32> to vector<144x1xf32>
    %cst_100 = arith.constant 3.200000e+01 : f32
    %187 = vector.broadcast %cst_100 : f32 to vector<144x1xf32>
    %188 = arith.divf %186, %187 : vector<144x1xf32>
    %189 = vector.broadcast %181 : vector<144x1xf32> to vector<144x32xf32>
    %190 = arith.subf %173, %189 : vector<144x32xf32>
    %cst_101 = arith.constant 9.99999996E-13 : f32
    %191 = vector.broadcast %cst_101 : f32 to vector<144x1xf32>
    %192 = arith.addf %188, %191 : vector<144x1xf32>
    %193 = math.rsqrt %192 : vector<144x1xf32>
    %194 = vector.broadcast %193 : vector<144x1xf32> to vector<144x32xf32>
    %195 = arith.mulf %190, %194 : vector<144x32xf32>
    %196 = vector.broadcast %175 : vector<1x32xf32> to vector<144x32xf32>
    %197 = arith.mulf %195, %196 : vector<144x32xf32>
    %198 = vector.broadcast %177 : vector<1x32xf32> to vector<144x32xf32>
    %199 = arith.addf %197, %198 : vector<144x32xf32>
    %c1_102 = arith.constant 1 : index
    %c0_103 = arith.constant 0 : index
    %c0_104 = arith.constant 0 : index
    %200 = vector.load %arg14[%c1_102, %c0_103, %c0_104] : memref<2x32x512xbf16, #tpu.memory_space<vmem>>, vector<1x32x512xbf16>
    %201 = vector.shape_cast %200 : vector<1x32x512xbf16> to vector<32x512xbf16>
    %202 = arith.truncf %199 : vector<144x32xf32> to vector<144x32xbf16>
    %cst_105 = arith.constant dense<0.000000e+00> : vector<144x512xf32>
    %203 = tpu.matmul %202, %201, %cst_105 {dimension_numbers = #tpu.dot_dimension_numbers<[1], [0], [0], [1], [0, 0, 1, 1], [], []>} : vector<144x32xbf16>, vector<32x512xbf16>, vector<144x512xf32> -> vector<144x512xf32>
    %c1_106 = arith.constant 1 : index
    %c0_107 = arith.constant 0 : index
    %c0_108 = arith.constant 0 : index
    %204 = vector.load %arg15[%c1_106, %c0_107, %c0_108] : memref<2x1x512xf32, #tpu.memory_space<vmem>>, vector<1x1x512xf32>
    %205 = vector.shape_cast %204 : vector<1x1x512xf32> to vector<1x512xf32>
    %206 = vector.broadcast %205 : vector<1x512xf32> to vector<144x512xf32>
    %207 = arith.addf %203, %206 : vector<144x512xf32>
    %cst_109 = arith.constant 5.000000e-01 : f32
    %208 = vector.broadcast %cst_109 : f32 to vector<144x512xf32>
    %209 = arith.mulf %208, %207 : vector<144x512xf32>
    %cst_110 = arith.constant 4.471500e-02 : f32
    %210 = vector.broadcast %cst_110 : f32 to vector<144x512xf32>
    %211 = arith.mulf %210, %207 : vector<144x512xf32>
    %212 = arith.mulf %211, %207 : vector<144x512xf32>
    %213 = arith.mulf %212, %207 : vector<144x512xf32>
    %214 = arith.addf %207, %213 : vector<144x512xf32>
    %cst_111 = arith.constant 0.797884583 : f32
    %215 = vector.broadcast %cst_111 : f32 to vector<144x512xf32>
    %216 = arith.mulf %215, %214 : vector<144x512xf32>
    %217 = math.tanh %216 : vector<144x512xf32>
    %cst_112 = arith.constant 1.000000e+00 : f32
    %218 = vector.broadcast %cst_112 : f32 to vector<144x512xf32>
    %219 = arith.addf %218, %217 : vector<144x512xf32>
    %220 = arith.mulf %209, %219 : vector<144x512xf32>
    %c1_113 = arith.constant 1 : index
    %c0_114 = arith.constant 0 : index
    %c0_115 = arith.constant 0 : index
    %221 = vector.load %arg16[%c1_113, %c0_114, %c0_115] : memref<2x512x32xbf16, #tpu.memory_space<vmem>>, vector<1x512x32xbf16>
    %222 = vector.shape_cast %221 : vector<1x512x32xbf16> to vector<512x32xbf16>
    %223 = arith.truncf %220 : vector<144x512xf32> to vector<144x512xbf16>
    %cst_116 = arith.constant dense<0.000000e+00> : vector<144x32xf32>
    %224 = tpu.matmul %223, %222, %cst_116 {dimension_numbers = #tpu.dot_dimension_numbers<[1], [0], [0], [1], [0, 0, 1, 1], [], []>} : vector<144x512xbf16>, vector<512x32xbf16>, vector<144x32xf32> -> vector<144x32xf32>
    %225 = arith.addf %199, %224 : vector<144x32xf32>
    %c1_117 = arith.constant 1 : index
    %c0_118 = arith.constant 0 : index
    %c0_119 = arith.constant 0 : index
    %226 = vector.load %arg17[%c1_117, %c0_118, %c0_119] : memref<2x1x32xf32, #tpu.memory_space<vmem>>, vector<1x1x32xf32>
    %227 = vector.shape_cast %226 : vector<1x1x32xf32> to vector<1x32xf32>
    %228 = vector.broadcast %227 : vector<1x32xf32> to vector<144x32xf32>
    %229 = arith.addf %225, %228 : vector<144x32xf32>
    %c1_120 = arith.constant 1 : index
    %c0_121 = arith.constant 0 : index
    %c0_122 = arith.constant 0 : index
    %230 = vector.load %arg18[%c1_120, %c0_121, %c0_122] : memref<2x1x32xf32, #tpu.memory_space<vmem>>, vector<1x1x32xf32>
    %231 = vector.shape_cast %230 : vector<1x1x32xf32> to vector<1x32xf32>
    %c1_123 = arith.constant 1 : index
    %c0_124 = arith.constant 0 : index
    %c0_125 = arith.constant 0 : index
    %232 = vector.load %arg19[%c1_123, %c0_124, %c0_125] : memref<2x1x32xf32, #tpu.memory_space<vmem>>, vector<1x1x32xf32>
    %233 = vector.shape_cast %232 : vector<1x1x32xf32> to vector<1x32xf32>
    %cst_126 = arith.constant dense<0.000000e+00> : vector<144xf32>
    %234 = vector.multi_reduction <add>, %229, %cst_126 [1] : vector<144x32xf32> to vector<144xf32>
    %235 = vector.shape_cast %234 : vector<144xf32> to vector<144x1xf32>
    %cst_127 = arith.constant 3.200000e+01 : f32
    %236 = vector.broadcast %cst_127 : f32 to vector<144x1xf32>
    %237 = arith.divf %235, %236 : vector<144x1xf32>
    %238 = vector.broadcast %237 : vector<144x1xf32> to vector<144x32xf32>
    %239 = arith.subf %229, %238 : vector<144x32xf32>
    %240 = arith.mulf %239, %239 : vector<144x32xf32>
    %cst_128 = arith.constant dense<0.000000e+00> : vector<144xf32>
    %241 = vector.multi_reduction <add>, %240, %cst_128 [1] : vector<144x32xf32> to vector<144xf32>
    %242 = vector.shape_cast %241 : vector<144xf32> to vector<144x1xf32>
    %cst_129 = arith.constant 3.200000e+01 : f32
    %243 = vector.broadcast %cst_129 : f32 to vector<144x1xf32>
    %244 = arith.divf %242, %243 : vector<144x1xf32>
    %245 = vector.broadcast %237 : vector<144x1xf32> to vector<144x32xf32>
    %246 = arith.subf %229, %245 : vector<144x32xf32>
    %cst_130 = arith.constant 9.99999996E-13 : f32
    %247 = vector.broadcast %cst_130 : f32 to vector<144x1xf32>
    %248 = arith.addf %244, %247 : vector<144x1xf32>
    %249 = math.rsqrt %248 : vector<144x1xf32>
    %250 = vector.broadcast %249 : vector<144x1xf32> to vector<144x32xf32>
    %251 = arith.mulf %246, %250 : vector<144x32xf32>
    %252 = vector.broadcast %231 : vector<1x32xf32> to vector<144x32xf32>
    %253 = arith.mulf %251, %252 : vector<144x32xf32>
    %254 = vector.broadcast %233 : vector<1x32xf32> to vector<144x32xf32>
    %255 = arith.addf %253, %254 : vector<144x32xf32>
    %256 = vector.extract_strided_slice %255 {offsets = [0, 0], sizes = [128, 32], strides = [1, 1]} : vector<144x32xf32> to vector<128x32xf32>
    %257 = arith.mulf %256, %256 : vector<128x32xf32>
    %cst_131 = arith.constant dense<0.000000e+00> : vector<128xf32>
    %258 = vector.multi_reduction <add>, %257, %cst_131 [1] : vector<128x32xf32> to vector<128xf32>
    %259 = vector.shape_cast %258 : vector<128xf32> to vector<128x1xf32>
    %c0_132 = arith.constant 0 : index
    %c0_133 = arith.constant 0 : index
    %260 = vector.load %arg20[%c0_132, %c0_133] : memref<64x32xf32, #tpu.memory_space<vmem>>, vector<64x32xf32>
    %cst_134 = arith.constant dense<0.000000e+00> : vector<128x64xf32>
    %261 = tpu.matmul %256, %260, %cst_134 {dimension_numbers = #tpu.dot_dimension_numbers<[1], [1], [0], [0], [0, 0, 1, 0], [], []>} : vector<128x32xf32>, vector<64x32xf32>, vector<128x64xf32> -> vector<128x64xf32>
    %c0_135 = arith.constant 0 : index
    %c0_136 = arith.constant 0 : index
    %262 = vector.load %arg21[%c0_135, %c0_136] : memref<1x64xf32, #tpu.memory_space<vmem>>, vector<1x64xf32>
    %263 = vector.broadcast %259 : vector<128x1xf32> to vector<128x64xf32>
    %264 = vector.broadcast %262 : vector<1x64xf32> to vector<128x64xf32>
    %265 = arith.addf %263, %264 : vector<128x64xf32>
    %cst_137 = arith.constant 2.000000e+00 : f32
    %266 = vector.broadcast %cst_137 : f32 to vector<128x64xf32>
    %267 = arith.mulf %266, %261 : vector<128x64xf32>
    %268 = arith.subf %265, %267 : vector<128x64xf32>
    %269 = tpu.iota {dimensions = array<i32: 1>} : vector<128x64xi32>
    %270 = arith.sitofp %269 : vector<128x64xi32> to vector<128x64xf32>
    %cst_138 = arith.constant dense<0x7F800000> : vector<128xf32>
    %271 = vector.multi_reduction <minimumf>, %268, %cst_138 [1] : vector<128x64xf32> to vector<128xf32>
    %272 = vector.shape_cast %271 : vector<128xf32> to vector<128x1xf32>
    %273 = vector.broadcast %272 : vector<128x1xf32> to vector<128x64xf32>
    %274 = arith.cmpf oeq, %268, %273 : vector<128x64xf32>
    %cst_139 = arith.constant 6.400000e+01 : f32
    %275 = vector.broadcast %cst_139 : f32 to vector<128x64xf32>
    %276 = arith.select %274, %270, %275 : vector<128x64xi1>, vector<128x64xf32>
    %cst_140 = arith.constant dense<0x7F800000> : vector<128xf32>
    %277 = vector.multi_reduction <minimumf>, %276, %cst_140 [1] : vector<128x64xf32> to vector<128xf32>
    %278 = vector.shape_cast %277 : vector<128xf32> to vector<128x1xf32>
    %279 = vector.broadcast %278 : vector<128x1xf32> to vector<128x64xf32>
    %280 = arith.cmpf oeq, %270, %279 : vector<128x64xf32>
    %281 = arith.extui %280 : vector<128x64xi1> to vector<128x64xi32>
    %282 = arith.sitofp %281 : vector<128x64xi32> to vector<128x64xf32>
    %c0_141 = arith.constant 0 : index
    %c0_142 = arith.constant 0 : index
    %283 = vector.load %arg20[%c0_141, %c0_142] : memref<64x32xf32, #tpu.memory_space<vmem>>, vector<64x32xf32>
    %cst_143 = arith.constant dense<0.000000e+00> : vector<128x32xf32>
    %284 = tpu.matmul %282, %283, %cst_143 {dimension_numbers = #tpu.dot_dimension_numbers<[1], [0], [0], [1], [0, 0, 1, 1], [], []>} : vector<128x64xf32>, vector<64x32xf32>, vector<128x32xf32> -> vector<128x32xf32>
    %285 = arith.subf %284, %256 : vector<128x32xf32>
    %286 = arith.mulf %285, %285 : vector<128x32xf32>
    %287 = vector.shape_cast %286 : vector<128x32xf32> to vector<1x128x32xf32>
    %cst_144 = arith.constant dense<0.000000e+00> : vector<1xf32>
    %288 = vector.multi_reduction <add>, %287, %cst_144 [1, 2] : vector<1x128x32xf32> to vector<1xf32>
    %289 = vector.shape_cast %288 : vector<1xf32> to vector<1x1x1xf32>
    %290 = vector.extract %289[0, 0, 0] : f32 from vector<1x1x1xf32>
    %c0_145 = arith.constant 0 : index
    %c0_146 = arith.constant 0 : index
    %291 = vector.load %arg23[%c0_145, %c0_146] : memref<128x128xf32, #tpu.memory_space<vmem>>, vector<128x128xf32>
    %292 = arith.truncf %291 : vector<128x128xf32> to vector<128x128xbf16>
    %293 = arith.truncf %284 : vector<128x32xf32> to vector<128x32xbf16>
    %cst_147 = arith.constant dense<0.000000e+00> : vector<128x32xf32>
    %294 = tpu.matmul %292, %293, %cst_147 {dimension_numbers = #tpu.dot_dimension_numbers<[1], [0], [0], [1], [0, 0, 1, 1], [], []>} : vector<128x128xbf16>, vector<128x32xbf16>, vector<128x32xf32> -> vector<128x32xf32>
    %c0_148 = arith.constant 0 : index
    %c0_149 = arith.constant 0 : index
    %295 = vector.load %arg24[%c0_148, %c0_149] : memref<128x1xf32, #tpu.memory_space<vmem>>, vector<128x1xf32>
    %296 = vector.broadcast %295 : vector<128x1xf32> to vector<128x32xf32>
    %297 = arith.addf %294, %296 : vector<128x32xf32>
    %c0_150 = arith.constant 0 : index
    %c0_151 = arith.constant 0 : index
    %298 = vector.load %arg29[%c0_150, %c0_151] : memref<32x192xbf16, #tpu.memory_space<vmem>>, vector<32x192xbf16>
    %299 = arith.truncf %297 : vector<128x32xf32> to vector<128x32xbf16>
    %cst_152 = arith.constant dense<0.000000e+00> : vector<128x192xf32>
    %300 = tpu.matmul %299, %298, %cst_152 {dimension_numbers = #tpu.dot_dimension_numbers<[1], [0], [0], [1], [0, 0, 1, 1], [], []>} : vector<128x32xbf16>, vector<32x192xbf16>, vector<128x192xf32> -> vector<128x192xf32>
    %c0_153 = arith.constant 0 : index
    %c0_154 = arith.constant 0 : index
    %301 = vector.load %arg30[%c0_153, %c0_154] : memref<1x192xf32, #tpu.memory_space<vmem>>, vector<1x192xf32>
    %302 = vector.broadcast %301 : vector<1x192xf32> to vector<128x192xf32>
    %303 = arith.addf %300, %302 : vector<128x192xf32>
    %304 = arith.subf %303, %0 : vector<128x192xf32>
    %305 = arith.mulf %304, %304 : vector<128x192xf32>
    %306 = vector.shape_cast %305 : vector<128x192xf32> to vector<1x128x192xf32>
    %cst_155 = arith.constant dense<0.000000e+00> : vector<1xf32>
    %307 = vector.multi_reduction <add>, %306, %cst_155 [1, 2] : vector<1x128x192xf32> to vector<1xf32>
    %308 = vector.shape_cast %307 : vector<1xf32> to vector<1x1x1xf32>
    %309 = vector.extract %308[0, 0, 0] : f32 from vector<1x1x1xf32>
    %c0_156 = arith.constant 0 : index
    %c0_157 = arith.constant 0 : index
    %310 = vector.load %arg25[%c0_156, %c0_157] : memref<64x128xf32, #tpu.memory_space<vmem>>, vector<64x128xf32>
    %311 = arith.truncf %310 : vector<64x128xf32> to vector<64x128xbf16>
    %312 = arith.truncf %284 : vector<128x32xf32> to vector<128x32xbf16>
    %cst_158 = arith.constant dense<0.000000e+00> : vector<64x32xf32>
    %313 = tpu.matmul %311, %312, %cst_158 {dimension_numbers = #tpu.dot_dimension_numbers<[1], [0], [0], [1], [0, 0, 1, 1], [], []>} : vector<64x128xbf16>, vector<128x32xbf16>, vector<64x32xf32> -> vector<64x32xf32>
    %c0_159 = arith.constant 0 : index
    %c0_160 = arith.constant 0 : index
    %314 = vector.load %arg26[%c0_159, %c0_160] : memref<64x1xf32, #tpu.memory_space<vmem>>, vector<64x1xf32>
    %315 = vector.broadcast %314 : vector<64x1xf32> to vector<64x32xf32>
    %316 = arith.addf %313, %315 : vector<64x32xf32>
    %cst_161 = arith.constant 0.000000e+00 : f32
    %317 = vector.broadcast %cst_161 : f32 to vector<64x32xf32>
    %318 = arith.maximumf %316, %317 : vector<64x32xf32>
    %c0_162 = arith.constant 0 : index
    %c0_163 = arith.constant 0 : index
    %319 = vector.load %arg27[%c0_162, %c0_163] : memref<16x64xf32, #tpu.memory_space<vmem>>, vector<16x64xf32>
    %320 = arith.truncf %319 : vector<16x64xf32> to vector<16x64xbf16>
    %321 = arith.truncf %318 : vector<64x32xf32> to vector<64x32xbf16>
    %cst_164 = arith.constant dense<0.000000e+00> : vector<16x32xf32>
    %322 = tpu.matmul %320, %321, %cst_164 {dimension_numbers = #tpu.dot_dimension_numbers<[1], [0], [0], [1], [0, 0, 1, 1], [], []>} : vector<16x64xbf16>, vector<64x32xbf16>, vector<16x32xf32> -> vector<16x32xf32>
    %c0_165 = arith.constant 0 : index
    %c0_166 = arith.constant 0 : index
    %323 = vector.load %arg28[%c0_165, %c0_166] : memref<16x1xf32, #tpu.memory_space<vmem>>, vector<16x1xf32>
    %324 = vector.broadcast %323 : vector<16x1xf32> to vector<16x32xf32>
    %325 = arith.addf %322, %324 : vector<16x32xf32>
    %c0_167 = arith.constant 0 : index
    %c0_168 = arith.constant 0 : index
    %326 = vector.load %arg31[%c0_167, %c0_168] : memref<32x1024xbf16, #tpu.memory_space<vmem>>, vector<32x1024xbf16>
    %327 = arith.truncf %325 : vector<16x32xf32> to vector<16x32xbf16>
    %cst_169 = arith.constant dense<0.000000e+00> : vector<16x1024xf32>
    %328 = tpu.matmul %327, %326, %cst_169 {dimension_numbers = #tpu.dot_dimension_numbers<[1], [0], [0], [1], [0, 0, 1, 1], [], []>} : vector<16x32xbf16>, vector<32x1024xbf16>, vector<16x1024xf32> -> vector<16x1024xf32>
    %c0_170 = arith.constant 0 : index
    %c0_171 = arith.constant 0 : index
    %329 = vector.load %arg32[%c0_170, %c0_171] : memref<1x1024xf32, #tpu.memory_space<vmem>>, vector<1x1024xf32>
    %330 = vector.broadcast %329 : vector<1x1024xf32> to vector<16x1024xf32>
    %331 = arith.addf %328, %330 : vector<16x1024xf32>
    %332 = vector.extract_strided_slice %331 {offsets = [0, 0], sizes = [16, 128], strides = [1, 1]} : vector<16x1024xf32> to vector<16x128xf32>
    %333 = vector.extract_strided_slice %331 {offsets = [0, 128], sizes = [16, 128], strides = [1, 1]} : vector<16x1024xf32> to vector<16x128xf32>
    %334 = vector.extract_strided_slice %331 {offsets = [0, 256], sizes = [16, 128], strides = [1, 1]} : vector<16x1024xf32> to vector<16x128xf32>
    %335 = vector.extract_strided_slice %331 {offsets = [0, 384], sizes = [16, 128], strides = [1, 1]} : vector<16x1024xf32> to vector<16x128xf32>
    %336 = vector.extract_strided_slice %331 {offsets = [0, 512], sizes = [16, 128], strides = [1, 1]} : vector<16x1024xf32> to vector<16x128xf32>
    %337 = vector.extract_strided_slice %331 {offsets = [0, 640], sizes = [16, 128], strides = [1, 1]} : vector<16x1024xf32> to vector<16x128xf32>
    %338 = vector.extract_strided_slice %331 {offsets = [0, 768], sizes = [16, 128], strides = [1, 1]} : vector<16x1024xf32> to vector<16x128xf32>
    %339 = vector.extract_strided_slice %331 {offsets = [0, 896], sizes = [16, 128], strides = [1, 1]} : vector<16x1024xf32> to vector<16x128xf32>
    %340 = tpu.concatenate %332, %333, %334, %335, %336, %337, %338, %339 in 0 : vector<16x128xf32>, vector<16x128xf32>, vector<16x128xf32>, vector<16x128xf32>, vector<16x128xf32>, vector<16x128xf32>, vector<16x128xf32>, vector<16x128xf32> -> vector<128x128xf32>
    %c0_172 = arith.constant 0 : index
    %c0_173 = arith.constant 0 : index
    %c0_174 = arith.constant 0 : index
    %341 = vector.load %arg3[%c0_172, %c0_173, %c0_174] : memref<1x128x1xi32, #tpu.memory_space<vmem>>, vector<1x128x1xi32>
    %342 = vector.shape_cast %341 : vector<1x128x1xi32> to vector<128x1xi32>
    %343 = arith.sitofp %342 : vector<128x1xi32> to vector<128x1xf32>
    %cst_175 = arith.constant dense<0xFF800000> : vector<128xf32>
    %344 = vector.multi_reduction <maximumf>, %340, %cst_175 [1] : vector<128x128xf32> to vector<128xf32>
    %345 = vector.shape_cast %344 : vector<128xf32> to vector<128x1xf32>
    %346 = vector.broadcast %345 : vector<128x1xf32> to vector<128x128xf32>
    %347 = arith.subf %340, %346 : vector<128x128xf32>
    %348 = math.exp %347 : vector<128x128xf32>
    %cst_176 = arith.constant dense<0.000000e+00> : vector<128xf32>
    %349 = vector.multi_reduction <add>, %348, %cst_176 [1] : vector<128x128xf32> to vector<128xf32>
    %350 = vector.shape_cast %349 : vector<128xf32> to vector<128x1xf32>
    %351 = math.log %350 : vector<128x1xf32>
    %352 = arith.addf %351, %345 : vector<128x1xf32>
    %353 = tpu.iota {dimensions = array<i32: 1>} : vector<128x128xi32>
    %354 = arith.sitofp %353 : vector<128x128xi32> to vector<128x128xf32>
    %355 = vector.broadcast %343 : vector<128x1xf32> to vector<128x128xf32>
    %356 = arith.cmpf oeq, %354, %355 : vector<128x128xf32>
    %cst_177 = arith.constant 0.000000e+00 : f32
    %357 = vector.broadcast %cst_177 : f32 to vector<128x128xf32>
    %358 = arith.select %356, %340, %357 : vector<128x128xi1>, vector<128x128xf32>
    %cst_178 = arith.constant dense<0.000000e+00> : vector<128xf32>
    %359 = vector.multi_reduction <add>, %358, %cst_178 [1] : vector<128x128xf32> to vector<128xf32>
    %360 = vector.shape_cast %359 : vector<128xf32> to vector<128x1xf32>
    %361 = arith.subf %352, %360 : vector<128x1xf32>
    %362 = vector.shape_cast %361 : vector<128x1xf32> to vector<1x128x1xf32>
    %cst_179 = arith.constant dense<0.000000e+00> : vector<1xf32>
    %363 = vector.multi_reduction <add>, %362, %cst_179 [1, 2] : vector<1x128x1xf32> to vector<1xf32>
    %364 = vector.shape_cast %363 : vector<1xf32> to vector<1x1x1xf32>
    %365 = vector.extract %364[0, 0, 0] : f32 from vector<1x1x1xf32>
    %366 = vector.broadcast %345 : vector<128x1xf32> to vector<128x128xf32>
    %367 = arith.cmpf oeq, %340, %366 : vector<128x128xf32>
    %cst_180 = arith.constant 1.280000e+02 : f32
    %368 = vector.broadcast %cst_180 : f32 to vector<128x128xf32>
    %369 = arith.select %367, %354, %368 : vector<128x128xi1>, vector<128x128xf32>
    %cst_181 = arith.constant dense<0x7F800000> : vector<128xf32>
    %370 = vector.multi_reduction <minimumf>, %369, %cst_181 [1] : vector<128x128xf32> to vector<128xf32>
    %371 = vector.shape_cast %370 : vector<128xf32> to vector<128x1xf32>
    %372 = arith.cmpf oeq, %371, %343 : vector<128x1xf32>
    %373 = arith.extui %372 : vector<128x1xi1> to vector<128x1xi32>
    %374 = arith.sitofp %373 : vector<128x1xi32> to vector<128x1xf32>
    %375 = vector.shape_cast %374 : vector<128x1xf32> to vector<1x128x1xf32>
    %cst_182 = arith.constant dense<0.000000e+00> : vector<1xf32>
    %376 = vector.multi_reduction <add>, %375, %cst_182 [1, 2] : vector<1x128x1xf32> to vector<1xf32>
    %377 = vector.shape_cast %376 : vector<1xf32> to vector<1x1x1xf32>
    %378 = vector.extract %377[0, 0, 0] : f32 from vector<1x1x1xf32>
    %379 = tpu.iota {dimensions = array<i32: 1>} : vector<1x8xi32>
    %c0_i32 = arith.constant 0 : i32
    %380 = vector.broadcast %c0_i32 : i32 to vector<1x8xi32>
    %381 = arith.cmpi eq, %379, %380 : vector<1x8xi32>
    %cst_183 = arith.constant 0.000000e+00 : f32
    %382 = vector.broadcast %290 : f32 to vector<1x8xf32>
    %383 = vector.broadcast %cst_183 : f32 to vector<1x8xf32>
    %384 = arith.select %381, %382, %383 : vector<1x8xi1>, vector<1x8xf32>
    %c1_i32 = arith.constant 1 : i32
    %385 = vector.broadcast %c1_i32 : i32 to vector<1x8xi32>
    %386 = arith.cmpi eq, %379, %385 : vector<1x8xi32>
    %387 = vector.broadcast %309 : f32 to vector<1x8xf32>
    %388 = arith.select %386, %387, %384 : vector<1x8xi1>, vector<1x8xf32>
    %c2_i32 = arith.constant 2 : i32
    %389 = vector.broadcast %c2_i32 : i32 to vector<1x8xi32>
    %390 = arith.cmpi eq, %379, %389 : vector<1x8xi32>
    %391 = vector.broadcast %365 : f32 to vector<1x8xf32>
    %392 = arith.select %390, %391, %388 : vector<1x8xi1>, vector<1x8xf32>
    %c3_i32 = arith.constant 3 : i32
    %393 = vector.broadcast %c3_i32 : i32 to vector<1x8xi32>
    %394 = arith.cmpi eq, %379, %393 : vector<1x8xi32>
    %395 = vector.broadcast %378 : f32 to vector<1x8xf32>
    %396 = arith.select %394, %395, %392 : vector<1x8xi1>, vector<1x8xf32>
    %c0_184 = arith.constant 0 : index
    %c0_185 = arith.constant 0 : index
    %c0_186 = arith.constant 0 : index
    %397 = vector.load %arg33[%c0_184, %c0_185, %c0_186] : memref<1x1x8xf32, #tpu.memory_space<vmem>>, vector<1x1x8xf32>
    %398 = vector.shape_cast %397 : vector<1x1x8xf32> to vector<1x8xf32>
    %399 = vector.shape_cast %396 : vector<1x8xf32> to vector<1x1x8xf32>
    tpu.vector_store %arg33[%c0_184, %c0_185, %c0_186], %399 {strides = array<i32>} : memref<1x1x8xf32, #tpu.memory_space<vmem>>, vector<1x1x8xf32>,
    return
  }
  func.func @transform_0(%arg0: i32) -> (i32, i32) {
    %c0_i32 = arith.constant 0 : i32
    %c0_i32_0 = arith.constant 0 : i32
    return %arg0, %c0_i32 : i32, i32
  }
  func.func @transform_1(%arg0: i32) -> (i32, i32) {
    %c0_i32 = arith.constant 0 : i32
    %c0_i32_0 = arith.constant 0 : i32
    return %arg0, %c0_i32 : i32, i32
  }
  func.func @transform_2(%arg0: i32) -> (i32, i32, i32) {
    %c0_i32 = arith.constant 0 : i32
    %c0_i32_0 = arith.constant 0 : i32
    %c0_i32_1 = arith.constant 0 : i32
    return %arg0, %c0_i32, %c0_i32_0 : i32, i32, i32
  }
  func.func @transform_3(%arg0: i32) -> (i32, i32) {
    %c0_i32 = arith.constant 0 : i32
    %c0_i32_0 = arith.constant 0 : i32
    %c0_i32_1 = arith.constant 0 : i32
    return %c0_i32, %c0_i32_0 : i32, i32
  }
  func.func @transform_4(%arg0: i32) -> (i32, i32) {
    %c0_i32 = arith.constant 0 : i32
    %c0_i32_0 = arith.constant 0 : i32
    %c0_i32_1 = arith.constant 0 : i32
    return %c0_i32, %c0_i32_0 : i32, i32
  }
  func.func @transform_5(%arg0: i32) -> (i32, i32) {
    %c0_i32 = arith.constant 0 : i32
    %c0_i32_0 = arith.constant 0 : i32
    %c0_i32_1 = arith.constant 0 : i32
    return %c0_i32, %c0_i32_0 : i32, i32
  }
  func.func @transform_6(%arg0: i32) -> (i32, i32) {
    %c0_i32 = arith.constant 0 : i32
    %c0_i32_0 = arith.constant 0 : i32
    %c0_i32_1 = arith.constant 0 : i32
    return %c0_i32, %c0_i32_0 : i32, i32
  }
  func.func @transform_7(%arg0: i32) -> (i32, i32, i32) {
    %c0_i32 = arith.constant 0 : i32
    %c0_i32_0 = arith.constant 0 : i32
    %c0_i32_1 = arith.constant 0 : i32
    %c0_i32_2 = arith.constant 0 : i32
    return %c0_i32, %c0_i32_0, %c0_i32_1 : i32, i32, i32
  }
  func.func @transform_8(%arg0: i32) -> (i32, i32, i32) {
    %c0_i32 = arith.constant 0 : i32
    %c0_i32_0 = arith.constant 0 : i32
    %c0_i32_1 = arith.constant 0 : i32
    %c0_i32_2 = arith.constant 0 : i32
    return %c0_i32, %c0_i32_0, %c0_i32_1 : i32, i32, i32
  }
  func.func @transform_9(%arg0: i32) -> (i32, i32, i32) {
    %c0_i32 = arith.constant 0 : i32
    %c0_i32_0 = arith.constant 0 : i32
    %c0_i32_1 = arith.constant 0 : i32
    %c0_i32_2 = arith.constant 0 : i32
    return %c0_i32, %c0_i32_0, %c0_i32_1 : i32, i32, i32
  }
  func.func @transform_10(%arg0: i32) -> (i32, i32, i32) {
    %c0_i32 = arith.constant 0 : i32
    %c0_i32_0 = arith.constant 0 : i32
    %c0_i32_1 = arith.constant 0 : i32
    %c0_i32_2 = arith.constant 0 : i32
    return %c0_i32, %c0_i32_0, %c0_i32_1 : i32, i32, i32
  }
  func.func @transform_11(%arg0: i32) -> (i32, i32, i32) {
    %c0_i32 = arith.constant 0 : i32
    %c0_i32_0 = arith.constant 0 : i32
    %c0_i32_1 = arith.constant 0 : i32
    %c0_i32_2 = arith.constant 0 : i32
    return %c0_i32, %c0_i32_0, %c0_i32_1 : i32, i32, i32
  }
  func.func @transform_12(%arg0: i32) -> (i32, i32, i32) {
    %c0_i32 = arith.constant 0 : i32
    %c0_i32_0 = arith.constant 0 : i32
    %c0_i32_1 = arith.constant 0 : i32
    %c0_i32_2 = arith.constant 0 : i32
    return %c0_i32, %c0_i32_0, %c0_i32_1 : i32, i32, i32
  }
  func.func @transform_13(%arg0: i32) -> (i32, i32, i32) {
    %c0_i32 = arith.constant 0 : i32
    %c0_i32_0 = arith.constant 0 : i32
    %c0_i32_1 = arith.constant 0 : i32
    %c0_i32_2 = arith.constant 0 : i32
    return %c0_i32, %c0_i32_0, %c0_i32_1 : i32, i32, i32
  }
  func.func @transform_14(%arg0: i32) -> (i32, i32, i32) {
    %c0_i32 = arith.constant 0 : i32
    %c0_i32_0 = arith.constant 0 : i32
    %c0_i32_1 = arith.constant 0 : i32
    %c0_i32_2 = arith.constant 0 : i32
    return %c0_i32, %c0_i32_0, %c0_i32_1 : i32, i32, i32
  }
  func.func @transform_15(%arg0: i32) -> (i32, i32, i32) {
    %c0_i32 = arith.constant 0 : i32
    %c0_i32_0 = arith.constant 0 : i32
    %c0_i32_1 = arith.constant 0 : i32
    %c0_i32_2 = arith.constant 0 : i32
    return %c0_i32, %c0_i32_0, %c0_i32_1 : i32, i32, i32
  }
  func.func @transform_16(%arg0: i32) -> (i32, i32, i32) {
    %c0_i32 = arith.constant 0 : i32
    %c0_i32_0 = arith.constant 0 : i32
    %c0_i32_1 = arith.constant 0 : i32
    %c0_i32_2 = arith.constant 0 : i32
    return %c0_i32, %c0_i32_0, %c0_i32_1 : i32, i32, i32
  }
  func.func @transform_17(%arg0: i32) -> (i32, i32, i32) {
    %c0_i32 = arith.constant 0 : i32
    %c0_i32_0 = arith.constant 0 : i32
    %c0_i32_1 = arith.constant 0 : i32
    %c0_i32_2 = arith.constant 0 : i32
    return %c0_i32, %c0_i32_0, %c0_i32_1 : i32, i32, i32
  }
  func.func @transform_18(%arg0: i32) -> (i32, i32, i32) {
    %c0_i32 = arith.constant 0 : i32
    %c0_i32_0 = arith.constant 0 : i32
    %c0_i32_1 = arith.constant 0 : i32
    %c0_i32_2 = arith.constant 0 : i32
    return %c0_i32, %c0_i32_0, %c0_i32_1 : i32, i32, i32
  }
  func.func @transform_19(%arg0: i32) -> (i32, i32) {
    %c0_i32 = arith.constant 0 : i32
    %c0_i32_0 = arith.constant 0 : i32
    %c0_i32_1 = arith.constant 0 : i32
    return %c0_i32, %c0_i32_0 : i32, i32
  }
  func.func @transform_20(%arg0: i32) -> (i32, i32) {
    %c0_i32 = arith.constant 0 : i32
    %c0_i32_0 = arith.constant 0 : i32
    %c0_i32_1 = arith.constant 0 : i32
    return %c0_i32, %c0_i32_0 : i32, i32
  }
  func.func @transform_21(%arg0: i32) -> (i32, i32) {
    %c0_i32 = arith.constant 0 : i32
    %c0_i32_0 = arith.constant 0 : i32
    %c0_i32_1 = arith.constant 0 : i32
    return %c0_i32, %c0_i32_0 : i32, i32
  }
  func.func @transform_22(%arg0: i32) -> (i32, i32) {
    %c0_i32 = arith.constant 0 : i32
    %c0_i32_0 = arith.constant 0 : i32
    %c0_i32_1 = arith.constant 0 : i32
    return %c0_i32, %c0_i32_0 : i32, i32
  }
  func.func @transform_23(%arg0: i32) -> (i32, i32) {
    %c0_i32 = arith.constant 0 : i32
    %c0_i32_0 = arith.constant 0 : i32
    %c0_i32_1 = arith.constant 0 : i32
    return %c0_i32, %c0_i32_0 : i32, i32
  }
  func.func @transform_24(%arg0: i32) -> (i32, i32) {
    %c0_i32 = arith.constant 0 : i32
    %c0_i32_0 = arith.constant 0 : i32
    %c0_i32_1 = arith.constant 0 : i32
    return %c0_i32, %c0_i32_0 : i32, i32
  }
  func.func @transform_25(%arg0: i32) -> (i32, i32) {
    %c0_i32 = arith.constant 0 : i32
    %c0_i32_0 = arith.constant 0 : i32
    %c0_i32_1 = arith.constant 0 : i32
    return %c0_i32, %c0_i32_0 : i32, i32
  }
  func.func @transform_26(%arg0: i32) -> (i32, i32) {
    %c0_i32 = arith.constant 0 : i32
    %c0_i32_0 = arith.constant 0 : i32
    %c0_i32_1 = arith.constant 0 : i32
    return %c0_i32, %c0_i32_0 : i32, i32
  }
  func.func @transform_27(%arg0: i32) -> (i32, i32) {
    %c0_i32 = arith.constant 0 : i32
    %c0_i32_0 = arith.constant 0 : i32
    %c0_i32_1 = arith.constant 0 : i32
    return %c0_i32, %c0_i32_0 : i32, i32
  }
  func.func @transform_28(%arg0: i32) -> (i32, i32) {
    %c0_i32 = arith.constant 0 : i32
    %c0_i32_0 = arith.constant 0 : i32
    %c0_i32_1 = arith.constant 0 : i32
    return %c0_i32, %c0_i32_0 : i32, i32
  }
  func.func @transform_29(%arg0: i32) -> (i32, i32) {
    %c0_i32 = arith.constant 0 : i32
    %c0_i32_0 = arith.constant 0 : i32
    %c0_i32_1 = arith.constant 0 : i32
    return %c0_i32, %c0_i32_0 : i32, i32
  }
  func.func @transform_30(%arg0: i32) -> (i32, i32) {
    %c0_i32 = arith.constant 0 : i32
    %c0_i32_0 = arith.constant 0 : i32
    %c0_i32_1 = arith.constant 0 : i32
    return %c0_i32, %c0_i32_0 : i32, i32
  }
  func.func @transform_31(%arg0: i32) -> (i32, i32) {
    %c0_i32 = arith.constant 0 : i32
    %c0_i32_0 = arith.constant 0 : i32
    %c0_i32_1 = arith.constant 0 : i32
    return %c0_i32, %c0_i32_0 : i32, i32
  }
  func.func @transform_32(%arg0: i32) -> (i32, i32, i32) {
    %c0_i32 = arith.constant 0 : i32
    %c0_i32_0 = arith.constant 0 : i32
    %c0_i32_1 = arith.constant 0 : i32
    return %arg0, %c0_i32, %c0_i32_0 : i32, i32, i32
  }
}

</mosaic_0001>

<llo_original>
// kernel: custom-call
$region0: #{custom-call}
  %s0 = inlined_call_operand.vmem [shape: s32[144], index: 0, kind: output, shape index: {}]

// kernel: forward.1
$region0: #{forward.1}
  #allocation0 [shape = 'u32[]', space=smem, size = 0x4, offset = 0x4, fixed_abs, tag = 'smem constant byte address 0x4 - core index']
  #allocation1 [shape = 'u32[144,128]{1,0:T(1,128)}', space=vmem, size = 0x12000, scoped, tag = 'internal scratch']
  %s0 = inlined_call_operand.smem [shape: u32[33], index: -1, kind: input, shape index: {}]
  %s1 = sld [smem:[%s0]]
  %s2 = scalar_lea.smem %s0, 1
  %s3 = sld [smem:[%s2]]
  %s4 = scalar_lea.smem %s0, 2
  %s5 = sld [smem:[%s4]]
  %s6 = scalar_lea.smem %s0, 3
  %s7 = sld [smem:[%s6]]
  %s8 = scalar_lea.smem %s0, 4
  %s9 = sld [smem:[%s8]]
  %s10 = scalar_lea.smem %s0, 5
  %s11 = sld [smem:[%s10]]
  %s12 = scalar_lea.smem %s0, 6
  %s13 = sld [smem:[%s12]]
  %s14 = scalar_lea.smem %s0, 7
  %s15 = sld [smem:[%s14]]
  %s16 = scalar_lea.smem %s0, 8
  %s17 = sld [smem:[%s16]]
  %s18 = scalar_lea.smem %s0, 9
  %s19 = sld [smem:[%s18]]
  %s20 = scalar_lea.smem %s0, 10
  %s21 = sld [smem:[%s20]]
  %s22 = scalar_lea.smem %s0, 11
  %s23 = sld [smem:[%s22]]
  %s24 = scalar_lea.smem %s0, 12
  %s25 = sld [smem:[%s24]]
  %s26 = scalar_lea.smem %s0, 13
  %s27 = sld [smem:[%s26]]
  %s28 = scalar_lea.smem %s0, 14
  %s29 = sld [smem:[%s28]]
  %s30 = scalar_lea.smem %s0, 15
  %s31 = sld [smem:[%s30]]
  %s32 = scalar_lea.smem %s0, 16
  %s33 = sld [smem:[%s32]]
  %s34 = scalar_lea.smem %s0, 17
  %s35 = sld [smem:[%s34]]
  %s36 = scalar_lea.smem %s0, 18
  %s37 = sld [smem:[%s36]]
  %s38 = scalar_lea.smem %s0, 19
  %s39 = sld [smem:[%s38]]
  %s40 = scalar_lea.smem %s0, 20
  %s41 = sld [smem:[%s40]]
  %s42 = scalar_lea.smem %s0, 21
  %s43 = sld [smem:[%s42]]
  %s44 = scalar_lea.smem %s0, 22
  %s45 = sld [smem:[%s44]]
  %s46 = scalar_lea.smem %s0, 23
  %s47 = sld [smem:[%s46]]
  %s48 = scalar_lea.smem %s0, 24
  %s49 = sld [smem:[%s48]]
  %s50 = scalar_lea.smem %s0, 25
  %s51 = sld [smem:[%s50]]
  %s52 = scalar_lea.smem %s0, 26
  %s53 = sld [smem:[%s52]]
  %s54 = scalar_lea.smem %s0, 27
  %s55 = sld [smem:[%s54]]
  %s56 = scalar_lea.smem %s0, 28
  %s57 = sld [smem:[%s56]]
  %s58 = scalar_lea.smem %s0, 29
  %s59 = sld [smem:[%s58]]
  %s60 = scalar_lea.smem %s0, 30
  %s61 = sld [smem:[%s60]]
  %s62 = scalar_lea.smem %s0, 31
  %s63 = sld [smem:[%s62]]
  %s64 = scalar_lea.smem %s0, 32
  %s65 = sld [smem:[%s64]]
  %s66 = sld [smem:[#allocation0]]
  $region161: #{forward.1} parent=0
    _
  %s68 = ssub.s32 1, %s66
  %s69 = scalar_select 0, %s68, %s66
  loop: start=0, step=1, limit=6
  $region2: #{forward.1} parent=0 // loop_pre_header
    _
  $region3: #{forward.1} parent=0 // loop_header
    %s71 = sphi 0, %s75
    %p72 = scmp.ge.s32.totalorder %s71, 6
    %s81 = sphi 0, %s83
    %s84 = sphi 0, %s81
    %s85 = sphi 0, %s84
    %s101 = sphi 0, %s85
    %s107 = sphi 0, %s109
    %s110 = sphi 0, %s107
    %s111 = sphi 0, %s110
    %s127 = sphi 0, %s111
    %s133 = sphi 0, %s135
    %s136 = sphi 0, %s133
    %s137 = sphi 0, %s136
    %s153 = sphi 0, %s137
    %s157 = sphi 0, %s157
    %s159 = sphi 0, %s157
    %s160 = sphi 0, %s159
    %s174 = sphi 0, %s160
    %s178 = sphi 0, %s178
    %s180 = sphi 0, %s178
    %s181 = sphi 0, %s180
    %s195 = sphi 0, %s181
    %s199 = sphi 0, %s199
    %s201 = sphi 0, %s199
    %s202 = sphi 0, %s201
    %s216 = sphi 0, %s202
    %s220 = sphi 0, %s220
    %s222 = sphi 0, %s220
    %s223 = sphi 0, %s222
    %s237 = sphi 0, %s223
    %s241 = sphi 0, %s241
    %s243 = sphi 0, %s241
    %s244 = sphi 0, %s243
    %s258 = sphi 0, %s244
    %s262 = sphi 0, %s262
    %s264 = sphi 0, %s262
    %s265 = sphi 0, %s264
    %s279 = sphi 0, %s265
    %s283 = sphi 0, %s283
    %s285 = sphi 0, %s283
    %s286 = sphi 0, %s285
    %s300 = sphi 0, %s286
    %s304 = sphi 0, %s304
    %s306 = sphi 0, %s304
    %s307 = sphi 0, %s306
    %s321 = sphi 0, %s307
    %s325 = sphi 0, %s325
    %s327 = sphi 0, %s325
    %s328 = sphi 0, %s327
    %s342 = sphi 0, %s328
    %s346 = sphi 0, %s346
    %s348 = sphi 0, %s346
    %s349 = sphi 0, %s348
    %s363 = sphi 0, %s349
    %s367 = sphi 0, %s367
    %s369 = sphi 0, %s367
    %s370 = sphi 0, %s369
    %s384 = sphi 0, %s370
    %s388 = sphi 0, %s388
    %s390 = sphi 0, %s388
    %s391 = sphi 0, %s390
    %s405 = sphi 0, %s391
    %s409 = sphi 0, %s409
    %s411 = sphi 0, %s409
    %s412 = sphi 0, %s411
    %s426 = sphi 0, %s412
    %s430 = sphi 0, %s430
    %s432 = sphi 0, %s430
    %s433 = sphi 0, %s432
    %s447 = sphi 0, %s433
    %s451 = sphi 0, %s451
    %s453 = sphi 0, %s451
    %s454 = sphi 0, %s453
    %s468 = sphi 0, %s454
    %s472 = sphi 0, %s472
    %s474 = sphi 0, %s472
    %s475 = sphi 0, %s474
    %s489 = sphi 0, %s475
    %s493 = sphi 0, %s493
    %s495 = sphi 0, %s493
    %s496 = sphi 0, %s495
    %s510 = sphi 0, %s496
    %s514 = sphi 0, %s514
    %s516 = sphi 0, %s514
    %s517 = sphi 0, %s516
    %s531 = sphi 0, %s517
    %s535 = sphi 0, %s535
    %s537 = sphi 0, %s535
    %s538 = sphi 0, %s537
    %s552 = sphi 0, %s538
    %s556 = sphi 0, %s556
    %s558 = sphi 0, %s556
    %s559 = sphi 0, %s558
    %s573 = sphi 0, %s559
    %s577 = sphi 0, %s577
    %s579 = sphi 0, %s577
    %s580 = sphi 0, %s579
    %s594 = sphi 0, %s580
    %s598 = sphi 0, %s598
    %s600 = sphi 0, %s598
    %s601 = sphi 0, %s600
    %s615 = sphi 0, %s601
    %s619 = sphi 0, %s619
    %s621 = sphi 0, %s619
    %s622 = sphi 0, %s621
    %s636 = sphi 0, %s622
    %s640 = sphi 0, %s640
    %s642 = sphi 0, %s640
    %s643 = sphi 0, %s642
    %s657 = sphi 0, %s643
    %s661 = sphi 0, %s661
    %s663 = sphi 0, %s661
    %s664 = sphi 0, %s663
    %s678 = sphi 0, %s664
    %s682 = sphi 0, %s682
    %s684 = sphi 0, %s682
    %s685 = sphi 0, %s684
    %s699 = sphi 0, %s685
    %s703 = sphi 0, %s703
    %s705 = sphi 0, %s703
    %s706 = sphi 0, %s705
    %s720 = sphi 0, %s706
    %s724 = sphi 0, %s724
    %s726 = sphi 0, %s724
    %s727 = sphi 0, %s726
    %s741 = sphi 0, %s727
    %s745 = sphi 0, %s745
    %s747 = sphi 0, %s745
    %s748 = sphi 0, %s747
    %s762 = sphi 0, %s748
    %s768 = sphi 0, %s770
    %s771 = sphi 0, %s768
    %s772 = sphi 0, %s771
    %s788 = sphi 0, %s772
  $region4: #{forward.1} parent=0 // loop_header_branch
    %74 = sbr.rel (%p72) target = $region8
  $region5: #{forward.1} parent=0 // loop_body
    %s76 = ssub.s32 %s71, 1
    %s77 = ssub.s32 %s71, 2
    %s78 = sadd.s32 %s71, 1
    %s79 = ssub.s32 %s71, %s78
    %p80 = scmp.eq.s32.totalorder %s79, 0
    %s82 = sadd.s32 %s81, 1
    %s83 = scalar_select %p80, %s81, %s82
    %p86 = pneg %p80
    %p87 = scmp.eq.s32.totalorder %s71, 3
    %p88 = por %p86, %p87
    %p89 = scmp.ne.s32.totalorder %s81, %s84
    %p90 = scmp.eq.s32.totalorder %s71, 0
    %p91 = por %p89, %p90
    %p92 = scmp.ne.s32.totalorder %s81, %s84
    %p93 = scmp.eq.s32.totalorder %s76, 3
    %p94 = por %p92, %p93
    %p95 = scmp.ne.s32.totalorder %s84, %s85
    %p96 = scmp.eq.s32.totalorder %s76, 0
    %p97 = por %p95, %p96
    %p98 = scmp.ne.s32.totalorder %s84, %s85
    %p99 = scmp.eq.s32.totalorder %s77, 3
    %p100 = por %p98, %p99
    %p102 = scmp.ne.s32.totalorder %s85, %s101
    %p103 = scmp.eq.s32.totalorder %s77, 0
    %p104 = por %p102, %p103
    %s105 = ssub.s32 %s71, %s78
    %p106 = scmp.eq.s32.totalorder %s105, 0
    %s108 = sadd.s32 %s107, 1
    %s109 = scalar_select %p106, %s107, %s108
    %p112 = pneg %p106
    %p113 = scmp.eq.s32.totalorder %s71, 3
    %p114 = por %p112, %p113
    %p115 = scmp.ne.s32.totalorder %s107, %s110
    %p116 = scmp.eq.s32.totalorder %s71, 0
    %p117 = por %p115, %p116
    %p118 = scmp.ne.s32.totalorder %s107, %s110
    %p119 = scmp.eq.s32.totalorder %s76, 3
    %p120 = por %p118, %p119
    %p121 = scmp.ne.s32.totalorder %s110, %s111
    %p122 = scmp.eq.s32.totalorder %s76, 0
    %p123 = por %p121, %p122
    %p124 = scmp.ne.s32.totalorder %s110, %s111
    %p125 = scmp.eq.s32.totalorder %s77, 3
    %p126 = por %p124, %p125
    %p128 = scmp.ne.s32.totalorder %s111, %s127
    %p129 = scmp.eq.s32.totalorder %s77, 0
    %p130 = por %p128, %p129
    %s131 = ssub.s32 %s71, %s78
    %p132 = scmp.eq.s32.totalorder %s131, 0
    %s134 = sadd.s32 %s133, 1
    %s135 = scalar_select %p132, %s133, %s134
    %p138 = pneg %p132
    %p139 = scmp.eq.s32.totalorder %s71, 3
    %p140 = por %p138, %p139
    %p141 = scmp.ne.s32.totalorder %s133, %s136
    %p142 = scmp.eq.s32.totalorder %s71, 0
    %p143 = por %p141, %p142
    %p144 = scmp.ne.s32.totalorder %s133, %s136
    %p145 = scmp.eq.s32.totalorder %s76, 3
    %p146 = por %p144, %p145
    %p147 = scmp.ne.s32.totalorder %s136, %s137
    %p148 = scmp.eq.s32.totalorder %s76, 0
    %p149 = por %p147, %p148
    %p150 = scmp.ne.s32.totalorder %s136, %s137
    %p151 = scmp.eq.s32.totalorder %s77, 3
    %p152 = por %p150, %p151
    %p154 = scmp.ne.s32.totalorder %s137, %s153
    %p155 = scmp.eq.s32.totalorder %s77, 0
    %p156 = por %p154, %p155
    %s158 = sadd.s32 %s157, 1
    %p161 = scmp.eq.s32.totalorder %s71, 3
    %p162 = scmp.ne.s32.totalorder %s157, %s159
    %p163 = scmp.eq.s32.totalorder %s71, 0
    %p164 = por %p162, %p163
    %p165 = scmp.ne.s32.totalorder %s157, %s159
    %p166 = scmp.eq.s32.totalorder %s76, 3
    %p167 = por %p165, %p166
    %p168 = scmp.ne.s32.totalorder %s159, %s160
    %p169 = scmp.eq.s32.totalorder %s76, 0
    %p170 = por %p168, %p169
    %p171 = scmp.ne.s32.totalorder %s159, %s160
    %p172 = scmp.eq.s32.totalorder %s77, 3
    %p173 = por %p171, %p172
    %p175 = scmp.ne.s32.totalorder %s160, %s174
    %p176 = scmp.eq.s32.totalorder %s77, 0
    %p177 = por %p175, %p176
    %s179 = sadd.s32 %s178, 1
    %p182 = scmp.eq.s32.totalorder %s71, 3
    %p183 = scmp.ne.s32.totalorder %s178, %s180
    %p184 = scmp.eq.s32.totalorder %s71, 0
    %p185 = por %p183, %p184
    %p186 = scmp.ne.s32.totalorder %s178, %s180
    %p187 = scmp.eq.s32.totalorder %s76, 3
    %p188 = por %p186, %p187
    %p189 = scmp.ne.s32.totalorder %s180, %s181
    %p190 = scmp.eq.s32.totalorder %s76, 0
    %p191 = por %p189, %p190
    %p192 = scmp.ne.s32.totalorder %s180, %s181
    %p193 = scmp.eq.s32.totalorder %s77, 3
    %p194 = por %p192, %p193
    %p196 = scmp.ne.s32.totalorder %s181, %s195
    %p197 = scmp.eq.s32.totalorder %s77, 0
    %p198 = por %p196, %p197
    %s200 = sadd.s32 %s199, 1
    %p203 = scmp.eq.s32.totalorder %s71, 3
    %p204 = scmp.ne.s32.totalorder %s199, %s201
    %p205 = scmp.eq.s32.totalorder %s71, 0
    %p206 = por %p204, %p205
    %p207 = scmp.ne.s32.totalorder %s199, %s201
    %p208 = scmp.eq.s32.totalorder %s76, 3
    %p209 = por %p207, %p208
    %p210 = scmp.ne.s32.totalorder %s201, %s202
    %p211 = scmp.eq.s32.totalorder %s76, 0
    %p212 = por %p210, %p211
    %p213 = scmp.ne.s32.totalorder %s201, %s202
    %p214 = scmp.eq.s32.totalorder %s77, 3
    %p215 = por %p213, %p214
    %p217 = scmp.ne.s32.totalorder %s202, %s216
    %p218 = scmp.eq.s32.totalorder %s77, 0
    %p219 = por %p217, %p218
    %s221 = sadd.s32 %s220, 1
    %p224 = scmp.eq.s32.totalorder %s71, 3
    %p225 = scmp.ne.s32.totalorder %s220, %s222
    %p226 = scmp.eq.s32.totalorder %s71, 0
    %p227 = por %p225, %p226
    %p228 = scmp.ne.s32.totalorder %s220, %s222
    %p229 = scmp.eq.s32.totalorder %s76, 3
    %p230 = por %p228, %p229
    %p231 = scmp.ne.s32.totalorder %s222, %s223
    %p232 = scmp.eq.s32.totalorder %s76, 0
    %p233 = por %p231, %p232
    %p234 = scmp.ne.s32.totalorder %s222, %s223
    %p235 = scmp.eq.s32.totalorder %s77, 3
    %p236 = por %p234, %p235
    %p238 = scmp.ne.s32.totalorder %s223, %s237
    %p239 = scmp.eq.s32.totalorder %s77, 0
    %p240 = por %p238, %p239
    %s242 = sadd.s32 %s241, 1
    %p245 = scmp.eq.s32.totalorder %s71, 3
    %p246 = scmp.ne.s32.totalorder %s241, %s243
    %p247 = scmp.eq.s32.totalorder %s71, 0
    %p248 = por %p246, %p247
    %p249 = scmp.ne.s32.totalorder %s241, %s243
    %p250 = scmp.eq.s32.totalorder %s76, 3
    %p251 = por %p249, %p250
    %p252 = scmp.ne.s32.totalorder %s243, %s244
    %p253 = scmp.eq.s32.totalorder %s76, 0
    %p254 = por %p252, %p253
    %p255 = scmp.ne.s32.totalorder %s243, %s244
    %p256 = scmp.eq.s32.totalorder %s77, 3
    %p257 = por %p255, %p256
    %p259 = scmp.ne.s32.totalorder %s244, %s258
    %p260 = scmp.eq.s32.totalorder %s77, 0
    %p261 = por %p259, %p260
    %s263 = sadd.s32 %s262, 1
    %p266 = scmp.eq.s32.totalorder %s71, 3
    %p267 = scmp.ne.s32.totalorder %s262, %s264
    %p268 = scmp.eq.s32.totalorder %s71, 0
    %p269 = por %p267, %p268
    %p270 = scmp.ne.s32.totalorder %s262, %s264
    %p271 = scmp.eq.s32.totalorder %s76, 3
    %p272 = por %p270, %p271
    %p273 = scmp.ne.s32.totalorder %s264, %s265
    %p274 = scmp.eq.s32.totalorder %s76, 0
    %p275 = por %p273, %p274
    %p276 = scmp.ne.s32.totalorder %s264, %s265
    %p277 = scmp.eq.s32.totalorder %s77, 3
    %p278 = por %p276, %p277
    %p280 = scmp.ne.s32.totalorder %s265, %s279
    %p281 = scmp.eq.s32.totalorder %s77, 0
    %p282 = por %p280, %p281
    %s284 = sadd.s32 %s283, 1
    %p287 = scmp.eq.s32.totalorder %s71, 3
    %p288 = scmp.ne.s32.totalorder %s283, %s285
    %p289 = scmp.eq.s32.totalorder %s71, 0
    %p290 = por %p288, %p289
    %p291 = scmp.ne.s32.totalorder %s283, %s285
    %p292 = scmp.eq.s32.totalorder %s76, 3
    %p293 = por %p291, %p292
    %p294 = scmp.ne.s32.totalorder %s285, %s286
    %p295 = scmp.eq.s32.totalorder %s76, 0
    %p296 = por %p294, %p295
    %p297 = scmp.ne.s32.totalorder %s285, %s286
    %p298 = scmp.eq.s32.totalorder %s77, 3
    %p299 = por %p297, %p298
    %p301 = scmp.ne.s32.totalorder %s286, %s300
    %p302 = scmp.eq.s32.totalorder %s77, 0
    %p303 = por %p301, %p302
    %s305 = sadd.s32 %s304, 1
    %p308 = scmp.eq.s32.totalorder %s71, 3
    %p309 = scmp.ne.s32.totalorder %s304, %s306
    %p310 = scmp.eq.s32.totalorder %s71, 0
    %p311 = por %p309, %p310
    %p312 = scmp.ne.s32.totalorder %s304, %s306
    %p313 = scmp.eq.s32.totalorder %s76, 3
    %p314 = por %p312, %p313
    %p315 = scmp.ne.s32.totalorder %s306, %s307
    %p316 = scmp.eq.s32.totalorder %s76, 0
    %p317 = por %p315, %p316
    %p318 = scmp.ne.s32.totalorder %s306, %s307
    %p319 = scmp.eq.s32.totalorder %s77, 3
    %p320 = por %p318, %p319
    %p322 = scmp.ne.s32.totalorder %s307, %s321
    %p323 = scmp.eq.s32.totalorder %s77, 0
    %p324 = por %p322, %p323
    %s326 = sadd.s32 %s325, 1
    %p329 = scmp.eq.s32.totalorder %s71, 3
    %p330 = scmp.ne.s32.totalorder %s325, %s327
    %p331 = scmp.eq.s32.totalorder %s71, 0
    %p332 = por %p330, %p331
    %p333 = scmp.ne.s32.totalorder %s325, %s327
    %p334 = scmp.eq.s32.totalorder %s76, 3
    %p335 = por %p333, %p334
    %p336 = scmp.ne.s32.totalorder %s327, %s328
    %p337 = scmp.eq.s32.totalorder %s76, 0
    %p338 = por %p336, %p337
    %p339 = scmp.ne.s32.totalorder %s327, %s328
    %p340 = scmp.eq.s32.totalorder %s77, 3
    %p341 = por %p339, %p340
    %p343 = scmp.ne.s32.totalorder %s328, %s342
    %p344 = scmp.eq.s32.totalorder %s77, 0
    %p345 = por %p343, %p344
    %s347 = sadd.s32 %s346, 1
    %p350 = scmp.eq.s32.totalorder %s71, 3
    %p351 = scmp.ne.s32.totalorder %s346, %s348
    %p352 = scmp.eq.s32.totalorder %s71, 0
    %p353 = por %p351, %p352
    %p354 = scmp.ne.s32.totalorder %s346, %s348
    %p355 = scmp.eq.s32.totalorder %s76, 3
    %p356 = por %p354, %p355
    %p357 = scmp.ne.s32.totalorder %s348, %s349
    %p358 = scmp.eq.s32.totalorder %s76, 0
    %p359 = por %p357, %p358
    %p360 = scmp.ne.s32.totalorder %s348, %s349
    %p361 = scmp.eq.s32.totalorder %s77, 3
    %p362 = por %p360, %p361
    %p364 = scmp.ne.s32.totalorder %s349, %s363
    %p365 = scmp.eq.s32.totalorder %s77, 0
    %p366 = por %p364, %p365
    %s368 = sadd.s32 %s367, 1
    %p371 = scmp.eq.s32.totalorder %s71, 3
    %p372 = scmp.ne.s32.totalorder %s367, %s369
    %p373 = scmp.eq.s32.totalorder %s71, 0
    %p374 = por %p372, %p373
    %p375 = scmp.ne.s32.totalorder %s367, %s369
    %p376 = scmp.eq.s32.totalorder %s76, 3
    %p377 = por %p375, %p376
    %p378 = scmp.ne.s32.totalorder %s369, %s370
    %p379 = scmp.eq.s32.totalorder %s76, 0
    %p380 = por %p378, %p379
    %p381 = scmp.ne.s32.totalorder %s369, %s370
    %p382 = scmp.eq.s32.totalorder %s77, 3
    %p383 = por %p381, %p382
    %p385 = scmp.ne.s32.totalorder %s370, %s384
    %p386 = scmp.eq.s32.totalorder %s77, 0
    %p387 = por %p385, %p386
    %s389 = sadd.s32 %s388, 1
    %p392 = scmp.eq.s32.totalorder %s71, 3
    %p393 = scmp.ne.s32.totalorder %s388, %s390
    %p394 = scmp.eq.s32.totalorder %s71, 0
    %p395 = por %p393, %p394
    %p396 = scmp.ne.s32.totalorder %s388, %s390
    %p397 = scmp.eq.s32.totalorder %s76, 3
    %p398 = por %p396, %p397
    %p399 = scmp.ne.s32.totalorder %s390, %s391
    %p400 = scmp.eq.s32.totalorder %s76, 0
    %p401 = por %p399, %p400
    %p402 = scmp.ne.s32.totalorder %s390, %s391
    %p403 = scmp.eq.s32.totalorder %s77, 3
    %p404 = por %p402, %p403
    %p406 = scmp.ne.s32.totalorder %s391, %s405
    %p407 = scmp.eq.s32.totalorder %s77, 0
    %p408 = por %p406, %p407
    %s410 = sadd.s32 %s409, 1
    %p413 = scmp.eq.s32.totalorder %s71, 3
    %p414 = scmp.ne.s32.totalorder %s409, %s411
    %p415 = scmp.eq.s32.totalorder %s71, 0
    %p416 = por %p414, %p415
    %p417 = scmp.ne.s32.totalorder %s409, %s411
    %p418 = scmp.eq.s32.totalorder %s76, 3
    %p419 = por %p417, %p418
    %p420 = scmp.ne.s32.totalorder %s411, %s412
    %p421 = scmp.eq.s32.totalorder %s76, 0
    %p422 = por %p420, %p421
    %p423 = scmp.ne.s32.totalorder %s411, %s412
    %p424 = scmp.eq.s32.totalorder %s77, 3
    %p425 = por %p423, %p424
    %p427 = scmp.ne.s32.totalorder %s412, %s426
    %p428 = scmp.eq.s32.totalorder %s77, 0
    %p429 = por %p427, %p428
    %s431 = sadd.s32 %s430, 1
    %p434 = scmp.eq.s32.totalorder %s71, 3
    %p435 = scmp.ne.s32.totalorder %s430, %s432
    %p436 = scmp.eq.s32.totalorder %s71, 0
    %p437 = por %p435, %p436
    %p438 = scmp.ne.s32.totalorder %s430, %s432
    %p439 = scmp.eq.s32.totalorder %s76, 3
    %p440 = por %p438, %p439
    %p441 = scmp.ne.s32.totalorder %s432, %s433
    %p442 = scmp.eq.s32.totalorder %s76, 0
    %p443 = por %p441, %p442
    %p444 = scmp.ne.s32.totalorder %s432, %s433
    %p445 = scmp.eq.s32.totalorder %s77, 3
    %p446 = por %p444, %p445
    %p448 = scmp.ne.s32.totalorder %s433, %s447
    %p449 = scmp.eq.s32.totalorder %s77, 0
    %p450 = por %p448, %p449
    %s452 = sadd.s32 %s451, 1
    %p455 = scmp.eq.s32.totalorder %s71, 3
    %p456 = scmp.ne.s32.totalorder %s451, %s453
    %p457 = scmp.eq.s32.totalorder %s71, 0
    %p458 = por %p456, %p457
    %p459 = scmp.ne.s32.totalorder %s451, %s453
    %p460 = scmp.eq.s32.totalorder %s76, 3
    %p461 = por %p459, %p460
    %p462 = scmp.ne.s32.totalorder %s453, %s454
    %p463 = scmp.eq.s32.totalorder %s76, 0
    %p464 = por %p462, %p463
    %p465 = scmp.ne.s32.totalorder %s453, %s454
    %p466 = scmp.eq.s32.totalorder %s77, 3
    %p467 = por %p465, %p466
    %p469 = scmp.ne.s32.totalorder %s454, %s468
    %p470 = scmp.eq.s32.totalorder %s77, 0
    %p471 = por %p469, %p470
    %s473 = sadd.s32 %s472, 1
    %p476 = scmp.eq.s32.totalorder %s71, 3
    %p477 = scmp.ne.s32.totalorder %s472, %s474
    %p478 = scmp.eq.s32.totalorder %s71, 0
    %p479 = por %p477, %p478
    %p480 = scmp.ne.s32.totalorder %s472, %s474
    %p481 = scmp.eq.s32.totalorder %s76, 3
    %p482 = por %p480, %p481
    %p483 = scmp.ne.s32.totalorder %s474, %s475
    %p484 = scmp.eq.s32.totalorder %s76, 0
    %p485 = por %p483, %p484
    %p486 = scmp.ne.s32.totalorder %s474, %s475
    %p487 = scmp.eq.s32.totalorder %s77, 3
    %p488 = por %p486, %p487
    %p490 = scmp.ne.s32.totalorder %s475, %s489
    %p491 = scmp.eq.s32.totalorder %s77, 0
    %p492 = por %p490, %p491
    %s494 = sadd.s32 %s493, 1
    %p497 = scmp.eq.s32.totalorder %s71, 3
    %p498 = scmp.ne.s32.totalorder %s493, %s495
    %p499 = scmp.eq.s32.totalorder %s71, 0
    %p500 = por %p498, %p499
    %p501 = scmp.ne.s32.totalorder %s493, %s495
    %p502 = scmp.eq.s32.totalorder %s76, 3
    %p503 = por %p501, %p502
    %p504 = scmp.ne.s32.totalorder %s495, %s496
    %p505 = scmp.eq.s32.totalorder %s76, 0
    %p506 = por %p504, %p505
    %p507 = scmp.ne.s32.totalorder %s495, %s496
    %p508 = scmp.eq.s32.totalorder %s77, 3
    %p509 = por %p507, %p508
    %p511 = scmp.ne.s32.totalorder %s496, %s510
    %p512 = scmp.eq.s32.totalorder %s77, 0
    %p513 = por %p511, %p512
    %s515 = sadd.s32 %s514, 1
    %p518 = scmp.eq.s32.totalorder %s71, 3
    %p519 = scmp.ne.s32.totalorder %s514, %s516
    %p520 = scmp.eq.s32.totalorder %s71, 0
    %p521 = por %p519, %p520
    %p522 = scmp.ne.s32.totalorder %s514, %s516
    %p523 = scmp.eq.s32.totalorder %s76, 3
    %p524 = por %p522, %p523
    %p525 = scmp.ne.s32.totalorder %s516, %s517
    %p526 = scmp.eq.s32.totalorder %s76, 0
    %p527 = por %p525, %p526
    %p528 = scmp.ne.s32.totalorder %s516, %s517
    %p529 = scmp.eq.s32.totalorder %s77, 3
    %p530 = por %p528, %p529
    %p532 = scmp.ne.s32.totalorder %s517, %s531
    %p533 = scmp.eq.s32.totalorder %s77, 0
    %p534 = por %p532, %p533
    %s536 = sadd.s32 %s535, 1
    %p539 = scmp.eq.s32.totalorder %s71, 3
    %p540 = scmp.ne.s32.totalorder %s535, %s537
    %p541 = scmp.eq.s32.totalorder %s71, 0
    %p542 = por %p540, %p541
    %p543 = scmp.ne.s32.totalorder %s535, %s537
    %p544 = scmp.eq.s32.totalorder %s76, 3
    %p545 = por %p543, %p544
    %p546 = scmp.ne.s32.totalorder %s537, %s538
    %p547 = scmp.eq.s32.totalorder %s76, 0
    %p548 = por %p546, %p547
    %p549 = scmp.ne.s32.totalorder %s537, %s538
    %p550 = scmp.eq.s32.totalorder %s77, 3
    %p551 = por %p549, %p550
    %p553 = scmp.ne.s32.totalorder %s538, %s552
    %p554 = scmp.eq.s32.totalorder %s77, 0
    %p555 = por %p553, %p554
    %s557 = sadd.s32 %s556, 1
    %p560 = scmp.eq.s32.totalorder %s71, 3
    %p561 = scmp.ne.s32.totalorder %s556, %s558
    %p562 = scmp.eq.s32.totalorder %s71, 0
    %p563 = por %p561, %p562
    %p564 = scmp.ne.s32.totalorder %s556, %s558
    %p565 = scmp.eq.s32.totalorder %s76, 3
    %p566 = por %p564, %p565
    %p567 = scmp.ne.s32.totalorder %s558, %s559
    %p568 = scmp.eq.s32.totalorder %s76, 0
    %p569 = por %p567, %p568
    %p570 = scmp.ne.s32.totalorder %s558, %s559
    %p571 = scmp.eq.s32.totalorder %s77, 3
    %p572 = por %p570, %p571
    %p574 = scmp.ne.s32.totalorder %s559, %s573
    %p575 = scmp.eq.s32.totalorder %s77, 0
    %p576 = por %p574, %p575
    %s578 = sadd.s32 %s577, 1
    %p581 = scmp.eq.s32.totalorder %s71, 3
    %p582 = scmp.ne.s32.totalorder %s577, %s579
    %p583 = scmp.eq.s32.totalorder %s71, 0
    %p584 = por %p582, %p583
    %p585 = scmp.ne.s32.totalorder %s577, %s579
    %p586 = scmp.eq.s32.totalorder %s76, 3
    %p587 = por %p585, %p586
    %p588 = scmp.ne.s32.totalorder %s579, %s580
    %p589 = scmp.eq.s32.totalorder %s76, 0
    %p590 = por %p588, %p589
    %p591 = scmp.ne.s32.totalorder %s579, %s580
    %p592 = scmp.eq.s32.totalorder %s77, 3
    %p593 = por %p591, %p592
    %p595 = scmp.ne.s32.totalorder %s580, %s594
    %p596 = scmp.eq.s32.totalorder %s77, 0
    %p597 = por %p595, %p596
    %s599 = sadd.s32 %s598, 1
    %p602 = scmp.eq.s32.totalorder %s71, 3
    %p603 = scmp.ne.s32.totalorder %s598, %s600
    %p604 = scmp.eq.s32.totalorder %s71, 0
    %p605 = por %p603, %p604
    %p606 = scmp.ne.s32.totalorder %s598, %s600
    %p607 = scmp.eq.s32.totalorder %s76, 3
    %p608 = por %p606, %p607
    %p609 = scmp.ne.s32.totalorder %s600, %s601
    %p610 = scmp.eq.s32.totalorder %s76, 0
    %p611 = por %p609, %p610
    %p612 = scmp.ne.s32.totalorder %s600, %s601
    %p613 = scmp.eq.s32.totalorder %s77, 3
    %p614 = por %p612, %p613
    %p616 = scmp.ne.s32.totalorder %s601, %s615
    %p617 = scmp.eq.s32.totalorder %s77, 0
    %p618 = por %p616, %p617
    %s620 = sadd.s32 %s619, 1
    %p623 = scmp.eq.s32.totalorder %s71, 3
    %p624 = scmp.ne.s32.totalorder %s619, %s621
    %p625 = scmp.eq.s32.totalorder %s71, 0
    %p626 = por %p624, %p625
    %p627 = scmp.ne.s32.totalorder %s619, %s621
    %p628 = scmp.eq.s32.totalorder %s76, 3
    %p629 = por %p627, %p628
    %p630 = scmp.ne.s32.totalorder %s621, %s622
    %p631 = scmp.eq.s32.totalorder %s76, 0
    %p632 = por %p630, %p631
    %p633 = scmp.ne.s32.totalorder %s621, %s622
    %p634 = scmp.eq.s32.totalorder %s77, 3
    %p635 = por %p633, %p634
    %p637 = scmp.ne.s32.totalorder %s622, %s636
    %p638 = scmp.eq.s32.totalorder %s77, 0
    %p639 = por %p637, %p638
    %s641 = sadd.s32 %s640, 1
    %p644 = scmp.eq.s32.totalorder %s71, 3
    %p645 = scmp.ne.s32.totalorder %s640, %s642
    %p646 = scmp.eq.s32.totalorder %s71, 0
    %p647 = por %p645, %p646
    %p648 = scmp.ne.s32.totalorder %s640, %s642
    %p649 = scmp.eq.s32.totalorder %s76, 3
    %p650 = por %p648, %p649
    %p651 = scmp.ne.s32.totalorder %s642, %s643
    %p652 = scmp.eq.s32.totalorder %s76, 0
    %p653 = por %p651, %p652
    %p654 = scmp.ne.s32.totalorder %s642, %s643
    %p655 = scmp.eq.s32.totalorder %s77, 3
    %p656 = por %p654, %p655
    %p658 = scmp.ne.s32.totalorder %s643, %s657
    %p659 = scmp.eq.s32.totalorder %s77, 0
    %p660 = por %p658, %p659
    %s662 = sadd.s32 %s661, 1
    %p665 = scmp.eq.s32.totalorder %s71, 3
    %p666 = scmp.ne.s32.totalorder %s661, %s663
    %p667 = scmp.eq.s32.totalorder %s71, 0
    %p668 = por %p666, %p667
    %p669 = scmp.ne.s32.totalorder %s661, %s663
    %p670 = scmp.eq.s32.totalorder %s76, 3
    %p671 = por %p669, %p670
    %p672 = scmp.ne.s32.totalorder %s663, %s664
    %p673 = scmp.eq.s32.totalorder %s76, 0
    %p674 = por %p672, %p673
    %p675 = scmp.ne.s32.totalorder %s663, %s664
    %p676 = scmp.eq.s32.totalorder %s77, 3
    %p677 = por %p675, %p676
    %p679 = scmp.ne.s32.totalorder %s664, %s678
    %p680 = scmp.eq.s32.totalorder %s77, 0
    %p681 = por %p679, %p680
    %s683 = sadd.s32 %s682, 1
    %p686 = scmp.eq.s32.totalorder %s71, 3
    %p687 = scmp.ne.s32.totalorder %s682, %s684
    %p688 = scmp.eq.s32.totalorder %s71, 0
    %p689 = por %p687, %p688
    %p690 = scmp.ne.s32.totalorder %s682, %s684
    %p691 = scmp.eq.s32.totalorder %s76, 3
    %p692 = por %p690, %p691
    %p693 = scmp.ne.s32.totalorder %s684, %s685
    %p694 = scmp.eq.s32.totalorder %s76, 0
    %p695 = por %p693, %p694
    %p696 = scmp.ne.s32.totalorder %s684, %s685
    %p697 = scmp.eq.s32.totalorder %s77, 3
    %p698 = por %p696, %p697
    %p700 = scmp.ne.s32.totalorder %s685, %s699
    %p701 = scmp.eq.s32.totalorder %s77, 0
    %p702 = por %p700, %p701
    %s704 = sadd.s32 %s703, 1
    %p707 = scmp.eq.s32.totalorder %s71, 3
    %p708 = scmp.ne.s32.totalorder %s703, %s705
    %p709 = scmp.eq.s32.totalorder %s71, 0
    %p710 = por %p708, %p709
    %p711 = scmp.ne.s32.totalorder %s703, %s705
    %p712 = scmp.eq.s32.totalorder %s76, 3
    %p713 = por %p711, %p712
    %p714 = scmp.ne.s32.totalorder %s705, %s706
    %p715 = scmp.eq.s32.totalorder %s76, 0
    %p716 = por %p714, %p715
    %p717 = scmp.ne.s32.totalorder %s705, %s706
    %p718 = scmp.eq.s32.totalorder %s77, 3
    %p719 = por %p717, %p718
    %p721 = scmp.ne.s32.totalorder %s706, %s720
    %p722 = scmp.eq.s32.totalorder %s77, 0
    %p723 = por %p721, %p722
    %s725 = sadd.s32 %s724, 1
    %p728 = scmp.eq.s32.totalorder %s71, 3
    %p729 = scmp.ne.s32.totalorder %s724, %s726
    %p730 = scmp.eq.s32.totalorder %s71, 0
    %p731 = por %p729, %p730
    %p732 = scmp.ne.s32.totalorder %s724, %s726
    %p733 = scmp.eq.s32.totalorder %s76, 3
    %p734 = por %p732, %p733
    %p735 = scmp.ne.s32.totalorder %s726, %s727
    %p736 = scmp.eq.s32.totalorder %s76, 0
    %p737 = por %p735, %p736
    %p738 = scmp.ne.s32.totalorder %s726, %s727
    %p739 = scmp.eq.s32.totalorder %s77, 3
    %p740 = por %p738, %p739
    %p742 = scmp.ne.s32.totalorder %s727, %s741
    %p743 = scmp.eq.s32.totalorder %s77, 0
    %p744 = por %p742, %p743
    %s746 = sadd.s32 %s745, 1
    %p749 = scmp.eq.s32.totalorder %s71, 3
    %p750 = scmp.ne.s32.totalorder %s745, %s747
    %p751 = scmp.eq.s32.totalorder %s71, 0
    %p752 = por %p750, %p751
    %p753 = scmp.ne.s32.totalorder %s745, %s747
    %p754 = scmp.eq.s32.totalorder %s76, 3
    %p755 = por %p753, %p754
    %p756 = scmp.ne.s32.totalorder %s747, %s748
    %p757 = scmp.eq.s32.totalorder %s76, 0
    %p758 = por %p756, %p757
    %p759 = scmp.ne.s32.totalorder %s747, %s748
    %p760 = scmp.eq.s32.totalorder %s77, 3
    %p761 = por %p759, %p760
    %p763 = scmp.ne.s32.totalorder %s748, %s762
    %p764 = scmp.eq.s32.totalorder %s77, 0
    %p765 = por %p763, %p764
    %s766 = ssub.s32 %s71, %s78
    %p767 = scmp.eq.s32.totalorder %s766, 0
    %s769 = sadd.s32 %s768, 1
    %s770 = scalar_select %p767, %s768, %s769
    %p773 = pneg %p767
    %p774 = scmp.eq.s32.totalorder %s71, 3
    %p775 = por %p773, %p774
    %p776 = scmp.ne.s32.totalorder %s768, %s771
    %p777 = scmp.eq.s32.totalorder %s71, 0
    %p778 = por %p776, %p777
    %p779 = scmp.ne.s32.totalorder %s768, %s771
    %p780 = scmp.eq.s32.totalorder %s76, 3
    %p781 = por %p779, %p780
    %p782 = scmp.ne.s32.totalorder %s771, %s772
    %p783 = scmp.eq.s32.totalorder %s76, 0
    %p784 = por %p782, %p783
    %p785 = scmp.ne.s32.totalorder %s771, %s772
    %p786 = scmp.eq.s32.totalorder %s77, 3
    %p787 = por %p785, %p786
    %p789 = scmp.ne.s32.totalorder %s772, %s788
    %p790 = scmp.eq.s32.totalorder %s77, 0
    %p791 = por %p789, %p790
    %p792 = scmp.le.s32.totalorder 1, %s71
    %p793 = scmp.lt.s32.totalorder %s71, 5
    %p794 = pnand %p792, %p793
    %p795 = pneg %p794
    // Predicated region
    $region9: #{forward.1} parent=5 // pred_check
      _
    $region10: #{forward.1} parent=5 // pred_check_branch
      %797 = sbr.rel (%p794) target = $region12
    $region11: #{forward.1} parent=5 // pred_region
      %s798 = ssub.s32 %s71, 1
      // Predicated region
      $region13: #{forward.1} parent=11 // pred_check
        %p799 = pneg %p170
      $region14: #{forward.1} parent=11 // pred_check_branch
        %801 = sbr.rel (%p799) target = $region16
      $region15: #{forward.1} parent=11 // pred_region
        _
      $region16: #{forward.1} parent=11 // pred_fallthru
        _
      // Predicated region
      $region17: #{forward.1} parent=11 // pred_check
        %p802 = pneg %p191
      $region18: #{forward.1} parent=11 // pred_check_branch
        %804 = sbr.rel (%p802) target = $region20
      $region19: #{forward.1} parent=11 // pred_region
        _
      $region20: #{forward.1} parent=11 // pred_fallthru
        _
      // Predicated region
      $region21: #{forward.1} parent=11 // pred_check
        %p805 = pneg %p212
      $region22: #{forward.1} parent=11 // pred_check_branch
        %807 = sbr.rel (%p805) target = $region24
      $region23: #{forward.1} parent=11 // pred_region
        _
      $region24: #{forward.1} parent=11 // pred_fallthru
        _
      // Predicated region
      $region25: #{forward.1} parent=11 // pred_check
        %p808 = pneg %p233
      $region26: #{forward.1} parent=11 // pred_check_branch
        %810 = sbr.rel (%p808) target = $region28
      $region27: #{forward.1} parent=11 // pred_region
        _
      $region28: #{forward.1} parent=11 // pred_fallthru
        _
      // Predicated region
      $region29: #{forward.1} parent=11 // pred_check
        %p811 = pneg %p254
      $region30: #{forward.1} parent=11 // pred_check_branch
        %813 = sbr.rel (%p811) target = $region32
      $region31: #{forward.1} parent=11 // pred_region
        _
      $region32: #{forward.1} parent=11 // pred_fallthru
        _
      // Predicated region
      $region33: #{forward.1} parent=11 // pred_check
        %p814 = pneg %p275
      $region34: #{forward.1} parent=11 // pred_check_branch
        %816 = sbr.rel (%p814) target = $region36
      $region35: #{forward.1} parent=11 // pred_region
        _
      $region36: #{forward.1} parent=11 // pred_fallthru
        _
      // Predicated region
      $region37: #{forward.1} parent=11 // pred_check
        %p817 = pneg %p296
      $region38: #{forward.1} parent=11 // pred_check_branch
        %819 = sbr.rel (%p817) target = $region40
      $region39: #{forward.1} parent=11 // pred_region
        _
      $region40: #{forward.1} parent=11 // pred_fallthru
        _
      // Predicated region
      $region41: #{forward.1} parent=11 // pred_check
        %p820 = pneg %p317
      $region42: #{forward.1} parent=11 // pred_check_branch
        %822 = sbr.rel (%p820) target = $region44
      $region43: #{forward.1} parent=11 // pred_region
        _
      $region44: #{forward.1} parent=11 // pred_fallthru
        _
      // Predicated region
      $region45: #{forward.1} parent=11 // pred_check
        %p823 = pneg %p338
      $region46: #{forward.1} parent=11 // pred_check_branch
        %825 = sbr.rel (%p823) target = $region48
      $region47: #{forward.1} parent=11 // pred_region
        _
      $region48: #{forward.1} parent=11 // pred_fallthru
        _
      // Predicated region
      $region49: #{forward.1} parent=11 // pred_check
        %p826 = pneg %p359
      $region50: #{forward.1} parent=11 // pred_check_branch
        %828 = sbr.rel (%p826) target = $region52
      $region51: #{forward.1} parent=11 // pred_region
        _
      $region52: #{forward.1} parent=11 // pred_fallthru
        _
      // Predicated region
      $region53: #{forward.1} parent=11 // pred_check
        %p829 = pneg %p380
      $region54: #{forward.1} parent=11 // pred_check_branch
        %831 = sbr.rel (%p829) target = $region56
      $region55: #{forward.1} parent=11 // pred_region
        _
      $region56: #{forward.1} parent=11 // pred_fallthru
        _
      // Predicated region
      $region57: #{forward.1} parent=11 // pred_check
        %p832 = pneg %p401
      $region58: #{forward.1} parent=11 // pred_check_branch
        %834 = sbr.rel (%p832) target = $region60
      $region59: #{forward.1} parent=11 // pred_region
        _
      $region60: #{forward.1} parent=11 // pred_fallthru
        _
      // Predicated region
      $region61: #{forward.1} parent=11 // pred_check
        %p835 = pneg %p422
      $region62: #{forward.1} parent=11 // pred_check_branch
        %837 = sbr.rel (%p835) target = $region64
      $region63: #{forward.1} parent=11 // pred_region
        _
      $region64: #{forward.1} parent=11 // pred_fallthru
        _
      // Predicated region
      $region65: #{forward.1} parent=11 // pred_check
        %p838 = pneg %p443
      $region66: #{forward.1} parent=11 // pred_check_branch
        %840 = sbr.rel (%p838) target = $region68
      $region67: #{forward.1} parent=11 // pred_region
        _
      $region68: #{forward.1} parent=11 // pred_fallthru
        _
      // Predicated region
      $region69: #{forward.1} parent=11 // pred_check
        %p841 = pneg %p464
      $region70: #{forward.1} parent=11 // pred_check_branch
        %843 = sbr.rel (%p841) target = $region72
      $region71: #{forward.1} parent=11 // pred_region
        _
      $region72: #{forward.1} parent=11 // pred_fallthru
        _
      // Predicated region
      $region73: #{forward.1} parent=11 // pred_check
        %p844 = pneg %p485
      $region74: #{forward.1} parent=11 // pred_check_branch
        %846 = sbr.rel (%p844) target = $region76
      $region75: #{forward.1} parent=11 // pred_region
        _
      $region76: #{forward.1} parent=11 // pred_fallthru
        _
      // Predicated region
      $region77: #{forward.1} parent=11 // pred_check
        %p847 = pneg %p506
      $region78: #{forward.1} parent=11 // pred_check_branch
        %849 = sbr.rel (%p847) target = $region80
      $region79: #{forward.1} parent=11 // pred_region
        _
      $region80: #{forward.1} parent=11 // pred_fallthru
        _
      // Predicated region
      $region81: #{forward.1} parent=11 // pred_check
        %p850 = pneg %p527
      $region82: #{forward.1} parent=11 // pred_check_branch
        %852 = sbr.rel (%p850) target = $region84
      $region83: #{forward.1} parent=11 // pred_region
        _
      $region84: #{forward.1} parent=11 // pred_fallthru
        _
      // Predicated region
      $region85: #{forward.1} parent=11 // pred_check
        %p853 = pneg %p548
      $region86: #{forward.1} parent=11 // pred_check_branch
        %855 = sbr.rel (%p853) target = $region88
      $region87: #{forward.1} parent=11 // pred_region
        _
      $region88: #{forward.1} parent=11 // pred_fallthru
        _
      // Predicated region
      $region89: #{forward.1} parent=11 // pred_check
        %p856 = pneg %p569
      $region90: #{forward.1} parent=11 // pred_check_branch
        %858 = sbr.rel (%p856) target = $region92
      $region91: #{forward.1} parent=11 // pred_region
        _
      $region92: #{forward.1} parent=11 // pred_fallthru
        _
      // Predicated region
      $region93: #{forward.1} parent=11 // pred_check
        %p859 = pneg %p590
      $region94: #{forward.1} parent=11 // pred_check_branch
        %861 = sbr.rel (%p859) target = $region96
      $region95: #{forward.1} parent=11 // pred_region
        _
      $region96: #{forward.1} parent=11 // pred_fallthru
        _
      // Predicated region
      $region97: #{forward.1} parent=11 // pred_check
        %p862 = pneg %p611
      $region98: #{forward.1} parent=11 // pred_check_branch
        %864 = sbr.rel (%p862) target = $region100
      $region99: #{forward.1} parent=11 // pred_region
        _
      $region100: #{forward.1} parent=11 // pred_fallthru
        _
      // Predicated region
      $region101: #{forward.1} parent=11 // pred_check
        %p865 = pneg %p632
      $region102: #{forward.1} parent=11 // pred_check_branch
        %867 = sbr.rel (%p865) target = $region104
      $region103: #{forward.1} parent=11 // pred_region
        _
      $region104: #{forward.1} parent=11 // pred_fallthru
        _
      // Predicated region
      $region105: #{forward.1} parent=11 // pred_check
        %p868 = pneg %p653
      $region106: #{forward.1} parent=11 // pred_check_branch
        %870 = sbr.rel (%p868) target = $region108
      $region107: #{forward.1} parent=11 // pred_region
        _
      $region108: #{forward.1} parent=11 // pred_fallthru
        _
      // Predicated region
      $region109: #{forward.1} parent=11 // pred_check
        %p871 = pneg %p674
      $region110: #{forward.1} parent=11 // pred_check_branch
        %873 = sbr.rel (%p871) target = $region112
      $region111: #{forward.1} parent=11 // pred_region
        _
      $region112: #{forward.1} parent=11 // pred_fallthru
        _
      // Predicated region
      $region113: #{forward.1} parent=11 // pred_check
        %p874 = pneg %p695
      $region114: #{forward.1} parent=11 // pred_check_branch
        %876 = sbr.rel (%p874) target = $region116
      $region115: #{forward.1} parent=11 // pred_region
        _
      $region116: #{forward.1} parent=11 // pred_fallthru
        _
      // Predicated region
      $region117: #{forward.1} parent=11 // pred_check
        %p877 = pneg %p716
      $region118: #{forward.1} parent=11 // pred_check_branch
        %879 = sbr.rel (%p877) target = $region120
      $region119: #{forward.1} parent=11 // pred_region
        _
      $region120: #{forward.1} parent=11 // pred_fallthru
        _
      // Predicated region
      $region121: #{forward.1} parent=11 // pred_check
        %p880 = pneg %p737
      $region122: #{forward.1} parent=11 // pred_check_branch
        %882 = sbr.rel (%p880) target = $region124
      $region123: #{forward.1} parent=11 // pred_region
        _
      $region124: #{forward.1} parent=11 // pred_fallthru
        _
      // Predicated region
      $region125: #{forward.1} parent=11 // pred_check
        %p883 = pneg %p758
      $region126: #{forward.1} parent=11 // pred_check_branch
        %885 = sbr.rel (%p883) target = $region128
      $region127: #{forward.1} parent=11 // pred_region
        _
      $region128: #{forward.1} parent=11 // pred_fallthru
        _
    $region12: #{forward.1} parent=5 // pred_fallthru
      _
    %p886 = scmp.lt.s32.totalorder %s71, 4
    // Predicated region
    $region129: #{forward.1} parent=5 // pred_check
      %p887 = pneg %p886
    $region130: #{forward.1} parent=5 // pred_check_branch
      %889 = sbr.rel (%p887) target = $region132
    $region131: #{forward.1} parent=5 // pred_region
      // Predicated region
      $region133: #{forward.1} parent=131 // pred_check
        %p890 = pneg %p91
      $region134: #{forward.1} parent=131 // pred_check_branch
        %892 = sbr.rel (%p890) target = $region136
      $region135: #{forward.1} parent=131 // pred_region
        %s893 = smul.u32 16, %s71
        %p894 = scmp.lt.s32.totalorder %s893, 63
        %s895 = scalar_select %p894, %s893, 63
        %s896 = smul.addr %s895, 2
        %s897 = smul.addr %s896, 8
        %s898 = scalar_lea.vmem %s1, %s897
        %s899 = smul.u32 16, %s71
      $region136: #{forward.1} parent=131 // pred_fallthru
        _
      // Predicated region
      $region137: #{forward.1} parent=131 // pred_check
        %p900 = pneg %p117
      $region138: #{forward.1} parent=131 // pred_check_branch
        %902 = sbr.rel (%p900) target = $region140
      $region139: #{forward.1} parent=131 // pred_region
        %s903 = smul.u32 2, %s71
        %p904 = scmp.lt.s32.totalorder %s903, 7
        %s905 = scalar_select %p904, %s903, 7
        %s906 = smul.addr %s905, 2
        %s907 = smul.addr %s906, 8
        %s908 = scalar_lea.vmem %s3, %s907
        %s909 = smul.u32 2, %s71
      $region140: #{forward.1} parent=131 // pred_fallthru
        _
      // Predicated region
      $region141: #{forward.1} parent=131 // pred_check
        %p910 = pneg %p143
      $region142: #{forward.1} parent=131 // pred_check_branch
        %912 = sbr.rel (%p910) target = $region144
      $region143: #{forward.1} parent=131 // pred_region
        %p913 = scmp.lt.s32.totalorder %s71, 3
        %s914 = scalar_select %p913, %s71, 3
        %s915 = smul.addr %s914, 16
        %s916 = smul.addr %s915, 8
        %s917 = scalar_lea.vmem %s5, %s916
      $region144: #{forward.1} parent=131 // pred_fallthru
        _
    $region132: #{forward.1} parent=5 // pred_fallthru
      _
    %p918 = scmp.le.s32.totalorder 1, %s71
    %p919 = scmp.lt.s32.totalorder %s71, 5
    %p920 = pnand %p918, %p919
    %p921 = pneg %p920
    // Predicated region
    $region145: #{forward.1} parent=5 // pred_check
      _
    $region146: #{forward.1} parent=5 // pred_check_branch
      %923 = sbr.rel (%p920) target = $region148
    $region147: #{forward.1} parent=5 // pred_region
      %s924 = ssub.s32 %s71, 1
      %s925 = smul.u32 16, %s76
      %p926 = scmp.lt.s32.totalorder %s925, 63
      %s927 = scalar_select %p926, %s925, 63
      %s928 = smul.addr %s927, 2
      %s929 = smul.addr %s928, 8
      %s930 = scalar_lea.vmem %s1, %s929
      %p931 = pneg %p97
      %p932 = pneg %p94
      %s933 = smul.u32 2, %s76
      %p934 = scmp.lt.s32.totalorder %s933, 7
      %s935 = scalar_select %p934, %s933, 7
      %s936 = smul.addr %s935, 2
      %s937 = smul.addr %s936, 8
      %s938 = scalar_lea.vmem %s3, %s937
      %p939 = pneg %p123
      %p940 = pneg %p120
      %p941 = scmp.lt.s32.totalorder %s76, 3
      %s942 = scalar_select %p941, %s76, 3
      %s943 = smul.addr %s942, 16
      %s944 = smul.addr %s943, 8
      %s945 = scalar_lea.vmem %s5, %s944
      %p946 = pneg %p149
      %p947 = pneg %p146
      %p948 = pneg %p170
      %p949 = pneg %p167
      %p950 = pneg %p191
      %p951 = pneg %p188
      %p952 = pneg %p212
      %p953 = pneg %p209
      %p954 = pneg %p233
      %p955 = pneg %p230
      %p956 = pneg %p254
      %p957 = pneg %p251
      %p958 = pneg %p275
      %p959 = pneg %p272
      %p960 = pneg %p296
      %p961 = pneg %p293
      %p962 = pneg %p317
      %p963 = pneg %p314
      %p964 = pneg %p338
      %p965 = pneg %p335
      %p966 = pneg %p359
      %p967 = pneg %p356
      %p968 = pneg %p380
      %p969 = pneg %p377
      %p970 = pneg %p401
      %p971 = pneg %p398
      %p972 = pneg %p422
      %p973 = pneg %p419
      %p974 = pneg %p443
      %p975 = pneg %p440
      %p976 = pneg %p464
      %p977 = pneg %p461
      %p978 = pneg %p485
      %p979 = pneg %p482
      %p980 = pneg %p506
      %p981 = pneg %p503
      %p982 = pneg %p527
      %p983 = pneg %p524
      %p984 = pneg %p548
      %p985 = pneg %p545
      %p986 = pneg %p569
      %p987 = pneg %p566
      %p988 = pneg %p590
      %p989 = pneg %p587
      %p990 = pneg %p611
      %p991 = pneg %p608
      %p992 = pneg %p632
      %p993 = pneg %p629
      %p994 = pneg %p653
      %p995 = pneg %p650
      %p996 = pneg %p674
      %p997 = pneg %p671
      %p998 = pneg %p695
      %p999 = pneg %p692
      %p1000 = pneg %p716
      %p1001 = pneg %p713
      %p1002 = pneg %p737
      %p1003 = pneg %p734
      %p1004 = pneg %p758
      %p1005 = pneg %p755
      %p1006 = pneg %p784
      %p1007 = pneg %p781
      %p1008 = scmp.lt.s32.totalorder %s76, 3
      %s1009 = scalar_select %p1008, %s76, 3
      %s1010 = scalar_lea.vmem %s65, %s1009
      %s1011 = smul.u32 16, %s76
      %p1012 = scmp.lt.s32.totalorder %s1011, 63
      %s1013 = scalar_select %p1012, %s1011, 63
      %s1014 = smul.addr %s1013, 2
      %s1015 = smul.addr %s1014, 8
      %s1016 = scalar_lea.vmem %s1, %s1015
      %s1017 = smul.u32 16, %s76
      %s1018 = smul.u32 2, %s76
      %p1019 = scmp.lt.s32.totalorder %s1018, 7
      %s1020 = scalar_select %p1019, %s1018, 7
      %s1021 = smul.addr %s1020, 2
      %s1022 = smul.addr %s1021, 8
      %s1023 = scalar_lea.vmem %s3, %s1022
      %s1024 = smul.u32 2, %s76
      %p1025 = scmp.lt.s32.totalorder %s76, 3
      %s1026 = scalar_select %p1025, %s76, 3
      %s1027 = smul.addr %s1026, 16
      %s1028 = smul.addr %s1027, 8
      %s1029 = scalar_lea.vmem %s5, %s1028
      %p1030 = scmp.lt.s32.totalorder %s76, 3
      %s1031 = scalar_select %p1030, %s76, 3
      %s1032 = scalar_lea.vmem %s65, %s1031
      %v1034 = vld [vmem:[%s1016] sm:$0xff]
      %v1035 = vld [vmem:[%s1016 + $0x8] sm:$0xff]
      %v1036 = vld [vmem:[%s1016 + $0x10] sm:$0xff]
      %v1037 = vld [vmem:[%s1016 + $0x18] sm:$0xff]
      %v1038 = vld [vmem:[%s1016 + $0x20] sm:$0xff]
      %v1039 = vld [vmem:[%s1016 + $0x28] sm:$0xff]
      %v1040 = vld [vmem:[%s1016 + $0x30] sm:$0xff]
      %v1041 = vld [vmem:[%s1016 + $0x38] sm:$0xff]
      %v1042 = vld [vmem:[%s1016 + $0x40] sm:$0xff]
      %v1043 = vld [vmem:[%s1016 + $0x48] sm:$0xff]
      %v1044 = vld [vmem:[%s1016 + $0x50] sm:$0xff]
      %v1045 = vld [vmem:[%s1016 + $0x58] sm:$0xff]
      %v1046 = vld [vmem:[%s1016 + $0x60] sm:$0xff]
      %v1047 = vld [vmem:[%s1016 + $0x68] sm:$0xff]
      %v1048 = vld [vmem:[%s1016 + $0x70] sm:$0xff]
      %v1049 = vld [vmem:[%s1016 + $0x78] sm:$0xff]
      %v1050 = vld [vmem:[%s1016 + $0x80] sm:$0xff]
      %v1051 = vld [vmem:[%s1016 + $0x88] sm:$0xff]
      %v1052 = vld [vmem:[%s1016 + $0x90] sm:$0xff]
      %v1053 = vld [vmem:[%s1016 + $0x98] sm:$0xff]
      %v1054 = vld [vmem:[%s1016 + $0xa0] sm:$0xff]
      %v1055 = vld [vmem:[%s1016 + $0xa8] sm:$0xff]
      %v1056 = vld [vmem:[%s1016 + $0xb0] sm:$0xff]
      %v1057 = vld [vmem:[%s1016 + $0xb8] sm:$0xff]
      %v1058 = vld [vmem:[%s1016 + $0xc0] sm:$0xff]
      %v1059 = vld [vmem:[%s1016 + $0xc8] sm:$0xff]
      %v1060 = vld [vmem:[%s1016 + $0xd0] sm:$0xff]
      %v1061 = vld [vmem:[%s1016 + $0xd8] sm:$0xff]
      %v1062 = vld [vmem:[%s1016 + $0xe0] sm:$0xff]
      %v1063 = vld [vmem:[%s1016 + $0xe8] sm:$0xff]
      %v1064 = vld [vmem:[%s1016 + $0xf0] sm:$0xff]
      %v1065 = vld [vmem:[%s1016 + $0xf8] sm:$0xff]
      %v1066 = vld [vmem:[%s1023] sm:$0xff]
      %v1067 = vld [vmem:[%s1023 + $0x8] sm:$0xff]
      %v1068 = vld [vmem:[%s1023 + $0x10] sm:$0xff]
      %v1069 = vld [vmem:[%s1023 + $0x18] sm:$0xff]
      %v1070 = vld [vmem:[%s7] sm:$0xf]
      %v1071 = vld [vmem:[%s7 + $0x4] sm:$0xf]
      %v1072 = vld [vmem:[%s7 + $0x8] sm:$0xf]
      %v1073 = vld [vmem:[%s7 + $0xc] sm:$0xf]
      %v1074 = vld [vmem:[%s7 + $0x10] sm:$0xf]
      %v1075 = vld [vmem:[%s7 + $0x14] sm:$0xf]
      %v1076 = vld [vmem:[%s7 + $0x18] sm:$0xf]
      %v1077 = vld [vmem:[%s7 + $0x1c] sm:$0xf]
      %v1078 = vld [vmem:[%s7 + $0x20] sm:$0xf]
      %v1079 = vld [vmem:[%s7 + $0x24] sm:$0xf]
      %v1080 = vld [vmem:[%s7 + $0x28] sm:$0xf]
      %v1081 = vld [vmem:[%s7 + $0x2c] sm:$0xf]
      %v1082 = vld [vmem:[%s7 + $0x30] sm:$0xf]
      %v1083 = vld [vmem:[%s7 + $0x34] sm:$0xf]
      %v1084 = vld [vmem:[%s7 + $0x38] sm:$0xf]
      %v1085 = vld [vmem:[%s7 + $0x3c] sm:$0xf]
      %v1086 = vld [vmem:[%s7 + $0x40] sm:$0xf]
      %v1087 = vld [vmem:[%s7 + $0x44] sm:$0xf]
      %v1088 = vld [vmem:[%s7 + $0x48] sm:$0xf]
      %v1089 = vld [vmem:[%s7 + $0x4c] sm:$0xf]
      %v1090 = vld [vmem:[%s7 + $0x50] sm:$0xf]
      %v1091 = vld [vmem:[%s7 + $0x54] sm:$0xf]
      %v1092 = vld [vmem:[%s7 + $0x58] sm:$0xf]
      %v1093 = vld [vmem:[%s7 + $0x5c] sm:$0xf]
      %v1094 = vpack.c.bf16 %v1036, %v1034
      %v1095 = vpack.c.bf16 %v1037, %v1035
      %v1096 = vpack.c.bf16 %v1040, %v1038
      %v1097 = vpack.c.bf16 %v1041, %v1039
      %v1098 = vpack.c.bf16 %v1044, %v1042
      %v1099 = vpack.c.bf16 %v1045, %v1043
      %v1100 = vpack.c.bf16 %v1048, %v1046
      %v1101 = vpack.c.bf16 %v1049, %v1047
      %v1102 = vpack.c.bf16 %v1052, %v1050
      %v1103 = vpack.c.bf16 %v1053, %v1051
      %v1104 = vpack.c.bf16 %v1056, %v1054
      %v1105 = vpack.c.bf16 %v1057, %v1055
      %v1106 = vpack.c.bf16 %v1060, %v1058
      %v1107 = vpack.c.bf16 %v1061, %v1059
      %v1108 = vpack.c.bf16 %v1064, %v1062
      %v1109 = vpack.c.bf16 %v1065, %v1063
      %v1110 = vld [vmem:[%s9] sm:$0x1]
      %v1112 = vlaneseq
      %v1113 = vshrl.u32 %v1112, 7
      %v1114 = vsub.s32 0, %v1113
      %v1115 = vrot.slane %v1110, %v1114
      %v1141 = vunpack.c.l.b16 %v1070
      %v1142 = vunpack.c.l.b16 %v1071
      %v1143 = vunpack.c.l.b16 %v1072
      %v1144 = vunpack.c.l.b16 %v1073
      %v1145 = vunpack.c.l.b16 %v1074
      %v1146 = vunpack.c.l.b16 %v1075
      %v1147 = vunpack.c.l.b16 %v1076
      %v1148 = vunpack.c.l.b16 %v1077
      %v1149 = vunpack.c.l.b16 %v1078
      %v1150 = vunpack.c.l.b16 %v1079
      %v1151 = vunpack.c.l.b16 %v1080
      %v1152 = vunpack.c.l.b16 %v1081
      %v1153 = vunpack.c.l.b16 %v1082
      %v1154 = vunpack.c.l.b16 %v1083
      %v1155 = vunpack.c.l.b16 %v1084
      %v1156 = vunpack.c.l.b16 %v1085
      %v1157 = vunpack.c.l.b16 %v1086
      %v1158 = vunpack.c.l.b16 %v1087
      %v1159 = vunpack.c.l.b16 %v1088
      %v1160 = vunpack.c.l.b16 %v1089
      %v1161 = vunpack.c.l.b16 %v1090
      %v1162 = vunpack.c.l.b16 %v1091
      %v1163 = vunpack.c.l.b16 %v1092
      %v1164 = vunpack.c.l.b16 %v1093
      %v1165 = vpack.c.b16 %v1142, %v1141
      %v1166 = vpack.c.b16 %v1144, %v1143
      %v1167 = vpack.c.b16 %v1146, %v1145
      %v1168 = vpack.c.b16 %v1148, %v1147
      %v1169 = vpack.c.b16 %v1150, %v1149
      %v1170 = vpack.c.b16 %v1152, %v1151
      %v1171 = vpack.c.b16 %v1154, %v1153
      %v1172 = vpack.c.b16 %v1156, %v1155
      %v1173 = vpack.c.b16 %v1158, %v1157
      %v1174 = vpack.c.b16 %v1160, %v1159
      %v1175 = vpack.c.b16 %v1162, %v1161
      %v1176 = vpack.c.b16 %v1164, %v1163
      %vm1189 = vcmask 523264
      %v1191 = vsel %vm1189, %v1095, 0
      %v1194 = vsel %vm1189, %v1097, 0
      %v1197 = vsel %vm1189, %v1099, 0
      %v1200 = vsel %vm1189, %v1101, 0
      %v1203 = vsel %vm1189, %v1103, 0
      %v1206 = vsel %vm1189, %v1105, 0
      %v1209 = vsel %vm1189, %v1107, 0
      %v1212 = vsel %vm1189, %v1109, 0
      %1214 = vmatprep.subr.bf16.mxu0 0
      %1215 = vmatpush1.bf16.msra.mxu0 %v1172
      %1216 = vmatprep.subr.bf16.mxu0 0
      %1217 = vmatpush1.bf16.msra.mxu0 %v1171
      %1218 = vmatprep.subr.bf16.mxu0 0
      %1219 = vmatpush1.bf16.msra.mxu0 %v1170
      %1220 = vmatprep.subr.bf16.mxu0 0
      %1221 = vmatpush1.bf16.msra.mxu0 %v1169
      %1222 = vmatprep.subr.bf16.mxu0 0
      %1223 = vmatpush1.bf16.msra.mxu0 %v1168
      %1224 = vmatprep.subr.bf16.mxu0 0
      %1225 = vmatpush1.bf16.msra.mxu0 %v1167
      %1226 = vmatprep.subr.bf16.mxu0 0
      %1227 = vmatpush1.bf16.msra.mxu0 %v1166
      %1228 = vmatprep.subr.bf16.mxu0 0
      %1229 = vmatpush1.bf16.msra.mxu0 %v1165
      %1230 = vmatprep.subr.bf16.mxu0 0
      %1231 = vmatpush2.bf16.msra.mxu0 0
      %1232 = vmatprep.subr.bf16.mxu0 0
      %1233 = vmatpush2.bf16.msra.mxu0 0
      %1234 = vmatprep.subr.bf16.mxu0 0
      %1235 = vmatpush2.bf16.msra.mxu0 0
      %1236 = vmatprep.subr.bf16.mxu0 0
      %1237 = vmatpush2.bf16.msra.mxu0 0
      %1238 = vmatprep.subr.bf16.mxu0 0
      %1239 = vmatpush2.bf16.msra.mxu0 %v1176
      %1240 = vmatprep.subr.bf16.mxu0 0
      %1241 = vmatpush2.bf16.msra.mxu0 %v1175
      %1242 = vmatprep.subr.bf16.mxu0 0
      %1243 = vmatpush2.bf16.msra.mxu0 %v1174
      %1244 = vmatprep.subr.bf16.mxu0 0
      %1245 = vmatpush2.bf16.msra.mxu0 %v1173
      %1246 = vmatprep.mubr.bf16.mxu0 %v1191
      %1247 = vmatmul.mubr.bf16.gmra.mxu0 %v1094
      %v1248 = vpop.f32.mrf.mxu0
      %v1249 = vadd.f32 %v1115, %v1248
      %v1250 = vpop.f32.mrf.mxu0
      %v1251 = vpop.f32.mrf.mxu0
      %v1252 = vadd.f32 %v1115, %v1251
      %v1253 = vpop.f32.mrf.mxu0
      %1254 = vmatprep.mubr.bf16.mxu0 %v1194
      %1255 = vmatmul.mubr.bf16.gmra.mxu0 %v1096
      %v1256 = vpop.f32.mrf.mxu0
      %v1257 = vadd.f32 %v1115, %v1256
      %v1258 = vpop.f32.mrf.mxu0
      %v1259 = vpop.f32.mrf.mxu0
      %v1260 = vadd.f32 %v1115, %v1259
      %v1261 = vpop.f32.mrf.mxu0
      %1262 = vmatprep.mubr.bf16.mxu0 %v1197
      %1263 = vmatmul.mubr.bf16.gmra.mxu0 %v1098
      %v1264 = vpop.f32.mrf.mxu0
      %v1265 = vadd.f32 %v1115, %v1264
      %v1266 = vpop.f32.mrf.mxu0
      %v1267 = vpop.f32.mrf.mxu0
      %v1268 = vadd.f32 %v1115, %v1267
      %v1269 = vpop.f32.mrf.mxu0
      %1270 = vmatprep.mubr.bf16.mxu0 %v1200
      %1271 = vmatmul.mubr.bf16.gmra.mxu0 %v1100
      %v1272 = vpop.f32.mrf.mxu0
      %v1273 = vadd.f32 %v1115, %v1272
      %v1274 = vpop.f32.mrf.mxu0
      %v1275 = vpop.f32.mrf.mxu0
      %v1276 = vadd.f32 %v1115, %v1275
      %v1277 = vpop.f32.mrf.mxu0
      %1278 = vmatprep.mubr.bf16.mxu0 %v1203
      %1279 = vmatmul.mubr.bf16.gmra.mxu0 %v1102
      %v1280 = vpop.f32.mrf.mxu0
      %v1281 = vadd.f32 %v1115, %v1280
      %v1282 = vpop.f32.mrf.mxu0
      %v1283 = vpop.f32.mrf.mxu0
      %v1284 = vadd.f32 %v1115, %v1283
      %v1285 = vpop.f32.mrf.mxu0
      %1286 = vmatprep.mubr.bf16.mxu0 %v1206
      %1287 = vmatmul.mubr.bf16.gmra.mxu0 %v1104
      %v1288 = vpop.f32.mrf.mxu0
      %v1289 = vadd.f32 %v1115, %v1288
      %v1290 = vpop.f32.mrf.mxu0
      %v1291 = vpop.f32.mrf.mxu0
      %v1292 = vadd.f32 %v1115, %v1291
      %v1293 = vpop.f32.mrf.mxu0
      %1294 = vmatprep.mubr.bf16.mxu0 %v1209
      %1295 = vmatmul.mubr.bf16.gmra.mxu0 %v1106
      %v1296 = vpop.f32.mrf.mxu0
      %v1297 = vadd.f32 %v1115, %v1296
      %v1298 = vpop.f32.mrf.mxu0
      %v1299 = vpop.f32.mrf.mxu0
      %v1300 = vadd.f32 %v1115, %v1299
      %v1301 = vpop.f32.mrf.mxu0
      %1302 = vmatprep.mubr.bf16.mxu0 %v1212
      %1303 = vmatmul.mubr.bf16.gmra.mxu0 %v1108
      %v1304 = vpop.f32.mrf.mxu0
      %v1305 = vadd.f32 %v1115, %v1304
      %v1306 = vpop.f32.mrf.mxu0
      %v1307 = vpop.f32.mrf.mxu0
      %v1308 = vadd.f32 %v1115, %v1307
      %v1309 = vpop.f32.mrf.mxu0
      %1310 = vdwg.mxu0
      %v1311 = vld [vmem:[%s11] sm:$0xf]
      %v1312 = vld [vmem:[%s11 + $0x4] sm:$0xf]
      %v1313 = vld [vmem:[%s11 + $0x8] sm:$0xf]
      %v1314 = vld [vmem:[%s11 + $0xc] sm:$0xf]
      %v1315 = vld [vmem:[%s11 + $0x10] sm:$0xf]
      %v1316 = vld [vmem:[%s11 + $0x14] sm:$0xf]
      %v1317 = vld [vmem:[%s11 + $0x18] sm:$0xf]
      %v1318 = vld [vmem:[%s11 + $0x1c] sm:$0xf]
      %v1319 = vld [vmem:[%s11 + $0x20] sm:$0xf]
      %v1320 = vld [vmem:[%s11 + $0x24] sm:$0xf]
      %v1321 = vld [vmem:[%s11 + $0x28] sm:$0xf]
      %v1322 = vld [vmem:[%s11 + $0x2c] sm:$0xf]
      %v1323 = vld [vmem:[%s11 + $0x30] sm:$0xf]
      %v1324 = vld [vmem:[%s11 + $0x34] sm:$0xf]
      %v1325 = vld [vmem:[%s11 + $0x38] sm:$0xf]
      %v1326 = vld [vmem:[%s11 + $0x3c] sm:$0xf]
      %v1327 = vld [vmem:[%s11 + $0x40] sm:$0xf]
      %v1328 = vld [vmem:[%s11 + $0x44] sm:$0xf]
      %v1329 = vld [vmem:[%s11 + $0x48] sm:$0xf]
      %v1330 = vld [vmem:[%s11 + $0x4c] sm:$0xf]
      %v1331 = vld [vmem:[%s11 + $0x50] sm:$0xf]
      %v1332 = vld [vmem:[%s11 + $0x54] sm:$0xf]
      %v1333 = vld [vmem:[%s11 + $0x58] sm:$0xf]
      %v1334 = vld [vmem:[%s11 + $0x5c] sm:$0xf]
      %v1335 = vld [vmem:[%s11 + $0x60] sm:$0xf]
      %v1336 = vld [vmem:[%s11 + $0x64] sm:$0xf]
      %v1337 = vld [vmem:[%s11 + $0x68] sm:$0xf]
      %v1338 = vld [vmem:[%s11 + $0x6c] sm:$0xf]
      %v1339 = vld [vmem:[%s11 + $0x70] sm:$0xf]
      %v1340 = vld [vmem:[%s11 + $0x74] sm:$0xf]
      %v1341 = vld [vmem:[%s11 + $0x78] sm:$0xf]
      %v1342 = vld [vmem:[%s11 + $0x7c] sm:$0xf]
      %v1343 = vpack.c.bf16 %v1068, %v1066
      %v1344 = vpack.c.bf16 %v1069, %v1067
      %v1345 = vld [vmem:[%s13] sm:$0x1]
      %v1347 = vlaneseq
      %v1348 = vshrl.u32 %v1347, 7
      %v1349 = vsub.s32 0, %v1348
      %v1350 = vrot.slane %v1345, %v1349
      %v1384 = vunpack.c.l.b16 %v1311
      %v1385 = vunpack.c.l.b16 %v1312
      %v1386 = vunpack.c.l.b16 %v1313
      %v1387 = vunpack.c.l.b16 %v1314
      %v1388 = vunpack.c.l.b16 %v1315
      %v1389 = vunpack.c.l.b16 %v1316
      %v1390 = vunpack.c.l.b16 %v1317
      %v1391 = vunpack.c.l.b16 %v1318
      %v1392 = vunpack.c.l.b16 %v1319
      %v1393 = vunpack.c.l.b16 %v1320
      %v1394 = vunpack.c.l.b16 %v1321
      %v1395 = vunpack.c.l.b16 %v1322
      %v1396 = vunpack.c.l.b16 %v1323
      %v1397 = vunpack.c.l.b16 %v1324
      %v1398 = vunpack.c.l.b16 %v1325
      %v1399 = vunpack.c.l.b16 %v1326
      %v1400 = vunpack.c.l.b16 %v1327
      %v1401 = vunpack.c.l.b16 %v1328
      %v1402 = vunpack.c.l.b16 %v1329
      %v1403 = vunpack.c.l.b16 %v1330
      %v1404 = vunpack.c.l.b16 %v1331
      %v1405 = vunpack.c.l.b16 %v1332
      %v1406 = vunpack.c.l.b16 %v1333
      %v1407 = vunpack.c.l.b16 %v1334
      %v1408 = vunpack.c.l.b16 %v1335
      %v1409 = vunpack.c.l.b16 %v1336
      %v1410 = vunpack.c.l.b16 %v1337
      %v1411 = vunpack.c.l.b16 %v1338
      %v1412 = vunpack.c.l.b16 %v1339
      %v1413 = vunpack.c.l.b16 %v1340
      %v1414 = vunpack.c.l.b16 %v1341
      %v1415 = vunpack.c.l.b16 %v1342
      %v1416 = vpack.c.b16 %v1385, %v1384
      %v1417 = vpack.c.b16 %v1387, %v1386
      %v1418 = vpack.c.b16 %v1389, %v1388
      %v1419 = vpack.c.b16 %v1391, %v1390
      %v1420 = vpack.c.b16 %v1393, %v1392
      %v1421 = vpack.c.b16 %v1395, %v1394
      %v1422 = vpack.c.b16 %v1397, %v1396
      %v1423 = vpack.c.b16 %v1399, %v1398
      %v1424 = vpack.c.b16 %v1401, %v1400
      %v1425 = vpack.c.b16 %v1403, %v1402
      %v1426 = vpack.c.b16 %v1405, %v1404
      %v1427 = vpack.c.b16 %v1407, %v1406
      %v1428 = vpack.c.b16 %v1409, %v1408
      %v1429 = vpack.c.b16 %v1411, %v1410
      %v1430 = vpack.c.b16 %v1413, %v1412
      %v1431 = vpack.c.b16 %v1415, %v1414
      %1448 = vmatprep.subr.bf16.mxu0 0
      %1449 = vmatpush1.bf16.msra.mxu0 %v1423
      %1450 = vmatprep.subr.bf16.mxu0 0
      %1451 = vmatpush1.bf16.msra.mxu0 %v1422
      %1452 = vmatprep.subr.bf16.mxu0 0
      %1453 = vmatpush1.bf16.msra.mxu0 %v1421
      %1454 = vmatprep.subr.bf16.mxu0 0
      %1455 = vmatpush1.bf16.msra.mxu0 %v1420
      %1456 = vmatprep.subr.bf16.mxu0 0
      %1457 = vmatpush1.bf16.msra.mxu0 %v1419
      %1458 = vmatprep.subr.bf16.mxu0 0
      %1459 = vmatpush1.bf16.msra.mxu0 %v1418
      %1460 = vmatprep.subr.bf16.mxu0 0
      %1461 = vmatpush1.bf16.msra.mxu0 %v1417
      %1462 = vmatprep.subr.bf16.mxu0 0
      %1463 = vmatpush1.bf16.msra.mxu0 %v1416
      %1464 = vmatprep.subr.bf16.mxu0 0
      %1465 = vmatpush2.bf16.msra.mxu0 %v1431
      %1466 = vmatprep.subr.bf16.mxu0 0
      %1467 = vmatpush2.bf16.msra.mxu0 %v1430
      %1468 = vmatprep.subr.bf16.mxu0 0
      %1469 = vmatpush2.bf16.msra.mxu0 %v1429
      %1470 = vmatprep.subr.bf16.mxu0 0
      %1471 = vmatpush2.bf16.msra.mxu0 %v1428
      %1472 = vmatprep.subr.bf16.mxu0 0
      %1473 = vmatpush2.bf16.msra.mxu0 %v1427
      %1474 = vmatprep.subr.bf16.mxu0 0
      %1475 = vmatpush2.bf16.msra.mxu0 %v1426
      %1476 = vmatprep.subr.bf16.mxu0 0
      %1477 = vmatpush2.bf16.msra.mxu0 %v1425
      %1478 = vmatprep.subr.bf16.mxu0 0
      %1479 = vmatpush2.bf16.msra.mxu0 %v1424
      %1480 = vmatprep.mubr.bf16.mxu0 %v1344
      %1481 = vmatmul.mubr.bf16.gmra.mxu0 %v1343
      %v1482 = vpop.f32.mrf.mxu0
      %v1483 = vadd.f32 %v1350, %v1482
      %v1484 = vpop.f32.mrf.mxu0
      %v1485 = vpop.f32.mrf.mxu0
      %v1486 = vadd.f32 %v1350, %v1485
      %v1487 = vpop.f32.mrf.mxu0
      %1488 = vdwg.mxu0
      %v1489 = vld [vmem:[%s43] sm:$0xff]
      %v1490 = vld [vmem:[%s43 + $0x8] sm:$0xff]
      %v1491 = vld [vmem:[%s43 + $0x10] sm:$0xff]
      %v1492 = vld [vmem:[%s43 + $0x18] sm:$0xff]
      %v1493 = vld [vmem:[%s43 + $0x20] sm:$0xff]
      %v1494 = vld [vmem:[%s43 + $0x28] sm:$0xff]
      %v1495 = vld [vmem:[%s43 + $0x30] sm:$0xff]
      %v1496 = vld [vmem:[%s43 + $0x38] sm:$0xff]
      %v1497 = vld [vmem:[%s43 + $0x40] sm:$0xff]
      %v1498 = vld [vmem:[%s43 + $0x48] sm:$0xff]
      %v1499 = vld [vmem:[%s43 + $0x50] sm:$0xff]
      %v1500 = vld [vmem:[%s43 + $0x58] sm:$0xff]
      %v1501 = vld [vmem:[%s43 + $0x60] sm:$0xff]
      %v1502 = vld [vmem:[%s43 + $0x68] sm:$0xff]
      %v1503 = vld [vmem:[%s43 + $0x70] sm:$0xff]
      %v1504 = vld [vmem:[%s43 + $0x78] sm:$0xff]
      %v1505 = vld [vmem:[%s43 + $0x80] sm:$0xff]
      %v1506 = vld [vmem:[%s43 + $0x88] sm:$0xff]
      %v1507 = vld [vmem:[%s43 + $0x90] sm:$0xff]
      %v1508 = vld [vmem:[%s43 + $0x98] sm:$0xff]
      %v1509 = vld [vmem:[%s43 + $0xa0] sm:$0xff]
      %v1510 = vld [vmem:[%s43 + $0xa8] sm:$0xff]
      %v1511 = vld [vmem:[%s43 + $0xb0] sm:$0xff]
      %v1512 = vld [vmem:[%s43 + $0xb8] sm:$0xff]
      %v1513 = vld [vmem:[%s43 + $0xc0] sm:$0xff]
      %v1514 = vld [vmem:[%s43 + $0xc8] sm:$0xff]
      %v1515 = vld [vmem:[%s43 + $0xd0] sm:$0xff]
      %v1516 = vld [vmem:[%s43 + $0xd8] sm:$0xff]
      %v1517 = vld [vmem:[%s43 + $0xe0] sm:$0xff]
      %v1518 = vld [vmem:[%s43 + $0xe8] sm:$0xff]
      %v1519 = vld [vmem:[%s43 + $0xf0] sm:$0xff]
      %v1520 = vld [vmem:[%s43 + $0xf8] sm:$0xff]
      %v1521 = vld [vmem:[%s43 + $0x100] sm:$0xff]
      %v1522 = vld [vmem:[%s43 + $0x108] sm:$0xff]
      %v1523 = vld [vmem:[%s43 + $0x110] sm:$0xff]
      %v1524 = vld [vmem:[%s43 + $0x118] sm:$0xff]
      %v1525 = vld [vmem:[%s15] sm:$0xf]
      %v1526 = vld [vmem:[%s15 + $0x4] sm:$0xf]
      %v1527 = vld [vmem:[%s15 + $0x8] sm:$0xf]
      %v1528 = vld [vmem:[%s15 + $0xc] sm:$0xf]
      %v1529 = vpack.c.bf16 %v1252, %v1249
      %v1530 = vpack.c.bf16 %v1260, %v1257
      %v1531 = vpack.c.bf16 %v1268, %v1265
      %v1532 = vpack.c.bf16 %v1276, %v1273
      %v1533 = vpack.c.bf16 %v1284, %v1281
      %v1534 = vpack.c.bf16 %v1292, %v1289
      %v1535 = vpack.c.bf16 %v1300, %v1297
      %v1536 = vpack.c.bf16 %v1308, %v1305
      %v1537 = vpack.c.bf16 %v1486, %v1483
      %v1538 = vld [vmem:[%s17] sm:$0x1]
      %v1540 = vlaneseq
      %v1541 = vshrl.u32 %v1540, 7
      %v1542 = vsub.s32 0, %v1541
      %v1543 = vrot.slane %v1538, %v1542
      %v1549 = vunpack.c.l.b16 %v1525
      %v1550 = vunpack.c.l.b16 %v1526
      %v1551 = vunpack.c.l.b16 %v1527
      %v1552 = vunpack.c.l.b16 %v1528
      %v1553 = vpack.c.b16 %v1550, %v1549
      %v1554 = vpack.c.b16 %v1552, %v1551
      %vm1557 = vcmask 261120
      %v1559 = vsel %vm1557, %v1529, 0
      %v1562 = vsel %vm1557, %v1530, 0
      %v1565 = vsel %vm1557, %v1531, 0
      %v1568 = vsel %vm1557, %v1532, 0
      %v1571 = vsel %vm1557, %v1533, 0
      %v1574 = vsel %vm1557, %v1534, 0
      %v1577 = vsel %vm1557, %v1535, 0
      %v1580 = vsel %vm1557, %v1536, 0
      %v1583 = vsel %vm1557, %v1537, 0
      %1585 = vmatprep.subr.bf16.mxu0 0
      %1586 = vmatpush1.bf16.msra.mxu0 0
      %1587 = vmatprep.subr.bf16.mxu0 0
      %1588 = vmatpush1.bf16.msra.mxu0 0
      %1589 = vmatprep.subr.bf16.mxu0 0
      %1590 = vmatpush1.bf16.msra.mxu0 0
      %1591 = vmatprep.subr.bf16.mxu0 0
      %1592 = vmatpush1.bf16.msra.mxu0 0
      %1593 = vmatprep.subr.bf16.mxu0 0
      %1594 = vmatpush1.bf16.msra.mxu0 0
      %1595 = vmatprep.subr.bf16.mxu0 0
      %1596 = vmatpush1.bf16.msra.mxu0 0
      %1597 = vmatprep.subr.bf16.mxu0 0
      %1598 = vmatpush1.bf16.msra.mxu0 %v1554
      %1599 = vmatprep.subr.bf16.mxu0 0
      %1600 = vmatpush1.bf16.msra.mxu0 %v1553
      %1601 = vmatprep.subr.bf16.mxu0 0
      %1602 = vmatpush2.bf16.msra.mxu0 0
      %1603 = vmatprep.subr.bf16.mxu0 0
      %1604 = vmatpush2.bf16.msra.mxu0 0
      %1605 = vmatprep.subr.bf16.mxu0 0
      %1606 = vmatpush2.bf16.msra.mxu0 0
      %1607 = vmatprep.subr.bf16.mxu0 0
      %1608 = vmatpush2.bf16.msra.mxu0 0
      %1609 = vmatprep.subr.bf16.mxu0 0
      %1610 = vmatpush2.bf16.msra.mxu0 0
      %1611 = vmatprep.subr.bf16.mxu0 0
      %1612 = vmatpush2.bf16.msra.mxu0 0
      %1613 = vmatprep.subr.bf16.mxu0 0
      %1614 = vmatpush2.bf16.msra.mxu0 0
      %1615 = vmatprep.subr.bf16.mxu0 0
      %1616 = vmatpush2.bf16.msra.mxu0 0
      %1617 = vmatprep.mubr.bf16.mxu0 0
      %1618 = vmatmul.mubr.bf16.gmra.mxu0 %v1559
      %v1619 = vpop.f32.mrf.mxu0
      %v1620 = vadd.f32 %v1543, %v1619
      %v1621 = vpop.f32.mrf.mxu0
      %v1622 = vpop.f32.mrf.mxu0
      %v1623 = vadd.f32 %v1543, %v1622
      %v1624 = vpop.f32.mrf.mxu0
      %1625 = vmatprep.mubr.bf16.mxu0 0
      %1626 = vmatmul.mubr.bf16.gmra.mxu0 %v1562
      %v1627 = vpop.f32.mrf.mxu0
      %v1628 = vadd.f32 %v1543, %v1627
      %v1629 = vpop.f32.mrf.mxu0
      %v1630 = vpop.f32.mrf.mxu0
      %v1631 = vadd.f32 %v1543, %v1630
      %v1632 = vpop.f32.mrf.mxu0
      %1633 = vmatprep.mubr.bf16.mxu0 0
      %1634 = vmatmul.mubr.bf16.gmra.mxu0 %v1565
      %v1635 = vpop.f32.mrf.mxu0
      %v1636 = vadd.f32 %v1543, %v1635
      %v1637 = vpop.f32.mrf.mxu0
      %v1638 = vpop.f32.mrf.mxu0
      %v1639 = vadd.f32 %v1543, %v1638
      %v1640 = vpop.f32.mrf.mxu0
      %1641 = vmatprep.mubr.bf16.mxu0 0
      %1642 = vmatmul.mubr.bf16.gmra.mxu0 %v1568
      %v1643 = vpop.f32.mrf.mxu0
      %v1644 = vadd.f32 %v1543, %v1643
      %v1645 = vpop.f32.mrf.mxu0
      %v1646 = vpop.f32.mrf.mxu0
      %v1647 = vadd.f32 %v1543, %v1646
      %v1648 = vpop.f32.mrf.mxu0
      %1649 = vmatprep.mubr.bf16.mxu0 0
      %1650 = vmatmul.mubr.bf16.gmra.mxu0 %v1571
      %v1651 = vpop.f32.mrf.mxu0
      %v1652 = vadd.f32 %v1543, %v1651
      %v1653 = vpop.f32.mrf.mxu0
      %v1654 = vpop.f32.mrf.mxu0
      %v1655 = vadd.f32 %v1543, %v1654
      %v1656 = vpop.f32.mrf.mxu0
      %1657 = vmatprep.mubr.bf16.mxu0 0
      %1658 = vmatmul.mubr.bf16.gmra.mxu0 %v1574
      %v1659 = vpop.f32.mrf.mxu0
      %v1660 = vadd.f32 %v1543, %v1659
      %v1661 = vpop.f32.mrf.mxu0
      %v1662 = vpop.f32.mrf.mxu0
      %v1663 = vadd.f32 %v1543, %v1662
      %v1664 = vpop.f32.mrf.mxu0
      %1665 = vmatprep.mubr.bf16.mxu0 0
      %1666 = vmatmul.mubr.bf16.gmra.mxu0 %v1577
      %v1667 = vpop.f32.mrf.mxu0
      %v1668 = vadd.f32 %v1543, %v1667
      %v1669 = vpop.f32.mrf.mxu0
      %v1670 = vpop.f32.mrf.mxu0
      %v1671 = vadd.f32 %v1543, %v1670
      %v1672 = vpop.f32.mrf.mxu0
      %1673 = vmatprep.mubr.bf16.mxu0 0
      %1674 = vmatmul.mubr.bf16.gmra.mxu0 %v1580
      %v1675 = vpop.f32.mrf.mxu0
      %v1676 = vadd.f32 %v1543, %v1675
      %v1677 = vpop.f32.mrf.mxu0
      %v1678 = vpop.f32.mrf.mxu0
      %v1679 = vadd.f32 %v1543, %v1678
      %v1680 = vpop.f32.mrf.mxu0
      %1681 = vmatprep.mubr.bf16.mxu0 0
      %1682 = vmatmul.mubr.bf16.gmra.mxu0 %v1583
      %v1683 = vpop.f32.mrf.mxu0
      %v1684 = vadd.f32 %v1543, %v1683
      %v1685 = vpop.f32.mrf.mxu0
      %v1686 = vpop.f32.mrf.mxu0
      %v1687 = vadd.f32 %v1543, %v1686
      %v1688 = vpop.f32.mrf.mxu0
      %1689 = vdwg.mxu0
      %v1690 = vpack.c.bf16 %v1623, %v1620
      %v1691 = vpack.c.bf16 %v1631, %v1628
      %v1692 = vpack.c.bf16 %v1639, %v1636
      %v1693 = vpack.c.bf16 %v1647, %v1644
      %v1694 = vpack.c.bf16 %v1655, %v1652
      %v1695 = vpack.c.bf16 %v1663, %v1660
      %v1696 = vpack.c.bf16 %v1671, %v1668
      %v1697 = vpack.c.bf16 %v1679, %v1676
      %v1698 = vpack.c.bf16 %v1687, %v1684
      %1708 = vrot.lane.b32.xlu0 %v1690, 96
      %v1709 = vpop.permute.xlu0 %1708
      %1710 = vrot.lane.b32.xlu0 %v1691, 96
      %v1711 = vpop.permute.xlu0 %1710
      %1712 = vrot.lane.b32.xlu0 %v1692, 96
      %v1713 = vpop.permute.xlu0 %1712
      %1714 = vrot.lane.b32.xlu0 %v1693, 96
      %v1715 = vpop.permute.xlu0 %1714
      %1716 = vrot.lane.b32.xlu0 %v1694, 96
      %v1717 = vpop.permute.xlu0 %1716
      %1718 = vrot.lane.b32.xlu0 %v1695, 96
      %v1719 = vpop.permute.xlu0 %1718
      %1720 = vrot.lane.b32.xlu0 %v1696, 96
      %v1721 = vpop.permute.xlu0 %1720
      %1722 = vrot.lane.b32.xlu0 %v1697, 96
      %v1723 = vpop.permute.xlu0 %1722
      %1724 = vrot.lane.b32.xlu0 %v1698, 96
      %v1725 = vpop.permute.xlu0 %1724
      %v1727 = vsel %vm1557, %v1690, 0
      %v1730 = vsel %vm1557, %v1691, 0
      %v1733 = vsel %vm1557, %v1692, 0
      %v1736 = vsel %vm1557, %v1693, 0
      %v1739 = vsel %vm1557, %v1694, 0
      %v1742 = vsel %vm1557, %v1695, 0
      %v1745 = vsel %vm1557, %v1696, 0
      %v1748 = vsel %vm1557, %v1697, 0
      %v1751 = vsel %vm1557, %v1698, 0
      %v1754 = vsel %vm1557, %v1709, 0
      %v1757 = vsel %vm1557, %v1711, 0
      %v1760 = vsel %vm1557, %v1713, 0
      %v1763 = vsel %vm1557, %v1715, 0
      %v1766 = vsel %vm1557, %v1717, 0
      %v1769 = vsel %vm1557, %v1719, 0
      %v1772 = vsel %vm1557, %v1721, 0
      %v1775 = vsel %vm1557, %v1723, 0
      %v1778 = vsel %vm1557, %v1725, 0
      %1780 = vmatprep.subr.bf16.mxu0 0
      %1781 = vmatpush1.bf16.xpose.msra.mxu0 %v1775
      %1782 = vmatprep.subr.bf16.mxu0 0
      %1783 = vmatpush1.bf16.xpose.msra.mxu0 %v1772
      %1784 = vmatprep.subr.bf16.mxu0 0
      %1785 = vmatpush1.bf16.xpose.msra.mxu0 %v1769
      %1786 = vmatprep.subr.bf16.mxu0 0
      %1787 = vmatpush1.bf16.xpose.msra.mxu0 %v1766
      %1788 = vmatprep.subr.bf16.mxu0 0
      %1789 = vmatpush1.bf16.xpose.msra.mxu0 %v1763
      %1790 = vmatprep.subr.bf16.mxu0 0
      %1791 = vmatpush1.bf16.xpose.msra.mxu0 %v1760
      %1792 = vmatprep.subr.bf16.mxu0 0
      %1793 = vmatpush1.bf16.xpose.msra.mxu0 %v1757
      %1794 = vmatprep.subr.bf16.mxu0 0
      %1795 = vmatpush1.bf16.xpose.msra.mxu0 %v1754
      %1796 = vmatprep.subr.bf16.mxu0 0
      %1797 = vmatpush2.bf16.xpose.msra.mxu0 0
      %1798 = vmatprep.subr.bf16.mxu0 0
      %1799 = vmatpush2.bf16.xpose.msra.mxu0 0
      %1800 = vmatprep.subr.bf16.mxu0 0
      %1801 = vmatpush2.bf16.xpose.msra.mxu0 0
      %1802 = vmatprep.subr.bf16.mxu0 0
      %1803 = vmatpush2.bf16.xpose.msra.mxu0 0
      %1804 = vmatprep.subr.bf16.mxu0 0
      %1805 = vmatpush2.bf16.xpose.msra.mxu0 0
      %1806 = vmatprep.subr.bf16.mxu0 0
      %1807 = vmatpush2.bf16.xpose.msra.mxu0 0
      %1808 = vmatprep.subr.bf16.mxu0 0
      %1809 = vmatpush2.bf16.xpose.msra.mxu0 0
      %1810 = vmatprep.subr.bf16.mxu0 0
      %1811 = vmatpush2.bf16.xpose.msra.mxu0 %v1778
      %1812 = vmatprep.mubr.bf16.mxu0 0
      %1813 = vmatmul.mubr.bf16.gmra.mxu0 %v1727
      %v1814 = vpop.f32.mrf.mxu0
      %v1815 = vadd.f32 0.0, %v1814
      %v1816 = vpop.f32.mrf.mxu0
      %v1817 = vadd.f32 0.0, %v1816
      %v1818 = vpop.f32.mrf.mxu0
      %v1819 = vadd.f32 0.0, %v1818
      %v1820 = vpop.f32.mrf.mxu0
      %v1821 = vadd.f32 0.0, %v1820
      %1822 = vmatprep.mubr.bf16.mxu0 0
      %1823 = vmatmul.mubr.bf16.gmra.mxu0 %v1730
      %v1824 = vpop.f32.mrf.mxu0
      %v1825 = vadd.f32 0.0, %v1824
      %v1826 = vpop.f32.mrf.mxu0
      %v1827 = vadd.f32 0.0, %v1826
      %v1828 = vpop.f32.mrf.mxu0
      %v1829 = vadd.f32 0.0, %v1828
      %v1830 = vpop.f32.mrf.mxu0
      %v1831 = vadd.f32 0.0, %v1830
      %1832 = vmatprep.mubr.bf16.mxu0 0
      %1833 = vmatmul.mubr.bf16.gmra.mxu0 %v1733
      %v1834 = vpop.f32.mrf.mxu0
      %v1835 = vadd.f32 0.0, %v1834
      %v1836 = vpop.f32.mrf.mxu0
      %v1837 = vadd.f32 0.0, %v1836
      %v1838 = vpop.f32.mrf.mxu0
      %v1839 = vadd.f32 0.0, %v1838
      %v1840 = vpop.f32.mrf.mxu0
      %v1841 = vadd.f32 0.0, %v1840
      %1842 = vmatprep.mubr.bf16.mxu0 0
      %1843 = vmatmul.mubr.bf16.gmra.mxu0 %v1736
      %v1844 = vpop.f32.mrf.mxu0
      %v1845 = vadd.f32 0.0, %v1844
      %v1846 = vpop.f32.mrf.mxu0
      %v1847 = vadd.f32 0.0, %v1846
      %v1848 = vpop.f32.mrf.mxu0
      %v1849 = vadd.f32 0.0, %v1848
      %v1850 = vpop.f32.mrf.mxu0
      %v1851 = vadd.f32 0.0, %v1850
      %1852 = vmatprep.mubr.bf16.mxu0 0
      %1853 = vmatmul.mubr.bf16.gmra.mxu0 %v1739
      %v1854 = vpop.f32.mrf.mxu0
      %v1855 = vadd.f32 0.0, %v1854
      %v1856 = vpop.f32.mrf.mxu0
      %v1857 = vadd.f32 0.0, %v1856
      %v1858 = vpop.f32.mrf.mxu0
      %v1859 = vadd.f32 0.0, %v1858
      %v1860 = vpop.f32.mrf.mxu0
      %v1861 = vadd.f32 0.0, %v1860
      %1862 = vmatprep.mubr.bf16.mxu0 0
      %1863 = vmatmul.mubr.bf16.gmra.mxu0 %v1742
      %v1864 = vpop.f32.mrf.mxu0
      %v1865 = vadd.f32 0.0, %v1864
      %v1866 = vpop.f32.mrf.mxu0
      %v1867 = vadd.f32 0.0, %v1866
      %v1868 = vpop.f32.mrf.mxu0
      %v1869 = vadd.f32 0.0, %v1868
      %v1870 = vpop.f32.mrf.mxu0
      %v1871 = vadd.f32 0.0, %v1870
      %1872 = vmatprep.mubr.bf16.mxu0 0
      %1873 = vmatmul.mubr.bf16.gmra.mxu0 %v1745
      %v1874 = vpop.f32.mrf.mxu0
      %v1875 = vadd.f32 0.0, %v1874
      %v1876 = vpop.f32.mrf.mxu0
      %v1877 = vadd.f32 0.0, %v1876
      %v1878 = vpop.f32.mrf.mxu0
      %v1879 = vadd.f32 0.0, %v1878
      %v1880 = vpop.f32.mrf.mxu0
      %v1881 = vadd.f32 0.0, %v1880
      %1882 = vmatprep.mubr.bf16.mxu0 0
      %1883 = vmatmul.mubr.bf16.gmra.mxu0 %v1748
      %v1884 = vpop.f32.mrf.mxu0
      %v1885 = vadd.f32 0.0, %v1884
      %v1886 = vpop.f32.mrf.mxu0
      %v1887 = vadd.f32 0.0, %v1886
      %v1888 = vpop.f32.mrf.mxu0
      %v1889 = vadd.f32 0.0, %v1888
      %v1890 = vpop.f32.mrf.mxu0
      %v1891 = vadd.f32 0.0, %v1890
      %1892 = vmatprep.mubr.bf16.mxu0 0
      %1893 = vmatmul.mubr.bf16.gmra.mxu0 %v1751
      %v1894 = vpop.f32.mrf.mxu0
      %v1895 = vadd.f32 0.0, %v1894
      %v1896 = vpop.f32.mrf.mxu0
      %v1897 = vadd.f32 0.0, %v1896
      %v1898 = vpop.f32.mrf.mxu0
      %v1899 = vadd.f32 0.0, %v1898
      %v1900 = vpop.f32.mrf.mxu0
      %v1901 = vadd.f32 0.0, %v1900
      %1902 = vdwg.mxu0
      %v1903 = vmul.f32 %v1815, 0.17677669
      %v1904 = vmul.f32 %v1817, 0.17677669
      %v1905 = vmul.f32 %v1819, 0.17677669
      %v1906 = vmul.f32 %v1821, 0.17677669
      %v1907 = vmul.f32 %v1825, 0.17677669
      %v1908 = vmul.f32 %v1827, 0.17677669
      %v1909 = vmul.f32 %v1829, 0.17677669
      %v1910 = vmul.f32 %v1831, 0.17677669
      %v1911 = vmul.f32 %v1835, 0.17677669
      %v1912 = vmul.f32 %v1837, 0.17677669
      %v1913 = vmul.f32 %v1839, 0.17677669
      %v1914 = vmul.f32 %v1841, 0.17677669
      %v1915 = vmul.f32 %v1845, 0.17677669
      %v1916 = vmul.f32 %v1847, 0.17677669
      %v1917 = vmul.f32 %v1849, 0.17677669
      %v1918 = vmul.f32 %v1851, 0.17677669
      %v1919 = vmul.f32 %v1855, 0.17677669
      %v1920 = vmul.f32 %v1857, 0.17677669
      %v1921 = vmul.f32 %v1859, 0.17677669
      %v1922 = vmul.f32 %v1861, 0.17677669
      %v1923 = vmul.f32 %v1865, 0.17677669
      %v1924 = vmul.f32 %v1867, 0.17677669
      %v1925 = vmul.f32 %v1869, 0.17677669
      %v1926 = vmul.f32 %v1871, 0.17677669
      %v1927 = vmul.f32 %v1875, 0.17677669
      %v1928 = vmul.f32 %v1877, 0.17677669
      %v1929 = vmul.f32 %v1879, 0.17677669
      %v1930 = vmul.f32 %v1881, 0.17677669
      %v1931 = vmul.f32 %v1885, 0.17677669
      %v1932 = vmul.f32 %v1887, 0.17677669
      %v1933 = vmul.f32 %v1889, 0.17677669
      %v1934 = vmul.f32 %v1891, 0.17677669
      %v1935 = vmul.f32 %v1895, 0.17677669
      %v1936 = vmul.f32 %v1897, 0.17677669
      %v1937 = vmul.f32 %v1899, 0.17677669
      %v1938 = vmul.f32 %v1901, 0.17677669
      %v1939 = vadd.f32 %v1903, %v1489
      %v1940 = vadd.f32 %v1904, %v1490
      %v1941 = vadd.f32 %v1905, %v1491
      %v1942 = vadd.f32 %v1906, %v1492
      %v1943 = vadd.f32 %v1907, %v1493
      %v1944 = vadd.f32 %v1908, %v1494
      %v1945 = vadd.f32 %v1909, %v1495
      %v1946 = vadd.f32 %v1910, %v1496
      %v1947 = vadd.f32 %v1911, %v1497
      %v1948 = vadd.f32 %v1912, %v1498
      %v1949 = vadd.f32 %v1913, %v1499
      %v1950 = vadd.f32 %v1914, %v1500
      %v1951 = vadd.f32 %v1915, %v1501
      %v1952 = vadd.f32 %v1916, %v1502
      %v1953 = vadd.f32 %v1917, %v1503
      %v1954 = vadd.f32 %v1918, %v1504
      %v1955 = vadd.f32 %v1919, %v1505
      %v1956 = vadd.f32 %v1920, %v1506
      %v1957 = vadd.f32 %v1921, %v1507
      %v1958 = vadd.f32 %v1922, %v1508
      %v1959 = vadd.f32 %v1923, %v1509
      %v1960 = vadd.f32 %v1924, %v1510
      %v1961 = vadd.f32 %v1925, %v1511
      %v1962 = vadd.f32 %v1926, %v1512
      %v1963 = vadd.f32 %v1927, %v1513
      %v1964 = vadd.f32 %v1928, %v1514
      %v1965 = vadd.f32 %v1929, %v1515
      %v1966 = vadd.f32 %v1930, %v1516
      %v1967 = vadd.f32 %v1931, %v1517
      %v1968 = vadd.f32 %v1932, %v1518
      %v1969 = vadd.f32 %v1933, %v1519
      %v1970 = vadd.f32 %v1934, %v1520
      %v1971 = vadd.f32 %v1935, %v1521
      %v1972 = vadd.f32 %v1936, %v1522
      %v1973 = vadd.f32 %v1937, %v1523
      %v1974 = vadd.f32 %v1938, %v1524
      %vm1975 = vcmask 130048
      %v1976 = vsel %vm1975, %v1940, -inf
      %v1977 = vmax.f32 %v1939, %v1976
      %1978 = vmax.xlane.f32.xlu0 %v1977
      %v1979 = vpop.xlane.xlu0 %1978
      %v1980 = vsel %vm1975, %v1942, -inf
      %v1981 = vmax.f32 %v1941, %v1980
      %1982 = vmax.xlane.f32.xlu0 %v1981
      %v1983 = vpop.xlane.xlu0 %1982
      %v1984 = vsel %vm1975, %v1944, -inf
      %v1985 = vmax.f32 %v1943, %v1984
      %1986 = vmax.xlane.f32.xlu0 %v1985
      %v1987 = vpop.xlane.xlu0 %1986
      %v1988 = vsel %vm1975, %v1946, -inf
      %v1989 = vmax.f32 %v1945, %v1988
      %1990 = vmax.xlane.f32.xlu0 %v1989
      %v1991 = vpop.xlane.xlu0 %1990
      %v1992 = vsel %vm1975, %v1948, -inf
      %v1993 = vmax.f32 %v1947, %v1992
      %1994 = vmax.xlane.f32.xlu0 %v1993
      %v1995 = vpop.xlane.xlu0 %1994
      %v1996 = vsel %vm1975, %v1950, -inf
      %v1997 = vmax.f32 %v1949, %v1996
      %1998 = vmax.xlane.f32.xlu0 %v1997
      %v1999 = vpop.xlane.xlu0 %1998
      %v2000 = vsel %vm1975, %v1952, -inf
      %v2001 = vmax.f32 %v1951, %v2000
      %2002 = vmax.xlane.f32.xlu0 %v2001
      %v2003 = vpop.xlane.xlu0 %2002
      %v2004 = vsel %vm1975, %v1954, -inf
      %v2005 = vmax.f32 %v1953, %v2004
      %2006 = vmax.xlane.f32.xlu0 %v2005
      %v2007 = vpop.xlane.xlu0 %2006
      %v2008 = vsel %vm1975, %v1956, -inf
      %v2009 = vmax.f32 %v1955, %v2008
      %2010 = vmax.xlane.f32.xlu0 %v2009
      %v2011 = vpop.xlane.xlu0 %2010
      %v2012 = vsel %vm1975, %v1958, -inf
      %v2013 = vmax.f32 %v1957, %v2012
      %2014 = vmax.xlane.f32.xlu0 %v2013
      %v2015 = vpop.xlane.xlu0 %2014
      %v2016 = vsel %vm1975, %v1960, -inf
      %v2017 = vmax.f32 %v1959, %v2016
      %2018 = vmax.xlane.f32.xlu0 %v2017
      %v2019 = vpop.xlane.xlu0 %2018
      %v2020 = vsel %vm1975, %v1962, -inf
      %v2021 = vmax.f32 %v1961, %v2020
      %2022 = vmax.xlane.f32.xlu0 %v2021
      %v2023 = vpop.xlane.xlu0 %2022
      %v2024 = vsel %vm1975, %v1964, -inf
      %v2025 = vmax.f32 %v1963, %v2024
      %2026 = vmax.xlane.f32.xlu0 %v2025
      %v2027 = vpop.xlane.xlu0 %2026
      %v2028 = vsel %vm1975, %v1966, -inf
      %v2029 = vmax.f32 %v1965, %v2028
      %2030 = vmax.xlane.f32.xlu0 %v2029
      %v2031 = vpop.xlane.xlu0 %2030
      %v2032 = vsel %vm1975, %v1968, -inf
      %v2033 = vmax.f32 %v1967, %v2032
      %2034 = vmax.xlane.f32.xlu0 %v2033
      %v2035 = vpop.xlane.xlu0 %2034
      %v2036 = vsel %vm1975, %v1970, -inf
      %v2037 = vmax.f32 %v1969, %v2036
      %2038 = vmax.xlane.f32.xlu0 %v2037
      %v2039 = vpop.xlane.xlu0 %2038
      %v2040 = vsel %vm1975, %v1972, -inf
      %v2041 = vmax.f32 %v1971, %v2040
      %2042 = vmax.xlane.f32.xlu0 %v2041
      %v2043 = vpop.xlane.xlu0 %2042
      %v2044 = vsel %vm1975, %v1974, -inf
      %v2045 = vmax.f32 %v1973, %v2044
      %2046 = vmax.xlane.f32.xlu0 %v2045
      %v2047 = vpop.xlane.xlu0 %2046
      %v2048 = vsub.f32 %v1939, %v1979
      %v2049 = vsub.f32 %v1940, %v1979
      %v2050 = vsub.f32 %v1941, %v1983
      %v2051 = vsub.f32 %v1942, %v1983
      %v2052 = vsub.f32 %v1943, %v1987
      %v2053 = vsub.f32 %v1944, %v1987
      %v2054 = vsub.f32 %v1945, %v1991
      %v2055 = vsub.f32 %v1946, %v1991
      %v2056 = vsub.f32 %v1947, %v1995
      %v2057 = vsub.f32 %v1948, %v1995
      %v2058 = vsub.f32 %v1949, %v1999
      %v2059 = vsub.f32 %v1950, %v1999
      %v2060 = vsub.f32 %v1951, %v2003
      %v2061 = vsub.f32 %v1952, %v2003
      %v2062 = vsub.f32 %v1953, %v2007
      %v2063 = vsub.f32 %v1954, %v2007
      %v2064 = vsub.f32 %v1955, %v2011
      %v2065 = vsub.f32 %v1956, %v2011
      %v2066 = vsub.f32 %v1957, %v2015
      %v2067 = vsub.f32 %v1958, %v2015
      %v2068 = vsub.f32 %v1959, %v2019
      %v2069 = vsub.f32 %v1960, %v2019
      %v2070 = vsub.f32 %v1961, %v2023
      %v2071 = vsub.f32 %v1962, %v2023
      %v2072 = vsub.f32 %v1963, %v2027
      %v2073 = vsub.f32 %v1964, %v2027
      %v2074 = vsub.f32 %v1965, %v2031
      %v2075 = vsub.f32 %v1966, %v2031
      %v2076 = vsub.f32 %v1967, %v2035
      %v2077 = vsub.f32 %v1968, %v2035
      %v2078 = vsub.f32 %v1969, %v2039
      %v2079 = vsub.f32 %v1970, %v2039
      %v2080 = vsub.f32 %v1971, %v2043
      %v2081 = vsub.f32 %v1972, %v2043
      %v2082 = vsub.f32 %v1973, %v2047
      %v2083 = vsub.f32 %v1974, %v2047
      %v2084 = vmul.f32 %v2048, 1.442695
      %v2085 = vpow.pop %v2084
      %v2086 = vmul.f32 %v2049, 1.442695
      %v2087 = vpow.pop %v2086
      %v2088 = vmul.f32 %v2050, 1.442695
      %v2089 = vpow.pop %v2088
      %v2090 = vmul.f32 %v2051, 1.442695
      %v2091 = vpow.pop %v2090
      %v2092 = vmul.f32 %v2052, 1.442695
      %v2093 = vpow.pop %v2092
      %v2094 = vmul.f32 %v2053, 1.442695
      %v2095 = vpow.pop %v2094
      %v2096 = vmul.f32 %v2054, 1.442695
      %v2097 = vpow.pop %v2096
      %v2098 = vmul.f32 %v2055, 1.442695
      %v2099 = vpow.pop %v2098
      %v2100 = vmul.f32 %v2056, 1.442695
      %v2101 = vpow.pop %v2100
      %v2102 = vmul.f32 %v2057, 1.442695
      %v2103 = vpow.pop %v2102
      %v2104 = vmul.f32 %v2058, 1.442695
      %v2105 = vpow.pop %v2104
      %v2106 = vmul.f32 %v2059, 1.442695
      %v2107 = vpow.pop %v2106
      %v2108 = vmul.f32 %v2060, 1.442695
      %v2109 = vpow.pop %v2108
      %v2110 = vmul.f32 %v2061, 1.442695
      %v2111 = vpow.pop %v2110
      %v2112 = vmul.f32 %v2062, 1.442695
      %v2113 = vpow.pop %v2112
      %v2114 = vmul.f32 %v2063, 1.442695
      %v2115 = vpow.pop %v2114
      %v2116 = vmul.f32 %v2064, 1.442695
      %v2117 = vpow.pop %v2116
      %v2118 = vmul.f32 %v2065, 1.442695
      %v2119 = vpow.pop %v2118
      %v2120 = vmul.f32 %v2066, 1.442695
      %v2121 = vpow.pop %v2120
      %v2122 = vmul.f32 %v2067, 1.442695
      %v2123 = vpow.pop %v2122
      %v2124 = vmul.f32 %v2068, 1.442695
      %v2125 = vpow.pop %v2124
      %v2126 = vmul.f32 %v2069, 1.442695
      %v2127 = vpow.pop %v2126
      %v2128 = vmul.f32 %v2070, 1.442695
      %v2129 = vpow.pop %v2128
      %v2130 = vmul.f32 %v2071, 1.442695
      %v2131 = vpow.pop %v2130
      %v2132 = vmul.f32 %v2072, 1.442695
      %v2133 = vpow.pop %v2132
      %v2134 = vmul.f32 %v2073, 1.442695
      %v2135 = vpow.pop %v2134
      %v2136 = vmul.f32 %v2074, 1.442695
      %v2137 = vpow.pop %v2136
      %v2138 = vmul.f32 %v2075, 1.442695
      %v2139 = vpow.pop %v2138
      %v2140 = vmul.f32 %v2076, 1.442695
      %v2141 = vpow.pop %v2140
      %v2142 = vmul.f32 %v2077, 1.442695
      %v2143 = vpow.pop %v2142
      %v2144 = vmul.f32 %v2078, 1.442695
      %v2145 = vpow.pop %v2144
      %v2146 = vmul.f32 %v2079, 1.442695
      %v2147 = vpow.pop %v2146
      %v2148 = vmul.f32 %v2080, 1.442695
      %v2149 = vpow.pop %v2148
      %v2150 = vmul.f32 %v2081, 1.442695
      %v2151 = vpow.pop %v2150
      %v2152 = vmul.f32 %v2082, 1.442695
      %v2153 = vpow.pop %v2152
      %v2154 = vmul.f32 %v2083, 1.442695
      %v2155 = vpow.pop %v2154
      %v2156 = vsel %vm1975, %v2087, 0.0
      %v2157 = vadd.f32 %v2085, %v2156
      %2158 = vadd.xlane.f32.xlu0 %v2157
      %v2159 = vpop.xlane.xlu0 %2158
      %v2160 = vsel %vm1975, %v2091, 0.0
      %v2161 = vadd.f32 %v2089, %v2160
      %2162 = vadd.xlane.f32.xlu0 %v2161
      %v2163 = vpop.xlane.xlu0 %2162
      %v2164 = vsel %vm1975, %v2095, 0.0
      %v2165 = vadd.f32 %v2093, %v2164
      %2166 = vadd.xlane.f32.xlu0 %v2165
      %v2167 = vpop.xlane.xlu0 %2166
      %v2168 = vsel %vm1975, %v2099, 0.0
      %v2169 = vadd.f32 %v2097, %v2168
      %2170 = vadd.xlane.f32.xlu0 %v2169
      %v2171 = vpop.xlane.xlu0 %2170
      %v2172 = vsel %vm1975, %v2103, 0.0
      %v2173 = vadd.f32 %v2101, %v2172
      %2174 = vadd.xlane.f32.xlu0 %v2173
      %v2175 = vpop.xlane.xlu0 %2174
      %v2176 = vsel %vm1975, %v2107, 0.0
      %v2177 = vadd.f32 %v2105, %v2176
      %2178 = vadd.xlane.f32.xlu0 %v2177
      %v2179 = vpop.xlane.xlu0 %2178
      %v2180 = vsel %vm1975, %v2111, 0.0
      %v2181 = vadd.f32 %v2109, %v2180
      %2182 = vadd.xlane.f32.xlu0 %v2181
      %v2183 = vpop.xlane.xlu0 %2182
      %v2184 = vsel %vm1975, %v2115, 0.0
      %v2185 = vadd.f32 %v2113, %v2184
      %2186 = vadd.xlane.f32.xlu0 %v2185
      %v2187 = vpop.xlane.xlu0 %2186
      %v2188 = vsel %vm1975, %v2119, 0.0
      %v2189 = vadd.f32 %v2117, %v2188
      %2190 = vadd.xlane.f32.xlu0 %v2189
      %v2191 = vpop.xlane.xlu0 %2190
      %v2192 = vsel %vm1975, %v2123, 0.0
      %v2193 = vadd.f32 %v2121, %v2192
      %2194 = vadd.xlane.f32.xlu0 %v2193
      %v2195 = vpop.xlane.xlu0 %2194
      %v2196 = vsel %vm1975, %v2127, 0.0
      %v2197 = vadd.f32 %v2125, %v2196
      %2198 = vadd.xlane.f32.xlu0 %v2197
      %v2199 = vpop.xlane.xlu0 %2198
      %v2200 = vsel %vm1975, %v2131, 0.0
      %v2201 = vadd.f32 %v2129, %v2200
      %2202 = vadd.xlane.f32.xlu0 %v2201
      %v2203 = vpop.xlane.xlu0 %2202
      %v2204 = vsel %vm1975, %v2135, 0.0
      %v2205 = vadd.f32 %v2133, %v2204
      %2206 = vadd.xlane.f32.xlu0 %v2205
      %v2207 = vpop.xlane.xlu0 %2206
      %v2208 = vsel %vm1975, %v2139, 0.0
      %v2209 = vadd.f32 %v2137, %v2208
      %2210 = vadd.xlane.f32.xlu0 %v2209
      %v2211 = vpop.xlane.xlu0 %2210
      %v2212 = vsel %vm1975, %v2143, 0.0
      %v2213 = vadd.f32 %v2141, %v2212
      %2214 = vadd.xlane.f32.xlu0 %v2213
      %v2215 = vpop.xlane.xlu0 %2214
      %v2216 = vsel %vm1975, %v2147, 0.0
      %v2217 = vadd.f32 %v2145, %v2216
      %2218 = vadd.xlane.f32.xlu0 %v2217
      %v2219 = vpop.xlane.xlu0 %2218
      %v2220 = vsel %vm1975, %v2151, 0.0
      %v2221 = vadd.f32 %v2149, %v2220
      %2222 = vadd.xlane.f32.xlu0 %v2221
      %v2223 = vpop.xlane.xlu0 %2222
      %v2224 = vsel %vm1975, %v2155, 0.0
      %v2225 = vadd.f32 %v2153, %v2224
      %2226 = vadd.xlane.f32.xlu0 %v2225
      %v2227 = vpop.xlane.xlu0 %2226
      %v2228 = vrcp.pop %v2159
      %v2229 = vmul.f32 %v2085, %v2228
      %v2230 = vmul.f32 %v2087, %v2228
      %v2231 = vrcp.pop %v2163
      %v2232 = vmul.f32 %v2089, %v2231
      %v2233 = vmul.f32 %v2091, %v2231
      %v2234 = vrcp.pop %v2167
      %v2235 = vmul.f32 %v2093, %v2234
      %v2236 = vmul.f32 %v2095, %v2234
      %v2237 = vrcp.pop %v2171
      %v2238 = vmul.f32 %v2097, %v2237
      %v2239 = vmul.f32 %v2099, %v2237
      %v2240 = vrcp.pop %v2175
      %v2241 = vmul.f32 %v2101, %v2240
      %v2242 = vmul.f32 %v2103, %v2240
      %v2243 = vrcp.pop %v2179
      %v2244 = vmul.f32 %v2105, %v2243
      %v2245 = vmul.f32 %v2107, %v2243
      %v2246 = vrcp.pop %v2183
      %v2247 = vmul.f32 %v2109, %v2246
      %v2248 = vmul.f32 %v2111, %v2246
      %v2249 = vrcp.pop %v2187
      %v2250 = vmul.f32 %v2113, %v2249
      %v2251 = vmul.f32 %v2115, %v2249
      %v2252 = vrcp.pop %v2191
      %v2253 = vmul.f32 %v2117, %v2252
      %v2254 = vmul.f32 %v2119, %v2252
      %v2255 = vrcp.pop %v2195
      %v2256 = vmul.f32 %v2121, %v2255
      %v2257 = vmul.f32 %v2123, %v2255
      %v2258 = vrcp.pop %v2199
      %v2259 = vmul.f32 %v2125, %v2258
      %v2260 = vmul.f32 %v2127, %v2258
      %v2261 = vrcp.pop %v2203
      %v2262 = vmul.f32 %v2129, %v2261
      %v2263 = vmul.f32 %v2131, %v2261
      %v2264 = vrcp.pop %v2207
      %v2265 = vmul.f32 %v2133, %v2264
      %v2266 = vmul.f32 %v2135, %v2264
      %v2267 = vrcp.pop %v2211
      %v2268 = vmul.f32 %v2137, %v2267
      %v2269 = vmul.f32 %v2139, %v2267
      %v2270 = vrcp.pop %v2215
      %v2271 = vmul.f32 %v2141, %v2270
      %v2272 = vmul.f32 %v2143, %v2270
      %v2273 = vrcp.pop %v2219
      %v2274 = vmul.f32 %v2145, %v2273
      %v2275 = vmul.f32 %v2147, %v2273
      %v2276 = vrcp.pop %v2223
      %v2277 = vmul.f32 %v2149, %v2276
      %v2278 = vmul.f32 %v2151, %v2276
      %v2279 = vrcp.pop %v2227
      %v2280 = vmul.f32 %v2153, %v2279
      %v2281 = vmul.f32 %v2155, %v2279
      %v2282 = vpack.c.bf16 %v2232, %v2229
      %v2283 = vpack.c.bf16 %v2233, %v2230
      %v2284 = vpack.c.bf16 %v2238, %v2235
      %v2285 = vpack.c.bf16 %v2239, %v2236
      %v2286 = vpack.c.bf16 %v2244, %v2241
      %v2287 = vpack.c.bf16 %v2245, %v2242
      %v2288 = vpack.c.bf16 %v2250, %v2247
      %v2289 = vpack.c.bf16 %v2251, %v2248
      %v2290 = vpack.c.bf16 %v2256, %v2253
      %v2291 = vpack.c.bf16 %v2257, %v2254
      %v2292 = vpack.c.bf16 %v2262, %v2259
      %v2293 = vpack.c.bf16 %v2263, %v2260
      %v2294 = vpack.c.bf16 %v2268, %v2265
      %v2295 = vpack.c.bf16 %v2269, %v2266
      %v2296 = vpack.c.bf16 %v2274, %v2271
      %v2297 = vpack.c.bf16 %v2275, %v2272
      %v2298 = vpack.c.bf16 %v2280, %v2277
      %v2299 = vpack.c.bf16 %v2281, %v2278
      %2300 = vrot.lane.b32.xlu0 %v1690, 64
      %v2301 = vpop.permute.xlu0 %2300
      %2302 = vrot.lane.b32.xlu0 %v1691, 64
      %v2303 = vpop.permute.xlu0 %2302
      %2304 = vrot.lane.b32.xlu0 %v1692, 64
      %v2305 = vpop.permute.xlu0 %2304
      %2306 = vrot.lane.b32.xlu0 %v1693, 64
      %v2307 = vpop.permute.xlu0 %2306
      %2308 = vrot.lane.b32.xlu0 %v1694, 64
      %v2309 = vpop.permute.xlu0 %2308
      %2310 = vrot.lane.b32.xlu0 %v1695, 64
      %v2311 = vpop.permute.xlu0 %2310
      %2312 = vrot.lane.b32.xlu0 %v1696, 64
      %v2313 = vpop.permute.xlu0 %2312
      %2314 = vrot.lane.b32.xlu0 %v1697, 64
      %v2315 = vpop.permute.xlu0 %2314
      %2316 = vrot.lane.b32.xlu0 %v1698, 64
      %v2317 = vpop.permute.xlu0 %2316
      %v2328 = vsel %vm1975, %v2283, 0
      %v2331 = vsel %vm1975, %v2285, 0
      %v2334 = vsel %vm1975, %v2287, 0
      %v2337 = vsel %vm1975, %v2289, 0
      %v2340 = vsel %vm1975, %v2291, 0
      %v2343 = vsel %vm1975, %v2293, 0
      %v2346 = vsel %vm1975, %v2295, 0
      %v2349 = vsel %vm1975, %v2297, 0
      %v2352 = vsel %vm1975, %v2299, 0
      %2354 = vmatprep.subr.bf16.mxu0 0
      %2355 = vmatpush1.bf16.msra.mxu0 %v2315
      %2356 = vmatprep.subr.bf16.mxu0 0
      %2357 = vmatpush1.bf16.msra.mxu0 %v2313
      %2358 = vmatprep.subr.bf16.mxu0 0
      %2359 = vmatpush1.bf16.msra.mxu0 %v2311
      %2360 = vmatprep.subr.bf16.mxu0 0
      %2361 = vmatpush1.bf16.msra.mxu0 %v2309
      %2362 = vmatprep.subr.bf16.mxu0 0
      %2363 = vmatpush1.bf16.msra.mxu0 %v2307
      %2364 = vmatprep.subr.bf16.mxu0 0
      %2365 = vmatpush1.bf16.msra.mxu0 %v2305
      %2366 = vmatprep.subr.bf16.mxu0 0
      %2367 = vmatpush1.bf16.msra.mxu0 %v2303
      %2368 = vmatprep.subr.bf16.mxu0 0
      %2369 = vmatpush1.bf16.msra.mxu0 %v2301
      %2370 = vmatprep.subr.bf16.mxu0 0
      %2371 = vmatpush2.bf16.msra.mxu0 0
      %2372 = vmatprep.subr.bf16.mxu0 0
      %2373 = vmatpush2.bf16.msra.mxu0 0
      %2374 = vmatprep.subr.bf16.mxu0 0
      %2375 = vmatpush2.bf16.msra.mxu0 0
      %2376 = vmatprep.subr.bf16.mxu0 0
      %2377 = vmatpush2.bf16.msra.mxu0 0
      %2378 = vmatprep.subr.bf16.mxu0 0
      %2379 = vmatpush2.bf16.msra.mxu0 0
      %2380 = vmatprep.subr.bf16.mxu0 0
      %2381 = vmatpush2.bf16.msra.mxu0 0
      %2382 = vmatprep.subr.bf16.mxu0 0
      %2383 = vmatpush2.bf16.msra.mxu0 0
      %2384 = vmatprep.subr.bf16.mxu0 0
      %2385 = vmatpush2.bf16.msra.mxu0 %v2317
      %2386 = vmatprep.mubr.bf16.mxu0 %v2328
      %2387 = vmatmul.mubr.bf16.gmra.mxu0 %v2282
      %v2388 = vpop.f32.mrf.mxu0
      %v2389 = vadd.f32 0.0, %v2388
      %v2390 = vpop.f32.mrf.mxu0
      %v2391 = vpop.f32.mrf.mxu0
      %v2392 = vadd.f32 0.0, %v2391
      %v2393 = vpop.f32.mrf.mxu0
      %2394 = vmatprep.mubr.bf16.mxu0 %v2331
      %2395 = vmatmul.mubr.bf16.gmra.mxu0 %v2284
      %v2396 = vpop.f32.mrf.mxu0
      %v2397 = vadd.f32 0.0, %v2396
      %v2398 = vpop.f32.mrf.mxu0
      %v2399 = vpop.f32.mrf.mxu0
      %v2400 = vadd.f32 0.0, %v2399
      %v2401 = vpop.f32.mrf.mxu0
      %2402 = vmatprep.mubr.bf16.mxu0 %v2334
      %2403 = vmatmul.mubr.bf16.gmra.mxu0 %v2286
      %v2404 = vpop.f32.mrf.mxu0
      %v2405 = vadd.f32 0.0, %v2404
      %v2406 = vpop.f32.mrf.mxu0
      %v2407 = vpop.f32.mrf.mxu0
      %v2408 = vadd.f32 0.0, %v2407
      %v2409 = vpop.f32.mrf.mxu0
      %2410 = vmatprep.mubr.bf16.mxu0 %v2337
      %2411 = vmatmul.mubr.bf16.gmra.mxu0 %v2288
      %v2412 = vpop.f32.mrf.mxu0
      %v2413 = vadd.f32 0.0, %v2412
      %v2414 = vpop.f32.mrf.mxu0
      %v2415 = vpop.f32.mrf.mxu0
      %v2416 = vadd.f32 0.0, %v2415
      %v2417 = vpop.f32.mrf.mxu0
      %2418 = vmatprep.mubr.bf16.mxu0 %v2340
      %2419 = vmatmul.mubr.bf16.gmra.mxu0 %v2290
      %v2420 = vpop.f32.mrf.mxu0
      %v2421 = vadd.f32 0.0, %v2420
      %v2422 = vpop.f32.mrf.mxu0
      %v2423 = vpop.f32.mrf.mxu0
      %v2424 = vadd.f32 0.0, %v2423
      %v2425 = vpop.f32.mrf.mxu0
      %2426 = vmatprep.mubr.bf16.mxu0 %v2343
      %2427 = vmatmul.mubr.bf16.gmra.mxu0 %v2292
      %v2428 = vpop.f32.mrf.mxu0
      %v2429 = vadd.f32 0.0, %v2428
      %v2430 = vpop.f32.mrf.mxu0
      %v2431 = vpop.f32.mrf.mxu0
      %v2432 = vadd.f32 0.0, %v2431
      %v2433 = vpop.f32.mrf.mxu0
      %2434 = vmatprep.mubr.bf16.mxu0 %v2346
      %2435 = vmatmul.mubr.bf16.gmra.mxu0 %v2294
      %v2436 = vpop.f32.mrf.mxu0
      %v2437 = vadd.f32 0.0, %v2436
      %v2438 = vpop.f32.mrf.mxu0
      %v2439 = vpop.f32.mrf.mxu0
      %v2440 = vadd.f32 0.0, %v2439
      %v2441 = vpop.f32.mrf.mxu0
      %2442 = vmatprep.mubr.bf16.mxu0 %v2349
      %2443 = vmatmul.mubr.bf16.gmra.mxu0 %v2296
      %v2444 = vpop.f32.mrf.mxu0
      %v2445 = vadd.f32 0.0, %v2444
      %v2446 = vpop.f32.mrf.mxu0
      %v2447 = vpop.f32.mrf.mxu0
      %v2448 = vadd.f32 0.0, %v2447
      %v2449 = vpop.f32.mrf.mxu0
      %2450 = vmatprep.mubr.bf16.mxu0 %v2352
      %2451 = vmatmul.mubr.bf16.gmra.mxu0 %v2298
      %v2452 = vpop.f32.mrf.mxu0
      %v2453 = vadd.f32 0.0, %v2452
      %v2454 = vpop.f32.mrf.mxu0
      %v2455 = vpop.f32.mrf.mxu0
      %v2456 = vadd.f32 0.0, %v2455
      %v2457 = vpop.f32.mrf.mxu0
      %2458 = vdwg.mxu0
      %v2459 = vld [vmem:[%s19] sm:$0xf]
      %v2460 = vld [vmem:[%s19 + $0x4] sm:$0xf]
      %v2461 = vld [vmem:[%s19 + $0x8] sm:$0xf]
      %v2462 = vld [vmem:[%s19 + $0xc] sm:$0xf]
      %v2463 = vpack.c.bf16 %v2392, %v2389
      %v2464 = vpack.c.bf16 %v2400, %v2397
      %v2465 = vpack.c.bf16 %v2408, %v2405
      %v2466 = vpack.c.bf16 %v2416, %v2413
      %v2467 = vpack.c.bf16 %v2424, %v2421
      %v2468 = vpack.c.bf16 %v2432, %v2429
      %v2469 = vpack.c.bf16 %v2440, %v2437
      %v2470 = vpack.c.bf16 %v2448, %v2445
      %v2471 = vpack.c.bf16 %v2456, %v2453
      %v2472 = vld [vmem:[%s21] sm:$0x1]
      %v2474 = vlaneseq
      %v2475 = vshrl.u32 %v2474, 7
      %v2476 = vsub.s32 0, %v2475
      %v2477 = vrot.slane %v2472, %v2476
      %v2483 = vunpack.c.l.b16 %v2459
      %v2484 = vunpack.c.l.b16 %v2460
      %v2485 = vunpack.c.l.b16 %v2461
      %v2486 = vunpack.c.l.b16 %v2462
      %v2487 = vpack.c.b16 %v2484, %v2483
      %v2488 = vpack.c.b16 %v2486, %v2485
      %v2492 = vsel %vm1557, %v2463, 0
      %v2495 = vsel %vm1557, %v2464, 0
      %v2498 = vsel %vm1557, %v2465, 0
      %v2501 = vsel %vm1557, %v2466, 0
      %v2504 = vsel %vm1557, %v2467, 0
      %v2507 = vsel %vm1557, %v2468, 0
      %v2510 = vsel %vm1557, %v2469, 0
      %v2513 = vsel %vm1557, %v2470, 0
      %v2516 = vsel %vm1557, %v2471, 0
      %2518 = vmatprep.subr.bf16.mxu0 0
      %2519 = vmatpush1.bf16.msra.mxu0 0
      %2520 = vmatprep.subr.bf16.mxu0 0
      %2521 = vmatpush1.bf16.msra.mxu0 0
      %2522 = vmatprep.subr.bf16.mxu0 0
      %2523 = vmatpush1.bf16.msra.mxu0 0
      %2524 = vmatprep.subr.bf16.mxu0 0
      %2525 = vmatpush1.bf16.msra.mxu0 0
      %2526 = vmatprep.subr.bf16.mxu0 0
      %2527 = vmatpush1.bf16.msra.mxu0 0
      %2528 = vmatprep.subr.bf16.mxu0 0
      %2529 = vmatpush1.bf16.msra.mxu0 0
      %2530 = vmatprep.subr.bf16.mxu0 0
      %2531 = vmatpush1.bf16.msra.mxu0 %v2488
      %2532 = vmatprep.subr.bf16.mxu0 0
      %2533 = vmatpush1.bf16.msra.mxu0 %v2487
      %2534 = vmatprep.subr.bf16.mxu0 0
      %2535 = vmatpush2.bf16.msra.mxu0 0
      %2536 = vmatprep.subr.bf16.mxu0 0
      %2537 = vmatpush2.bf16.msra.mxu0 0
      %2538 = vmatprep.subr.bf16.mxu0 0
      %2539 = vmatpush2.bf16.msra.mxu0 0
      %2540 = vmatprep.subr.bf16.mxu0 0
      %2541 = vmatpush2.bf16.msra.mxu0 0
      %2542 = vmatprep.subr.bf16.mxu0 0
      %2543 = vmatpush2.bf16.msra.mxu0 0
      %2544 = vmatprep.subr.bf16.mxu0 0
      %2545 = vmatpush2.bf16.msra.mxu0 0
      %2546 = vmatprep.subr.bf16.mxu0 0
      %2547 = vmatpush2.bf16.msra.mxu0 0
      %2548 = vmatprep.subr.bf16.mxu0 0
      %2549 = vmatpush2.bf16.msra.mxu0 0
      %2550 = vmatprep.mubr.bf16.mxu0 0
      %2551 = vmatmul.mubr.bf16.gmra.mxu0 %v2492
      %v2552 = vpop.f32.mrf.mxu0
      %v2553 = vadd.f32 %v2477, %v2552
      %v2554 = vpop.f32.mrf.mxu0
      %v2555 = vpop.f32.mrf.mxu0
      %v2556 = vadd.f32 %v2477, %v2555
      %v2557 = vpop.f32.mrf.mxu0
      %2558 = vmatprep.mubr.bf16.mxu0 0
      %2559 = vmatmul.mubr.bf16.gmra.mxu0 %v2495
      %v2560 = vpop.f32.mrf.mxu0
      %v2561 = vadd.f32 %v2477, %v2560
      %v2562 = vpop.f32.mrf.mxu0
      %v2563 = vpop.f32.mrf.mxu0
      %v2564 = vadd.f32 %v2477, %v2563
      %v2565 = vpop.f32.mrf.mxu0
      %2566 = vmatprep.mubr.bf16.mxu0 0
      %2567 = vmatmul.mubr.bf16.gmra.mxu0 %v2498
      %v2568 = vpop.f32.mrf.mxu0
      %v2569 = vadd.f32 %v2477, %v2568
      %v2570 = vpop.f32.mrf.mxu0
      %v2571 = vpop.f32.mrf.mxu0
      %v2572 = vadd.f32 %v2477, %v2571
      %v2573 = vpop.f32.mrf.mxu0
      %2574 = vmatprep.mubr.bf16.mxu0 0
      %2575 = vmatmul.mubr.bf16.gmra.mxu0 %v2501
      %v2576 = vpop.f32.mrf.mxu0
      %v2577 = vadd.f32 %v2477, %v2576
      %v2578 = vpop.f32.mrf.mxu0
      %v2579 = vpop.f32.mrf.mxu0
      %v2580 = vadd.f32 %v2477, %v2579
      %v2581 = vpop.f32.mrf.mxu0
      %2582 = vmatprep.mubr.bf16.mxu0 0
      %2583 = vmatmul.mubr.bf16.gmra.mxu0 %v2504
      %v2584 = vpop.f32.mrf.mxu0
      %v2585 = vadd.f32 %v2477, %v2584
      %v2586 = vpop.f32.mrf.mxu0
      %v2587 = vpop.f32.mrf.mxu0
      %v2588 = vadd.f32 %v2477, %v2587
      %v2589 = vpop.f32.mrf.mxu0
      %2590 = vmatprep.mubr.bf16.mxu0 0
      %2591 = vmatmul.mubr.bf16.gmra.mxu0 %v2507
      %v2592 = vpop.f32.mrf.mxu0
      %v2593 = vadd.f32 %v2477, %v2592
      %v2594 = vpop.f32.mrf.mxu0
      %v2595 = vpop.f32.mrf.mxu0
      %v2596 = vadd.f32 %v2477, %v2595
      %v2597 = vpop.f32.mrf.mxu0
      %2598 = vmatprep.mubr.bf16.mxu0 0
      %2599 = vmatmul.mubr.bf16.gmra.mxu0 %v2510
      %v2600 = vpop.f32.mrf.mxu0
      %v2601 = vadd.f32 %v2477, %v2600
      %v2602 = vpop.f32.mrf.mxu0
      %v2603 = vpop.f32.mrf.mxu0
      %v2604 = vadd.f32 %v2477, %v2603
      %v2605 = vpop.f32.mrf.mxu0
      %2606 = vmatprep.mubr.bf16.mxu0 0
      %2607 = vmatmul.mubr.bf16.gmra.mxu0 %v2513
      %v2608 = vpop.f32.mrf.mxu0
      %v2609 = vadd.f32 %v2477, %v2608
      %v2610 = vpop.f32.mrf.mxu0
      %v2611 = vpop.f32.mrf.mxu0
      %v2612 = vadd.f32 %v2477, %v2611
      %v2613 = vpop.f32.mrf.mxu0
      %2614 = vmatprep.mubr.bf16.mxu0 0
      %2615 = vmatmul.mubr.bf16.gmra.mxu0 %v2516
      %v2616 = vpop.f32.mrf.mxu0
      %v2617 = vadd.f32 %v2477, %v2616
      %v2618 = vpop.f32.mrf.mxu0
      %v2619 = vpop.f32.mrf.mxu0
      %v2620 = vadd.f32 %v2477, %v2619
      %v2621 = vpop.f32.mrf.mxu0
      %2622 = vdwg.mxu0
      %v2623 = vadd.f32 %v1249, %v2553
      %v2624 = vadd.f32 %v1252, %v2556
      %v2625 = vadd.f32 %v1257, %v2561
      %v2626 = vadd.f32 %v1260, %v2564
      %v2627 = vadd.f32 %v1265, %v2569
      %v2628 = vadd.f32 %v1268, %v2572
      %v2629 = vadd.f32 %v1273, %v2577
      %v2630 = vadd.f32 %v1276, %v2580
      %v2631 = vadd.f32 %v1281, %v2585
      %v2632 = vadd.f32 %v1284, %v2588
      %v2633 = vadd.f32 %v1289, %v2593
      %v2634 = vadd.f32 %v1292, %v2596
      %v2635 = vadd.f32 %v1297, %v2601
      %v2636 = vadd.f32 %v1300, %v2604
      %v2637 = vadd.f32 %v1305, %v2609
      %v2638 = vadd.f32 %v1308, %v2612
      %v2639 = vadd.f32 %v1483, %v2617
      %v2640 = vadd.f32 %v1486, %v2620
      %v2641 = vld [vmem:[%s23] sm:$0x1]
      %v2642 = vld [vmem:[%s25] sm:$0x1]
      %v2643 = vsel %vm1557, %v2623, 0.0
      %2644 = vadd.xlane.f32.xlu0 %v2643
      %v2645 = vpop.xlane.xlu0 %2644
      %v2646 = vsel %vm1557, %v2624, 0.0
      %2647 = vadd.xlane.f32.xlu0 %v2646
      %v2648 = vpop.xlane.xlu0 %2647
      %v2649 = vsel %vm1557, %v2625, 0.0
      %2650 = vadd.xlane.f32.xlu0 %v2649
      %v2651 = vpop.xlane.xlu0 %2650
      %v2652 = vsel %vm1557, %v2626, 0.0
      %2653 = vadd.xlane.f32.xlu0 %v2652
      %v2654 = vpop.xlane.xlu0 %2653
      %v2655 = vsel %vm1557, %v2627, 0.0
      %2656 = vadd.xlane.f32.xlu0 %v2655
      %v2657 = vpop.xlane.xlu0 %2656
      %v2658 = vsel %vm1557, %v2628, 0.0
      %2659 = vadd.xlane.f32.xlu0 %v2658
      %v2660 = vpop.xlane.xlu0 %2659
      %v2661 = vsel %vm1557, %v2629, 0.0
      %2662 = vadd.xlane.f32.xlu0 %v2661
      %v2663 = vpop.xlane.xlu0 %2662
      %v2664 = vsel %vm1557, %v2630, 0.0
      %2665 = vadd.xlane.f32.xlu0 %v2664
      %v2666 = vpop.xlane.xlu0 %2665
      %v2667 = vsel %vm1557, %v2631, 0.0
      %2668 = vadd.xlane.f32.xlu0 %v2667
      %v2669 = vpop.xlane.xlu0 %2668
      %v2670 = vsel %vm1557, %v2632, 0.0
      %2671 = vadd.xlane.f32.xlu0 %v2670
      %v2672 = vpop.xlane.xlu0 %2671
      %v2673 = vsel %vm1557, %v2633, 0.0
      %2674 = vadd.xlane.f32.xlu0 %v2673
      %v2675 = vpop.xlane.xlu0 %2674
      %v2676 = vsel %vm1557, %v2634, 0.0
      %2677 = vadd.xlane.f32.xlu0 %v2676
      %v2678 = vpop.xlane.xlu0 %2677
      %v2679 = vsel %vm1557, %v2635, 0.0
      %2680 = vadd.xlane.f32.xlu0 %v2679
      %v2681 = vpop.xlane.xlu0 %2680
      %v2682 = vsel %vm1557, %v2636, 0.0
      %2683 = vadd.xlane.f32.xlu0 %v2682
      %v2684 = vpop.xlane.xlu0 %2683
      %v2685 = vsel %vm1557, %v2637, 0.0
      %2686 = vadd.xlane.f32.xlu0 %v2685
      %v2687 = vpop.xlane.xlu0 %2686
      %v2688 = vsel %vm1557, %v2638, 0.0
      %2689 = vadd.xlane.f32.xlu0 %v2688
      %v2690 = vpop.xlane.xlu0 %2689
      %v2691 = vsel %vm1557, %v2639, 0.0
      %2692 = vadd.xlane.f32.xlu0 %v2691
      %v2693 = vpop.xlane.xlu0 %2692
      %v2694 = vsel %vm1557, %v2640, 0.0
      %2695 = vadd.xlane.f32.xlu0 %v2694
      %v2696 = vpop.xlane.xlu0 %2695
      %v2697 = vrcp.pop 32.0
      %v2698 = vmul.f32 %v2645, %v2697
      %v2699 = vmul.f32 %v2648, %v2697
      %v2700 = vmul.f32 %v2651, %v2697
      %v2701 = vmul.f32 %v2654, %v2697
      %v2702 = vmul.f32 %v2657, %v2697
      %v2703 = vmul.f32 %v2660, %v2697
      %v2704 = vmul.f32 %v2663, %v2697
      %v2705 = vmul.f32 %v2666, %v2697
      %v2706 = vmul.f32 %v2669, %v2697
      %v2707 = vmul.f32 %v2672, %v2697
      %v2708 = vmul.f32 %v2675, %v2697
      %v2709 = vmul.f32 %v2678, %v2697
      %v2710 = vmul.f32 %v2681, %v2697
      %v2711 = vmul.f32 %v2684, %v2697
      %v2712 = vmul.f32 %v2687, %v2697
      %v2713 = vmul.f32 %v2690, %v2697
      %v2714 = vmul.f32 %v2693, %v2697
      %v2715 = vmul.f32 %v2696, %v2697
      %v2716 = vsub.f32 %v2623, %v2698
      %v2717 = vsub.f32 %v2624, %v2699
      %v2718 = vsub.f32 %v2625, %v2700
      %v2719 = vsub.f32 %v2626, %v2701
      %v2720 = vsub.f32 %v2627, %v2702
      %v2721 = vsub.f32 %v2628, %v2703
      %v2722 = vsub.f32 %v2629, %v2704
      %v2723 = vsub.f32 %v2630, %v2705
      %v2724 = vsub.f32 %v2631, %v2706
      %v2725 = vsub.f32 %v2632, %v2707
      %v2726 = vsub.f32 %v2633, %v2708
      %v2727 = vsub.f32 %v2634, %v2709
      %v2728 = vsub.f32 %v2635, %v2710
      %v2729 = vsub.f32 %v2636, %v2711
      %v2730 = vsub.f32 %v2637, %v2712
      %v2731 = vsub.f32 %v2638, %v2713
      %v2732 = vsub.f32 %v2639, %v2714
      %v2733 = vsub.f32 %v2640, %v2715
      %v2734 = vmul.f32 %v2716, %v2716
      %v2735 = vmul.f32 %v2717, %v2717
      %v2736 = vmul.f32 %v2718, %v2718
      %v2737 = vmul.f32 %v2719, %v2719
      %v2738 = vmul.f32 %v2720, %v2720
      %v2739 = vmul.f32 %v2721, %v2721
      %v2740 = vmul.f32 %v2722, %v2722
      %v2741 = vmul.f32 %v2723, %v2723
      %v2742 = vmul.f32 %v2724, %v2724
      %v2743 = vmul.f32 %v2725, %v2725
      %v2744 = vmul.f32 %v2726, %v2726
      %v2745 = vmul.f32 %v2727, %v2727
      %v2746 = vmul.f32 %v2728, %v2728
      %v2747 = vmul.f32 %v2729, %v2729
      %v2748 = vmul.f32 %v2730, %v2730
      %v2749 = vmul.f32 %v2731, %v2731
      %v2750 = vmul.f32 %v2732, %v2732
      %v2751 = vmul.f32 %v2733, %v2733
      %v2752 = vsel %vm1557, %v2734, 0.0
      %2753 = vadd.xlane.f32.xlu0 %v2752
      %v2754 = vpop.xlane.xlu0 %2753
      %v2755 = vsel %vm1557, %v2735, 0.0
      %2756 = vadd.xlane.f32.xlu0 %v2755
      %v2757 = vpop.xlane.xlu0 %2756
      %v2758 = vsel %vm1557, %v2736, 0.0
      %2759 = vadd.xlane.f32.xlu0 %v2758
      %v2760 = vpop.xlane.xlu0 %2759
      %v2761 = vsel %vm1557, %v2737, 0.0
      %2762 = vadd.xlane.f32.xlu0 %v2761
      %v2763 = vpop.xlane.xlu0 %2762
      %v2764 = vsel %vm1557, %v2738, 0.0
      %2765 = vadd.xlane.f32.xlu0 %v2764
      %v2766 = vpop.xlane.xlu0 %2765
      %v2767 = vsel %vm1557, %v2739, 0.0
      %2768 = vadd.xlane.f32.xlu0 %v2767
      %v2769 = vpop.xlane.xlu0 %2768
      %v2770 = vsel %vm1557, %v2740, 0.0
      %2771 = vadd.xlane.f32.xlu0 %v2770
      %v2772 = vpop.xlane.xlu0 %2771
      %v2773 = vsel %vm1557, %v2741, 0.0
      %2774 = vadd.xlane.f32.xlu0 %v2773
      %v2775 = vpop.xlane.xlu0 %2774
      %v2776 = vsel %vm1557, %v2742, 0.0
      %2777 = vadd.xlane.f32.xlu0 %v2776
      %v2778 = vpop.xlane.xlu0 %2777
      %v2779 = vsel %vm1557, %v2743, 0.0
      %2780 = vadd.xlane.f32.xlu0 %v2779
      %v2781 = vpop.xlane.xlu0 %2780
      %v2782 = vsel %vm1557, %v2744, 0.0
      %2783 = vadd.xlane.f32.xlu0 %v2782
      %v2784 = vpop.xlane.xlu0 %2783
      %v2785 = vsel %vm1557, %v2745, 0.0
      %2786 = vadd.xlane.f32.xlu0 %v2785
      %v2787 = vpop.xlane.xlu0 %2786
      %v2788 = vsel %vm1557, %v2746, 0.0
      %2789 = vadd.xlane.f32.xlu0 %v2788
      %v2790 = vpop.xlane.xlu0 %2789
      %v2791 = vsel %vm1557, %v2747, 0.0
      %2792 = vadd.xlane.f32.xlu0 %v2791
      %v2793 = vpop.xlane.xlu0 %2792
      %v2794 = vsel %vm1557, %v2748, 0.0
      %2795 = vadd.xlane.f32.xlu0 %v2794
      %v2796 = vpop.xlane.xlu0 %2795
      %v2797 = vsel %vm1557, %v2749, 0.0
      %2798 = vadd.xlane.f32.xlu0 %v2797
      %v2799 = vpop.xlane.xlu0 %2798
      %v2800 = vsel %vm1557, %v2750, 0.0
      %2801 = vadd.xlane.f32.xlu0 %v2800
      %v2802 = vpop.xlane.xlu0 %2801
      %v2803 = vsel %vm1557, %v2751, 0.0
      %2804 = vadd.xlane.f32.xlu0 %v2803
      %v2805 = vpop.xlane.xlu0 %2804
      %v2806 = vmul.f32 %v2754, %v2697
      %v2807 = vmul.f32 %v2757, %v2697
      %v2808 = vmul.f32 %v2760, %v2697
      %v2809 = vmul.f32 %v2763, %v2697
      %v2810 = vmul.f32 %v2766, %v2697
      %v2811 = vmul.f32 %v2769, %v2697
      %v2812 = vmul.f32 %v2772, %v2697
      %v2813 = vmul.f32 %v2775, %v2697
      %v2814 = vmul.f32 %v2778, %v2697
      %v2815 = vmul.f32 %v2781, %v2697
      %v2816 = vmul.f32 %v2784, %v2697
      %v2817 = vmul.f32 %v2787, %v2697
      %v2818 = vmul.f32 %v2790, %v2697
      %v2819 = vmul.f32 %v2793, %v2697
      %v2820 = vmul.f32 %v2796, %v2697
      %v2821 = vmul.f32 %v2799, %v2697
      %v2822 = vmul.f32 %v2802, %v2697
      %v2823 = vmul.f32 %v2805, %v2697
      %v2824 = vadd.f32 %v2806, 1e-12
      %v2825 = vadd.f32 %v2807, 1e-12
      %v2826 = vadd.f32 %v2808, 1e-12
      %v2827 = vadd.f32 %v2809, 1e-12
      %v2828 = vadd.f32 %v2810, 1e-12
      %v2829 = vadd.f32 %v2811, 1e-12
      %v2830 = vadd.f32 %v2812, 1e-12
      %v2831 = vadd.f32 %v2813, 1e-12
      %v2832 = vadd.f32 %v2814, 1e-12
      %v2833 = vadd.f32 %v2815, 1e-12
      %v2834 = vadd.f32 %v2816, 1e-12
      %v2835 = vadd.f32 %v2817, 1e-12
      %v2836 = vadd.f32 %v2818, 1e-12
      %v2837 = vadd.f32 %v2819, 1e-12
      %v2838 = vadd.f32 %v2820, 1e-12
      %v2839 = vadd.f32 %v2821, 1e-12
      %v2840 = vadd.f32 %v2822, 1e-12
      %v2841 = vadd.f32 %v2823, 1e-12
      %v2842 = vrsqrt.pop %v2824
      %v2843 = vrsqrt.pop %v2825
      %v2844 = vrsqrt.pop %v2826
      %v2845 = vrsqrt.pop %v2827
      %v2846 = vrsqrt.pop %v2828
      %v2847 = vrsqrt.pop %v2829
      %v2848 = vrsqrt.pop %v2830
      %v2849 = vrsqrt.pop %v2831
      %v2850 = vrsqrt.pop %v2832
      %v2851 = vrsqrt.pop %v2833
      %v2852 = vrsqrt.pop %v2834
      %v2853 = vrsqrt.pop %v2835
      %v2854 = vrsqrt.pop %v2836
      %v2855 = vrsqrt.pop %v2837
      %v2856 = vrsqrt.pop %v2838
      %v2857 = vrsqrt.pop %v2839
      %v2858 = vrsqrt.pop %v2840
      %v2859 = vrsqrt.pop %v2841
      %v2860 = vmul.f32 %v2716, %v2842
      %v2861 = vmul.f32 %v2717, %v2843
      %v2862 = vmul.f32 %v2718, %v2844
      %v2863 = vmul.f32 %v2719, %v2845
      %v2864 = vmul.f32 %v2720, %v2846
      %v2865 = vmul.f32 %v2721, %v2847
      %v2866 = vmul.f32 %v2722, %v2848
      %v2867 = vmul.f32 %v2723, %v2849
      %v2868 = vmul.f32 %v2724, %v2850
      %v2869 = vmul.f32 %v2725, %v2851
      %v2870 = vmul.f32 %v2726, %v2852
      %v2871 = vmul.f32 %v2727, %v2853
      %v2872 = vmul.f32 %v2728, %v2854
      %v2873 = vmul.f32 %v2729, %v2855
      %v2874 = vmul.f32 %v2730, %v2856
      %v2875 = vmul.f32 %v2731, %v2857
      %v2876 = vmul.f32 %v2732, %v2858
      %v2877 = vmul.f32 %v2733, %v2859
      %v2879 = vlaneseq
      %v2880 = vshrl.u32 %v2879, 7
      %v2881 = vsub.s32 0, %v2880
      %v2882 = vrot.slane %v2641, %v2881
      %v2884 = vmul.f32 %v2860, %v2882
      %v2885 = vmul.f32 %v2861, %v2882
      %v2886 = vmul.f32 %v2862, %v2882
      %v2887 = vmul.f32 %v2863, %v2882
      %v2888 = vmul.f32 %v2864, %v2882
      %v2889 = vmul.f32 %v2865, %v2882
      %v2890 = vmul.f32 %v2866, %v2882
      %v2891 = vmul.f32 %v2867, %v2882
      %v2892 = vmul.f32 %v2868, %v2882
      %v2893 = vmul.f32 %v2869, %v2882
      %v2894 = vmul.f32 %v2870, %v2882
      %v2895 = vmul.f32 %v2871, %v2882
      %v2896 = vmul.f32 %v2872, %v2882
      %v2897 = vmul.f32 %v2873, %v2882
      %v2898 = vmul.f32 %v2874, %v2882
      %v2899 = vmul.f32 %v2875, %v2882
      %v2900 = vmul.f32 %v2876, %v2882
      %v2901 = vmul.f32 %v2877, %v2882
      %v2903 = vlaneseq
      %v2904 = vshrl.u32 %v2903, 7
      %v2905 = vsub.s32 0, %v2904
      %v2906 = vrot.slane %v2642, %v2905
      %v2908 = vadd.f32 %v2884, %v2906
      %v2909 = vadd.f32 %v2885, %v2906
      %v2910 = vadd.f32 %v2886, %v2906
      %v2911 = vadd.f32 %v2887, %v2906
      %v2912 = vadd.f32 %v2888, %v2906
      %v2913 = vadd.f32 %v2889, %v2906
      %v2914 = vadd.f32 %v2890, %v2906
      %v2915 = vadd.f32 %v2891, %v2906
      %v2916 = vadd.f32 %v2892, %v2906
      %v2917 = vadd.f32 %v2893, %v2906
      %v2918 = vadd.f32 %v2894, %v2906
      %v2919 = vadd.f32 %v2895, %v2906
      %v2920 = vadd.f32 %v2896, %v2906
      %v2921 = vadd.f32 %v2897, %v2906
      %v2922 = vadd.f32 %v2898, %v2906
      %v2923 = vadd.f32 %v2899, %v2906
      %v2924 = vadd.f32 %v2900, %v2906
      %v2925 = vadd.f32 %v2901, %v2906
      %v2926 = vld [vmem:[%s27] sm:$0xff]
      %v2927 = vld [vmem:[%s27 + $0x8] sm:$0xff]
      %v2928 = vld [vmem:[%s27 + $0x10] sm:$0xff]
      %v2929 = vld [vmem:[%s27 + $0x18] sm:$0xff]
      %v2930 = vld [vmem:[%s27 + $0x20] sm:$0xff]
      %v2931 = vld [vmem:[%s27 + $0x28] sm:$0xff]
      %v2932 = vld [vmem:[%s27 + $0x30] sm:$0xff]
      %v2933 = vld [vmem:[%s27 + $0x38] sm:$0xff]
      %v2934 = vpack.c.bf16 %v2909, %v2908
      %v2935 = vpack.c.bf16 %v2911, %v2910
      %v2936 = vpack.c.bf16 %v2913, %v2912
      %v2937 = vpack.c.bf16 %v2915, %v2914
      %v2938 = vpack.c.bf16 %v2917, %v2916
      %v2939 = vpack.c.bf16 %v2919, %v2918
      %v2940 = vpack.c.bf16 %v2921, %v2920
      %v2941 = vpack.c.bf16 %v2923, %v2922
      %v2942 = vpack.c.bf16 %v2925, %v2924
      %v2943 = vld [vmem:[%s29] sm:$0xf]
      %v2945 = vlaneseq
      %v2946 = vshrl.u32 %v2945, 7
      %v2947 = vsub.s32 0, %v2946
      %v2948 = vrot.slane %v2943, %v2947
      %v2949 = vlaneseq
      %v2950 = vshrl.u32 %v2949, 7
      %v2951 = vsub.s32 1, %v2950
      %v2952 = vrot.slane %v2943, %v2951
      %v2953 = vlaneseq
      %v2954 = vshrl.u32 %v2953, 7
      %v2955 = vsub.s32 2, %v2954
      %v2956 = vrot.slane %v2943, %v2955
      %v2957 = vlaneseq
      %v2958 = vshrl.u32 %v2957, 7
      %v2959 = vsub.s32 3, %v2958
      %v2960 = vrot.slane %v2943, %v2959
      %v2973 = vunpack.c.l.b16 %v2926
      %v2974 = vunpack.c.h.b16 %v2926
      %v2975 = vunpack.c.l.b16 %v2927
      %v2976 = vunpack.c.h.b16 %v2927
      %v2977 = vunpack.c.l.b16 %v2928
      %v2978 = vunpack.c.h.b16 %v2928
      %v2979 = vunpack.c.l.b16 %v2929
      %v2980 = vunpack.c.h.b16 %v2929
      %v2981 = vunpack.c.l.b16 %v2930
      %v2982 = vunpack.c.h.b16 %v2930
      %v2983 = vunpack.c.l.b16 %v2931
      %v2984 = vunpack.c.h.b16 %v2931
      %v2985 = vunpack.c.l.b16 %v2932
      %v2986 = vunpack.c.h.b16 %v2932
      %v2987 = vunpack.c.l.b16 %v2933
      %v2988 = vunpack.c.h.b16 %v2933
      %v2989 = vpack.c.b16 %v2977, %v2973
      %v2990 = vpack.c.b16 %v2978, %v2974
      %v2991 = vpack.c.b16 %v2979, %v2975
      %v2992 = vpack.c.b16 %v2980, %v2976
      %v2993 = vpack.c.b16 %v2985, %v2981
      %v2994 = vpack.c.b16 %v2986, %v2982
      %v2995 = vpack.c.b16 %v2987, %v2983
      %v2996 = vpack.c.b16 %v2988, %v2984
      %v3006 = vsel %vm1557, %v2934, 0
      %v3009 = vsel %vm1557, %v2935, 0
      %v3012 = vsel %vm1557, %v2936, 0
      %v3015 = vsel %vm1557, %v2937, 0
      %v3018 = vsel %vm1557, %v2938, 0
      %v3021 = vsel %vm1557, %v2939, 0
      %v3024 = vsel %vm1557, %v2940, 0
      %v3027 = vsel %vm1557, %v2941, 0
      %v3030 = vsel %vm1557, %v2942, 0
      %3032 = vmatprep.subr.bf16.mxu0 0
      %3033 = vmatpush1.bf16.msra.mxu0 0
      %3034 = vmatprep.subr.bf16.mxu0 0
      %3035 = vmatpush1.bf16.msra.mxu0 0
      %3036 = vmatprep.subr.bf16.mxu0 0
      %3037 = vmatpush1.bf16.msra.mxu0 0
      %3038 = vmatprep.subr.bf16.mxu0 0
      %3039 = vmatpush1.bf16.msra.mxu0 0
      %3040 = vmatprep.subr.bf16.mxu0 0
      %3041 = vmatpush1.bf16.msra.mxu0 0
      %3042 = vmatprep.subr.bf16.mxu0 0
      %3043 = vmatpush1.bf16.msra.mxu0 0
      %3044 = vmatprep.subr.bf16.mxu0 %v2994
      %3045 = vmatpush1.bf16.msra.mxu0 %v2993
      %3046 = vmatprep.subr.bf16.mxu0 %v2990
      %3047 = vmatpush1.bf16.msra.mxu0 %v2989
      %3048 = vmatprep.subr.bf16.mxu0 0
      %3049 = vmatpush2.bf16.msra.mxu0 0
      %3050 = vmatprep.subr.bf16.mxu0 0
      %3051 = vmatpush2.bf16.msra.mxu0 0
      %3052 = vmatprep.subr.bf16.mxu0 0
      %3053 = vmatpush2.bf16.msra.mxu0 0
      %3054 = vmatprep.subr.bf16.mxu0 0
      %3055 = vmatpush2.bf16.msra.mxu0 0
      %3056 = vmatprep.subr.bf16.mxu0 0
      %3057 = vmatpush2.bf16.msra.mxu0 0
      %3058 = vmatprep.subr.bf16.mxu0 0
      %3059 = vmatpush2.bf16.msra.mxu0 0
      %3060 = vmatprep.subr.bf16.mxu0 0
      %3061 = vmatpush2.bf16.msra.mxu0 0
      %3062 = vmatprep.subr.bf16.mxu0 0
      %3063 = vmatpush2.bf16.msra.mxu0 0
      %3064 = vmatprep.mubr.bf16.mxu0 0
      %3065 = vmatmul.mubr.bf16.gmra.mxu0 %v3006
      %v3066 = vpop.f32.mrf.mxu0
      %v3067 = vadd.f32 %v2948, %v3066
      %v3068 = vpop.f32.mrf.mxu0
      %v3069 = vadd.f32 %v2952, %v3068
      %v3070 = vpop.f32.mrf.mxu0
      %v3071 = vadd.f32 %v2948, %v3070
      %v3072 = vpop.f32.mrf.mxu0
      %v3073 = vadd.f32 %v2952, %v3072
      %3074 = vmatprep.mubr.bf16.mxu0 0
      %3075 = vmatmul.mubr.bf16.gmra.mxu0 %v3009
      %v3076 = vpop.f32.mrf.mxu0
      %v3077 = vadd.f32 %v2948, %v3076
      %v3078 = vpop.f32.mrf.mxu0
      %v3079 = vadd.f32 %v2952, %v3078
      %v3080 = vpop.f32.mrf.mxu0
      %v3081 = vadd.f32 %v2948, %v3080
      %v3082 = vpop.f32.mrf.mxu0
      %v3083 = vadd.f32 %v2952, %v3082
      %3084 = vmatprep.mubr.bf16.mxu0 0
      %3085 = vmatmul.mubr.bf16.gmra.mxu0 %v3012
      %v3086 = vpop.f32.mrf.mxu0
      %v3087 = vadd.f32 %v2948, %v3086
      %v3088 = vpop.f32.mrf.mxu0
      %v3089 = vadd.f32 %v2952, %v3088
      %v3090 = vpop.f32.mrf.mxu0
      %v3091 = vadd.f32 %v2948, %v3090
      %v3092 = vpop.f32.mrf.mxu0
      %v3093 = vadd.f32 %v2952, %v3092
      %3094 = vmatprep.mubr.bf16.mxu0 0
      %3095 = vmatmul.mubr.bf16.gmra.mxu0 %v3015
      %v3096 = vpop.f32.mrf.mxu0
      %v3097 = vadd.f32 %v2948, %v3096
      %v3098 = vpop.f32.mrf.mxu0
      %v3099 = vadd.f32 %v2952, %v3098
      %v3100 = vpop.f32.mrf.mxu0
      %v3101 = vadd.f32 %v2948, %v3100
      %v3102 = vpop.f32.mrf.mxu0
      %v3103 = vadd.f32 %v2952, %v3102
      %3104 = vmatprep.mubr.bf16.mxu0 0
      %3105 = vmatmul.mubr.bf16.gmra.mxu0 %v3018
      %v3106 = vpop.f32.mrf.mxu0
      %v3107 = vadd.f32 %v2948, %v3106
      %v3108 = vpop.f32.mrf.mxu0
      %v3109 = vadd.f32 %v2952, %v3108
      %v3110 = vpop.f32.mrf.mxu0
      %v3111 = vadd.f32 %v2948, %v3110
      %v3112 = vpop.f32.mrf.mxu0
      %v3113 = vadd.f32 %v2952, %v3112
      %3114 = vmatprep.mubr.bf16.mxu0 0
      %3115 = vmatmul.mubr.bf16.gmra.mxu0 %v3021
      %v3116 = vpop.f32.mrf.mxu0
      %v3117 = vadd.f32 %v2948, %v3116
      %v3118 = vpop.f32.mrf.mxu0
      %v3119 = vadd.f32 %v2952, %v3118
      %v3120 = vpop.f32.mrf.mxu0
      %v3121 = vadd.f32 %v2948, %v3120
      %v3122 = vpop.f32.mrf.mxu0
      %v3123 = vadd.f32 %v2952, %v3122
      %3124 = vmatprep.mubr.bf16.mxu0 0
      %3125 = vmatmul.mubr.bf16.gmra.mxu0 %v3024
      %v3126 = vpop.f32.mrf.mxu0
      %v3127 = vadd.f32 %v2948, %v3126
      %v3128 = vpop.f32.mrf.mxu0
      %v3129 = vadd.f32 %v2952, %v3128
      %v3130 = vpop.f32.mrf.mxu0
      %v3131 = vadd.f32 %v2948, %v3130
      %v3132 = vpop.f32.mrf.mxu0
      %v3133 = vadd.f32 %v2952, %v3132
      %3134 = vmatprep.mubr.bf16.mxu0 0
      %3135 = vmatmul.mubr.bf16.gmra.mxu0 %v3027
      %v3136 = vpop.f32.mrf.mxu0
      %v3137 = vadd.f32 %v2948, %v3136
      %v3138 = vpop.f32.mrf.mxu0
      %v3139 = vadd.f32 %v2952, %v3138
      %v3140 = vpop.f32.mrf.mxu0
      %v3141 = vadd.f32 %v2948, %v3140
      %v3142 = vpop.f32.mrf.mxu0
      %v3143 = vadd.f32 %v2952, %v3142
      %3144 = vmatprep.mubr.bf16.mxu0 0
      %3145 = vmatmul.mubr.bf16.gmra.mxu0 %v3030
      %v3146 = vpop.f32.mrf.mxu0
      %v3147 = vadd.f32 %v2948, %v3146
      %v3148 = vpop.f32.mrf.mxu0
      %v3149 = vadd.f32 %v2952, %v3148
      %v3150 = vpop.f32.mrf.mxu0
      %v3151 = vadd.f32 %v2948, %v3150
      %v3152 = vpop.f32.mrf.mxu0
      %v3153 = vadd.f32 %v2952, %v3152
      %3154 = vdwg.mxu0
      %3155 = vmatprep.subr.bf16.mxu0 0
      %3156 = vmatpush1.bf16.msra.mxu0 0
      %3157 = vmatprep.subr.bf16.mxu0 0
      %3158 = vmatpush1.bf16.msra.mxu0 0
      %3159 = vmatprep.subr.bf16.mxu0 0
      %3160 = vmatpush1.bf16.msra.mxu0 0
      %3161 = vmatprep.subr.bf16.mxu0 0
      %3162 = vmatpush1.bf16.msra.mxu0 0
      %3163 = vmatprep.subr.bf16.mxu0 0
      %3164 = vmatpush1.bf16.msra.mxu0 0
      %3165 = vmatprep.subr.bf16.mxu0 0
      %3166 = vmatpush1.bf16.msra.mxu0 0
      %3167 = vmatprep.subr.bf16.mxu0 %v2996
      %3168 = vmatpush1.bf16.msra.mxu0 %v2995
      %3169 = vmatprep.subr.bf16.mxu0 %v2992
      %3170 = vmatpush1.bf16.msra.mxu0 %v2991
      %3171 = vmatprep.subr.bf16.mxu0 0
      %3172 = vmatpush2.bf16.msra.mxu0 0
      %3173 = vmatprep.subr.bf16.mxu0 0
      %3174 = vmatpush2.bf16.msra.mxu0 0
      %3175 = vmatprep.subr.bf16.mxu0 0
      %3176 = vmatpush2.bf16.msra.mxu0 0
      %3177 = vmatprep.subr.bf16.mxu0 0
      %3178 = vmatpush2.bf16.msra.mxu0 0
      %3179 = vmatprep.subr.bf16.mxu0 0
      %3180 = vmatpush2.bf16.msra.mxu0 0
      %3181 = vmatprep.subr.bf16.mxu0 0
      %3182 = vmatpush2.bf16.msra.mxu0 0
      %3183 = vmatprep.subr.bf16.mxu0 0
      %3184 = vmatpush2.bf16.msra.mxu0 0
      %3185 = vmatprep.subr.bf16.mxu0 0
      %3186 = vmatpush2.bf16.msra.mxu0 0
      %3187 = vmatprep.mubr.bf16.mxu0 0
      %3188 = vmatmul.mubr.bf16.gmra.mxu0 %v3006
      %v3189 = vpop.f32.mrf.mxu0
      %v3190 = vadd.f32 %v2956, %v3189
      %v3191 = vpop.f32.mrf.mxu0
      %v3192 = vadd.f32 %v2960, %v3191
      %v3193 = vpop.f32.mrf.mxu0
      %v3194 = vadd.f32 %v2956, %v3193
      %v3195 = vpop.f32.mrf.mxu0
      %v3196 = vadd.f32 %v2960, %v3195
      %3197 = vmatprep.mubr.bf16.mxu0 0
      %3198 = vmatmul.mubr.bf16.gmra.mxu0 %v3009
      %v3199 = vpop.f32.mrf.mxu0
      %v3200 = vadd.f32 %v2956, %v3199
      %v3201 = vpop.f32.mrf.mxu0
      %v3202 = vadd.f32 %v2960, %v3201
      %v3203 = vpop.f32.mrf.mxu0
      %v3204 = vadd.f32 %v2956, %v3203
      %v3205 = vpop.f32.mrf.mxu0
      %v3206 = vadd.f32 %v2960, %v3205
      %3207 = vmatprep.mubr.bf16.mxu0 0
      %3208 = vmatmul.mubr.bf16.gmra.mxu0 %v3012
      %v3209 = vpop.f32.mrf.mxu0
      %v3210 = vadd.f32 %v2956, %v3209
      %v3211 = vpop.f32.mrf.mxu0
      %v3212 = vadd.f32 %v2960, %v3211
      %v3213 = vpop.f32.mrf.mxu0
      %v3214 = vadd.f32 %v2956, %v3213
      %v3215 = vpop.f32.mrf.mxu0
      %v3216 = vadd.f32 %v2960, %v3215
      %3217 = vmatprep.mubr.bf16.mxu0 0
      %3218 = vmatmul.mubr.bf16.gmra.mxu0 %v3015
      %v3219 = vpop.f32.mrf.mxu0
      %v3220 = vadd.f32 %v2956, %v3219
      %v3221 = vpop.f32.mrf.mxu0
      %v3222 = vadd.f32 %v2960, %v3221
      %v3223 = vpop.f32.mrf.mxu0
      %v3224 = vadd.f32 %v2956, %v3223
      %v3225 = vpop.f32.mrf.mxu0
      %v3226 = vadd.f32 %v2960, %v3225
      %3227 = vmatprep.mubr.bf16.mxu0 0
      %3228 = vmatmul.mubr.bf16.gmra.mxu0 %v3018
      %v3229 = vpop.f32.mrf.mxu0
      %v3230 = vadd.f32 %v2956, %v3229
      %v3231 = vpop.f32.mrf.mxu0
      %v3232 = vadd.f32 %v2960, %v3231
      %v3233 = vpop.f32.mrf.mxu0
      %v3234 = vadd.f32 %v2956, %v3233
      %v3235 = vpop.f32.mrf.mxu0
      %v3236 = vadd.f32 %v2960, %v3235
      %3237 = vmatprep.mubr.bf16.mxu0 0
      %3238 = vmatmul.mubr.bf16.gmra.mxu0 %v3021
      %v3239 = vpop.f32.mrf.mxu0
      %v3240 = vadd.f32 %v2956, %v3239
      %v3241 = vpop.f32.mrf.mxu0
      %v3242 = vadd.f32 %v2960, %v3241
      %v3243 = vpop.f32.mrf.mxu0
      %v3244 = vadd.f32 %v2956, %v3243
      %v3245 = vpop.f32.mrf.mxu0
      %v3246 = vadd.f32 %v2960, %v3245
      %3247 = vmatprep.mubr.bf16.mxu0 0
      %3248 = vmatmul.mubr.bf16.gmra.mxu0 %v3024
      %v3249 = vpop.f32.mrf.mxu0
      %v3250 = vadd.f32 %v2956, %v3249
      %v3251 = vpop.f32.mrf.mxu0
      %v3252 = vadd.f32 %v2960, %v3251
      %v3253 = vpop.f32.mrf.mxu0
      %v3254 = vadd.f32 %v2956, %v3253
      %v3255 = vpop.f32.mrf.mxu0
      %v3256 = vadd.f32 %v2960, %v3255
      %3257 = vmatprep.mubr.bf16.mxu0 0
      %3258 = vmatmul.mubr.bf16.gmra.mxu0 %v3027
      %v3259 = vpop.f32.mrf.mxu0
      %v3260 = vadd.f32 %v2956, %v3259
      %v3261 = vpop.f32.mrf.mxu0
      %v3262 = vadd.f32 %v2960, %v3261
      %v3263 = vpop.f32.mrf.mxu0
      %v3264 = vadd.f32 %v2956, %v3263
      %v3265 = vpop.f32.mrf.mxu0
      %v3266 = vadd.f32 %v2960, %v3265
      %3267 = vmatprep.mubr.bf16.mxu0 0
      %3268 = vmatmul.mubr.bf16.gmra.mxu0 %v3030
      %v3269 = vpop.f32.mrf.mxu0
      %v3270 = vadd.f32 %v2956, %v3269
      %v3271 = vpop.f32.mrf.mxu0
      %v3272 = vadd.f32 %v2960, %v3271
      %v3273 = vpop.f32.mrf.mxu0
      %v3274 = vadd.f32 %v2956, %v3273
      %v3275 = vpop.f32.mrf.mxu0
      %v3276 = vadd.f32 %v2960, %v3275
      %3277 = vdwg.mxu0
      %v3278 = vmul.f32 %v3067, 0.5
      %v3279 = vmul.f32 %v3069, 0.5
      %v3280 = vmul.f32 %v3190, 0.5
      %v3281 = vmul.f32 %v3192, 0.5
      %v3282 = vmul.f32 %v3071, 0.5
      %v3283 = vmul.f32 %v3073, 0.5
      %v3284 = vmul.f32 %v3194, 0.5
      %v3285 = vmul.f32 %v3196, 0.5
      %v3286 = vmul.f32 %v3077, 0.5
      %v3287 = vmul.f32 %v3079, 0.5
      %v3288 = vmul.f32 %v3200, 0.5
      %v3289 = vmul.f32 %v3202, 0.5
      %v3290 = vmul.f32 %v3081, 0.5
      %v3291 = vmul.f32 %v3083, 0.5
      %v3292 = vmul.f32 %v3204, 0.5
      %v3293 = vmul.f32 %v3206, 0.5
      %v3294 = vmul.f32 %v3087, 0.5
      %v3295 = vmul.f32 %v3089, 0.5
      %v3296 = vmul.f32 %v3210, 0.5
      %v3297 = vmul.f32 %v3212, 0.5
      %v3298 = vmul.f32 %v3091, 0.5
      %v3299 = vmul.f32 %v3093, 0.5
      %v3300 = vmul.f32 %v3214, 0.5
      %v3301 = vmul.f32 %v3216, 0.5
      %v3302 = vmul.f32 %v3097, 0.5
      %v3303 = vmul.f32 %v3099, 0.5
      %v3304 = vmul.f32 %v3220, 0.5
      %v3305 = vmul.f32 %v3222, 0.5
      %v3306 = vmul.f32 %v3101, 0.5
      %v3307 = vmul.f32 %v3103, 0.5
      %v3308 = vmul.f32 %v3224, 0.5
      %v3309 = vmul.f32 %v3226, 0.5
      %v3310 = vmul.f32 %v3107, 0.5
      %v3311 = vmul.f32 %v3109, 0.5
      %v3312 = vmul.f32 %v3230, 0.5
      %v3313 = vmul.f32 %v3232, 0.5
      %v3314 = vmul.f32 %v3111, 0.5
      %v3315 = vmul.f32 %v3113, 0.5
      %v3316 = vmul.f32 %v3234, 0.5
      %v3317 = vmul.f32 %v3236, 0.5
      %v3318 = vmul.f32 %v3117, 0.5
      %v3319 = vmul.f32 %v3119, 0.5
      %v3320 = vmul.f32 %v3240, 0.5
      %v3321 = vmul.f32 %v3242, 0.5
      %v3322 = vmul.f32 %v3121, 0.5
      %v3323 = vmul.f32 %v3123, 0.5
      %v3324 = vmul.f32 %v3244, 0.5
      %v3325 = vmul.f32 %v3246, 0.5
      %v3326 = vmul.f32 %v3127, 0.5
      %v3327 = vmul.f32 %v3129, 0.5
      %v3328 = vmul.f32 %v3250, 0.5
      %v3329 = vmul.f32 %v3252, 0.5
      %v3330 = vmul.f32 %v3131, 0.5
      %v3331 = vmul.f32 %v3133, 0.5
      %v3332 = vmul.f32 %v3254, 0.5
      %v3333 = vmul.f32 %v3256, 0.5
      %v3334 = vmul.f32 %v3137, 0.5
      %v3335 = vmul.f32 %v3139, 0.5
      %v3336 = vmul.f32 %v3260, 0.5
      %v3337 = vmul.f32 %v3262, 0.5
      %v3338 = vmul.f32 %v3141, 0.5
      %v3339 = vmul.f32 %v3143, 0.5
      %v3340 = vmul.f32 %v3264, 0.5
      %v3341 = vmul.f32 %v3266, 0.5
      %v3342 = vmul.f32 %v3147, 0.5
      %v3343 = vmul.f32 %v3149, 0.5
      %v3344 = vmul.f32 %v3270, 0.5
      %v3345 = vmul.f32 %v3272, 0.5
      %v3346 = vmul.f32 %v3151, 0.5
      %v3347 = vmul.f32 %v3153, 0.5
      %v3348 = vmul.f32 %v3274, 0.5
      %v3349 = vmul.f32 %v3276, 0.5
      %v3350 = vmul.f32 %v3067, 0.044715
      %v3351 = vmul.f32 %v3069, 0.044715
      %v3352 = vmul.f32 %v3190, 0.044715
      %v3353 = vmul.f32 %v3192, 0.044715
      %v3354 = vmul.f32 %v3071, 0.044715
      %v3355 = vmul.f32 %v3073, 0.044715
      %v3356 = vmul.f32 %v3194, 0.044715
      %v3357 = vmul.f32 %v3196, 0.044715
      %v3358 = vmul.f32 %v3077, 0.044715
      %v3359 = vmul.f32 %v3079, 0.044715
      %v3360 = vmul.f32 %v3200, 0.044715
      %v3361 = vmul.f32 %v3202, 0.044715
      %v3362 = vmul.f32 %v3081, 0.044715
      %v3363 = vmul.f32 %v3083, 0.044715
      %v3364 = vmul.f32 %v3204, 0.044715
      %v3365 = vmul.f32 %v3206, 0.044715
      %v3366 = vmul.f32 %v3087, 0.044715
      %v3367 = vmul.f32 %v3089, 0.044715
      %v3368 = vmul.f32 %v3210, 0.044715
      %v3369 = vmul.f32 %v3212, 0.044715
      %v3370 = vmul.f32 %v3091, 0.044715
      %v3371 = vmul.f32 %v3093, 0.044715
      %v3372 = vmul.f32 %v3214, 0.044715
      %v3373 = vmul.f32 %v3216, 0.044715
      %v3374 = vmul.f32 %v3097, 0.044715
      %v3375 = vmul.f32 %v3099, 0.044715
      %v3376 = vmul.f32 %v3220, 0.044715
      %v3377 = vmul.f32 %v3222, 0.044715
      %v3378 = vmul.f32 %v3101, 0.044715
      %v3379 = vmul.f32 %v3103, 0.044715
      %v3380 = vmul.f32 %v3224, 0.044715
      %v3381 = vmul.f32 %v3226, 0.044715
      %v3382 = vmul.f32 %v3107, 0.044715
      %v3383 = vmul.f32 %v3109, 0.044715
      %v3384 = vmul.f32 %v3230, 0.044715
      %v3385 = vmul.f32 %v3232, 0.044715
      %v3386 = vmul.f32 %v3111, 0.044715
      %v3387 = vmul.f32 %v3113, 0.044715
      %v3388 = vmul.f32 %v3234, 0.044715
      %v3389 = vmul.f32 %v3236, 0.044715
      %v3390 = vmul.f32 %v3117, 0.044715
      %v3391 = vmul.f32 %v3119, 0.044715
      %v3392 = vmul.f32 %v3240, 0.044715
      %v3393 = vmul.f32 %v3242, 0.044715
      %v3394 = vmul.f32 %v3121, 0.044715
      %v3395 = vmul.f32 %v3123, 0.044715
      %v3396 = vmul.f32 %v3244, 0.044715
      %v3397 = vmul.f32 %v3246, 0.044715
      %v3398 = vmul.f32 %v3127, 0.044715
      %v3399 = vmul.f32 %v3129, 0.044715
      %v3400 = vmul.f32 %v3250, 0.044715
      %v3401 = vmul.f32 %v3252, 0.044715
      %v3402 = vmul.f32 %v3131, 0.044715
      %v3403 = vmul.f32 %v3133, 0.044715
      %v3404 = vmul.f32 %v3254, 0.044715
      %v3405 = vmul.f32 %v3256, 0.044715
      %v3406 = vmul.f32 %v3137, 0.044715
      %v3407 = vmul.f32 %v3139, 0.044715
      %v3408 = vmul.f32 %v3260, 0.044715
      %v3409 = vmul.f32 %v3262, 0.044715
      %v3410 = vmul.f32 %v3141, 0.044715
      %v3411 = vmul.f32 %v3143, 0.044715
      %v3412 = vmul.f32 %v3264, 0.044715
      %v3413 = vmul.f32 %v3266, 0.044715
      %v3414 = vmul.f32 %v3147, 0.044715
      %v3415 = vmul.f32 %v3149, 0.044715
      %v3416 = vmul.f32 %v3270, 0.044715
      %v3417 = vmul.f32 %v3272, 0.044715
      %v3418 = vmul.f32 %v3151, 0.044715
      %v3419 = vmul.f32 %v3153, 0.044715
      %v3420 = vmul.f32 %v3274, 0.044715
      %v3421 = vmul.f32 %v3276, 0.044715
      %v3422 = vmul.f32 %v3350, %v3067
      %v3423 = vmul.f32 %v3351, %v3069
      %v3424 = vmul.f32 %v3352, %v3190
      %v3425 = vmul.f32 %v3353, %v3192
      %v3426 = vmul.f32 %v3354, %v3071
      %v3427 = vmul.f32 %v3355, %v3073
      %v3428 = vmul.f32 %v3356, %v3194
      %v3429 = vmul.f32 %v3357, %v3196
      %v3430 = vmul.f32 %v3358, %v3077
      %v3431 = vmul.f32 %v3359, %v3079
      %v3432 = vmul.f32 %v3360, %v3200
      %v3433 = vmul.f32 %v3361, %v3202
      %v3434 = vmul.f32 %v3362, %v3081
      %v3435 = vmul.f32 %v3363, %v3083
      %v3436 = vmul.f32 %v3364, %v3204
      %v3437 = vmul.f32 %v3365, %v3206
      %v3438 = vmul.f32 %v3366, %v3087
      %v3439 = vmul.f32 %v3367, %v3089
      %v3440 = vmul.f32 %v3368, %v3210
      %v3441 = vmul.f32 %v3369, %v3212
      %v3442 = vmul.f32 %v3370, %v3091
      %v3443 = vmul.f32 %v3371, %v3093
      %v3444 = vmul.f32 %v3372, %v3214
      %v3445 = vmul.f32 %v3373, %v3216
      %v3446 = vmul.f32 %v3374, %v3097
      %v3447 = vmul.f32 %v3375, %v3099
      %v3448 = vmul.f32 %v3376, %v3220
      %v3449 = vmul.f32 %v3377, %v3222
      %v3450 = vmul.f32 %v3378, %v3101
      %v3451 = vmul.f32 %v3379, %v3103
      %v3452 = vmul.f32 %v3380, %v3224
      %v3453 = vmul.f32 %v3381, %v3226
      %v3454 = vmul.f32 %v3382, %v3107
      %v3455 = vmul.f32 %v3383, %v3109
      %v3456 = vmul.f32 %v3384, %v3230
      %v3457 = vmul.f32 %v3385, %v3232
      %v3458 = vmul.f32 %v3386, %v3111
      %v3459 = vmul.f32 %v3387, %v3113
      %v3460 = vmul.f32 %v3388, %v3234
      %v3461 = vmul.f32 %v3389, %v3236
      %v3462 = vmul.f32 %v3390, %v3117
      %v3463 = vmul.f32 %v3391, %v3119
      %v3464 = vmul.f32 %v3392, %v3240
      %v3465 = vmul.f32 %v3393, %v3242
      %v3466 = vmul.f32 %v3394, %v3121
      %v3467 = vmul.f32 %v3395, %v3123
      %v3468 = vmul.f32 %v3396, %v3244
      %v3469 = vmul.f32 %v3397, %v3246
      %v3470 = vmul.f32 %v3398, %v3127
      %v3471 = vmul.f32 %v3399, %v3129
      %v3472 = vmul.f32 %v3400, %v3250
      %v3473 = vmul.f32 %v3401, %v3252
      %v3474 = vmul.f32 %v3402, %v3131
      %v3475 = vmul.f32 %v3403, %v3133
      %v3476 = vmul.f32 %v3404, %v3254
      %v3477 = vmul.f32 %v3405, %v3256
      %v3478 = vmul.f32 %v3406, %v3137
      %v3479 = vmul.f32 %v3407, %v3139
      %v3480 = vmul.f32 %v3408, %v3260
      %v3481 = vmul.f32 %v3409, %v3262
      %v3482 = vmul.f32 %v3410, %v3141
      %v3483 = vmul.f32 %v3411, %v3143
      %v3484 = vmul.f32 %v3412, %v3264
      %v3485 = vmul.f32 %v3413, %v3266
      %v3486 = vmul.f32 %v3414, %v3147
      %v3487 = vmul.f32 %v3415, %v3149
      %v3488 = vmul.f32 %v3416, %v3270
      %v3489 = vmul.f32 %v3417, %v3272
      %v3490 = vmul.f32 %v3418, %v3151
      %v3491 = vmul.f32 %v3419, %v3153
      %v3492 = vmul.f32 %v3420, %v3274
      %v3493 = vmul.f32 %v3421, %v3276
      %v3494 = vmul.f32 %v3422, %v3067
      %v3495 = vmul.f32 %v3423, %v3069
      %v3496 = vmul.f32 %v3424, %v3190
      %v3497 = vmul.f32 %v3425, %v3192
      %v3498 = vmul.f32 %v3426, %v3071
      %v3499 = vmul.f32 %v3427, %v3073
      %v3500 = vmul.f32 %v3428, %v3194
      %v3501 = vmul.f32 %v3429, %v3196
      %v3502 = vmul.f32 %v3430, %v3077
      %v3503 = vmul.f32 %v3431, %v3079
      %v3504 = vmul.f32 %v3432, %v3200
      %v3505 = vmul.f32 %v3433, %v3202
      %v3506 = vmul.f32 %v3434, %v3081
      %v3507 = vmul.f32 %v3435, %v3083
      %v3508 = vmul.f32 %v3436, %v3204
      %v3509 = vmul.f32 %v3437, %v3206
      %v3510 = vmul.f32 %v3438, %v3087
      %v3511 = vmul.f32 %v3439, %v3089
      %v3512 = vmul.f32 %v3440, %v3210
      %v3513 = vmul.f32 %v3441, %v3212
      %v3514 = vmul.f32 %v3442, %v3091
      %v3515 = vmul.f32 %v3443, %v3093
      %v3516 = vmul.f32 %v3444, %v3214
      %v3517 = vmul.f32 %v3445, %v3216
      %v3518 = vmul.f32 %v3446, %v3097
      %v3519 = vmul.f32 %v3447, %v3099
      %v3520 = vmul.f32 %v3448, %v3220
      %v3521 = vmul.f32 %v3449, %v3222
      %v3522 = vmul.f32 %v3450, %v3101
      %v3523 = vmul.f32 %v3451, %v3103
      %v3524 = vmul.f32 %v3452, %v3224
      %v3525 = vmul.f32 %v3453, %v3226
      %v3526 = vmul.f32 %v3454, %v3107
      %v3527 = vmul.f32 %v3455, %v3109
      %v3528 = vmul.f32 %v3456, %v3230
      %v3529 = vmul.f32 %v3457, %v3232
      %v3530 = vmul.f32 %v3458, %v3111
      %v3531 = vmul.f32 %v3459, %v3113
      %v3532 = vmul.f32 %v3460, %v3234
      %v3533 = vmul.f32 %v3461, %v3236
      %v3534 = vmul.f32 %v3462, %v3117
      %v3535 = vmul.f32 %v3463, %v3119
      %v3536 = vmul.f32 %v3464, %v3240
      %v3537 = vmul.f32 %v3465, %v3242
      %v3538 = vmul.f32 %v3466, %v3121
      %v3539 = vmul.f32 %v3467, %v3123
      %v3540 = vmul.f32 %v3468, %v3244
      %v3541 = vmul.f32 %v3469, %v3246
      %v3542 = vmul.f32 %v3470, %v3127
      %v3543 = vmul.f32 %v3471, %v3129
      %v3544 = vmul.f32 %v3472, %v3250
      %v3545 = vmul.f32 %v3473, %v3252
      %v3546 = vmul.f32 %v3474, %v3131
      %v3547 = vmul.f32 %v3475, %v3133
      %v3548 = vmul.f32 %v3476, %v3254
      %v3549 = vmul.f32 %v3477, %v3256
      %v3550 = vmul.f32 %v3478, %v3137
      %v3551 = vmul.f32 %v3479, %v3139
      %v3552 = vmul.f32 %v3480, %v3260
      %v3553 = vmul.f32 %v3481, %v3262
      %v3554 = vmul.f32 %v3482, %v3141
      %v3555 = vmul.f32 %v3483, %v3143
      %v3556 = vmul.f32 %v3484, %v3264
      %v3557 = vmul.f32 %v3485, %v3266
      %v3558 = vmul.f32 %v3486, %v3147
      %v3559 = vmul.f32 %v3487, %v3149
      %v3560 = vmul.f32 %v3488, %v3270
      %v3561 = vmul.f32 %v3489, %v3272
      %v3562 = vmul.f32 %v3490, %v3151
      %v3563 = vmul.f32 %v3491, %v3153
      %v3564 = vmul.f32 %v3492, %v3274
      %v3565 = vmul.f32 %v3493, %v3276
      %v3566 = vadd.f32 %v3067, %v3494
      %v3567 = vadd.f32 %v3069, %v3495
      %v3568 = vadd.f32 %v3190, %v3496
      %v3569 = vadd.f32 %v3192, %v3497
      %v3570 = vadd.f32 %v3071, %v3498
      %v3571 = vadd.f32 %v3073, %v3499
      %v3572 = vadd.f32 %v3194, %v3500
      %v3573 = vadd.f32 %v3196, %v3501
      %v3574 = vadd.f32 %v3077, %v3502
      %v3575 = vadd.f32 %v3079, %v3503
      %v3576 = vadd.f32 %v3200, %v3504
      %v3577 = vadd.f32 %v3202, %v3505
      %v3578 = vadd.f32 %v3081, %v3506
      %v3579 = vadd.f32 %v3083, %v3507
      %v3580 = vadd.f32 %v3204, %v3508
      %v3581 = vadd.f32 %v3206, %v3509
      %v3582 = vadd.f32 %v3087, %v3510
      %v3583 = vadd.f32 %v3089, %v3511
      %v3584 = vadd.f32 %v3210, %v3512
      %v3585 = vadd.f32 %v3212, %v3513
      %v3586 = vadd.f32 %v3091, %v3514
      %v3587 = vadd.f32 %v3093, %v3515
      %v3588 = vadd.f32 %v3214, %v3516
      %v3589 = vadd.f32 %v3216, %v3517
      %v3590 = vadd.f32 %v3097, %v3518
      %v3591 = vadd.f32 %v3099, %v3519
      %v3592 = vadd.f32 %v3220, %v3520
      %v3593 = vadd.f32 %v3222, %v3521
      %v3594 = vadd.f32 %v3101, %v3522
      %v3595 = vadd.f32 %v3103, %v3523
      %v3596 = vadd.f32 %v3224, %v3524
      %v3597 = vadd.f32 %v3226, %v3525
      %v3598 = vadd.f32 %v3107, %v3526
      %v3599 = vadd.f32 %v3109, %v3527
      %v3600 = vadd.f32 %v3230, %v3528
      %v3601 = vadd.f32 %v3232, %v3529
      %v3602 = vadd.f32 %v3111, %v3530
      %v3603 = vadd.f32 %v3113, %v3531
      %v3604 = vadd.f32 %v3234, %v3532
      %v3605 = vadd.f32 %v3236, %v3533
      %v3606 = vadd.f32 %v3117, %v3534
      %v3607 = vadd.f32 %v3119, %v3535
      %v3608 = vadd.f32 %v3240, %v3536
      %v3609 = vadd.f32 %v3242, %v3537
      %v3610 = vadd.f32 %v3121, %v3538
      %v3611 = vadd.f32 %v3123, %v3539
      %v3612 = vadd.f32 %v3244, %v3540
      %v3613 = vadd.f32 %v3246, %v3541
      %v3614 = vadd.f32 %v3127, %v3542
      %v3615 = vadd.f32 %v3129, %v3543
      %v3616 = vadd.f32 %v3250, %v3544
      %v3617 = vadd.f32 %v3252, %v3545
      %v3618 = vadd.f32 %v3131, %v3546
      %v3619 = vadd.f32 %v3133, %v3547
      %v3620 = vadd.f32 %v3254, %v3548
      %v3621 = vadd.f32 %v3256, %v3549
      %v3622 = vadd.f32 %v3137, %v3550
      %v3623 = vadd.f32 %v3139, %v3551
      %v3624 = vadd.f32 %v3260, %v3552
      %v3625 = vadd.f32 %v3262, %v3553
      %v3626 = vadd.f32 %v3141, %v3554
      %v3627 = vadd.f32 %v3143, %v3555
      %v3628 = vadd.f32 %v3264, %v3556
      %v3629 = vadd.f32 %v3266, %v3557
      %v3630 = vadd.f32 %v3147, %v3558
      %v3631 = vadd.f32 %v3149, %v3559
      %v3632 = vadd.f32 %v3270, %v3560
      %v3633 = vadd.f32 %v3272, %v3561
      %v3634 = vadd.f32 %v3151, %v3562
      %v3635 = vadd.f32 %v3153, %v3563
      %v3636 = vadd.f32 %v3274, %v3564
      %v3637 = vadd.f32 %v3276, %v3565
      %v3638 = vmul.f32 %v3566, 0.7978846
      %v3639 = vmul.f32 %v3567, 0.7978846
      %v3640 = vmul.f32 %v3568, 0.7978846
      %v3641 = vmul.f32 %v3569, 0.7978846
      %v3642 = vmul.f32 %v3570, 0.7978846
      %v3643 = vmul.f32 %v3571, 0.7978846
      %v3644 = vmul.f32 %v3572, 0.7978846
      %v3645 = vmul.f32 %v3573, 0.7978846
      %v3646 = vmul.f32 %v3574, 0.7978846
      %v3647 = vmul.f32 %v3575, 0.7978846
      %v3648 = vmul.f32 %v3576, 0.7978846
      %v3649 = vmul.f32 %v3577, 0.7978846
      %v3650 = vmul.f32 %v3578, 0.7978846
      %v3651 = vmul.f32 %v3579, 0.7978846
      %v3652 = vmul.f32 %v3580, 0.7978846
      %v3653 = vmul.f32 %v3581, 0.7978846
      %v3654 = vmul.f32 %v3582, 0.7978846
      %v3655 = vmul.f32 %v3583, 0.7978846
      %v3656 = vmul.f32 %v3584, 0.7978846
      %v3657 = vmul.f32 %v3585, 0.7978846
      %v3658 = vmul.f32 %v3586, 0.7978846
      %v3659 = vmul.f32 %v3587, 0.7978846
      %v3660 = vmul.f32 %v3588, 0.7978846
      %v3661 = vmul.f32 %v3589, 0.7978846
      %v3662 = vmul.f32 %v3590, 0.7978846
      %v3663 = vmul.f32 %v3591, 0.7978846
      %v3664 = vmul.f32 %v3592, 0.7978846
      %v3665 = vmul.f32 %v3593, 0.7978846
      %v3666 = vmul.f32 %v3594, 0.7978846
      %v3667 = vmul.f32 %v3595, 0.7978846
      %v3668 = vmul.f32 %v3596, 0.7978846
      %v3669 = vmul.f32 %v3597, 0.7978846
      %v3670 = vmul.f32 %v3598, 0.7978846
      %v3671 = vmul.f32 %v3599, 0.7978846
      %v3672 = vmul.f32 %v3600, 0.7978846
      %v3673 = vmul.f32 %v3601, 0.7978846
      %v3674 = vmul.f32 %v3602, 0.7978846
      %v3675 = vmul.f32 %v3603, 0.7978846
      %v3676 = vmul.f32 %v3604, 0.7978846
      %v3677 = vmul.f32 %v3605, 0.7978846
      %v3678 = vmul.f32 %v3606, 0.7978846
      %v3679 = vmul.f32 %v3607, 0.7978846
      %v3680 = vmul.f32 %v3608, 0.7978846
      %v3681 = vmul.f32 %v3609, 0.7978846
      %v3682 = vmul.f32 %v3610, 0.7978846
      %v3683 = vmul.f32 %v3611, 0.7978846
      %v3684 = vmul.f32 %v3612, 0.7978846
      %v3685 = vmul.f32 %v3613, 0.7978846
      %v3686 = vmul.f32 %v3614, 0.7978846
      %v3687 = vmul.f32 %v3615, 0.7978846
      %v3688 = vmul.f32 %v3616, 0.7978846
      %v3689 = vmul.f32 %v3617, 0.7978846
      %v3690 = vmul.f32 %v3618, 0.7978846
      %v3691 = vmul.f32 %v3619, 0.7978846
      %v3692 = vmul.f32 %v3620, 0.7978846
      %v3693 = vmul.f32 %v3621, 0.7978846
      %v3694 = vmul.f32 %v3622, 0.7978846
      %v3695 = vmul.f32 %v3623, 0.7978846
      %v3696 = vmul.f32 %v3624, 0.7978846
      %v3697 = vmul.f32 %v3625, 0.7978846
      %v3698 = vmul.f32 %v3626, 0.7978846
      %v3699 = vmul.f32 %v3627, 0.7978846
      %v3700 = vmul.f32 %v3628, 0.7978846
      %v3701 = vmul.f32 %v3629, 0.7978846
      %v3702 = vmul.f32 %v3630, 0.7978846
      %v3703 = vmul.f32 %v3631, 0.7978846
      %v3704 = vmul.f32 %v3632, 0.7978846
      %v3705 = vmul.f32 %v3633, 0.7978846
      %v3706 = vmul.f32 %v3634, 0.7978846
      %v3707 = vmul.f32 %v3635, 0.7978846
      %v3708 = vmul.f32 %v3636, 0.7978846
      %v3709 = vmul.f32 %v3637, 0.7978846
      %v3710 = vtanh.pop %v3638
      %v3711 = vtanh.pop %v3639
      %v3712 = vtanh.pop %v3640
      %v3713 = vtanh.pop %v3641
      %v3714 = vtanh.pop %v3642
      %v3715 = vtanh.pop %v3643
      %v3716 = vtanh.pop %v3644
      %v3717 = vtanh.pop %v3645
      %v3718 = vtanh.pop %v3646
      %v3719 = vtanh.pop %v3647
      %v3720 = vtanh.pop %v3648
      %v3721 = vtanh.pop %v3649
      %v3722 = vtanh.pop %v3650
      %v3723 = vtanh.pop %v3651
      %v3724 = vtanh.pop %v3652
      %v3725 = vtanh.pop %v3653
      %v3726 = vtanh.pop %v3654
      %v3727 = vtanh.pop %v3655
      %v3728 = vtanh.pop %v3656
      %v3729 = vtanh.pop %v3657
      %v3730 = vtanh.pop %v3658
      %v3731 = vtanh.pop %v3659
      %v3732 = vtanh.pop %v3660
      %v3733 = vtanh.pop %v3661
      %v3734 = vtanh.pop %v3662
      %v3735 = vtanh.pop %v3663
      %v3736 = vtanh.pop %v3664
      %v3737 = vtanh.pop %v3665
      %v3738 = vtanh.pop %v3666
      %v3739 = vtanh.pop %v3667
      %v3740 = vtanh.pop %v3668
      %v3741 = vtanh.pop %v3669
      %v3742 = vtanh.pop %v3670
      %v3743 = vtanh.pop %v3671
      %v3744 = vtanh.pop %v3672
      %v3745 = vtanh.pop %v3673
      %v3746 = vtanh.pop %v3674
      %v3747 = vtanh.pop %v3675
      %v3748 = vtanh.pop %v3676
      %v3749 = vtanh.pop %v3677
      %v3750 = vtanh.pop %v3678
      %v3751 = vtanh.pop %v3679
      %v3752 = vtanh.pop %v3680
      %v3753 = vtanh.pop %v3681
      %v3754 = vtanh.pop %v3682
      %v3755 = vtanh.pop %v3683
      %v3756 = vtanh.pop %v3684
      %v3757 = vtanh.pop %v3685
      %v3758 = vtanh.pop %v3686
      %v3759 = vtanh.pop %v3687
      %v3760 = vtanh.pop %v3688
      %v3761 = vtanh.pop %v3689
      %v3762 = vtanh.pop %v3690
      %v3763 = vtanh.pop %v3691
      %v3764 = vtanh.pop %v3692
      %v3765 = vtanh.pop %v3693
      %v3766 = vtanh.pop %v3694
      %v3767 = vtanh.pop %v3695
      %v3768 = vtanh.pop %v3696
      %v3769 = vtanh.pop %v3697
      %v3770 = vtanh.pop %v3698
      %v3771 = vtanh.pop %v3699
      %v3772 = vtanh.pop %v3700
      %v3773 = vtanh.pop %v3701
      %v3774 = vtanh.pop %v3702
      %v3775 = vtanh.pop %v3703
      %v3776 = vtanh.pop %v3704
      %v3777 = vtanh.pop %v3705
      %v3778 = vtanh.pop %v3706
      %v3779 = vtanh.pop %v3707
      %v3780 = vtanh.pop %v3708
      %v3781 = vtanh.pop %v3709
      %v3782 = vadd.f32 %v3710, 1.0
      %v3783 = vadd.f32 %v3711, 1.0
      %v3784 = vadd.f32 %v3712, 1.0
      %v3785 = vadd.f32 %v3713, 1.0
      %v3786 = vadd.f32 %v3714, 1.0
      %v3787 = vadd.f32 %v3715, 1.0
      %v3788 = vadd.f32 %v3716, 1.0
      %v3789 = vadd.f32 %v3717, 1.0
      %v3790 = vadd.f32 %v3718, 1.0
      %v3791 = vadd.f32 %v3719, 1.0
      %v3792 = vadd.f32 %v3720, 1.0
      %v3793 = vadd.f32 %v3721, 1.0
      %v3794 = vadd.f32 %v3722, 1.0
      %v3795 = vadd.f32 %v3723, 1.0
      %v3796 = vadd.f32 %v3724, 1.0
      %v3797 = vadd.f32 %v3725, 1.0
      %v3798 = vadd.f32 %v3726, 1.0
      %v3799 = vadd.f32 %v3727, 1.0
      %v3800 = vadd.f32 %v3728, 1.0
      %v3801 = vadd.f32 %v3729, 1.0
      %v3802 = vadd.f32 %v3730, 1.0
      %v3803 = vadd.f32 %v3731, 1.0
      %v3804 = vadd.f32 %v3732, 1.0
      %v3805 = vadd.f32 %v3733, 1.0
      %v3806 = vadd.f32 %v3734, 1.0
      %v3807 = vadd.f32 %v3735, 1.0
      %v3808 = vadd.f32 %v3736, 1.0
      %v3809 = vadd.f32 %v3737, 1.0
      %v3810 = vadd.f32 %v3738, 1.0
      %v3811 = vadd.f32 %v3739, 1.0
      %v3812 = vadd.f32 %v3740, 1.0
      %v3813 = vadd.f32 %v3741, 1.0
      %v3814 = vadd.f32 %v3742, 1.0
      %v3815 = vadd.f32 %v3743, 1.0
      %v3816 = vadd.f32 %v3744, 1.0
      %v3817 = vadd.f32 %v3745, 1.0
      %v3818 = vadd.f32 %v3746, 1.0
      %v3819 = vadd.f32 %v3747, 1.0
      %v3820 = vadd.f32 %v3748, 1.0
      %v3821 = vadd.f32 %v3749, 1.0
      %v3822 = vadd.f32 %v3750, 1.0
      %v3823 = vadd.f32 %v3751, 1.0
      %v3824 = vadd.f32 %v3752, 1.0
      %v3825 = vadd.f32 %v3753, 1.0
      %v3826 = vadd.f32 %v3754, 1.0
      %v3827 = vadd.f32 %v3755, 1.0
      %v3828 = vadd.f32 %v3756, 1.0
      %v3829 = vadd.f32 %v3757, 1.0
      %v3830 = vadd.f32 %v3758, 1.0
      %v3831 = vadd.f32 %v3759, 1.0
      %v3832 = vadd.f32 %v3760, 1.0
      %v3833 = vadd.f32 %v3761, 1.0
      %v3834 = vadd.f32 %v3762, 1.0
      %v3835 = vadd.f32 %v3763, 1.0
      %v3836 = vadd.f32 %v3764, 1.0
      %v3837 = vadd.f32 %v3765, 1.0
      %v3838 = vadd.f32 %v3766, 1.0
      %v3839 = vadd.f32 %v3767, 1.0
      %v3840 = vadd.f32 %v3768, 1.0
      %v3841 = vadd.f32 %v3769, 1.0
      %v3842 = vadd.f32 %v3770, 1.0
      %v3843 = vadd.f32 %v3771, 1.0
      %v3844 = vadd.f32 %v3772, 1.0
      %v3845 = vadd.f32 %v3773, 1.0
      %v3846 = vadd.f32 %v3774, 1.0
      %v3847 = vadd.f32 %v3775, 1.0
      %v3848 = vadd.f32 %v3776, 1.0
      %v3849 = vadd.f32 %v3777, 1.0
      %v3850 = vadd.f32 %v3778, 1.0
      %v3851 = vadd.f32 %v3779, 1.0
      %v3852 = vadd.f32 %v3780, 1.0
      %v3853 = vadd.f32 %v3781, 1.0
      %v3854 = vmul.f32 %v3278, %v3782
      %v3855 = vmul.f32 %v3279, %v3783
      %v3856 = vmul.f32 %v3280, %v3784
      %v3857 = vmul.f32 %v3281, %v3785
      %v3858 = vmul.f32 %v3282, %v3786
      %v3859 = vmul.f32 %v3283, %v3787
      %v3860 = vmul.f32 %v3284, %v3788
      %v3861 = vmul.f32 %v3285, %v3789
      %v3862 = vmul.f32 %v3286, %v3790
      %v3863 = vmul.f32 %v3287, %v3791
      %v3864 = vmul.f32 %v3288, %v3792
      %v3865 = vmul.f32 %v3289, %v3793
      %v3866 = vmul.f32 %v3290, %v3794
      %v3867 = vmul.f32 %v3291, %v3795
      %v3868 = vmul.f32 %v3292, %v3796
      %v3869 = vmul.f32 %v3293, %v3797
      %v3870 = vmul.f32 %v3294, %v3798
      %v3871 = vmul.f32 %v3295, %v3799
      %v3872 = vmul.f32 %v3296, %v3800
      %v3873 = vmul.f32 %v3297, %v3801
      %v3874 = vmul.f32 %v3298, %v3802
      %v3875 = vmul.f32 %v3299, %v3803
      %v3876 = vmul.f32 %v3300, %v3804
      %v3877 = vmul.f32 %v3301, %v3805
      %v3878 = vmul.f32 %v3302, %v3806
      %v3879 = vmul.f32 %v3303, %v3807
      %v3880 = vmul.f32 %v3304, %v3808
      %v3881 = vmul.f32 %v3305, %v3809
      %v3882 = vmul.f32 %v3306, %v3810
      %v3883 = vmul.f32 %v3307, %v3811
      %v3884 = vmul.f32 %v3308, %v3812
      %v3885 = vmul.f32 %v3309, %v3813
      %v3886 = vmul.f32 %v3310, %v3814
      %v3887 = vmul.f32 %v3311, %v3815
      %v3888 = vmul.f32 %v3312, %v3816
      %v3889 = vmul.f32 %v3313, %v3817
      %v3890 = vmul.f32 %v3314, %v3818
      %v3891 = vmul.f32 %v3315, %v3819
      %v3892 = vmul.f32 %v3316, %v3820
      %v3893 = vmul.f32 %v3317, %v3821
      %v3894 = vmul.f32 %v3318, %v3822
      %v3895 = vmul.f32 %v3319, %v3823
      %v3896 = vmul.f32 %v3320, %v3824
      %v3897 = vmul.f32 %v3321, %v3825
      %v3898 = vmul.f32 %v3322, %v3826
      %v3899 = vmul.f32 %v3323, %v3827
      %v3900 = vmul.f32 %v3324, %v3828
      %v3901 = vmul.f32 %v3325, %v3829
      %v3902 = vmul.f32 %v3326, %v3830
      %v3903 = vmul.f32 %v3327, %v3831
      %v3904 = vmul.f32 %v3328, %v3832
      %v3905 = vmul.f32 %v3329, %v3833
      %v3906 = vmul.f32 %v3330, %v3834
      %v3907 = vmul.f32 %v3331, %v3835
      %v3908 = vmul.f32 %v3332, %v3836
      %v3909 = vmul.f32 %v3333, %v3837
      %v3910 = vmul.f32 %v3334, %v3838
      %v3911 = vmul.f32 %v3335, %v3839
      %v3912 = vmul.f32 %v3336, %v3840
      %v3913 = vmul.f32 %v3337, %v3841
      %v3914 = vmul.f32 %v3338, %v3842
      %v3915 = vmul.f32 %v3339, %v3843
      %v3916 = vmul.f32 %v3340, %v3844
      %v3917 = vmul.f32 %v3341, %v3845
      %v3918 = vmul.f32 %v3342, %v3846
      %v3919 = vmul.f32 %v3343, %v3847
      %v3920 = vmul.f32 %v3344, %v3848
      %v3921 = vmul.f32 %v3345, %v3849
      %v3922 = vmul.f32 %v3346, %v3850
      %v3923 = vmul.f32 %v3347, %v3851
      %v3924 = vmul.f32 %v3348, %v3852
      %v3925 = vmul.f32 %v3349, %v3853
      %v3926 = vld [vmem:[%s31] sm:$0xf]
      %v3927 = vld [vmem:[%s31 + $0x4] sm:$0xf]
      %v3928 = vld [vmem:[%s31 + $0x8] sm:$0xf]
      %v3929 = vld [vmem:[%s31 + $0xc] sm:$0xf]
      %v3930 = vld [vmem:[%s31 + $0x10] sm:$0xf]
      %v3931 = vld [vmem:[%s31 + $0x14] sm:$0xf]
      %v3932 = vld [vmem:[%s31 + $0x18] sm:$0xf]
      %v3933 = vld [vmem:[%s31 + $0x1c] sm:$0xf]
      %v3934 = vld [vmem:[%s31 + $0x20] sm:$0xf]
      %v3935 = vld [vmem:[%s31 + $0x24] sm:$0xf]
      %v3936 = vld [vmem:[%s31 + $0x28] sm:$0xf]
      %v3937 = vld [vmem:[%s31 + $0x2c] sm:$0xf]
      %v3938 = vld [vmem:[%s31 + $0x30] sm:$0xf]
      %v3939 = vld [vmem:[%s31 + $0x34] sm:$0xf]
      %v3940 = vld [vmem:[%s31 + $0x38] sm:$0xf]
      %v3941 = vld [vmem:[%s31 + $0x3c] sm:$0xf]
      %v3942 = vld [vmem:[%s31 + $0x40] sm:$0xf]
      %v3943 = vld [vmem:[%s31 + $0x44] sm:$0xf]
      %v3944 = vld [vmem:[%s31 + $0x48] sm:$0xf]
      %v3945 = vld [vmem:[%s31 + $0x4c] sm:$0xf]
      %v3946 = vld [vmem:[%s31 + $0x50] sm:$0xf]
      %v3947 = vld [vmem:[%s31 + $0x54] sm:$0xf]
      %v3948 = vld [vmem:[%s31 + $0x58] sm:$0xf]
      %v3949 = vld [vmem:[%s31 + $0x5c] sm:$0xf]
      %v3950 = vld [vmem:[%s31 + $0x60] sm:$0xf]
      %v3951 = vld [vmem:[%s31 + $0x64] sm:$0xf]
      %v3952 = vld [vmem:[%s31 + $0x68] sm:$0xf]
      %v3953 = vld [vmem:[%s31 + $0x6c] sm:$0xf]
      %v3954 = vld [vmem:[%s31 + $0x70] sm:$0xf]
      %v3955 = vld [vmem:[%s31 + $0x74] sm:$0xf]
      %v3956 = vld [vmem:[%s31 + $0x78] sm:$0xf]
      %v3957 = vld [vmem:[%s31 + $0x7c] sm:$0xf]
      %v3958 = vld [vmem:[%s31 + $0x80] sm:$0xf]
      %v3959 = vld [vmem:[%s31 + $0x84] sm:$0xf]
      %v3960 = vld [vmem:[%s31 + $0x88] sm:$0xf]
      %v3961 = vld [vmem:[%s31 + $0x8c] sm:$0xf]
      %v3962 = vld [vmem:[%s31 + $0x90] sm:$0xf]
      %v3963 = vld [vmem:[%s31 + $0x94] sm:$0xf]
      %v3964 = vld [vmem:[%s31 + $0x98] sm:$0xf]
      %v3965 = vld [vmem:[%s31 + $0x9c] sm:$0xf]
      %v3966 = vld [vmem:[%s31 + $0xa0] sm:$0xf]
      %v3967 = vld [vmem:[%s31 + $0xa4] sm:$0xf]
      %v3968 = vld [vmem:[%s31 + $0xa8] sm:$0xf]
      %v3969 = vld [vmem:[%s31 + $0xac] sm:$0xf]
      %v3970 = vld [vmem:[%s31 + $0xb0] sm:$0xf]
      %v3971 = vld [vmem:[%s31 + $0xb4] sm:$0xf]
      %v3972 = vld [vmem:[%s31 + $0xb8] sm:$0xf]
      %v3973 = vld [vmem:[%s31 + $0xbc] sm:$0xf]
      %v3974 = vld [vmem:[%s31 + $0xc0] sm:$0xf]
      %v3975 = vld [vmem:[%s31 + $0xc4] sm:$0xf]
      %v3976 = vld [vmem:[%s31 + $0xc8] sm:$0xf]
      %v3977 = vld [vmem:[%s31 + $0xcc] sm:$0xf]
      %v3978 = vld [vmem:[%s31 + $0xd0] sm:$0xf]
      %v3979 = vld [vmem:[%s31 + $0xd4] sm:$0xf]
      %v3980 = vld [vmem:[%s31 + $0xd8] sm:$0xf]
      %v3981 = vld [vmem:[%s31 + $0xdc] sm:$0xf]
      %v3982 = vld [vmem:[%s31 + $0xe0] sm:$0xf]
      %v3983 = vld [vmem:[%s31 + $0xe4] sm:$0xf]
      %v3984 = vld [vmem:[%s31 + $0xe8] sm:$0xf]
      %v3985 = vld [vmem:[%s31 + $0xec] sm:$0xf]
      %v3986 = vld [vmem:[%s31 + $0xf0] sm:$0xf]
      %v3987 = vld [vmem:[%s31 + $0xf4] sm:$0xf]
      %v3988 = vld [vmem:[%s31 + $0xf8] sm:$0xf]
      %v3989 = vld [vmem:[%s31 + $0xfc] sm:$0xf]
      %v3990 = vpack.c.bf16 %v3858, %v3854
      %v3991 = vpack.c.bf16 %v3859, %v3855
      %v3992 = vpack.c.bf16 %v3860, %v3856
      %v3993 = vpack.c.bf16 %v3861, %v3857
      %v3994 = vpack.c.bf16 %v3866, %v3862
      %v3995 = vpack.c.bf16 %v3867, %v3863
      %v3996 = vpack.c.bf16 %v3868, %v3864
      %v3997 = vpack.c.bf16 %v3869, %v3865
      %v3998 = vpack.c.bf16 %v3874, %v3870
      %v3999 = vpack.c.bf16 %v3875, %v3871
      %v4000 = vpack.c.bf16 %v3876, %v3872
      %v4001 = vpack.c.bf16 %v3877, %v3873
      %v4002 = vpack.c.bf16 %v3882, %v3878
      %v4003 = vpack.c.bf16 %v3883, %v3879
      %v4004 = vpack.c.bf16 %v3884, %v3880
      %v4005 = vpack.c.bf16 %v3885, %v3881
      %v4006 = vpack.c.bf16 %v3890, %v3886
      %v4007 = vpack.c.bf16 %v3891, %v3887
      %v4008 = vpack.c.bf16 %v3892, %v3888
      %v4009 = vpack.c.bf16 %v3893, %v3889
      %v4010 = vpack.c.bf16 %v3898, %v3894
      %v4011 = vpack.c.bf16 %v3899, %v3895
      %v4012 = vpack.c.bf16 %v3900, %v3896
      %v4013 = vpack.c.bf16 %v3901, %v3897
      %v4014 = vpack.c.bf16 %v3906, %v3902
      %v4015 = vpack.c.bf16 %v3907, %v3903
      %v4016 = vpack.c.bf16 %v3908, %v3904
      %v4017 = vpack.c.bf16 %v3909, %v3905
      %v4018 = vpack.c.bf16 %v3914, %v3910
      %v4019 = vpack.c.bf16 %v3915, %v3911
      %v4020 = vpack.c.bf16 %v3916, %v3912
      %v4021 = vpack.c.bf16 %v3917, %v3913
      %v4022 = vpack.c.bf16 %v3922, %v3918
      %v4023 = vpack.c.bf16 %v3923, %v3919
      %v4024 = vpack.c.bf16 %v3924, %v3920
      %v4025 = vpack.c.bf16 %v3925, %v3921
      %v4090 = vunpack.c.l.b16 %v3926
      %v4091 = vunpack.c.l.b16 %v3927
      %v4092 = vunpack.c.l.b16 %v3928
      %v4093 = vunpack.c.l.b16 %v3929
      %v4094 = vunpack.c.l.b16 %v3930
      %v4095 = vunpack.c.l.b16 %v3931
      %v4096 = vunpack.c.l.b16 %v3932
      %v4097 = vunpack.c.l.b16 %v3933
      %v4098 = vunpack.c.l.b16 %v3934
      %v4099 = vunpack.c.l.b16 %v3935
      %v4100 = vunpack.c.l.b16 %v3936
      %v4101 = vunpack.c.l.b16 %v3937
      %v4102 = vunpack.c.l.b16 %v3938
      %v4103 = vunpack.c.l.b16 %v3939
      %v4104 = vunpack.c.l.b16 %v3940
      %v4105 = vunpack.c.l.b16 %v3941
      %v4106 = vunpack.c.l.b16 %v3942
      %v4107 = vunpack.c.l.b16 %v3943
      %v4108 = vunpack.c.l.b16 %v3944
      %v4109 = vunpack.c.l.b16 %v3945
      %v4110 = vunpack.c.l.b16 %v3946
      %v4111 = vunpack.c.l.b16 %v3947
      %v4112 = vunpack.c.l.b16 %v3948
      %v4113 = vunpack.c.l.b16 %v3949
      %v4114 = vunpack.c.l.b16 %v3950
      %v4115 = vunpack.c.l.b16 %v3951
      %v4116 = vunpack.c.l.b16 %v3952
      %v4117 = vunpack.c.l.b16 %v3953
      %v4118 = vunpack.c.l.b16 %v3954
      %v4119 = vunpack.c.l.b16 %v3955
      %v4120 = vunpack.c.l.b16 %v3956
      %v4121 = vunpack.c.l.b16 %v3957
      %v4122 = vunpack.c.l.b16 %v3958
      %v4123 = vunpack.c.l.b16 %v3959
      %v4124 = vunpack.c.l.b16 %v3960
      %v4125 = vunpack.c.l.b16 %v3961
      %v4126 = vunpack.c.l.b16 %v3962
      %v4127 = vunpack.c.l.b16 %v3963
      %v4128 = vunpack.c.l.b16 %v3964
      %v4129 = vunpack.c.l.b16 %v3965
      %v4130 = vunpack.c.l.b16 %v3966
      %v4131 = vunpack.c.l.b16 %v3967
      %v4132 = vunpack.c.l.b16 %v3968
      %v4133 = vunpack.c.l.b16 %v3969
      %v4134 = vunpack.c.l.b16 %v3970
      %v4135 = vunpack.c.l.b16 %v3971
      %v4136 = vunpack.c.l.b16 %v3972
      %v4137 = vunpack.c.l.b16 %v3973
      %v4138 = vunpack.c.l.b16 %v3974
      %v4139 = vunpack.c.l.b16 %v3975
      %v4140 = vunpack.c.l.b16 %v3976
      %v4141 = vunpack.c.l.b16 %v3977
      %v4142 = vunpack.c.l.b16 %v3978
      %v4143 = vunpack.c.l.b16 %v3979
      %v4144 = vunpack.c.l.b16 %v3980
      %v4145 = vunpack.c.l.b16 %v3981
      %v4146 = vunpack.c.l.b16 %v3982
      %v4147 = vunpack.c.l.b16 %v3983
      %v4148 = vunpack.c.l.b16 %v3984
      %v4149 = vunpack.c.l.b16 %v3985
      %v4150 = vunpack.c.l.b16 %v3986
      %v4151 = vunpack.c.l.b16 %v3987
      %v4152 = vunpack.c.l.b16 %v3988
      %v4153 = vunpack.c.l.b16 %v3989
      %v4154 = vpack.c.b16 %v4091, %v4090
      %v4155 = vpack.c.b16 %v4093, %v4092
      %v4156 = vpack.c.b16 %v4095, %v4094
      %v4157 = vpack.c.b16 %v4097, %v4096
      %v4158 = vpack.c.b16 %v4099, %v4098
      %v4159 = vpack.c.b16 %v4101, %v4100
      %v4160 = vpack.c.b16 %v4103, %v4102
      %v4161 = vpack.c.b16 %v4105, %v4104
      %v4162 = vpack.c.b16 %v4107, %v4106
      %v4163 = vpack.c.b16 %v4109, %v4108
      %v4164 = vpack.c.b16 %v4111, %v4110
      %v4165 = vpack.c.b16 %v4113, %v4112
      %v4166 = vpack.c.b16 %v4115, %v4114
      %v4167 = vpack.c.b16 %v4117, %v4116
      %v4168 = vpack.c.b16 %v4119, %v4118
      %v4169 = vpack.c.b16 %v4121, %v4120
      %v4170 = vpack.c.b16 %v4123, %v4122
      %v4171 = vpack.c.b16 %v4125, %v4124
      %v4172 = vpack.c.b16 %v4127, %v4126
      %v4173 = vpack.c.b16 %v4129, %v4128
      %v4174 = vpack.c.b16 %v4131, %v4130
      %v4175 = vpack.c.b16 %v4133, %v4132
      %v4176 = vpack.c.b16 %v4135, %v4134
      %v4177 = vpack.c.b16 %v4137, %v4136
      %v4178 = vpack.c.b16 %v4139, %v4138
      %v4179 = vpack.c.b16 %v4141, %v4140
      %v4180 = vpack.c.b16 %v4143, %v4142
      %v4181 = vpack.c.b16 %v4145, %v4144
      %v4182 = vpack.c.b16 %v4147, %v4146
      %v4183 = vpack.c.b16 %v4149, %v4148
      %v4184 = vpack.c.b16 %v4151, %v4150
      %v4185 = vpack.c.b16 %v4153, %v4152
      %4218 = vmatprep.subr.bf16.mxu0 0
      %4219 = vmatpush1.bf16.msra.mxu0 %v4161
      %4220 = vmatprep.subr.bf16.mxu0 0
      %4221 = vmatpush1.bf16.msra.mxu0 %v4160
      %4222 = vmatprep.subr.bf16.mxu0 0
      %4223 = vmatpush1.bf16.msra.mxu0 %v4159
      %4224 = vmatprep.subr.bf16.mxu0 0
      %4225 = vmatpush1.bf16.msra.mxu0 %v4158
      %4226 = vmatprep.subr.bf16.mxu0 0
      %4227 = vmatpush1.bf16.msra.mxu0 %v4157
      %4228 = vmatprep.subr.bf16.mxu0 0
      %4229 = vmatpush1.bf16.msra.mxu0 %v4156
      %4230 = vmatprep.subr.bf16.mxu0 0
      %4231 = vmatpush1.bf16.msra.mxu0 %v4155
      %4232 = vmatprep.subr.bf16.mxu0 0
      %4233 = vmatpush1.bf16.msra.mxu0 %v4154
      %4234 = vmatprep.subr.bf16.mxu0 0
      %4235 = vmatpush2.bf16.msra.mxu0 %v4169
      %4236 = vmatprep.subr.bf16.mxu0 0
      %4237 = vmatpush2.bf16.msra.mxu0 %v4168
      %4238 = vmatprep.subr.bf16.mxu0 0
      %4239 = vmatpush2.bf16.msra.mxu0 %v4167
      %4240 = vmatprep.subr.bf16.mxu0 0
      %4241 = vmatpush2.bf16.msra.mxu0 %v4166
      %4242 = vmatprep.subr.bf16.mxu0 0
      %4243 = vmatpush2.bf16.msra.mxu0 %v4165
      %4244 = vmatprep.subr.bf16.mxu0 0
      %4245 = vmatpush2.bf16.msra.mxu0 %v4164
      %4246 = vmatprep.subr.bf16.mxu0 0
      %4247 = vmatpush2.bf16.msra.mxu0 %v4163
      %4248 = vmatprep.subr.bf16.mxu0 0
      %4249 = vmatpush2.bf16.msra.mxu0 %v4162
      %4250 = vmatprep.mubr.bf16.mxu0 %v3991
      %4251 = vmatmul.mubr.bf16.gmra.mxu0 %v3990
      %v4252 = vpop.f32.mrf.mxu0
      %v4253 = vadd.f32 0.0, %v4252
      %v4254 = vpop.f32.mrf.mxu0
      %v4255 = vpop.f32.mrf.mxu0
      %v4256 = vadd.f32 0.0, %v4255
      %v4257 = vpop.f32.mrf.mxu0
      %4258 = vmatprep.mubr.bf16.mxu0 %v3995
      %4259 = vmatmul.mubr.bf16.gmra.mxu0 %v3994
      %v4260 = vpop.f32.mrf.mxu0
      %v4261 = vadd.f32 0.0, %v4260
      %v4262 = vpop.f32.mrf.mxu0
      %v4263 = vpop.f32.mrf.mxu0
      %v4264 = vadd.f32 0.0, %v4263
      %v4265 = vpop.f32.mrf.mxu0
      %4266 = vmatprep.mubr.bf16.mxu0 %v3999
      %4267 = vmatmul.mubr.bf16.gmra.mxu0 %v3998
      %v4268 = vpop.f32.mrf.mxu0
      %v4269 = vadd.f32 0.0, %v4268
      %v4270 = vpop.f32.mrf.mxu0
      %v4271 = vpop.f32.mrf.mxu0
      %v4272 = vadd.f32 0.0, %v4271
      %v4273 = vpop.f32.mrf.mxu0
      %4274 = vmatprep.mubr.bf16.mxu0 %v4003
      %4275 = vmatmul.mubr.bf16.gmra.mxu0 %v4002
      %v4276 = vpop.f32.mrf.mxu0
      %v4277 = vadd.f32 0.0, %v4276
      %v4278 = vpop.f32.mrf.mxu0
      %v4279 = vpop.f32.mrf.mxu0
      %v4280 = vadd.f32 0.0, %v4279
      %v4281 = vpop.f32.mrf.mxu0
      %4282 = vmatprep.mubr.bf16.mxu0 %v4007
      %4283 = vmatmul.mubr.bf16.gmra.mxu0 %v4006
      %v4284 = vpop.f32.mrf.mxu0
      %v4285 = vadd.f32 0.0, %v4284
      %v4286 = vpop.f32.mrf.mxu0
      %v4287 = vpop.f32.mrf.mxu0
      %v4288 = vadd.f32 0.0, %v4287
      %v4289 = vpop.f32.mrf.mxu0
      %4290 = vmatprep.mubr.bf16.mxu0 %v4011
      %4291 = vmatmul.mubr.bf16.gmra.mxu0 %v4010
      %v4292 = vpop.f32.mrf.mxu0
      %v4293 = vadd.f32 0.0, %v4292
      %v4294 = vpop.f32.mrf.mxu0
      %v4295 = vpop.f32.mrf.mxu0
      %v4296 = vadd.f32 0.0, %v4295
      %v4297 = vpop.f32.mrf.mxu0
      %4298 = vmatprep.mubr.bf16.mxu0 %v4015
      %4299 = vmatmul.mubr.bf16.gmra.mxu0 %v4014
      %v4300 = vpop.f32.mrf.mxu0
      %v4301 = vadd.f32 0.0, %v4300
      %v4302 = vpop.f32.mrf.mxu0
      %v4303 = vpop.f32.mrf.mxu0
      %v4304 = vadd.f32 0.0, %v4303
      %v4305 = vpop.f32.mrf.mxu0
      %4306 = vmatprep.mubr.bf16.mxu0 %v4019
      %4307 = vmatmul.mubr.bf16.gmra.mxu0 %v4018
      %v4308 = vpop.f32.mrf.mxu0
      %v4309 = vadd.f32 0.0, %v4308
      %v4310 = vpop.f32.mrf.mxu0
      %v4311 = vpop.f32.mrf.mxu0
      %v4312 = vadd.f32 0.0, %v4311
      %v4313 = vpop.f32.mrf.mxu0
      %4314 = vmatprep.mubr.bf16.mxu0 %v4023
      %4315 = vmatmul.mubr.bf16.gmra.mxu0 %v4022
      %v4316 = vpop.f32.mrf.mxu0
      %v4317 = vadd.f32 0.0, %v4316
      %v4318 = vpop.f32.mrf.mxu0
      %v4319 = vpop.f32.mrf.mxu0
      %v4320 = vadd.f32 0.0, %v4319
      %v4321 = vpop.f32.mrf.mxu0
      %4322 = vdwg.mxu0
      %4323 = vmatprep.subr.bf16.mxu0 0
      %4324 = vmatpush1.bf16.msra.mxu0 %v4177
      %4325 = vmatprep.subr.bf16.mxu0 0
      %4326 = vmatpush1.bf16.msra.mxu0 %v4176
      %4327 = vmatprep.subr.bf16.mxu0 0
      %4328 = vmatpush1.bf16.msra.mxu0 %v4175
      %4329 = vmatprep.subr.bf16.mxu0 0
      %4330 = vmatpush1.bf16.msra.mxu0 %v4174
      %4331 = vmatprep.subr.bf16.mxu0 0
      %4332 = vmatpush1.bf16.msra.mxu0 %v4173
      %4333 = vmatprep.subr.bf16.mxu0 0
      %4334 = vmatpush1.bf16.msra.mxu0 %v4172
      %4335 = vmatprep.subr.bf16.mxu0 0
      %4336 = vmatpush1.bf16.msra.mxu0 %v4171
      %4337 = vmatprep.subr.bf16.mxu0 0
      %4338 = vmatpush1.bf16.msra.mxu0 %v4170
      %4339 = vmatprep.subr.bf16.mxu0 0
      %4340 = vmatpush2.bf16.msra.mxu0 %v4185
      %4341 = vmatprep.subr.bf16.mxu0 0
      %4342 = vmatpush2.bf16.msra.mxu0 %v4184
      %4343 = vmatprep.subr.bf16.mxu0 0
      %4344 = vmatpush2.bf16.msra.mxu0 %v4183
      %4345 = vmatprep.subr.bf16.mxu0 0
      %4346 = vmatpush2.bf16.msra.mxu0 %v4182
      %4347 = vmatprep.subr.bf16.mxu0 0
      %4348 = vmatpush2.bf16.msra.mxu0 %v4181
      %4349 = vmatprep.subr.bf16.mxu0 0
      %4350 = vmatpush2.bf16.msra.mxu0 %v4180
      %4351 = vmatprep.subr.bf16.mxu0 0
      %4352 = vmatpush2.bf16.msra.mxu0 %v4179
      %4353 = vmatprep.subr.bf16.mxu0 0
      %4354 = vmatpush2.bf16.msra.mxu0 %v4178
      %4355 = vmatprep.mubr.bf16.mxu0 %v3993
      %4356 = vmatmul.mubr.bf16.gmra.mxu0 %v3992
      %v4357 = vpop.f32.mrf.mxu0
      %v4358 = vadd.f32 %v4253, %v4357
      %v4359 = vpop.f32.mrf.mxu0
      %v4360 = vpop.f32.mrf.mxu0
      %v4361 = vadd.f32 %v4256, %v4360
      %v4362 = vpop.f32.mrf.mxu0
      %4363 = vmatprep.mubr.bf16.mxu0 %v3997
      %4364 = vmatmul.mubr.bf16.gmra.mxu0 %v3996
      %v4365 = vpop.f32.mrf.mxu0
      %v4366 = vadd.f32 %v4261, %v4365
      %v4367 = vpop.f32.mrf.mxu0
      %v4368 = vpop.f32.mrf.mxu0
      %v4369 = vadd.f32 %v4264, %v4368
      %v4370 = vpop.f32.mrf.mxu0
      %4371 = vmatprep.mubr.bf16.mxu0 %v4001
      %4372 = vmatmul.mubr.bf16.gmra.mxu0 %v4000
      %v4373 = vpop.f32.mrf.mxu0
      %v4374 = vadd.f32 %v4269, %v4373
      %v4375 = vpop.f32.mrf.mxu0
      %v4376 = vpop.f32.mrf.mxu0
      %v4377 = vadd.f32 %v4272, %v4376
      %v4378 = vpop.f32.mrf.mxu0
      %4379 = vmatprep.mubr.bf16.mxu0 %v4005
      %4380 = vmatmul.mubr.bf16.gmra.mxu0 %v4004
      %v4381 = vpop.f32.mrf.mxu0
      %v4382 = vadd.f32 %v4277, %v4381
      %v4383 = vpop.f32.mrf.mxu0
      %v4384 = vpop.f32.mrf.mxu0
      %v4385 = vadd.f32 %v4280, %v4384
      %v4386 = vpop.f32.mrf.mxu0
      %4387 = vmatprep.mubr.bf16.mxu0 %v4009
      %4388 = vmatmul.mubr.bf16.gmra.mxu0 %v4008
      %v4389 = vpop.f32.mrf.mxu0
      %v4390 = vadd.f32 %v4285, %v4389
      %v4391 = vpop.f32.mrf.mxu0
      %v4392 = vpop.f32.mrf.mxu0
      %v4393 = vadd.f32 %v4288, %v4392
      %v4394 = vpop.f32.mrf.mxu0
      %4395 = vmatprep.mubr.bf16.mxu0 %v4013
      %4396 = vmatmul.mubr.bf16.gmra.mxu0 %v4012
      %v4397 = vpop.f32.mrf.mxu0
      %v4398 = vadd.f32 %v4293, %v4397
      %v4399 = vpop.f32.mrf.mxu0
      %v4400 = vpop.f32.mrf.mxu0
      %v4401 = vadd.f32 %v4296, %v4400
      %v4402 = vpop.f32.mrf.mxu0
      %4403 = vmatprep.mubr.bf16.mxu0 %v4017
      %4404 = vmatmul.mubr.bf16.gmra.mxu0 %v4016
      %v4405 = vpop.f32.mrf.mxu0
      %v4406 = vadd.f32 %v4301, %v4405
      %v4407 = vpop.f32.mrf.mxu0
      %v4408 = vpop.f32.mrf.mxu0
      %v4409 = vadd.f32 %v4304, %v4408
      %v4410 = vpop.f32.mrf.mxu0
      %4411 = vmatprep.mubr.bf16.mxu0 %v4021
      %4412 = vmatmul.mubr.bf16.gmra.mxu0 %v4020
      %v4413 = vpop.f32.mrf.mxu0
      %v4414 = vadd.f32 %v4309, %v4413
      %v4415 = vpop.f32.mrf.mxu0
      %v4416 = vpop.f32.mrf.mxu0
      %v4417 = vadd.f32 %v4312, %v4416
      %v4418 = vpop.f32.mrf.mxu0
      %4419 = vmatprep.mubr.bf16.mxu0 %v4025
      %4420 = vmatmul.mubr.bf16.gmra.mxu0 %v4024
      %v4421 = vpop.f32.mrf.mxu0
      %v4422 = vadd.f32 %v4317, %v4421
      %v4423 = vpop.f32.mrf.mxu0
      %v4424 = vpop.f32.mrf.mxu0
      %v4425 = vadd.f32 %v4320, %v4424
      %v4426 = vpop.f32.mrf.mxu0
      %4427 = vdwg.mxu0
      %v4428 = vadd.f32 %v2908, %v4358
      %v4429 = vadd.f32 %v2909, %v4361
      %v4430 = vadd.f32 %v2910, %v4366
      %v4431 = vadd.f32 %v2911, %v4369
      %v4432 = vadd.f32 %v2912, %v4374
      %v4433 = vadd.f32 %v2913, %v4377
      %v4434 = vadd.f32 %v2914, %v4382
      %v4435 = vadd.f32 %v2915, %v4385
      %v4436 = vadd.f32 %v2916, %v4390
      %v4437 = vadd.f32 %v2917, %v4393
      %v4438 = vadd.f32 %v2918, %v4398
      %v4439 = vadd.f32 %v2919, %v4401
      %v4440 = vadd.f32 %v2920, %v4406
      %v4441 = vadd.f32 %v2921, %v4409
      %v4442 = vadd.f32 %v2922, %v4414
      %v4443 = vadd.f32 %v2923, %v4417
      %v4444 = vadd.f32 %v2924, %v4422
      %v4445 = vadd.f32 %v2925, %v4425
      %v4446 = vld [vmem:[%s33] sm:$0x1]
      %v4448 = vlaneseq
      %v4449 = vshrl.u32 %v4448, 7
      %v4450 = vsub.s32 0, %v4449
      %v4451 = vrot.slane %v4446, %v4450
      %v4453 = vadd.f32 %v4428, %v4451
      %v4454 = vadd.f32 %v4429, %v4451
      %v4455 = vadd.f32 %v4430, %v4451
      %v4456 = vadd.f32 %v4431, %v4451
      %v4457 = vadd.f32 %v4432, %v4451
      %v4458 = vadd.f32 %v4433, %v4451
      %v4459 = vadd.f32 %v4434, %v4451
      %v4460 = vadd.f32 %v4435, %v4451
      %v4461 = vadd.f32 %v4436, %v4451
      %v4462 = vadd.f32 %v4437, %v4451
      %v4463 = vadd.f32 %v4438, %v4451
      %v4464 = vadd.f32 %v4439, %v4451
      %v4465 = vadd.f32 %v4440, %v4451
      %v4466 = vadd.f32 %v4441, %v4451
      %v4467 = vadd.f32 %v4442, %v4451
      %v4468 = vadd.f32 %v4443, %v4451
      %v4469 = vadd.f32 %v4444, %v4451
      %v4470 = vadd.f32 %v4445, %v4451
      %v4471 = vld [vmem:[%s35] sm:$0x1]
      %v4472 = vld [vmem:[%s37] sm:$0x1]
      %v4473 = vsel %vm1557, %v4453, 0.0
      %4474 = vadd.xlane.f32.xlu0 %v4473
      %v4475 = vpop.xlane.xlu0 %4474
      %v4476 = vsel %vm1557, %v4454, 0.0
      %4477 = vadd.xlane.f32.xlu0 %v4476
      %v4478 = vpop.xlane.xlu0 %4477
      %v4479 = vsel %vm1557, %v4455, 0.0
      %4480 = vadd.xlane.f32.xlu0 %v4479
      %v4481 = vpop.xlane.xlu0 %4480
      %v4482 = vsel %vm1557, %v4456, 0.0
      %4483 = vadd.xlane.f32.xlu0 %v4482
      %v4484 = vpop.xlane.xlu0 %4483
      %v4485 = vsel %vm1557, %v4457, 0.0
      %4486 = vadd.xlane.f32.xlu0 %v4485
      %v4487 = vpop.xlane.xlu0 %4486
      %v4488 = vsel %vm1557, %v4458, 0.0
      %4489 = vadd.xlane.f32.xlu0 %v4488
      %v4490 = vpop.xlane.xlu0 %4489
      %v4491 = vsel %vm1557, %v4459, 0.0
      %4492 = vadd.xlane.f32.xlu0 %v4491
      %v4493 = vpop.xlane.xlu0 %4492
      %v4494 = vsel %vm1557, %v4460, 0.0
      %4495 = vadd.xlane.f32.xlu0 %v4494
      %v4496 = vpop.xlane.xlu0 %4495
      %v4497 = vsel %vm1557, %v4461, 0.0
      %4498 = vadd.xlane.f32.xlu0 %v4497
      %v4499 = vpop.xlane.xlu0 %4498
      %v4500 = vsel %vm1557, %v4462, 0.0
      %4501 = vadd.xlane.f32.xlu0 %v4500
      %v4502 = vpop.xlane.xlu0 %4501
      %v4503 = vsel %vm1557, %v4463, 0.0
      %4504 = vadd.xlane.f32.xlu0 %v4503
      %v4505 = vpop.xlane.xlu0 %4504
      %v4506 = vsel %vm1557, %v4464, 0.0
      %4507 = vadd.xlane.f32.xlu0 %v4506
      %v4508 = vpop.xlane.xlu0 %4507
      %v4509 = vsel %vm1557, %v4465, 0.0
      %4510 = vadd.xlane.f32.xlu0 %v4509
      %v4511 = vpop.xlane.xlu0 %4510
      %v4512 = vsel %vm1557, %v4466, 0.0
      %4513 = vadd.xlane.f32.xlu0 %v4512
      %v4514 = vpop.xlane.xlu0 %4513
      %v4515 = vsel %vm1557, %v4467, 0.0
      %4516 = vadd.xlane.f32.xlu0 %v4515
      %v4517 = vpop.xlane.xlu0 %4516
      %v4518 = vsel %vm1557, %v4468, 0.0
      %4519 = vadd.xlane.f32.xlu0 %v4518
      %v4520 = vpop.xlane.xlu0 %4519
      %v4521 = vsel %vm1557, %v4469, 0.0
      %4522 = vadd.xlane.f32.xlu0 %v4521
      %v4523 = vpop.xlane.xlu0 %4522
      %v4524 = vsel %vm1557, %v4470, 0.0
      %4525 = vadd.xlane.f32.xlu0 %v4524
      %v4526 = vpop.xlane.xlu0 %4525
      %v4527 = vmul.f32 %v4475, %v2697
      %v4528 = vmul.f32 %v4478, %v2697
      %v4529 = vmul.f32 %v4481, %v2697
      %v4530 = vmul.f32 %v4484, %v2697
      %v4531 = vmul.f32 %v4487, %v2697
      %v4532 = vmul.f32 %v4490, %v2697
      %v4533 = vmul.f32 %v4493, %v2697
      %v4534 = vmul.f32 %v4496, %v2697
      %v4535 = vmul.f32 %v4499, %v2697
      %v4536 = vmul.f32 %v4502, %v2697
      %v4537 = vmul.f32 %v4505, %v2697
      %v4538 = vmul.f32 %v4508, %v2697
      %v4539 = vmul.f32 %v4511, %v2697
      %v4540 = vmul.f32 %v4514, %v2697
      %v4541 = vmul.f32 %v4517, %v2697
      %v4542 = vmul.f32 %v4520, %v2697
      %v4543 = vmul.f32 %v4523, %v2697
      %v4544 = vmul.f32 %v4526, %v2697
      %v4545 = vsub.f32 %v4453, %v4527
      %v4546 = vsub.f32 %v4454, %v4528
      %v4547 = vsub.f32 %v4455, %v4529
      %v4548 = vsub.f32 %v4456, %v4530
      %v4549 = vsub.f32 %v4457, %v4531
      %v4550 = vsub.f32 %v4458, %v4532
      %v4551 = vsub.f32 %v4459, %v4533
      %v4552 = vsub.f32 %v4460, %v4534
      %v4553 = vsub.f32 %v4461, %v4535
      %v4554 = vsub.f32 %v4462, %v4536
      %v4555 = vsub.f32 %v4463, %v4537
      %v4556 = vsub.f32 %v4464, %v4538
      %v4557 = vsub.f32 %v4465, %v4539
      %v4558 = vsub.f32 %v4466, %v4540
      %v4559 = vsub.f32 %v4467, %v4541
      %v4560 = vsub.f32 %v4468, %v4542
      %v4561 = vsub.f32 %v4469, %v4543
      %v4562 = vsub.f32 %v4470, %v4544
      %v4563 = vmul.f32 %v4545, %v4545
      %v4564 = vmul.f32 %v4546, %v4546
      %v4565 = vmul.f32 %v4547, %v4547
      %v4566 = vmul.f32 %v4548, %v4548
      %v4567 = vmul.f32 %v4549, %v4549
      %v4568 = vmul.f32 %v4550, %v4550
      %v4569 = vmul.f32 %v4551, %v4551
      %v4570 = vmul.f32 %v4552, %v4552
      %v4571 = vmul.f32 %v4553, %v4553
      %v4572 = vmul.f32 %v4554, %v4554
      %v4573 = vmul.f32 %v4555, %v4555
      %v4574 = vmul.f32 %v4556, %v4556
      %v4575 = vmul.f32 %v4557, %v4557
      %v4576 = vmul.f32 %v4558, %v4558
      %v4577 = vmul.f32 %v4559, %v4559
      %v4578 = vmul.f32 %v4560, %v4560
      %v4579 = vmul.f32 %v4561, %v4561
      %v4580 = vmul.f32 %v4562, %v4562
      %v4581 = vsel %vm1557, %v4563, 0.0
      %4582 = vadd.xlane.f32.xlu0 %v4581
      %v4583 = vpop.xlane.xlu0 %4582
      %v4584 = vsel %vm1557, %v4564, 0.0
      %4585 = vadd.xlane.f32.xlu0 %v4584
      %v4586 = vpop.xlane.xlu0 %4585
      %v4587 = vsel %vm1557, %v4565, 0.0
      %4588 = vadd.xlane.f32.xlu0 %v4587
      %v4589 = vpop.xlane.xlu0 %4588
      %v4590 = vsel %vm1557, %v4566, 0.0
      %4591 = vadd.xlane.f32.xlu0 %v4590
      %v4592 = vpop.xlane.xlu0 %4591
      %v4593 = vsel %vm1557, %v4567, 0.0
      %4594 = vadd.xlane.f32.xlu0 %v4593
      %v4595 = vpop.xlane.xlu0 %4594
      %v4596 = vsel %vm1557, %v4568, 0.0
      %4597 = vadd.xlane.f32.xlu0 %v4596
      %v4598 = vpop.xlane.xlu0 %4597
      %v4599 = vsel %vm1557, %v4569, 0.0
      %4600 = vadd.xlane.f32.xlu0 %v4599
      %v4601 = vpop.xlane.xlu0 %4600
      %v4602 = vsel %vm1557, %v4570, 0.0
      %4603 = vadd.xlane.f32.xlu0 %v4602
      %v4604 = vpop.xlane.xlu0 %4603
      %v4605 = vsel %vm1557, %v4571, 0.0
      %4606 = vadd.xlane.f32.xlu0 %v4605
      %v4607 = vpop.xlane.xlu0 %4606
      %v4608 = vsel %vm1557, %v4572, 0.0
      %4609 = vadd.xlane.f32.xlu0 %v4608
      %v4610 = vpop.xlane.xlu0 %4609
      %v4611 = vsel %vm1557, %v4573, 0.0
      %4612 = vadd.xlane.f32.xlu0 %v4611
      %v4613 = vpop.xlane.xlu0 %4612
      %v4614 = vsel %vm1557, %v4574, 0.0
      %4615 = vadd.xlane.f32.xlu0 %v4614
      %v4616 = vpop.xlane.xlu0 %4615
      %v4617 = vsel %vm1557, %v4575, 0.0
      %4618 = vadd.xlane.f32.xlu0 %v4617
      %v4619 = vpop.xlane.xlu0 %4618
      %v4620 = vsel %vm1557, %v4576, 0.0
      %4621 = vadd.xlane.f32.xlu0 %v4620
      %v4622 = vpop.xlane.xlu0 %4621
      %v4623 = vsel %vm1557, %v4577, 0.0
      %4624 = vadd.xlane.f32.xlu0 %v4623
      %v4625 = vpop.xlane.xlu0 %4624
      %v4626 = vsel %vm1557, %v4578, 0.0
      %4627 = vadd.xlane.f32.xlu0 %v4626
      %v4628 = vpop.xlane.xlu0 %4627
      %v4629 = vsel %vm1557, %v4579, 0.0
      %4630 = vadd.xlane.f32.xlu0 %v4629
      %v4631 = vpop.xlane.xlu0 %4630
      %v4632 = vsel %vm1557, %v4580, 0.0
      %4633 = vadd.xlane.f32.xlu0 %v4632
      %v4634 = vpop.xlane.xlu0 %4633
      %v4635 = vmul.f32 %v4583, %v2697
      %v4636 = vmul.f32 %v4586, %v2697
      %v4637 = vmul.f32 %v4589, %v2697
      %v4638 = vmul.f32 %v4592, %v2697
      %v4639 = vmul.f32 %v4595, %v2697
      %v4640 = vmul.f32 %v4598, %v2697
      %v4641 = vmul.f32 %v4601, %v2697
      %v4642 = vmul.f32 %v4604, %v2697
      %v4643 = vmul.f32 %v4607, %v2697
      %v4644 = vmul.f32 %v4610, %v2697
      %v4645 = vmul.f32 %v4613, %v2697
      %v4646 = vmul.f32 %v4616, %v2697
      %v4647 = vmul.f32 %v4619, %v2697
      %v4648 = vmul.f32 %v4622, %v2697
      %v4649 = vmul.f32 %v4625, %v2697
      %v4650 = vmul.f32 %v4628, %v2697
      %v4651 = vmul.f32 %v4631, %v2697
      %v4652 = vmul.f32 %v4634, %v2697
      %v4653 = vadd.f32 %v4635, 1e-12
      %v4654 = vadd.f32 %v4636, 1e-12
      %v4655 = vadd.f32 %v4637, 1e-12
      %v4656 = vadd.f32 %v4638, 1e-12
      %v4657 = vadd.f32 %v4639, 1e-12
      %v4658 = vadd.f32 %v4640, 1e-12
      %v4659 = vadd.f32 %v4641, 1e-12
      %v4660 = vadd.f32 %v4642, 1e-12
      %v4661 = vadd.f32 %v4643, 1e-12
      %v4662 = vadd.f32 %v4644, 1e-12
      %v4663 = vadd.f32 %v4645, 1e-12
      %v4664 = vadd.f32 %v4646, 1e-12
      %v4665 = vadd.f32 %v4647, 1e-12
      %v4666 = vadd.f32 %v4648, 1e-12
      %v4667 = vadd.f32 %v4649, 1e-12
      %v4668 = vadd.f32 %v4650, 1e-12
      %v4669 = vadd.f32 %v4651, 1e-12
      %v4670 = vadd.f32 %v4652, 1e-12
      %v4671 = vrsqrt.pop %v4653
      %v4672 = vrsqrt.pop %v4654
      %v4673 = vrsqrt.pop %v4655
      %v4674 = vrsqrt.pop %v4656
      %v4675 = vrsqrt.pop %v4657
      %v4676 = vrsqrt.pop %v4658
      %v4677 = vrsqrt.pop %v4659
      %v4678 = vrsqrt.pop %v4660
      %v4679 = vrsqrt.pop %v4661
      %v4680 = vrsqrt.pop %v4662
      %v4681 = vrsqrt.pop %v4663
      %v4682 = vrsqrt.pop %v4664
      %v4683 = vrsqrt.pop %v4665
      %v4684 = vrsqrt.pop %v4666
      %v4685 = vrsqrt.pop %v4667
      %v4686 = vrsqrt.pop %v4668
      %v4687 = vrsqrt.pop %v4669
      %v4688 = vrsqrt.pop %v4670
      %v4689 = vmul.f32 %v4545, %v4671
      %v4690 = vmul.f32 %v4546, %v4672
      %v4691 = vmul.f32 %v4547, %v4673
      %v4692 = vmul.f32 %v4548, %v4674
      %v4693 = vmul.f32 %v4549, %v4675
      %v4694 = vmul.f32 %v4550, %v4676
      %v4695 = vmul.f32 %v4551, %v4677
      %v4696 = vmul.f32 %v4552, %v4678
      %v4697 = vmul.f32 %v4553, %v4679
      %v4698 = vmul.f32 %v4554, %v4680
      %v4699 = vmul.f32 %v4555, %v4681
      %v4700 = vmul.f32 %v4556, %v4682
      %v4701 = vmul.f32 %v4557, %v4683
      %v4702 = vmul.f32 %v4558, %v4684
      %v4703 = vmul.f32 %v4559, %v4685
      %v4704 = vmul.f32 %v4560, %v4686
      %v4705 = vmul.f32 %v4561, %v4687
      %v4706 = vmul.f32 %v4562, %v4688
      %v4708 = vlaneseq
      %v4709 = vshrl.u32 %v4708, 7
      %v4710 = vsub.s32 0, %v4709
      %v4711 = vrot.slane %v4471, %v4710
      %v4713 = vmul.f32 %v4689, %v4711
      %v4714 = vmul.f32 %v4690, %v4711
      %v4715 = vmul.f32 %v4691, %v4711
      %v4716 = vmul.f32 %v4692, %v4711
      %v4717 = vmul.f32 %v4693, %v4711
      %v4718 = vmul.f32 %v4694, %v4711
      %v4719 = vmul.f32 %v4695, %v4711
      %v4720 = vmul.f32 %v4696, %v4711
      %v4721 = vmul.f32 %v4697, %v4711
      %v4722 = vmul.f32 %v4698, %v4711
      %v4723 = vmul.f32 %v4699, %v4711
      %v4724 = vmul.f32 %v4700, %v4711
      %v4725 = vmul.f32 %v4701, %v4711
      %v4726 = vmul.f32 %v4702, %v4711
      %v4727 = vmul.f32 %v4703, %v4711
      %v4728 = vmul.f32 %v4704, %v4711
      %v4729 = vmul.f32 %v4705, %v4711
      %v4730 = vmul.f32 %v4706, %v4711
      %v4732 = vlaneseq
      %v4733 = vshrl.u32 %v4732, 7
      %v4734 = vsub.s32 0, %v4733
      %v4735 = vrot.slane %v4472, %v4734
      %v4737 = vadd.f32 %v4713, %v4735
      %v4738 = vadd.f32 %v4714, %v4735
      %v4739 = vadd.f32 %v4715, %v4735
      %v4740 = vadd.f32 %v4716, %v4735
      %v4741 = vadd.f32 %v4717, %v4735
      %v4742 = vadd.f32 %v4718, %v4735
      %v4743 = vadd.f32 %v4719, %v4735
      %v4744 = vadd.f32 %v4720, %v4735
      %v4745 = vadd.f32 %v4721, %v4735
      %v4746 = vadd.f32 %v4722, %v4735
      %v4747 = vadd.f32 %v4723, %v4735
      %v4748 = vadd.f32 %v4724, %v4735
      %v4749 = vadd.f32 %v4725, %v4735
      %v4750 = vadd.f32 %v4726, %v4735
      %v4751 = vadd.f32 %v4727, %v4735
      %v4752 = vadd.f32 %v4728, %v4735
      %v4753 = vadd.f32 %v4729, %v4735
      %v4754 = vadd.f32 %v4730, %v4735
      %s4755 = scalar_lea.vmem %s15, 16
      %v4756 = vld [vmem:[%s4755] sm:$0xf]
      %v4757 = vld [vmem:[%s4755 + $0x4] sm:$0xf]
      %v4758 = vld [vmem:[%s4755 + $0x8] sm:$0xf]
      %v4759 = vld [vmem:[%s4755 + $0xc] sm:$0xf]
      %v4760 = vpack.c.bf16 %v4738, %v4737
      %v4761 = vpack.c.bf16 %v4740, %v4739
      %v4762 = vpack.c.bf16 %v4742, %v4741
      %v4763 = vpack.c.bf16 %v4744, %v4743
      %v4764 = vpack.c.bf16 %v4746, %v4745
      %v4765 = vpack.c.bf16 %v4748, %v4747
      %v4766 = vpack.c.bf16 %v4750, %v4749
      %v4767 = vpack.c.bf16 %v4752, %v4751
      %v4768 = vpack.c.bf16 %v4754, %v4753
      %s4769 = scalar_lea.vmem %s17, 1
      %v4770 = vld [vmem:[%s4769] sm:$0x1]
      %v4772 = vlaneseq
      %v4773 = vshrl.u32 %v4772, 7
      %v4774 = vsub.s32 0, %v4773
      %v4775 = vrot.slane %v4770, %v4774
      %v4781 = vunpack.c.l.b16 %v4756
      %v4782 = vunpack.c.l.b16 %v4757
      %v4783 = vunpack.c.l.b16 %v4758
      %v4784 = vunpack.c.l.b16 %v4759
      %v4785 = vpack.c.b16 %v4782, %v4781
      %v4786 = vpack.c.b16 %v4784, %v4783
      %v4790 = vsel %vm1557, %v4760, 0
      %v4793 = vsel %vm1557, %v4761, 0
      %v4796 = vsel %vm1557, %v4762, 0
      %v4799 = vsel %vm1557, %v4763, 0
      %v4802 = vsel %vm1557, %v4764, 0
      %v4805 = vsel %vm1557, %v4765, 0
      %v4808 = vsel %vm1557, %v4766, 0
      %v4811 = vsel %vm1557, %v4767, 0
      %v4814 = vsel %vm1557, %v4768, 0
      %4816 = vmatprep.subr.bf16.mxu0 0
      %4817 = vmatpush1.bf16.msra.mxu0 0
      %4818 = vmatprep.subr.bf16.mxu0 0
      %4819 = vmatpush1.bf16.msra.mxu0 0
      %4820 = vmatprep.subr.bf16.mxu0 0
      %4821 = vmatpush1.bf16.msra.mxu0 0
      %4822 = vmatprep.subr.bf16.mxu0 0
      %4823 = vmatpush1.bf16.msra.mxu0 0
      %4824 = vmatprep.subr.bf16.mxu0 0
      %4825 = vmatpush1.bf16.msra.mxu0 0
      %4826 = vmatprep.subr.bf16.mxu0 0
      %4827 = vmatpush1.bf16.msra.mxu0 0
      %4828 = vmatprep.subr.bf16.mxu0 0
      %4829 = vmatpush1.bf16.msra.mxu0 %v4786
      %4830 = vmatprep.subr.bf16.mxu0 0
      %4831 = vmatpush1.bf16.msra.mxu0 %v4785
      %4832 = vmatprep.subr.bf16.mxu0 0
      %4833 = vmatpush2.bf16.msra.mxu0 0
      %4834 = vmatprep.subr.bf16.mxu0 0
      %4835 = vmatpush2.bf16.msra.mxu0 0
      %4836 = vmatprep.subr.bf16.mxu0 0
      %4837 = vmatpush2.bf16.msra.mxu0 0
      %4838 = vmatprep.subr.bf16.mxu0 0
      %4839 = vmatpush2.bf16.msra.mxu0 0
      %4840 = vmatprep.subr.bf16.mxu0 0
      %4841 = vmatpush2.bf16.msra.mxu0 0
      %4842 = vmatprep.subr.bf16.mxu0 0
      %4843 = vmatpush2.bf16.msra.mxu0 0
      %4844 = vmatprep.subr.bf16.mxu0 0
      %4845 = vmatpush2.bf16.msra.mxu0 0
      %4846 = vmatprep.subr.bf16.mxu0 0
      %4847 = vmatpush2.bf16.msra.mxu0 0
      %4848 = vmatprep.mubr.bf16.mxu0 0
      %4849 = vmatmul.mubr.bf16.gmra.mxu0 %v4790
      %v4850 = vpop.f32.mrf.mxu0
      %v4851 = vadd.f32 %v4775, %v4850
      %v4852 = vpop.f32.mrf.mxu0
      %v4853 = vpop.f32.mrf.mxu0
      %v4854 = vadd.f32 %v4775, %v4853
      %v4855 = vpop.f32.mrf.mxu0
      %4856 = vmatprep.mubr.bf16.mxu0 0
      %4857 = vmatmul.mubr.bf16.gmra.mxu0 %v4793
      %v4858 = vpop.f32.mrf.mxu0
      %v4859 = vadd.f32 %v4775, %v4858
      %v4860 = vpop.f32.mrf.mxu0
      %v4861 = vpop.f32.mrf.mxu0
      %v4862 = vadd.f32 %v4775, %v4861
      %v4863 = vpop.f32.mrf.mxu0
      %4864 = vmatprep.mubr.bf16.mxu0 0
      %4865 = vmatmul.mubr.bf16.gmra.mxu0 %v4796
      %v4866 = vpop.f32.mrf.mxu0
      %v4867 = vadd.f32 %v4775, %v4866
      %v4868 = vpop.f32.mrf.mxu0
      %v4869 = vpop.f32.mrf.mxu0
      %v4870 = vadd.f32 %v4775, %v4869
      %v4871 = vpop.f32.mrf.mxu0
      %4872 = vmatprep.mubr.bf16.mxu0 0
      %4873 = vmatmul.mubr.bf16.gmra.mxu0 %v4799
      %v4874 = vpop.f32.mrf.mxu0
      %v4875 = vadd.f32 %v4775, %v4874
      %v4876 = vpop.f32.mrf.mxu0
      %v4877 = vpop.f32.mrf.mxu0
      %v4878 = vadd.f32 %v4775, %v4877
      %v4879 = vpop.f32.mrf.mxu0
      %4880 = vmatprep.mubr.bf16.mxu0 0
      %4881 = vmatmul.mubr.bf16.gmra.mxu0 %v4802
      %v4882 = vpop.f32.mrf.mxu0
      %v4883 = vadd.f32 %v4775, %v4882
      %v4884 = vpop.f32.mrf.mxu0
      %v4885 = vpop.f32.mrf.mxu0
      %v4886 = vadd.f32 %v4775, %v4885
      %v4887 = vpop.f32.mrf.mxu0
      %4888 = vmatprep.mubr.bf16.mxu0 0
      %4889 = vmatmul.mubr.bf16.gmra.mxu0 %v4805
      %v4890 = vpop.f32.mrf.mxu0
      %v4891 = vadd.f32 %v4775, %v4890
      %v4892 = vpop.f32.mrf.mxu0
      %v4893 = vpop.f32.mrf.mxu0
      %v4894 = vadd.f32 %v4775, %v4893
      %v4895 = vpop.f32.mrf.mxu0
      %4896 = vmatprep.mubr.bf16.mxu0 0
      %4897 = vmatmul.mubr.bf16.gmra.mxu0 %v4808
      %v4898 = vpop.f32.mrf.mxu0
      %v4899 = vadd.f32 %v4775, %v4898
      %v4900 = vpop.f32.mrf.mxu0
      %v4901 = vpop.f32.mrf.mxu0
      %v4902 = vadd.f32 %v4775, %v4901
      %v4903 = vpop.f32.mrf.mxu0
      %4904 = vmatprep.mubr.bf16.mxu0 0
      %4905 = vmatmul.mubr.bf16.gmra.mxu0 %v4811
      %v4906 = vpop.f32.mrf.mxu0
      %v4907 = vadd.f32 %v4775, %v4906
      %v4908 = vpop.f32.mrf.mxu0
      %v4909 = vpop.f32.mrf.mxu0
      %v4910 = vadd.f32 %v4775, %v4909
      %v4911 = vpop.f32.mrf.mxu0
      %4912 = vmatprep.mubr.bf16.mxu0 0
      %4913 = vmatmul.mubr.bf16.gmra.mxu0 %v4814
      %v4914 = vpop.f32.mrf.mxu0
      %v4915 = vadd.f32 %v4775, %v4914
      %v4916 = vpop.f32.mrf.mxu0
      %v4917 = vpop.f32.mrf.mxu0
      %v4918 = vadd.f32 %v4775, %v4917
      %v4919 = vpop.f32.mrf.mxu0
      %4920 = vdwg.mxu0
      %v4921 = vpack.c.bf16 %v4854, %v4851
      %v4922 = vpack.c.bf16 %v4862, %v4859
      %v4923 = vpack.c.bf16 %v4870, %v4867
      %v4924 = vpack.c.bf16 %v4878, %v4875
      %v4925 = vpack.c.bf16 %v4886, %v4883
      %v4926 = vpack.c.bf16 %v4894, %v4891
      %v4927 = vpack.c.bf16 %v4902, %v4899
      %v4928 = vpack.c.bf16 %v4910, %v4907
      %v4929 = vpack.c.bf16 %v4918, %v4915
      %4939 = vrot.lane.b32.xlu0 %v4921, 96
      %v4940 = vpop.permute.xlu0 %4939
      %4941 = vrot.lane.b32.xlu0 %v4922, 96
      %v4942 = vpop.permute.xlu0 %4941
      %4943 = vrot.lane.b32.xlu0 %v4923, 96
      %v4944 = vpop.permute.xlu0 %4943
      %4945 = vrot.lane.b32.xlu0 %v4924, 96
      %v4946 = vpop.permute.xlu0 %4945
      %4947 = vrot.lane.b32.xlu0 %v4925, 96
      %v4948 = vpop.permute.xlu0 %4947
      %4949 = vrot.lane.b32.xlu0 %v4926, 96
      %v4950 = vpop.permute.xlu0 %4949
      %4951 = vrot.lane.b32.xlu0 %v4927, 96
      %v4952 = vpop.permute.xlu0 %4951
      %4953 = vrot.lane.b32.xlu0 %v4928, 96
      %v4954 = vpop.permute.xlu0 %4953
      %4955 = vrot.lane.b32.xlu0 %v4929, 96
      %v4956 = vpop.permute.xlu0 %4955
      %v4958 = vsel %vm1557, %v4921, 0
      %v4961 = vsel %vm1557, %v4922, 0
      %v4964 = vsel %vm1557, %v4923, 0
      %v4967 = vsel %vm1557, %v4924, 0
      %v4970 = vsel %vm1557, %v4925, 0
      %v4973 = vsel %vm1557, %v4926, 0
      %v4976 = vsel %vm1557, %v4927, 0
      %v4979 = vsel %vm1557, %v4928, 0
      %v4982 = vsel %vm1557, %v4929, 0
      %v4985 = vsel %vm1557, %v4940, 0
      %v4988 = vsel %vm1557, %v4942, 0
      %v4991 = vsel %vm1557, %v4944, 0
      %v4994 = vsel %vm1557, %v4946, 0
      %v4997 = vsel %vm1557, %v4948, 0
      %v5000 = vsel %vm1557, %v4950, 0
      %v5003 = vsel %vm1557, %v4952, 0
      %v5006 = vsel %vm1557, %v4954, 0
      %v5009 = vsel %vm1557, %v4956, 0
      %5011 = vmatprep.subr.bf16.mxu0 0
      %5012 = vmatpush1.bf16.xpose.msra.mxu0 %v5006
      %5013 = vmatprep.subr.bf16.mxu0 0
      %5014 = vmatpush1.bf16.xpose.msra.mxu0 %v5003
      %5015 = vmatprep.subr.bf16.mxu0 0
      %5016 = vmatpush1.bf16.xpose.msra.mxu0 %v5000
      %5017 = vmatprep.subr.bf16.mxu0 0
      %5018 = vmatpush1.bf16.xpose.msra.mxu0 %v4997
      %5019 = vmatprep.subr.bf16.mxu0 0
      %5020 = vmatpush1.bf16.xpose.msra.mxu0 %v4994
      %5021 = vmatprep.subr.bf16.mxu0 0
      %5022 = vmatpush1.bf16.xpose.msra.mxu0 %v4991
      %5023 = vmatprep.subr.bf16.mxu0 0
      %5024 = vmatpush1.bf16.xpose.msra.mxu0 %v4988
      %5025 = vmatprep.subr.bf16.mxu0 0
      %5026 = vmatpush1.bf16.xpose.msra.mxu0 %v4985
      %5027 = vmatprep.subr.bf16.mxu0 0
      %5028 = vmatpush2.bf16.xpose.msra.mxu0 0
      %5029 = vmatprep.subr.bf16.mxu0 0
      %5030 = vmatpush2.bf16.xpose.msra.mxu0 0
      %5031 = vmatprep.subr.bf16.mxu0 0
      %5032 = vmatpush2.bf16.xpose.msra.mxu0 0
      %5033 = vmatprep.subr.bf16.mxu0 0
      %5034 = vmatpush2.bf16.xpose.msra.mxu0 0
      %5035 = vmatprep.subr.bf16.mxu0 0
      %5036 = vmatpush2.bf16.xpose.msra.mxu0 0
      %5037 = vmatprep.subr.bf16.mxu0 0
      %5038 = vmatpush2.bf16.xpose.msra.mxu0 0
      %5039 = vmatprep.subr.bf16.mxu0 0
      %5040 = vmatpush2.bf16.xpose.msra.mxu0 0
      %5041 = vmatprep.subr.bf16.mxu0 0
      %5042 = vmatpush2.bf16.xpose.msra.mxu0 %v5009
      %5043 = vmatprep.mubr.bf16.mxu0 0
      %5044 = vmatmul.mubr.bf16.gmra.mxu0 %v4958
      %v5045 = vpop.f32.mrf.mxu0
      %v5046 = vadd.f32 0.0, %v5045
      %v5047 = vpop.f32.mrf.mxu0
      %v5048 = vadd.f32 0.0, %v5047
      %v5049 = vpop.f32.mrf.mxu0
      %v5050 = vadd.f32 0.0, %v5049
      %v5051 = vpop.f32.mrf.mxu0
      %v5052 = vadd.f32 0.0, %v5051
      %5053 = vmatprep.mubr.bf16.mxu0 0
      %5054 = vmatmul.mubr.bf16.gmra.mxu0 %v4961
      %v5055 = vpop.f32.mrf.mxu0
      %v5056 = vadd.f32 0.0, %v5055
      %v5057 = vpop.f32.mrf.mxu0
      %v5058 = vadd.f32 0.0, %v5057
      %v5059 = vpop.f32.mrf.mxu0
      %v5060 = vadd.f32 0.0, %v5059
      %v5061 = vpop.f32.mrf.mxu0
      %v5062 = vadd.f32 0.0, %v5061
      %5063 = vmatprep.mubr.bf16.mxu0 0
      %5064 = vmatmul.mubr.bf16.gmra.mxu0 %v4964
      %v5065 = vpop.f32.mrf.mxu0
      %v5066 = vadd.f32 0.0, %v5065
      %v5067 = vpop.f32.mrf.mxu0
      %v5068 = vadd.f32 0.0, %v5067
      %v5069 = vpop.f32.mrf.mxu0
      %v5070 = vadd.f32 0.0, %v5069
      %v5071 = vpop.f32.mrf.mxu0
      %v5072 = vadd.f32 0.0, %v5071
      %5073 = vmatprep.mubr.bf16.mxu0 0
      %5074 = vmatmul.mubr.bf16.gmra.mxu0 %v4967
      %v5075 = vpop.f32.mrf.mxu0
      %v5076 = vadd.f32 0.0, %v5075
      %v5077 = vpop.f32.mrf.mxu0
      %v5078 = vadd.f32 0.0, %v5077
      %v5079 = vpop.f32.mrf.mxu0
      %v5080 = vadd.f32 0.0, %v5079
      %v5081 = vpop.f32.mrf.mxu0
      %v5082 = vadd.f32 0.0, %v5081
      %5083 = vmatprep.mubr.bf16.mxu0 0
      %5084 = vmatmul.mubr.bf16.gmra.mxu0 %v4970
      %v5085 = vpop.f32.mrf.mxu0
      %v5086 = vadd.f32 0.0, %v5085
      %v5087 = vpop.f32.mrf.mxu0
      %v5088 = vadd.f32 0.0, %v5087
      %v5089 = vpop.f32.mrf.mxu0
      %v5090 = vadd.f32 0.0, %v5089
      %v5091 = vpop.f32.mrf.mxu0
      %v5092 = vadd.f32 0.0, %v5091
      %5093 = vmatprep.mubr.bf16.mxu0 0
      %5094 = vmatmul.mubr.bf16.gmra.mxu0 %v4973
      %v5095 = vpop.f32.mrf.mxu0
      %v5096 = vadd.f32 0.0, %v5095
      %v5097 = vpop.f32.mrf.mxu0
      %v5098 = vadd.f32 0.0, %v5097
      %v5099 = vpop.f32.mrf.mxu0
      %v5100 = vadd.f32 0.0, %v5099
      %v5101 = vpop.f32.mrf.mxu0
      %v5102 = vadd.f32 0.0, %v5101
      %5103 = vmatprep.mubr.bf16.mxu0 0
      %5104 = vmatmul.mubr.bf16.gmra.mxu0 %v4976
      %v5105 = vpop.f32.mrf.mxu0
      %v5106 = vadd.f32 0.0, %v5105
      %v5107 = vpop.f32.mrf.mxu0
      %v5108 = vadd.f32 0.0, %v5107
      %v5109 = vpop.f32.mrf.mxu0
      %v5110 = vadd.f32 0.0, %v5109
      %v5111 = vpop.f32.mrf.mxu0
      %v5112 = vadd.f32 0.0, %v5111
      %5113 = vmatprep.mubr.bf16.mxu0 0
      %5114 = vmatmul.mubr.bf16.gmra.mxu0 %v4979
      %v5115 = vpop.f32.mrf.mxu0
      %v5116 = vadd.f32 0.0, %v5115
      %v5117 = vpop.f32.mrf.mxu0
      %v5118 = vadd.f32 0.0, %v5117
      %v5119 = vpop.f32.mrf.mxu0
      %v5120 = vadd.f32 0.0, %v5119
      %v5121 = vpop.f32.mrf.mxu0
      %v5122 = vadd.f32 0.0, %v5121
      %5123 = vmatprep.mubr.bf16.mxu0 0
      %5124 = vmatmul.mubr.bf16.gmra.mxu0 %v4982
      %v5125 = vpop.f32.mrf.mxu0
      %v5126 = vadd.f32 0.0, %v5125
      %v5127 = vpop.f32.mrf.mxu0
      %v5128 = vadd.f32 0.0, %v5127
      %v5129 = vpop.f32.mrf.mxu0
      %v5130 = vadd.f32 0.0, %v5129
      %v5131 = vpop.f32.mrf.mxu0
      %v5132 = vadd.f32 0.0, %v5131
      %5133 = vdwg.mxu0
      %v5134 = vmul.f32 %v5046, 0.17677669
      %v5135 = vmul.f32 %v5048, 0.17677669
      %v5136 = vmul.f32 %v5050, 0.17677669
      %v5137 = vmul.f32 %v5052, 0.17677669
      %v5138 = vmul.f32 %v5056, 0.17677669
      %v5139 = vmul.f32 %v5058, 0.17677669
      %v5140 = vmul.f32 %v5060, 0.17677669
      %v5141 = vmul.f32 %v5062, 0.17677669
      %v5142 = vmul.f32 %v5066, 0.17677669
      %v5143 = vmul.f32 %v5068, 0.17677669
      %v5144 = vmul.f32 %v5070, 0.17677669
      %v5145 = vmul.f32 %v5072, 0.17677669
      %v5146 = vmul.f32 %v5076, 0.17677669
      %v5147 = vmul.f32 %v5078, 0.17677669
      %v5148 = vmul.f32 %v5080, 0.17677669
      %v5149 = vmul.f32 %v5082, 0.17677669
      %v5150 = vmul.f32 %v5086, 0.17677669
      %v5151 = vmul.f32 %v5088, 0.17677669
      %v5152 = vmul.f32 %v5090, 0.17677669
      %v5153 = vmul.f32 %v5092, 0.17677669
      %v5154 = vmul.f32 %v5096, 0.17677669
      %v5155 = vmul.f32 %v5098, 0.17677669
      %v5156 = vmul.f32 %v5100, 0.17677669
      %v5157 = vmul.f32 %v5102, 0.17677669
      %v5158 = vmul.f32 %v5106, 0.17677669
      %v5159 = vmul.f32 %v5108, 0.17677669
      %v5160 = vmul.f32 %v5110, 0.17677669
      %v5161 = vmul.f32 %v5112, 0.17677669
      %v5162 = vmul.f32 %v5116, 0.17677669
      %v5163 = vmul.f32 %v5118, 0.17677669
      %v5164 = vmul.f32 %v5120, 0.17677669
      %v5165 = vmul.f32 %v5122, 0.17677669
      %v5166 = vmul.f32 %v5126, 0.17677669
      %v5167 = vmul.f32 %v5128, 0.17677669
      %v5168 = vmul.f32 %v5130, 0.17677669
      %v5169 = vmul.f32 %v5132, 0.17677669
      %v5170 = vadd.f32 %v5134, %v1489
      %v5171 = vadd.f32 %v5135, %v1490
      %v5172 = vadd.f32 %v5136, %v1491
      %v5173 = vadd.f32 %v5137, %v1492
      %v5174 = vadd.f32 %v5138, %v1493
      %v5175 = vadd.f32 %v5139, %v1494
      %v5176 = vadd.f32 %v5140, %v1495
      %v5177 = vadd.f32 %v5141, %v1496
      %v5178 = vadd.f32 %v5142, %v1497
      %v5179 = vadd.f32 %v5143, %v1498
      %v5180 = vadd.f32 %v5144, %v1499
      %v5181 = vadd.f32 %v5145, %v1500
      %v5182 = vadd.f32 %v5146, %v1501
      %v5183 = vadd.f32 %v5147, %v1502
      %v5184 = vadd.f32 %v5148, %v1503
      %v5185 = vadd.f32 %v5149, %v1504
      %v5186 = vadd.f32 %v5150, %v1505
      %v5187 = vadd.f32 %v5151, %v1506
      %v5188 = vadd.f32 %v5152, %v1507
      %v5189 = vadd.f32 %v5153, %v1508
      %v5190 = vadd.f32 %v5154, %v1509
      %v5191 = vadd.f32 %v5155, %v1510
      %v5192 = vadd.f32 %v5156, %v1511
      %v5193 = vadd.f32 %v5157, %v1512
      %v5194 = vadd.f32 %v5158, %v1513
      %v5195 = vadd.f32 %v5159, %v1514
      %v5196 = vadd.f32 %v5160, %v1515
      %v5197 = vadd.f32 %v5161, %v1516
      %v5198 = vadd.f32 %v5162, %v1517
      %v5199 = vadd.f32 %v5163, %v1518
      %v5200 = vadd.f32 %v5164, %v1519
      %v5201 = vadd.f32 %v5165, %v1520
      %v5202 = vadd.f32 %v5166, %v1521
      %v5203 = vadd.f32 %v5167, %v1522
      %v5204 = vadd.f32 %v5168, %v1523
      %v5205 = vadd.f32 %v5169, %v1524
      %v5206 = vsel %vm1975, %v5171, -inf
      %v5207 = vmax.f32 %v5170, %v5206
      %5208 = vmax.xlane.f32.xlu0 %v5207
      %v5209 = vpop.xlane.xlu0 %5208
      %v5210 = vsel %vm1975, %v5173, -inf
      %v5211 = vmax.f32 %v5172, %v5210
      %5212 = vmax.xlane.f32.xlu0 %v5211
      %v5213 = vpop.xlane.xlu0 %5212
      %v5214 = vsel %vm1975, %v5175, -inf
      %v5215 = vmax.f32 %v5174, %v5214
      %5216 = vmax.xlane.f32.xlu0 %v5215
      %v5217 = vpop.xlane.xlu0 %5216
      %v5218 = vsel %vm1975, %v5177, -inf
      %v5219 = vmax.f32 %v5176, %v5218
      %5220 = vmax.xlane.f32.xlu0 %v5219
      %v5221 = vpop.xlane.xlu0 %5220
      %v5222 = vsel %vm1975, %v5179, -inf
      %v5223 = vmax.f32 %v5178, %v5222
      %5224 = vmax.xlane.f32.xlu0 %v5223
      %v5225 = vpop.xlane.xlu0 %5224
      %v5226 = vsel %vm1975, %v5181, -inf
      %v5227 = vmax.f32 %v5180, %v5226
      %5228 = vmax.xlane.f32.xlu0 %v5227
      %v5229 = vpop.xlane.xlu0 %5228
      %v5230 = vsel %vm1975, %v5183, -inf
      %v5231 = vmax.f32 %v5182, %v5230
      %5232 = vmax.xlane.f32.xlu0 %v5231
      %v5233 = vpop.xlane.xlu0 %5232
      %v5234 = vsel %vm1975, %v5185, -inf
      %v5235 = vmax.f32 %v5184, %v5234
      %5236 = vmax.xlane.f32.xlu0 %v5235
      %v5237 = vpop.xlane.xlu0 %5236
      %v5238 = vsel %vm1975, %v5187, -inf
      %v5239 = vmax.f32 %v5186, %v5238
      %5240 = vmax.xlane.f32.xlu0 %v5239
      %v5241 = vpop.xlane.xlu0 %5240
      %v5242 = vsel %vm1975, %v5189, -inf
      %v5243 = vmax.f32 %v5188, %v5242
      %5244 = vmax.xlane.f32.xlu0 %v5243
      %v5245 = vpop.xlane.xlu0 %5244
      %v5246 = vsel %vm1975, %v5191, -inf
      %v5247 = vmax.f32 %v5190, %v5246
      %5248 = vmax.xlane.f32.xlu0 %v5247
      %v5249 = vpop.xlane.xlu0 %5248
      %v5250 = vsel %vm1975, %v5193, -inf
      %v5251 = vmax.f32 %v5192, %v5250
      %5252 = vmax.xlane.f32.xlu0 %v5251
      %v5253 = vpop.xlane.xlu0 %5252
      %v5254 = vsel %vm1975, %v5195, -inf
      %v5255 = vmax.f32 %v5194, %v5254
      %5256 = vmax.xlane.f32.xlu0 %v5255
      %v5257 = vpop.xlane.xlu0 %5256
      %v5258 = vsel %vm1975, %v5197, -inf
      %v5259 = vmax.f32 %v5196, %v5258
      %5260 = vmax.xlane.f32.xlu0 %v5259
      %v5261 = vpop.xlane.xlu0 %5260
      %v5262 = vsel %vm1975, %v5199, -inf
      %v5263 = vmax.f32 %v5198, %v5262
      %5264 = vmax.xlane.f32.xlu0 %v5263
      %v5265 = vpop.xlane.xlu0 %5264
      %v5266 = vsel %vm1975, %v5201, -inf
      %v5267 = vmax.f32 %v5200, %v5266
      %5268 = vmax.xlane.f32.xlu0 %v5267
      %v5269 = vpop.xlane.xlu0 %5268
      %v5270 = vsel %vm1975, %v5203, -inf
      %v5271 = vmax.f32 %v5202, %v5270
      %5272 = vmax.xlane.f32.xlu0 %v5271
      %v5273 = vpop.xlane.xlu0 %5272
      %v5274 = vsel %vm1975, %v5205, -inf
      %v5275 = vmax.f32 %v5204, %v5274
      %5276 = vmax.xlane.f32.xlu0 %v5275
      %v5277 = vpop.xlane.xlu0 %5276
      %v5278 = vsub.f32 %v5170, %v5209
      %v5279 = vsub.f32 %v5171, %v5209
      %v5280 = vsub.f32 %v5172, %v5213
      %v5281 = vsub.f32 %v5173, %v5213
      %v5282 = vsub.f32 %v5174, %v5217
      %v5283 = vsub.f32 %v5175, %v5217
      %v5284 = vsub.f32 %v5176, %v5221
      %v5285 = vsub.f32 %v5177, %v5221
      %v5286 = vsub.f32 %v5178, %v5225
      %v5287 = vsub.f32 %v5179, %v5225
      %v5288 = vsub.f32 %v5180, %v5229
      %v5289 = vsub.f32 %v5181, %v5229
      %v5290 = vsub.f32 %v5182, %v5233
      %v5291 = vsub.f32 %v5183, %v5233
      %v5292 = vsub.f32 %v5184, %v5237
      %v5293 = vsub.f32 %v5185, %v5237
      %v5294 = vsub.f32 %v5186, %v5241
      %v5295 = vsub.f32 %v5187, %v5241
      %v5296 = vsub.f32 %v5188, %v5245
      %v5297 = vsub.f32 %v5189, %v5245
      %v5298 = vsub.f32 %v5190, %v5249
      %v5299 = vsub.f32 %v5191, %v5249
      %v5300 = vsub.f32 %v5192, %v5253
      %v5301 = vsub.f32 %v5193, %v5253
      %v5302 = vsub.f32 %v5194, %v5257
      %v5303 = vsub.f32 %v5195, %v5257
      %v5304 = vsub.f32 %v5196, %v5261
      %v5305 = vsub.f32 %v5197, %v5261
      %v5306 = vsub.f32 %v5198, %v5265
      %v5307 = vsub.f32 %v5199, %v5265
      %v5308 = vsub.f32 %v5200, %v5269
      %v5309 = vsub.f32 %v5201, %v5269
      %v5310 = vsub.f32 %v5202, %v5273
      %v5311 = vsub.f32 %v5203, %v5273
      %v5312 = vsub.f32 %v5204, %v5277
      %v5313 = vsub.f32 %v5205, %v5277
      %v5314 = vmul.f32 %v5278, 1.442695
      %v5315 = vpow.pop %v5314
      %v5316 = vmul.f32 %v5279, 1.442695
      %v5317 = vpow.pop %v5316
      %v5318 = vmul.f32 %v5280, 1.442695
      %v5319 = vpow.pop %v5318
      %v5320 = vmul.f32 %v5281, 1.442695
      %v5321 = vpow.pop %v5320
      %v5322 = vmul.f32 %v5282, 1.442695
      %v5323 = vpow.pop %v5322
      %v5324 = vmul.f32 %v5283, 1.442695
      %v5325 = vpow.pop %v5324
      %v5326 = vmul.f32 %v5284, 1.442695
      %v5327 = vpow.pop %v5326
      %v5328 = vmul.f32 %v5285, 1.442695
      %v5329 = vpow.pop %v5328
      %v5330 = vmul.f32 %v5286, 1.442695
      %v5331 = vpow.pop %v5330
      %v5332 = vmul.f32 %v5287, 1.442695
      %v5333 = vpow.pop %v5332
      %v5334 = vmul.f32 %v5288, 1.442695
      %v5335 = vpow.pop %v5334
      %v5336 = vmul.f32 %v5289, 1.442695
      %v5337 = vpow.pop %v5336
      %v5338 = vmul.f32 %v5290, 1.442695
      %v5339 = vpow.pop %v5338
      %v5340 = vmul.f32 %v5291, 1.442695
      %v5341 = vpow.pop %v5340
      %v5342 = vmul.f32 %v5292, 1.442695
      %v5343 = vpow.pop %v5342
      %v5344 = vmul.f32 %v5293, 1.442695
      %v5345 = vpow.pop %v5344
      %v5346 = vmul.f32 %v5294, 1.442695
      %v5347 = vpow.pop %v5346
      %v5348 = vmul.f32 %v5295, 1.442695
      %v5349 = vpow.pop %v5348
      %v5350 = vmul.f32 %v5296, 1.442695
      %v5351 = vpow.pop %v5350
      %v5352 = vmul.f32 %v5297, 1.442695
      %v5353 = vpow.pop %v5352
      %v5354 = vmul.f32 %v5298, 1.442695
      %v5355 = vpow.pop %v5354
      %v5356 = vmul.f32 %v5299, 1.442695
      %v5357 = vpow.pop %v5356
      %v5358 = vmul.f32 %v5300, 1.442695
      %v5359 = vpow.pop %v5358
      %v5360 = vmul.f32 %v5301, 1.442695
      %v5361 = vpow.pop %v5360
      %v5362 = vmul.f32 %v5302, 1.442695
      %v5363 = vpow.pop %v5362
      %v5364 = vmul.f32 %v5303, 1.442695
      %v5365 = vpow.pop %v5364
      %v5366 = vmul.f32 %v5304, 1.442695
      %v5367 = vpow.pop %v5366
      %v5368 = vmul.f32 %v5305, 1.442695
      %v5369 = vpow.pop %v5368
      %v5370 = vmul.f32 %v5306, 1.442695
      %v5371 = vpow.pop %v5370
      %v5372 = vmul.f32 %v5307, 1.442695
      %v5373 = vpow.pop %v5372
      %v5374 = vmul.f32 %v5308, 1.442695
      %v5375 = vpow.pop %v5374
      %v5376 = vmul.f32 %v5309, 1.442695
      %v5377 = vpow.pop %v5376
      %v5378 = vmul.f32 %v5310, 1.442695
      %v5379 = vpow.pop %v5378
      %v5380 = vmul.f32 %v5311, 1.442695
      %v5381 = vpow.pop %v5380
      %v5382 = vmul.f32 %v5312, 1.442695
      %v5383 = vpow.pop %v5382
      %v5384 = vmul.f32 %v5313, 1.442695
      %v5385 = vpow.pop %v5384
      %v5386 = vsel %vm1975, %v5317, 0.0
      %v5387 = vadd.f32 %v5315, %v5386
      %5388 = vadd.xlane.f32.xlu0 %v5387
      %v5389 = vpop.xlane.xlu0 %5388
      %v5390 = vsel %vm1975, %v5321, 0.0
      %v5391 = vadd.f32 %v5319, %v5390
      %5392 = vadd.xlane.f32.xlu0 %v5391
      %v5393 = vpop.xlane.xlu0 %5392
      %v5394 = vsel %vm1975, %v5325, 0.0
      %v5395 = vadd.f32 %v5323, %v5394
      %5396 = vadd.xlane.f32.xlu0 %v5395
      %v5397 = vpop.xlane.xlu0 %5396
      %v5398 = vsel %vm1975, %v5329, 0.0
      %v5399 = vadd.f32 %v5327, %v5398
      %5400 = vadd.xlane.f32.xlu0 %v5399
      %v5401 = vpop.xlane.xlu0 %5400
      %v5402 = vsel %vm1975, %v5333, 0.0
      %v5403 = vadd.f32 %v5331, %v5402
      %5404 = vadd.xlane.f32.xlu0 %v5403
      %v5405 = vpop.xlane.xlu0 %5404
      %v5406 = vsel %vm1975, %v5337, 0.0
      %v5407 = vadd.f32 %v5335, %v5406
      %5408 = vadd.xlane.f32.xlu0 %v5407
      %v5409 = vpop.xlane.xlu0 %5408
      %v5410 = vsel %vm1975, %v5341, 0.0
      %v5411 = vadd.f32 %v5339, %v5410
      %5412 = vadd.xlane.f32.xlu0 %v5411
      %v5413 = vpop.xlane.xlu0 %5412
      %v5414 = vsel %vm1975, %v5345, 0.0
      %v5415 = vadd.f32 %v5343, %v5414
      %5416 = vadd.xlane.f32.xlu0 %v5415
      %v5417 = vpop.xlane.xlu0 %5416
      %v5418 = vsel %vm1975, %v5349, 0.0
      %v5419 = vadd.f32 %v5347, %v5418
      %5420 = vadd.xlane.f32.xlu0 %v5419
      %v5421 = vpop.xlane.xlu0 %5420
      %v5422 = vsel %vm1975, %v5353, 0.0
      %v5423 = vadd.f32 %v5351, %v5422
      %5424 = vadd.xlane.f32.xlu0 %v5423
      %v5425 = vpop.xlane.xlu0 %5424
      %v5426 = vsel %vm1975, %v5357, 0.0
      %v5427 = vadd.f32 %v5355, %v5426
      %5428 = vadd.xlane.f32.xlu0 %v5427
      %v5429 = vpop.xlane.xlu0 %5428
      %v5430 = vsel %vm1975, %v5361, 0.0
      %v5431 = vadd.f32 %v5359, %v5430
      %5432 = vadd.xlane.f32.xlu0 %v5431
      %v5433 = vpop.xlane.xlu0 %5432
      %v5434 = vsel %vm1975, %v5365, 0.0
      %v5435 = vadd.f32 %v5363, %v5434
      %5436 = vadd.xlane.f32.xlu0 %v5435
      %v5437 = vpop.xlane.xlu0 %5436
      %v5438 = vsel %vm1975, %v5369, 0.0
      %v5439 = vadd.f32 %v5367, %v5438
      %5440 = vadd.xlane.f32.xlu0 %v5439
      %v5441 = vpop.xlane.xlu0 %5440
      %v5442 = vsel %vm1975, %v5373, 0.0
      %v5443 = vadd.f32 %v5371, %v5442
      %5444 = vadd.xlane.f32.xlu0 %v5443
      %v5445 = vpop.xlane.xlu0 %5444
      %v5446 = vsel %vm1975, %v5377, 0.0
      %v5447 = vadd.f32 %v5375, %v5446
      %5448 = vadd.xlane.f32.xlu0 %v5447
      %v5449 = vpop.xlane.xlu0 %5448
      %v5450 = vsel %vm1975, %v5381, 0.0
      %v5451 = vadd.f32 %v5379, %v5450
      %5452 = vadd.xlane.f32.xlu0 %v5451
      %v5453 = vpop.xlane.xlu0 %5452
      %v5454 = vsel %vm1975, %v5385, 0.0
      %v5455 = vadd.f32 %v5383, %v5454
      %5456 = vadd.xlane.f32.xlu0 %v5455
      %v5457 = vpop.xlane.xlu0 %5456
      %v5458 = vrcp.pop %v5389
      %v5459 = vmul.f32 %v5315, %v5458
      %v5460 = vmul.f32 %v5317, %v5458
      %v5461 = vrcp.pop %v5393
      %v5462 = vmul.f32 %v5319, %v5461
      %v5463 = vmul.f32 %v5321, %v5461
      %v5464 = vrcp.pop %v5397
      %v5465 = vmul.f32 %v5323, %v5464
      %v5466 = vmul.f32 %v5325, %v5464
      %v5467 = vrcp.pop %v5401
      %v5468 = vmul.f32 %v5327, %v5467
      %v5469 = vmul.f32 %v5329, %v5467
      %v5470 = vrcp.pop %v5405
      %v5471 = vmul.f32 %v5331, %v5470
      %v5472 = vmul.f32 %v5333, %v5470
      %v5473 = vrcp.pop %v5409
      %v5474 = vmul.f32 %v5335, %v5473
      %v5475 = vmul.f32 %v5337, %v5473
      %v5476 = vrcp.pop %v5413
      %v5477 = vmul.f32 %v5339, %v5476
      %v5478 = vmul.f32 %v5341, %v5476
      %v5479 = vrcp.pop %v5417
      %v5480 = vmul.f32 %v5343, %v5479
      %v5481 = vmul.f32 %v5345, %v5479
      %v5482 = vrcp.pop %v5421
      %v5483 = vmul.f32 %v5347, %v5482
      %v5484 = vmul.f32 %v5349, %v5482
      %v5485 = vrcp.pop %v5425
      %v5486 = vmul.f32 %v5351, %v5485
      %v5487 = vmul.f32 %v5353, %v5485
      %v5488 = vrcp.pop %v5429
      %v5489 = vmul.f32 %v5355, %v5488
      %v5490 = vmul.f32 %v5357, %v5488
      %v5491 = vrcp.pop %v5433
      %v5492 = vmul.f32 %v5359, %v5491
      %v5493 = vmul.f32 %v5361, %v5491
      %v5494 = vrcp.pop %v5437
      %v5495 = vmul.f32 %v5363, %v5494
      %v5496 = vmul.f32 %v5365, %v5494
      %v5497 = vrcp.pop %v5441
      %v5498 = vmul.f32 %v5367, %v5497
      %v5499 = vmul.f32 %v5369, %v5497
      %v5500 = vrcp.pop %v5445
      %v5501 = vmul.f32 %v5371, %v5500
      %v5502 = vmul.f32 %v5373, %v5500
      %v5503 = vrcp.pop %v5449
      %v5504 = vmul.f32 %v5375, %v5503
      %v5505 = vmul.f32 %v5377, %v5503
      %v5506 = vrcp.pop %v5453
      %v5507 = vmul.f32 %v5379, %v5506
      %v5508 = vmul.f32 %v5381, %v5506
      %v5509 = vrcp.pop %v5457
      %v5510 = vmul.f32 %v5383, %v5509
      %v5511 = vmul.f32 %v5385, %v5509
      %v5512 = vpack.c.bf16 %v5462, %v5459
      %v5513 = vpack.c.bf16 %v5463, %v5460
      %v5514 = vpack.c.bf16 %v5468, %v5465
      %v5515 = vpack.c.bf16 %v5469, %v5466
      %v5516 = vpack.c.bf16 %v5474, %v5471
      %v5517 = vpack.c.bf16 %v5475, %v5472
      %v5518 = vpack.c.bf16 %v5480, %v5477
      %v5519 = vpack.c.bf16 %v5481, %v5478
      %v5520 = vpack.c.bf16 %v5486, %v5483
      %v5521 = vpack.c.bf16 %v5487, %v5484
      %v5522 = vpack.c.bf16 %v5492, %v5489
      %v5523 = vpack.c.bf16 %v5493, %v5490
      %v5524 = vpack.c.bf16 %v5498, %v5495
      %v5525 = vpack.c.bf16 %v5499, %v5496
      %v5526 = vpack.c.bf16 %v5504, %v5501
      %v5527 = vpack.c.bf16 %v5505, %v5502
      %v5528 = vpack.c.bf16 %v5510, %v5507
      %v5529 = vpack.c.bf16 %v5511, %v5508
      %5530 = vrot.lane.b32.xlu0 %v4921, 64
      %v5531 = vpop.permute.xlu0 %5530
      %5532 = vrot.lane.b32.xlu0 %v4922, 64
      %v5533 = vpop.permute.xlu0 %5532
      %5534 = vrot.lane.b32.xlu0 %v4923, 64
      %v5535 = vpop.permute.xlu0 %5534
      %5536 = vrot.lane.b32.xlu0 %v4924, 64
      %v5537 = vpop.permute.xlu0 %5536
      %5538 = vrot.lane.b32.xlu0 %v4925, 64
      %v5539 = vpop.permute.xlu0 %5538
      %5540 = vrot.lane.b32.xlu0 %v4926, 64
      %v5541 = vpop.permute.xlu0 %5540
      %5542 = vrot.lane.b32.xlu0 %v4927, 64
      %v5543 = vpop.permute.xlu0 %5542
      %5544 = vrot.lane.b32.xlu0 %v4928, 64
      %v5545 = vpop.permute.xlu0 %5544
      %5546 = vrot.lane.b32.xlu0 %v4929, 64
      %v5547 = vpop.permute.xlu0 %5546
      %v5558 = vsel %vm1975, %v5513, 0
      %v5561 = vsel %vm1975, %v5515, 0
      %v5564 = vsel %vm1975, %v5517, 0
      %v5567 = vsel %vm1975, %v5519, 0
      %v5570 = vsel %vm1975, %v5521, 0
      %v5573 = vsel %vm1975, %v5523, 0
      %v5576 = vsel %vm1975, %v5525, 0
      %v5579 = vsel %vm1975, %v5527, 0
      %v5582 = vsel %vm1975, %v5529, 0
      %5584 = vmatprep.subr.bf16.mxu0 0
      %5585 = vmatpush1.bf16.msra.mxu0 %v5545
      %5586 = vmatprep.subr.bf16.mxu0 0
      %5587 = vmatpush1.bf16.msra.mxu0 %v5543
      %5588 = vmatprep.subr.bf16.mxu0 0
      %5589 = vmatpush1.bf16.msra.mxu0 %v5541
      %5590 = vmatprep.subr.bf16.mxu0 0
      %5591 = vmatpush1.bf16.msra.mxu0 %v5539
      %5592 = vmatprep.subr.bf16.mxu0 0
      %5593 = vmatpush1.bf16.msra.mxu0 %v5537
      %5594 = vmatprep.subr.bf16.mxu0 0
      %5595 = vmatpush1.bf16.msra.mxu0 %v5535
      %5596 = vmatprep.subr.bf16.mxu0 0
      %5597 = vmatpush1.bf16.msra.mxu0 %v5533
      %5598 = vmatprep.subr.bf16.mxu0 0
      %5599 = vmatpush1.bf16.msra.mxu0 %v5531
      %5600 = vmatprep.subr.bf16.mxu0 0
      %5601 = vmatpush2.bf16.msra.mxu0 0
      %5602 = vmatprep.subr.bf16.mxu0 0
      %5603 = vmatpush2.bf16.msra.mxu0 0
      %5604 = vmatprep.subr.bf16.mxu0 0
      %5605 = vmatpush2.bf16.msra.mxu0 0
      %5606 = vmatprep.subr.bf16.mxu0 0
      %5607 = vmatpush2.bf16.msra.mxu0 0
      %5608 = vmatprep.subr.bf16.mxu0 0
      %5609 = vmatpush2.bf16.msra.mxu0 0
      %5610 = vmatprep.subr.bf16.mxu0 0
      %5611 = vmatpush2.bf16.msra.mxu0 0
      %5612 = vmatprep.subr.bf16.mxu0 0
      %5613 = vmatpush2.bf16.msra.mxu0 0
      %5614 = vmatprep.subr.bf16.mxu0 0
      %5615 = vmatpush2.bf16.msra.mxu0 %v5547
      %5616 = vmatprep.mubr.bf16.mxu0 %v5558
      %5617 = vmatmul.mubr.bf16.gmra.mxu0 %v5512
      %v5618 = vpop.f32.mrf.mxu0
      %v5619 = vadd.f32 0.0, %v5618
      %v5620 = vpop.f32.mrf.mxu0
      %v5621 = vpop.f32.mrf.mxu0
      %v5622 = vadd.f32 0.0, %v5621
      %v5623 = vpop.f32.mrf.mxu0
      %5624 = vmatprep.mubr.bf16.mxu0 %v5561
      %5625 = vmatmul.mubr.bf16.gmra.mxu0 %v5514
      %v5626 = vpop.f32.mrf.mxu0
      %v5627 = vadd.f32 0.0, %v5626
      %v5628 = vpop.f32.mrf.mxu0
      %v5629 = vpop.f32.mrf.mxu0
      %v5630 = vadd.f32 0.0, %v5629
      %v5631 = vpop.f32.mrf.mxu0
      %5632 = vmatprep.mubr.bf16.mxu0 %v5564
      %5633 = vmatmul.mubr.bf16.gmra.mxu0 %v5516
      %v5634 = vpop.f32.mrf.mxu0
      %v5635 = vadd.f32 0.0, %v5634
      %v5636 = vpop.f32.mrf.mxu0
      %v5637 = vpop.f32.mrf.mxu0
      %v5638 = vadd.f32 0.0, %v5637
      %v5639 = vpop.f32.mrf.mxu0
      %5640 = vmatprep.mubr.bf16.mxu0 %v5567
      %5641 = vmatmul.mubr.bf16.gmra.mxu0 %v5518
      %v5642 = vpop.f32.mrf.mxu0
      %v5643 = vadd.f32 0.0, %v5642
      %v5644 = vpop.f32.mrf.mxu0
      %v5645 = vpop.f32.mrf.mxu0
      %v5646 = vadd.f32 0.0, %v5645
      %v5647 = vpop.f32.mrf.mxu0
      %5648 = vmatprep.mubr.bf16.mxu0 %v5570
      %5649 = vmatmul.mubr.bf16.gmra.mxu0 %v5520
      %v5650 = vpop.f32.mrf.mxu0
      %v5651 = vadd.f32 0.0, %v5650
      %v5652 = vpop.f32.mrf.mxu0
      %v5653 = vpop.f32.mrf.mxu0
      %v5654 = vadd.f32 0.0, %v5653
      %v5655 = vpop.f32.mrf.mxu0
      %5656 = vmatprep.mubr.bf16.mxu0 %v5573
      %5657 = vmatmul.mubr.bf16.gmra.mxu0 %v5522
      %v5658 = vpop.f32.mrf.mxu0
      %v5659 = vadd.f32 0.0, %v5658
      %v5660 = vpop.f32.mrf.mxu0
      %v5661 = vpop.f32.mrf.mxu0
      %v5662 = vadd.f32 0.0, %v5661
      %v5663 = vpop.f32.mrf.mxu0
      %5664 = vmatprep.mubr.bf16.mxu0 %v5576
      %5665 = vmatmul.mubr.bf16.gmra.mxu0 %v5524
      %v5666 = vpop.f32.mrf.mxu0
      %v5667 = vadd.f32 0.0, %v5666
      %v5668 = vpop.f32.mrf.mxu0
      %v5669 = vpop.f32.mrf.mxu0
      %v5670 = vadd.f32 0.0, %v5669
      %v5671 = vpop.f32.mrf.mxu0
      %5672 = vmatprep.mubr.bf16.mxu0 %v5579
      %5673 = vmatmul.mubr.bf16.gmra.mxu0 %v5526
      %v5674 = vpop.f32.mrf.mxu0
      %v5675 = vadd.f32 0.0, %v5674
      %v5676 = vpop.f32.mrf.mxu0
      %v5677 = vpop.f32.mrf.mxu0
      %v5678 = vadd.f32 0.0, %v5677
      %v5679 = vpop.f32.mrf.mxu0
      %5680 = vmatprep.mubr.bf16.mxu0 %v5582
      %5681 = vmatmul.mubr.bf16.gmra.mxu0 %v5528
      %v5682 = vpop.f32.mrf.mxu0
      %v5683 = vadd.f32 0.0, %v5682
      %v5684 = vpop.f32.mrf.mxu0
      %v5685 = vpop.f32.mrf.mxu0
      %v5686 = vadd.f32 0.0, %v5685
      %v5687 = vpop.f32.mrf.mxu0
      %5688 = vdwg.mxu0
      %s5689 = scalar_lea.vmem %s19, 16
      %v5690 = vld [vmem:[%s5689] sm:$0xf]
      %v5691 = vld [vmem:[%s5689 + $0x4] sm:$0xf]
      %v5692 = vld [vmem:[%s5689 + $0x8] sm:$0xf]
      %v5693 = vld [vmem:[%s5689 + $0xc] sm:$0xf]
      %v5694 = vpack.c.bf16 %v5622, %v5619
      %v5695 = vpack.c.bf16 %v5630, %v5627
      %v5696 = vpack.c.bf16 %v5638, %v5635
      %v5697 = vpack.c.bf16 %v5646, %v5643
      %v5698 = vpack.c.bf16 %v5654, %v5651
      %v5699 = vpack.c.bf16 %v5662, %v5659
      %v5700 = vpack.c.bf16 %v5670, %v5667
      %v5701 = vpack.c.bf16 %v5678, %v5675
      %v5702 = vpack.c.bf16 %v5686, %v5683
      %s5703 = scalar_lea.vmem %s21, 1
      %v5704 = vld [vmem:[%s5703] sm:$0x1]
      %v5706 = vlaneseq
      %v5707 = vshrl.u32 %v5706, 7
      %v5708 = vsub.s32 0, %v5707
      %v5709 = vrot.slane %v5704, %v5708
      %v5715 = vunpack.c.l.b16 %v5690
      %v5716 = vunpack.c.l.b16 %v5691
      %v5717 = vunpack.c.l.b16 %v5692
      %v5718 = vunpack.c.l.b16 %v5693
      %v5719 = vpack.c.b16 %v5716, %v5715
      %v5720 = vpack.c.b16 %v5718, %v5717
      %v5724 = vsel %vm1557, %v5694, 0
      %v5727 = vsel %vm1557, %v5695, 0
      %v5730 = vsel %vm1557, %v5696, 0
      %v5733 = vsel %vm1557, %v5697, 0
      %v5736 = vsel %vm1557, %v5698, 0
      %v5739 = vsel %vm1557, %v5699, 0
      %v5742 = vsel %vm1557, %v5700, 0
      %v5745 = vsel %vm1557, %v5701, 0
      %v5748 = vsel %vm1557, %v5702, 0
      %5750 = vmatprep.subr.bf16.mxu0 0
      %5751 = vmatpush1.bf16.msra.mxu0 0
      %5752 = vmatprep.subr.bf16.mxu0 0
      %5753 = vmatpush1.bf16.msra.mxu0 0
      %5754 = vmatprep.subr.bf16.mxu0 0
      %5755 = vmatpush1.bf16.msra.mxu0 0
      %5756 = vmatprep.subr.bf16.mxu0 0
      %5757 = vmatpush1.bf16.msra.mxu0 0
      %5758 = vmatprep.subr.bf16.mxu0 0
      %5759 = vmatpush1.bf16.msra.mxu0 0
      %5760 = vmatprep.subr.bf16.mxu0 0
      %5761 = vmatpush1.bf16.msra.mxu0 0
      %5762 = vmatprep.subr.bf16.mxu0 0
      %5763 = vmatpush1.bf16.msra.mxu0 %v5720
      %5764 = vmatprep.subr.bf16.mxu0 0
      %5765 = vmatpush1.bf16.msra.mxu0 %v5719
      %5766 = vmatprep.subr.bf16.mxu0 0
      %5767 = vmatpush2.bf16.msra.mxu0 0
      %5768 = vmatprep.subr.bf16.mxu0 0
      %5769 = vmatpush2.bf16.msra.mxu0 0
      %5770 = vmatprep.subr.bf16.mxu0 0
      %5771 = vmatpush2.bf16.msra.mxu0 0
      %5772 = vmatprep.subr.bf16.mxu0 0
      %5773 = vmatpush2.bf16.msra.mxu0 0
      %5774 = vmatprep.subr.bf16.mxu0 0
      %5775 = vmatpush2.bf16.msra.mxu0 0
      %5776 = vmatprep.subr.bf16.mxu0 0
      %5777 = vmatpush2.bf16.msra.mxu0 0
      %5778 = vmatprep.subr.bf16.mxu0 0
      %5779 = vmatpush2.bf16.msra.mxu0 0
      %5780 = vmatprep.subr.bf16.mxu0 0
      %5781 = vmatpush2.bf16.msra.mxu0 0
      %5782 = vmatprep.mubr.bf16.mxu0 0
      %5783 = vmatmul.mubr.bf16.gmra.mxu0 %v5724
      %v5784 = vpop.f32.mrf.mxu0
      %v5785 = vadd.f32 %v5709, %v5784
      %v5786 = vpop.f32.mrf.mxu0
      %v5787 = vpop.f32.mrf.mxu0
      %v5788 = vadd.f32 %v5709, %v5787
      %v5789 = vpop.f32.mrf.mxu0
      %5790 = vmatprep.mubr.bf16.mxu0 0
      %5791 = vmatmul.mubr.bf16.gmra.mxu0 %v5727
      %v5792 = vpop.f32.mrf.mxu0
      %v5793 = vadd.f32 %v5709, %v5792
      %v5794 = vpop.f32.mrf.mxu0
      %v5795 = vpop.f32.mrf.mxu0
      %v5796 = vadd.f32 %v5709, %v5795
      %v5797 = vpop.f32.mrf.mxu0
      %5798 = vmatprep.mubr.bf16.mxu0 0
      %5799 = vmatmul.mubr.bf16.gmra.mxu0 %v5730
      %v5800 = vpop.f32.mrf.mxu0
      %v5801 = vadd.f32 %v5709, %v5800
      %v5802 = vpop.f32.mrf.mxu0
      %v5803 = vpop.f32.mrf.mxu0
      %v5804 = vadd.f32 %v5709, %v5803
      %v5805 = vpop.f32.mrf.mxu0
      %5806 = vmatprep.mubr.bf16.mxu0 0
      %5807 = vmatmul.mubr.bf16.gmra.mxu0 %v5733
      %v5808 = vpop.f32.mrf.mxu0
      %v5809 = vadd.f32 %v5709, %v5808
      %v5810 = vpop.f32.mrf.mxu0
      %v5811 = vpop.f32.mrf.mxu0
      %v5812 = vadd.f32 %v5709, %v5811
      %v5813 = vpop.f32.mrf.mxu0
      %5814 = vmatprep.mubr.bf16.mxu0 0
      %5815 = vmatmul.mubr.bf16.gmra.mxu0 %v5736
      %v5816 = vpop.f32.mrf.mxu0
      %v5817 = vadd.f32 %v5709, %v5816
      %v5818 = vpop.f32.mrf.mxu0
      %v5819 = vpop.f32.mrf.mxu0
      %v5820 = vadd.f32 %v5709, %v5819
      %v5821 = vpop.f32.mrf.mxu0
      %5822 = vmatprep.mubr.bf16.mxu0 0
      %5823 = vmatmul.mubr.bf16.gmra.mxu0 %v5739
      %v5824 = vpop.f32.mrf.mxu0
      %v5825 = vadd.f32 %v5709, %v5824
      %v5826 = vpop.f32.mrf.mxu0
      %v5827 = vpop.f32.mrf.mxu0
      %v5828 = vadd.f32 %v5709, %v5827
      %v5829 = vpop.f32.mrf.mxu0
      %5830 = vmatprep.mubr.bf16.mxu0 0
      %5831 = vmatmul.mubr.bf16.gmra.mxu0 %v5742
      %v5832 = vpop.f32.mrf.mxu0
      %v5833 = vadd.f32 %v5709, %v5832
      %v5834 = vpop.f32.mrf.mxu0
      %v5835 = vpop.f32.mrf.mxu0
      %v5836 = vadd.f32 %v5709, %v5835
      %v5837 = vpop.f32.mrf.mxu0
      %5838 = vmatprep.mubr.bf16.mxu0 0
      %5839 = vmatmul.mubr.bf16.gmra.mxu0 %v5745
      %v5840 = vpop.f32.mrf.mxu0
      %v5841 = vadd.f32 %v5709, %v5840
      %v5842 = vpop.f32.mrf.mxu0
      %v5843 = vpop.f32.mrf.mxu0
      %v5844 = vadd.f32 %v5709, %v5843
      %v5845 = vpop.f32.mrf.mxu0
      %5846 = vmatprep.mubr.bf16.mxu0 0
      %5847 = vmatmul.mubr.bf16.gmra.mxu0 %v5748
      %v5848 = vpop.f32.mrf.mxu0
      %v5849 = vadd.f32 %v5709, %v5848
      %v5850 = vpop.f32.mrf.mxu0
      %v5851 = vpop.f32.mrf.mxu0
      %v5852 = vadd.f32 %v5709, %v5851
      %v5853 = vpop.f32.mrf.mxu0
      %5854 = vdwg.mxu0
      %v5855 = vadd.f32 %v4737, %v5785
      %v5856 = vadd.f32 %v4738, %v5788
      %v5857 = vadd.f32 %v4739, %v5793
      %v5858 = vadd.f32 %v4740, %v5796
      %v5859 = vadd.f32 %v4741, %v5801
      %v5860 = vadd.f32 %v4742, %v5804
      %v5861 = vadd.f32 %v4743, %v5809
      %v5862 = vadd.f32 %v4744, %v5812
      %v5863 = vadd.f32 %v4745, %v5817
      %v5864 = vadd.f32 %v4746, %v5820
      %v5865 = vadd.f32 %v4747, %v5825
      %v5866 = vadd.f32 %v4748, %v5828
      %v5867 = vadd.f32 %v4749, %v5833
      %v5868 = vadd.f32 %v4750, %v5836
      %v5869 = vadd.f32 %v4751, %v5841
      %v5870 = vadd.f32 %v4752, %v5844
      %v5871 = vadd.f32 %v4753, %v5849
      %v5872 = vadd.f32 %v4754, %v5852
      %s5873 = scalar_lea.vmem %s23, 1
      %v5874 = vld [vmem:[%s5873] sm:$0x1]
      %s5875 = scalar_lea.vmem %s25, 1
      %v5876 = vld [vmem:[%s5875] sm:$0x1]
      %v5877 = vsel %vm1557, %v5855, 0.0
      %5878 = vadd.xlane.f32.xlu0 %v5877
      %v5879 = vpop.xlane.xlu0 %5878
      %v5880 = vsel %vm1557, %v5856, 0.0
      %5881 = vadd.xlane.f32.xlu0 %v5880
      %v5882 = vpop.xlane.xlu0 %5881
      %v5883 = vsel %vm1557, %v5857, 0.0
      %5884 = vadd.xlane.f32.xlu0 %v5883
      %v5885 = vpop.xlane.xlu0 %5884
      %v5886 = vsel %vm1557, %v5858, 0.0
      %5887 = vadd.xlane.f32.xlu0 %v5886
      %v5888 = vpop.xlane.xlu0 %5887
      %v5889 = vsel %vm1557, %v5859, 0.0
      %5890 = vadd.xlane.f32.xlu0 %v5889
      %v5891 = vpop.xlane.xlu0 %5890
      %v5892 = vsel %vm1557, %v5860, 0.0
      %5893 = vadd.xlane.f32.xlu0 %v5892
      %v5894 = vpop.xlane.xlu0 %5893
      %v5895 = vsel %vm1557, %v5861, 0.0
      %5896 = vadd.xlane.f32.xlu0 %v5895
      %v5897 = vpop.xlane.xlu0 %5896
      %v5898 = vsel %vm1557, %v5862, 0.0
      %5899 = vadd.xlane.f32.xlu0 %v5898
      %v5900 = vpop.xlane.xlu0 %5899
      %v5901 = vsel %vm1557, %v5863, 0.0
      %5902 = vadd.xlane.f32.xlu0 %v5901
      %v5903 = vpop.xlane.xlu0 %5902
      %v5904 = vsel %vm1557, %v5864, 0.0
      %5905 = vadd.xlane.f32.xlu0 %v5904
      %v5906 = vpop.xlane.xlu0 %5905
      %v5907 = vsel %vm1557, %v5865, 0.0
      %5908 = vadd.xlane.f32.xlu0 %v5907
      %v5909 = vpop.xlane.xlu0 %5908
      %v5910 = vsel %vm1557, %v5866, 0.0
      %5911 = vadd.xlane.f32.xlu0 %v5910
      %v5912 = vpop.xlane.xlu0 %5911
      %v5913 = vsel %vm1557, %v5867, 0.0
      %5914 = vadd.xlane.f32.xlu0 %v5913
      %v5915 = vpop.xlane.xlu0 %5914
      %v5916 = vsel %vm1557, %v5868, 0.0
      %5917 = vadd.xlane.f32.xlu0 %v5916
      %v5918 = vpop.xlane.xlu0 %5917
      %v5919 = vsel %vm1557, %v5869, 0.0
      %5920 = vadd.xlane.f32.xlu0 %v5919
      %v5921 = vpop.xlane.xlu0 %5920
      %v5922 = vsel %vm1557, %v5870, 0.0
      %5923 = vadd.xlane.f32.xlu0 %v5922
      %v5924 = vpop.xlane.xlu0 %5923
      %v5925 = vsel %vm1557, %v5871, 0.0
      %5926 = vadd.xlane.f32.xlu0 %v5925
      %v5927 = vpop.xlane.xlu0 %5926
      %v5928 = vsel %vm1557, %v5872, 0.0
      %5929 = vadd.xlane.f32.xlu0 %v5928
      %v5930 = vpop.xlane.xlu0 %5929
      %v5931 = vmul.f32 %v5879, %v2697
      %v5932 = vmul.f32 %v5882, %v2697
      %v5933 = vmul.f32 %v5885, %v2697
      %v5934 = vmul.f32 %v5888, %v2697
      %v5935 = vmul.f32 %v5891, %v2697
      %v5936 = vmul.f32 %v5894, %v2697
      %v5937 = vmul.f32 %v5897, %v2697
      %v5938 = vmul.f32 %v5900, %v2697
      %v5939 = vmul.f32 %v5903, %v2697
      %v5940 = vmul.f32 %v5906, %v2697
      %v5941 = vmul.f32 %v5909, %v2697
      %v5942 = vmul.f32 %v5912, %v2697
      %v5943 = vmul.f32 %v5915, %v2697
      %v5944 = vmul.f32 %v5918, %v2697
      %v5945 = vmul.f32 %v5921, %v2697
      %v5946 = vmul.f32 %v5924, %v2697
      %v5947 = vmul.f32 %v5927, %v2697
      %v5948 = vmul.f32 %v5930, %v2697
      %v5949 = vsub.f32 %v5855, %v5931
      %v5950 = vsub.f32 %v5856, %v5932
      %v5951 = vsub.f32 %v5857, %v5933
      %v5952 = vsub.f32 %v5858, %v5934
      %v5953 = vsub.f32 %v5859, %v5935
      %v5954 = vsub.f32 %v5860, %v5936
      %v5955 = vsub.f32 %v5861, %v5937
      %v5956 = vsub.f32 %v5862, %v5938
      %v5957 = vsub.f32 %v5863, %v5939
      %v5958 = vsub.f32 %v5864, %v5940
      %v5959 = vsub.f32 %v5865, %v5941
      %v5960 = vsub.f32 %v5866, %v5942
      %v5961 = vsub.f32 %v5867, %v5943
      %v5962 = vsub.f32 %v5868, %v5944
      %v5963 = vsub.f32 %v5869, %v5945
      %v5964 = vsub.f32 %v5870, %v5946
      %v5965 = vsub.f32 %v5871, %v5947
      %v5966 = vsub.f32 %v5872, %v5948
      %v5967 = vmul.f32 %v5949, %v5949
      %v5968 = vmul.f32 %v5950, %v5950
      %v5969 = vmul.f32 %v5951, %v5951
      %v5970 = vmul.f32 %v5952, %v5952
      %v5971 = vmul.f32 %v5953, %v5953
      %v5972 = vmul.f32 %v5954, %v5954
      %v5973 = vmul.f32 %v5955, %v5955
      %v5974 = vmul.f32 %v5956, %v5956
      %v5975 = vmul.f32 %v5957, %v5957
      %v5976 = vmul.f32 %v5958, %v5958
      %v5977 = vmul.f32 %v5959, %v5959
      %v5978 = vmul.f32 %v5960, %v5960
      %v5979 = vmul.f32 %v5961, %v5961
      %v5980 = vmul.f32 %v5962, %v5962
      %v5981 = vmul.f32 %v5963, %v5963
      %v5982 = vmul.f32 %v5964, %v5964
      %v5983 = vmul.f32 %v5965, %v5965
      %v5984 = vmul.f32 %v5966, %v5966
      %v5985 = vsel %vm1557, %v5967, 0.0
      %5986 = vadd.xlane.f32.xlu0 %v5985
      %v5987 = vpop.xlane.xlu0 %5986
      %v5988 = vsel %vm1557, %v5968, 0.0
      %5989 = vadd.xlane.f32.xlu0 %v5988
      %v5990 = vpop.xlane.xlu0 %5989
      %v5991 = vsel %vm1557, %v5969, 0.0
      %5992 = vadd.xlane.f32.xlu0 %v5991
      %v5993 = vpop.xlane.xlu0 %5992
      %v5994 = vsel %vm1557, %v5970, 0.0
      %5995 = vadd.xlane.f32.xlu0 %v5994
      %v5996 = vpop.xlane.xlu0 %5995
      %v5997 = vsel %vm1557, %v5971, 0.0
      %5998 = vadd.xlane.f32.xlu0 %v5997
      %v5999 = vpop.xlane.xlu0 %5998
      %v6000 = vsel %vm1557, %v5972, 0.0
      %6001 = vadd.xlane.f32.xlu0 %v6000
      %v6002 = vpop.xlane.xlu0 %6001
      %v6003 = vsel %vm1557, %v5973, 0.0
      %6004 = vadd.xlane.f32.xlu0 %v6003
      %v6005 = vpop.xlane.xlu0 %6004
      %v6006 = vsel %vm1557, %v5974, 0.0
      %6007 = vadd.xlane.f32.xlu0 %v6006
      %v6008 = vpop.xlane.xlu0 %6007
      %v6009 = vsel %vm1557, %v5975, 0.0
      %6010 = vadd.xlane.f32.xlu0 %v6009
      %v6011 = vpop.xlane.xlu0 %6010
      %v6012 = vsel %vm1557, %v5976, 0.0
      %6013 = vadd.xlane.f32.xlu0 %v6012
      %v6014 = vpop.xlane.xlu0 %6013
      %v6015 = vsel %vm1557, %v5977, 0.0
      %6016 = vadd.xlane.f32.xlu0 %v6015
      %v6017 = vpop.xlane.xlu0 %6016
      %v6018 = vsel %vm1557, %v5978, 0.0
      %6019 = vadd.xlane.f32.xlu0 %v6018
      %v6020 = vpop.xlane.xlu0 %6019
      %v6021 = vsel %vm1557, %v5979, 0.0
      %6022 = vadd.xlane.f32.xlu0 %v6021
      %v6023 = vpop.xlane.xlu0 %6022
      %v6024 = vsel %vm1557, %v5980, 0.0
      %6025 = vadd.xlane.f32.xlu0 %v6024
      %v6026 = vpop.xlane.xlu0 %6025
      %v6027 = vsel %vm1557, %v5981, 0.0
      %6028 = vadd.xlane.f32.xlu0 %v6027
      %v6029 = vpop.xlane.xlu0 %6028
      %v6030 = vsel %vm1557, %v5982, 0.0
      %6031 = vadd.xlane.f32.xlu0 %v6030
      %v6032 = vpop.xlane.xlu0 %6031
      %v6033 = vsel %vm1557, %v5983, 0.0
      %6034 = vadd.xlane.f32.xlu0 %v6033
      %v6035 = vpop.xlane.xlu0 %6034
      %v6036 = vsel %vm1557, %v5984, 0.0
      %6037 = vadd.xlane.f32.xlu0 %v6036
      %v6038 = vpop.xlane.xlu0 %6037
      %v6039 = vmul.f32 %v5987, %v2697
      %v6040 = vmul.f32 %v5990, %v2697
      %v6041 = vmul.f32 %v5993, %v2697
      %v6042 = vmul.f32 %v5996, %v2697
      %v6043 = vmul.f32 %v5999, %v2697
      %v6044 = vmul.f32 %v6002, %v2697
      %v6045 = vmul.f32 %v6005, %v2697
      %v6046 = vmul.f32 %v6008, %v2697
      %v6047 = vmul.f32 %v6011, %v2697
      %v6048 = vmul.f32 %v6014, %v2697
      %v6049 = vmul.f32 %v6017, %v2697
      %v6050 = vmul.f32 %v6020, %v2697
      %v6051 = vmul.f32 %v6023, %v2697
      %v6052 = vmul.f32 %v6026, %v2697
      %v6053 = vmul.f32 %v6029, %v2697
      %v6054 = vmul.f32 %v6032, %v2697
      %v6055 = vmul.f32 %v6035, %v2697
      %v6056 = vmul.f32 %v6038, %v2697
      %v6057 = vadd.f32 %v6039, 1e-12
      %v6058 = vadd.f32 %v6040, 1e-12
      %v6059 = vadd.f32 %v6041, 1e-12
      %v6060 = vadd.f32 %v6042, 1e-12
      %v6061 = vadd.f32 %v6043, 1e-12
      %v6062 = vadd.f32 %v6044, 1e-12
      %v6063 = vadd.f32 %v6045, 1e-12
      %v6064 = vadd.f32 %v6046, 1e-12
      %v6065 = vadd.f32 %v6047, 1e-12
      %v6066 = vadd.f32 %v6048, 1e-12
      %v6067 = vadd.f32 %v6049, 1e-12
      %v6068 = vadd.f32 %v6050, 1e-12
      %v6069 = vadd.f32 %v6051, 1e-12
      %v6070 = vadd.f32 %v6052, 1e-12
      %v6071 = vadd.f32 %v6053, 1e-12
      %v6072 = vadd.f32 %v6054, 1e-12
      %v6073 = vadd.f32 %v6055, 1e-12
      %v6074 = vadd.f32 %v6056, 1e-12
      %v6075 = vrsqrt.pop %v6057
      %v6076 = vrsqrt.pop %v6058
      %v6077 = vrsqrt.pop %v6059
      %v6078 = vrsqrt.pop %v6060
      %v6079 = vrsqrt.pop %v6061
      %v6080 = vrsqrt.pop %v6062
      %v6081 = vrsqrt.pop %v6063
      %v6082 = vrsqrt.pop %v6064
      %v6083 = vrsqrt.pop %v6065
      %v6084 = vrsqrt.pop %v6066
      %v6085 = vrsqrt.pop %v6067
      %v6086 = vrsqrt.pop %v6068
      %v6087 = vrsqrt.pop %v6069
      %v6088 = vrsqrt.pop %v6070
      %v6089 = vrsqrt.pop %v6071
      %v6090 = vrsqrt.pop %v6072
      %v6091 = vrsqrt.pop %v6073
      %v6092 = vrsqrt.pop %v6074
      %v6093 = vmul.f32 %v5949, %v6075
      %v6094 = vmul.f32 %v5950, %v6076
      %v6095 = vmul.f32 %v5951, %v6077
      %v6096 = vmul.f32 %v5952, %v6078
      %v6097 = vmul.f32 %v5953, %v6079
      %v6098 = vmul.f32 %v5954, %v6080
      %v6099 = vmul.f32 %v5955, %v6081
      %v6100 = vmul.f32 %v5956, %v6082
      %v6101 = vmul.f32 %v5957, %v6083
      %v6102 = vmul.f32 %v5958, %v6084
      %v6103 = vmul.f32 %v5959, %v6085
      %v6104 = vmul.f32 %v5960, %v6086
      %v6105 = vmul.f32 %v5961, %v6087
      %v6106 = vmul.f32 %v5962, %v6088
      %v6107 = vmul.f32 %v5963, %v6089
      %v6108 = vmul.f32 %v5964, %v6090
      %v6109 = vmul.f32 %v5965, %v6091
      %v6110 = vmul.f32 %v5966, %v6092
      %v6112 = vlaneseq
      %v6113 = vshrl.u32 %v6112, 7
      %v6114 = vsub.s32 0, %v6113
      %v6115 = vrot.slane %v5874, %v6114
      %v6117 = vmul.f32 %v6093, %v6115
      %v6118 = vmul.f32 %v6094, %v6115
      %v6119 = vmul.f32 %v6095, %v6115
      %v6120 = vmul.f32 %v6096, %v6115
      %v6121 = vmul.f32 %v6097, %v6115
      %v6122 = vmul.f32 %v6098, %v6115
      %v6123 = vmul.f32 %v6099, %v6115
      %v6124 = vmul.f32 %v6100, %v6115
      %v6125 = vmul.f32 %v6101, %v6115
      %v6126 = vmul.f32 %v6102, %v6115
      %v6127 = vmul.f32 %v6103, %v6115
      %v6128 = vmul.f32 %v6104, %v6115
      %v6129 = vmul.f32 %v6105, %v6115
      %v6130 = vmul.f32 %v6106, %v6115
      %v6131 = vmul.f32 %v6107, %v6115
      %v6132 = vmul.f32 %v6108, %v6115
      %v6133 = vmul.f32 %v6109, %v6115
      %v6134 = vmul.f32 %v6110, %v6115
      %v6136 = vlaneseq
      %v6137 = vshrl.u32 %v6136, 7
      %v6138 = vsub.s32 0, %v6137
      %v6139 = vrot.slane %v5876, %v6138
      %v6141 = vadd.f32 %v6117, %v6139
      %v6142 = vadd.f32 %v6118, %v6139
      %v6143 = vadd.f32 %v6119, %v6139
      %v6144 = vadd.f32 %v6120, %v6139
      %v6145 = vadd.f32 %v6121, %v6139
      %v6146 = vadd.f32 %v6122, %v6139
      %v6147 = vadd.f32 %v6123, %v6139
      %v6148 = vadd.f32 %v6124, %v6139
      %v6149 = vadd.f32 %v6125, %v6139
      %v6150 = vadd.f32 %v6126, %v6139
      %v6151 = vadd.f32 %v6127, %v6139
      %v6152 = vadd.f32 %v6128, %v6139
      %v6153 = vadd.f32 %v6129, %v6139
      %v6154 = vadd.f32 %v6130, %v6139
      %v6155 = vadd.f32 %v6131, %v6139
      %v6156 = vadd.f32 %v6132, %v6139
      %v6157 = vadd.f32 %v6133, %v6139
      %v6158 = vadd.f32 %v6134, %v6139
      %s6159 = scalar_lea.vmem %s27, 64
      %v6160 = vld [vmem:[%s6159] sm:$0xff]
      %v6161 = vld [vmem:[%s6159 + $0x8] sm:$0xff]
      %v6162 = vld [vmem:[%s6159 + $0x10] sm:$0xff]
      %v6163 = vld [vmem:[%s6159 + $0x18] sm:$0xff]
      %v6164 = vld [vmem:[%s6159 + $0x20] sm:$0xff]
      %v6165 = vld [vmem:[%s6159 + $0x28] sm:$0xff]
      %v6166 = vld [vmem:[%s6159 + $0x30] sm:$0xff]
      %v6167 = vld [vmem:[%s6159 + $0x38] sm:$0xff]
      %v6168 = vpack.c.bf16 %v6142, %v6141
      %v6169 = vpack.c.bf16 %v6144, %v6143
      %v6170 = vpack.c.bf16 %v6146, %v6145
      %v6171 = vpack.c.bf16 %v6148, %v6147
      %v6172 = vpack.c.bf16 %v6150, %v6149
      %v6173 = vpack.c.bf16 %v6152, %v6151
      %v6174 = vpack.c.bf16 %v6154, %v6153
      %v6175 = vpack.c.bf16 %v6156, %v6155
      %v6176 = vpack.c.bf16 %v6158, %v6157
      %s6177 = scalar_lea.vmem %s29, 4
      %v6178 = vld [vmem:[%s6177] sm:$0xf]
      %v6180 = vlaneseq
      %v6181 = vshrl.u32 %v6180, 7
      %v6182 = vsub.s32 0, %v6181
      %v6183 = vrot.slane %v6178, %v6182
      %v6184 = vlaneseq
      %v6185 = vshrl.u32 %v6184, 7
      %v6186 = vsub.s32 1, %v6185
      %v6187 = vrot.slane %v6178, %v6186
      %v6188 = vlaneseq
      %v6189 = vshrl.u32 %v6188, 7
      %v6190 = vsub.s32 2, %v6189
      %v6191 = vrot.slane %v6178, %v6190
      %v6192 = vlaneseq
      %v6193 = vshrl.u32 %v6192, 7
      %v6194 = vsub.s32 3, %v6193
      %v6195 = vrot.slane %v6178, %v6194
      %v6208 = vunpack.c.l.b16 %v6160
      %v6209 = vunpack.c.h.b16 %v6160
      %v6210 = vunpack.c.l.b16 %v6161
      %v6211 = vunpack.c.h.b16 %v6161
      %v6212 = vunpack.c.l.b16 %v6162
      %v6213 = vunpack.c.h.b16 %v6162
      %v6214 = vunpack.c.l.b16 %v6163
      %v6215 = vunpack.c.h.b16 %v6163
      %v6216 = vunpack.c.l.b16 %v6164
      %v6217 = vunpack.c.h.b16 %v6164
      %v6218 = vunpack.c.l.b16 %v6165
      %v6219 = vunpack.c.h.b16 %v6165
      %v6220 = vunpack.c.l.b16 %v6166
      %v6221 = vunpack.c.h.b16 %v6166
      %v6222 = vunpack.c.l.b16 %v6167
      %v6223 = vunpack.c.h.b16 %v6167
      %v6224 = vpack.c.b16 %v6212, %v6208
      %v6225 = vpack.c.b16 %v6213, %v6209
      %v6226 = vpack.c.b16 %v6214, %v6210
      %v6227 = vpack.c.b16 %v6215, %v6211
      %v6228 = vpack.c.b16 %v6220, %v6216
      %v6229 = vpack.c.b16 %v6221, %v6217
      %v6230 = vpack.c.b16 %v6222, %v6218
      %v6231 = vpack.c.b16 %v6223, %v6219
      %v6241 = vsel %vm1557, %v6168, 0
      %v6244 = vsel %vm1557, %v6169, 0
      %v6247 = vsel %vm1557, %v6170, 0
      %v6250 = vsel %vm1557, %v6171, 0
      %v6253 = vsel %vm1557, %v6172, 0
      %v6256 = vsel %vm1557, %v6173, 0
      %v6259 = vsel %vm1557, %v6174, 0
      %v6262 = vsel %vm1557, %v6175, 0
      %v6265 = vsel %vm1557, %v6176, 0
      %6267 = vmatprep.subr.bf16.mxu0 0
      %6268 = vmatpush1.bf16.msra.mxu0 0
      %6269 = vmatprep.subr.bf16.mxu0 0
      %6270 = vmatpush1.bf16.msra.mxu0 0
      %6271 = vmatprep.subr.bf16.mxu0 0
      %6272 = vmatpush1.bf16.msra.mxu0 0
      %6273 = vmatprep.subr.bf16.mxu0 0
      %6274 = vmatpush1.bf16.msra.mxu0 0
      %6275 = vmatprep.subr.bf16.mxu0 0
      %6276 = vmatpush1.bf16.msra.mxu0 0
      %6277 = vmatprep.subr.bf16.mxu0 0
      %6278 = vmatpush1.bf16.msra.mxu0 0
      %6279 = vmatprep.subr.bf16.mxu0 %v6229
      %6280 = vmatpush1.bf16.msra.mxu0 %v6228
      %6281 = vmatprep.subr.bf16.mxu0 %v6225
      %6282 = vmatpush1.bf16.msra.mxu0 %v6224
      %6283 = vmatprep.subr.bf16.mxu0 0
      %6284 = vmatpush2.bf16.msra.mxu0 0
      %6285 = vmatprep.subr.bf16.mxu0 0
      %6286 = vmatpush2.bf16.msra.mxu0 0
      %6287 = vmatprep.subr.bf16.mxu0 0
      %6288 = vmatpush2.bf16.msra.mxu0 0
      %6289 = vmatprep.subr.bf16.mxu0 0
      %6290 = vmatpush2.bf16.msra.mxu0 0
      %6291 = vmatprep.subr.bf16.mxu0 0
      %6292 = vmatpush2.bf16.msra.mxu0 0
      %6293 = vmatprep.subr.bf16.mxu0 0
      %6294 = vmatpush2.bf16.msra.mxu0 0
      %6295 = vmatprep.subr.bf16.mxu0 0
      %6296 = vmatpush2.bf16.msra.mxu0 0
      %6297 = vmatprep.subr.bf16.mxu0 0
      %6298 = vmatpush2.bf16.msra.mxu0 0
      %6299 = vmatprep.mubr.bf16.mxu0 0
      %6300 = vmatmul.mubr.bf16.gmra.mxu0 %v6241
      %v6301 = vpop.f32.mrf.mxu0
      %v6302 = vadd.f32 %v6183, %v6301
      %v6303 = vpop.f32.mrf.mxu0
      %v6304 = vadd.f32 %v6187, %v6303
      %v6305 = vpop.f32.mrf.mxu0
      %v6306 = vadd.f32 %v6183, %v6305
      %v6307 = vpop.f32.mrf.mxu0
      %v6308 = vadd.f32 %v6187, %v6307
      %6309 = vmatprep.mubr.bf16.mxu0 0
      %6310 = vmatmul.mubr.bf16.gmra.mxu0 %v6244
      %v6311 = vpop.f32.mrf.mxu0
      %v6312 = vadd.f32 %v6183, %v6311
      %v6313 = vpop.f32.mrf.mxu0
      %v6314 = vadd.f32 %v6187, %v6313
      %v6315 = vpop.f32.mrf.mxu0
      %v6316 = vadd.f32 %v6183, %v6315
      %v6317 = vpop.f32.mrf.mxu0
      %v6318 = vadd.f32 %v6187, %v6317
      %6319 = vmatprep.mubr.bf16.mxu0 0
      %6320 = vmatmul.mubr.bf16.gmra.mxu0 %v6247
      %v6321 = vpop.f32.mrf.mxu0
      %v6322 = vadd.f32 %v6183, %v6321
      %v6323 = vpop.f32.mrf.mxu0
      %v6324 = vadd.f32 %v6187, %v6323
      %v6325 = vpop.f32.mrf.mxu0
      %v6326 = vadd.f32 %v6183, %v6325
      %v6327 = vpop.f32.mrf.mxu0
      %v6328 = vadd.f32 %v6187, %v6327
      %6329 = vmatprep.mubr.bf16.mxu0 0
      %6330 = vmatmul.mubr.bf16.gmra.mxu0 %v6250
      %v6331 = vpop.f32.mrf.mxu0
      %v6332 = vadd.f32 %v6183, %v6331
      %v6333 = vpop.f32.mrf.mxu0
      %v6334 = vadd.f32 %v6187, %v6333
      %v6335 = vpop.f32.mrf.mxu0
      %v6336 = vadd.f32 %v6183, %v6335
      %v6337 = vpop.f32.mrf.mxu0
      %v6338 = vadd.f32 %v6187, %v6337
      %6339 = vmatprep.mubr.bf16.mxu0 0
      %6340 = vmatmul.mubr.bf16.gmra.mxu0 %v6253
      %v6341 = vpop.f32.mrf.mxu0
      %v6342 = vadd.f32 %v6183, %v6341
      %v6343 = vpop.f32.mrf.mxu0
      %v6344 = vadd.f32 %v6187, %v6343
      %v6345 = vpop.f32.mrf.mxu0
      %v6346 = vadd.f32 %v6183, %v6345
      %v6347 = vpop.f32.mrf.mxu0
      %v6348 = vadd.f32 %v6187, %v6347
      %6349 = vmatprep.mubr.bf16.mxu0 0
      %6350 = vmatmul.mubr.bf16.gmra.mxu0 %v6256
      %v6351 = vpop.f32.mrf.mxu0
      %v6352 = vadd.f32 %v6183, %v6351
      %v6353 = vpop.f32.mrf.mxu0
      %v6354 = vadd.f32 %v6187, %v6353
      %v6355 = vpop.f32.mrf.mxu0
      %v6356 = vadd.f32 %v6183, %v6355
      %v6357 = vpop.f32.mrf.mxu0
      %v6358 = vadd.f32 %v6187, %v6357
      %6359 = vmatprep.mubr.bf16.mxu0 0
      %6360 = vmatmul.mubr.bf16.gmra.mxu0 %v6259
      %v6361 = vpop.f32.mrf.mxu0
      %v6362 = vadd.f32 %v6183, %v6361
      %v6363 = vpop.f32.mrf.mxu0
      %v6364 = vadd.f32 %v6187, %v6363
      %v6365 = vpop.f32.mrf.mxu0
      %v6366 = vadd.f32 %v6183, %v6365
      %v6367 = vpop.f32.mrf.mxu0
      %v6368 = vadd.f32 %v6187, %v6367
      %6369 = vmatprep.mubr.bf16.mxu0 0
      %6370 = vmatmul.mubr.bf16.gmra.mxu0 %v6262
      %v6371 = vpop.f32.mrf.mxu0
      %v6372 = vadd.f32 %v6183, %v6371
      %v6373 = vpop.f32.mrf.mxu0
      %v6374 = vadd.f32 %v6187, %v6373
      %v6375 = vpop.f32.mrf.mxu0
      %v6376 = vadd.f32 %v6183, %v6375
      %v6377 = vpop.f32.mrf.mxu0
      %v6378 = vadd.f32 %v6187, %v6377
      %6379 = vmatprep.mubr.bf16.mxu0 0
      %6380 = vmatmul.mubr.bf16.gmra.mxu0 %v6265
      %v6381 = vpop.f32.mrf.mxu0
      %v6382 = vadd.f32 %v6183, %v6381
      %v6383 = vpop.f32.mrf.mxu0
      %v6384 = vadd.f32 %v6187, %v6383
      %v6385 = vpop.f32.mrf.mxu0
      %v6386 = vadd.f32 %v6183, %v6385
      %v6387 = vpop.f32.mrf.mxu0
      %v6388 = vadd.f32 %v6187, %v6387
      %6389 = vdwg.mxu0
      %6390 = vmatprep.subr.bf16.mxu0 0
      %6391 = vmatpush1.bf16.msra.mxu0 0
      %6392 = vmatprep.subr.bf16.mxu0 0
      %6393 = vmatpush1.bf16.msra.mxu0 0
      %6394 = vmatprep.subr.bf16.mxu0 0
      %6395 = vmatpush1.bf16.msra.mxu0 0
      %6396 = vmatprep.subr.bf16.mxu0 0
      %6397 = vmatpush1.bf16.msra.mxu0 0
      %6398 = vmatprep.subr.bf16.mxu0 0
      %6399 = vmatpush1.bf16.msra.mxu0 0
      %6400 = vmatprep.subr.bf16.mxu0 0
      %6401 = vmatpush1.bf16.msra.mxu0 0
      %6402 = vmatprep.subr.bf16.mxu0 %v6231
      %6403 = vmatpush1.bf16.msra.mxu0 %v6230
      %6404 = vmatprep.subr.bf16.mxu0 %v6227
      %6405 = vmatpush1.bf16.msra.mxu0 %v6226
      %6406 = vmatprep.subr.bf16.mxu0 0
      %6407 = vmatpush2.bf16.msra.mxu0 0
      %6408 = vmatprep.subr.bf16.mxu0 0
      %6409 = vmatpush2.bf16.msra.mxu0 0
      %6410 = vmatprep.subr.bf16.mxu0 0
      %6411 = vmatpush2.bf16.msra.mxu0 0
      %6412 = vmatprep.subr.bf16.mxu0 0
      %6413 = vmatpush2.bf16.msra.mxu0 0
      %6414 = vmatprep.subr.bf16.mxu0 0
      %6415 = vmatpush2.bf16.msra.mxu0 0
      %6416 = vmatprep.subr.bf16.mxu0 0
      %6417 = vmatpush2.bf16.msra.mxu0 0
      %6418 = vmatprep.subr.bf16.mxu0 0
      %6419 = vmatpush2.bf16.msra.mxu0 0
      %6420 = vmatprep.subr.bf16.mxu0 0
      %6421 = vmatpush2.bf16.msra.mxu0 0
      %6422 = vmatprep.mubr.bf16.mxu0 0
      %6423 = vmatmul.mubr.bf16.gmra.mxu0 %v6241
      %v6424 = vpop.f32.mrf.mxu0
      %v6425 = vadd.f32 %v6191, %v6424
      %v6426 = vpop.f32.mrf.mxu0
      %v6427 = vadd.f32 %v6195, %v6426
      %v6428 = vpop.f32.mrf.mxu0
      %v6429 = vadd.f32 %v6191, %v6428
      %v6430 = vpop.f32.mrf.mxu0
      %v6431 = vadd.f32 %v6195, %v6430
      %6432 = vmatprep.mubr.bf16.mxu0 0
      %6433 = vmatmul.mubr.bf16.gmra.mxu0 %v6244
      %v6434 = vpop.f32.mrf.mxu0
      %v6435 = vadd.f32 %v6191, %v6434
      %v6436 = vpop.f32.mrf.mxu0
      %v6437 = vadd.f32 %v6195, %v6436
      %v6438 = vpop.f32.mrf.mxu0
      %v6439 = vadd.f32 %v6191, %v6438
      %v6440 = vpop.f32.mrf.mxu0
      %v6441 = vadd.f32 %v6195, %v6440
      %6442 = vmatprep.mubr.bf16.mxu0 0
      %6443 = vmatmul.mubr.bf16.gmra.mxu0 %v6247
      %v6444 = vpop.f32.mrf.mxu0
      %v6445 = vadd.f32 %v6191, %v6444
      %v6446 = vpop.f32.mrf.mxu0
      %v6447 = vadd.f32 %v6195, %v6446
      %v6448 = vpop.f32.mrf.mxu0
      %v6449 = vadd.f32 %v6191, %v6448
      %v6450 = vpop.f32.mrf.mxu0
      %v6451 = vadd.f32 %v6195, %v6450
      %6452 = vmatprep.mubr.bf16.mxu0 0
      %6453 = vmatmul.mubr.bf16.gmra.mxu0 %v6250
      %v6454 = vpop.f32.mrf.mxu0
      %v6455 = vadd.f32 %v6191, %v6454
      %v6456 = vpop.f32.mrf.mxu0
      %v6457 = vadd.f32 %v6195, %v6456
      %v6458 = vpop.f32.mrf.mxu0
      %v6459 = vadd.f32 %v6191, %v6458
      %v6460 = vpop.f32.mrf.mxu0
      %v6461 = vadd.f32 %v6195, %v6460
      %6462 = vmatprep.mubr.bf16.mxu0 0
      %6463 = vmatmul.mubr.bf16.gmra.mxu0 %v6253
      %v6464 = vpop.f32.mrf.mxu0
      %v6465 = vadd.f32 %v6191, %v6464
      %v6466 = vpop.f32.mrf.mxu0
      %v6467 = vadd.f32 %v6195, %v6466
      %v6468 = vpop.f32.mrf.mxu0
      %v6469 = vadd.f32 %v6191, %v6468
      %v6470 = vpop.f32.mrf.mxu0
      %v6471 = vadd.f32 %v6195, %v6470
      %6472 = vmatprep.mubr.bf16.mxu0 0
      %6473 = vmatmul.mubr.bf16.gmra.mxu0 %v6256
      %v6474 = vpop.f32.mrf.mxu0
      %v6475 = vadd.f32 %v6191, %v6474
      %v6476 = vpop.f32.mrf.mxu0
      %v6477 = vadd.f32 %v6195, %v6476
      %v6478 = vpop.f32.mrf.mxu0
      %v6479 = vadd.f32 %v6191, %v6478
      %v6480 = vpop.f32.mrf.mxu0
      %v6481 = vadd.f32 %v6195, %v6480
      %6482 = vmatprep.mubr.bf16.mxu0 0
      %6483 = vmatmul.mubr.bf16.gmra.mxu0 %v6259
      %v6484 = vpop.f32.mrf.mxu0
      %v6485 = vadd.f32 %v6191, %v6484
      %v6486 = vpop.f32.mrf.mxu0
      %v6487 = vadd.f32 %v6195, %v6486
      %v6488 = vpop.f32.mrf.mxu0
      %v6489 = vadd.f32 %v6191, %v6488
      %v6490 = vpop.f32.mrf.mxu0
      %v6491 = vadd.f32 %v6195, %v6490
      %6492 = vmatprep.mubr.bf16.mxu0 0
      %6493 = vmatmul.mubr.bf16.gmra.mxu0 %v6262
      %v6494 = vpop.f32.mrf.mxu0
      %v6495 = vadd.f32 %v6191, %v6494
      %v6496 = vpop.f32.mrf.mxu0
      %v6497 = vadd.f32 %v6195, %v6496
      %v6498 = vpop.f32.mrf.mxu0
      %v6499 = vadd.f32 %v6191, %v6498
      %v6500 = vpop.f32.mrf.mxu0
      %v6501 = vadd.f32 %v6195, %v6500
      %6502 = vmatprep.mubr.bf16.mxu0 0
      %6503 = vmatmul.mubr.bf16.gmra.mxu0 %v6265
      %v6504 = vpop.f32.mrf.mxu0
      %v6505 = vadd.f32 %v6191, %v6504
      %v6506 = vpop.f32.mrf.mxu0
      %v6507 = vadd.f32 %v6195, %v6506
      %v6508 = vpop.f32.mrf.mxu0
      %v6509 = vadd.f32 %v6191, %v6508
      %v6510 = vpop.f32.mrf.mxu0
      %v6511 = vadd.f32 %v6195, %v6510
      %6512 = vdwg.mxu0
      %v6513 = vmul.f32 %v6302, 0.5
      %v6514 = vmul.f32 %v6304, 0.5
      %v6515 = vmul.f32 %v6425, 0.5
      %v6516 = vmul.f32 %v6427, 0.5
      %v6517 = vmul.f32 %v6306, 0.5
      %v6518 = vmul.f32 %v6308, 0.5
      %v6519 = vmul.f32 %v6429, 0.5
      %v6520 = vmul.f32 %v6431, 0.5
      %v6521 = vmul.f32 %v6312, 0.5
      %v6522 = vmul.f32 %v6314, 0.5
      %v6523 = vmul.f32 %v6435, 0.5
      %v6524 = vmul.f32 %v6437, 0.5
      %v6525 = vmul.f32 %v6316, 0.5
      %v6526 = vmul.f32 %v6318, 0.5
      %v6527 = vmul.f32 %v6439, 0.5
      %v6528 = vmul.f32 %v6441, 0.5
      %v6529 = vmul.f32 %v6322, 0.5
      %v6530 = vmul.f32 %v6324, 0.5
      %v6531 = vmul.f32 %v6445, 0.5
      %v6532 = vmul.f32 %v6447, 0.5
      %v6533 = vmul.f32 %v6326, 0.5
      %v6534 = vmul.f32 %v6328, 0.5
      %v6535 = vmul.f32 %v6449, 0.5
      %v6536 = vmul.f32 %v6451, 0.5
      %v6537 = vmul.f32 %v6332, 0.5
      %v6538 = vmul.f32 %v6334, 0.5
      %v6539 = vmul.f32 %v6455, 0.5
      %v6540 = vmul.f32 %v6457, 0.5
      %v6541 = vmul.f32 %v6336, 0.5
      %v6542 = vmul.f32 %v6338, 0.5
      %v6543 = vmul.f32 %v6459, 0.5
      %v6544 = vmul.f32 %v6461, 0.5
      %v6545 = vmul.f32 %v6342, 0.5
      %v6546 = vmul.f32 %v6344, 0.5
      %v6547 = vmul.f32 %v6465, 0.5
      %v6548 = vmul.f32 %v6467, 0.5
      %v6549 = vmul.f32 %v6346, 0.5
      %v6550 = vmul.f32 %v6348, 0.5
      %v6551 = vmul.f32 %v6469, 0.5
      %v6552 = vmul.f32 %v6471, 0.5
      %v6553 = vmul.f32 %v6352, 0.5
      %v6554 = vmul.f32 %v6354, 0.5
      %v6555 = vmul.f32 %v6475, 0.5
      %v6556 = vmul.f32 %v6477, 0.5
      %v6557 = vmul.f32 %v6356, 0.5
      %v6558 = vmul.f32 %v6358, 0.5
      %v6559 = vmul.f32 %v6479, 0.5
      %v6560 = vmul.f32 %v6481, 0.5
      %v6561 = vmul.f32 %v6362, 0.5
      %v6562 = vmul.f32 %v6364, 0.5
      %v6563 = vmul.f32 %v6485, 0.5
      %v6564 = vmul.f32 %v6487, 0.5
      %v6565 = vmul.f32 %v6366, 0.5
      %v6566 = vmul.f32 %v6368, 0.5
      %v6567 = vmul.f32 %v6489, 0.5
      %v6568 = vmul.f32 %v6491, 0.5
      %v6569 = vmul.f32 %v6372, 0.5
      %v6570 = vmul.f32 %v6374, 0.5
      %v6571 = vmul.f32 %v6495, 0.5
      %v6572 = vmul.f32 %v6497, 0.5
      %v6573 = vmul.f32 %v6376, 0.5
      %v6574 = vmul.f32 %v6378, 0.5
      %v6575 = vmul.f32 %v6499, 0.5
      %v6576 = vmul.f32 %v6501, 0.5
      %v6577 = vmul.f32 %v6382, 0.5
      %v6578 = vmul.f32 %v6384, 0.5
      %v6579 = vmul.f32 %v6505, 0.5
      %v6580 = vmul.f32 %v6507, 0.5
      %v6581 = vmul.f32 %v6386, 0.5
      %v6582 = vmul.f32 %v6388, 0.5
      %v6583 = vmul.f32 %v6509, 0.5
      %v6584 = vmul.f32 %v6511, 0.5
      %v6585 = vmul.f32 %v6302, 0.044715
      %v6586 = vmul.f32 %v6304, 0.044715
      %v6587 = vmul.f32 %v6425, 0.044715
      %v6588 = vmul.f32 %v6427, 0.044715
      %v6589 = vmul.f32 %v6306, 0.044715
      %v6590 = vmul.f32 %v6308, 0.044715
      %v6591 = vmul.f32 %v6429, 0.044715
      %v6592 = vmul.f32 %v6431, 0.044715
      %v6593 = vmul.f32 %v6312, 0.044715
      %v6594 = vmul.f32 %v6314, 0.044715
      %v6595 = vmul.f32 %v6435, 0.044715
      %v6596 = vmul.f32 %v6437, 0.044715
      %v6597 = vmul.f32 %v6316, 0.044715
      %v6598 = vmul.f32 %v6318, 0.044715
      %v6599 = vmul.f32 %v6439, 0.044715
      %v6600 = vmul.f32 %v6441, 0.044715
      %v6601 = vmul.f32 %v6322, 0.044715
      %v6602 = vmul.f32 %v6324, 0.044715
      %v6603 = vmul.f32 %v6445, 0.044715
      %v6604 = vmul.f32 %v6447, 0.044715
      %v6605 = vmul.f32 %v6326, 0.044715
      %v6606 = vmul.f32 %v6328, 0.044715
      %v6607 = vmul.f32 %v6449, 0.044715
      %v6608 = vmul.f32 %v6451, 0.044715
      %v6609 = vmul.f32 %v6332, 0.044715
      %v6610 = vmul.f32 %v6334, 0.044715
      %v6611 = vmul.f32 %v6455, 0.044715
      %v6612 = vmul.f32 %v6457, 0.044715
      %v6613 = vmul.f32 %v6336, 0.044715
      %v6614 = vmul.f32 %v6338, 0.044715
      %v6615 = vmul.f32 %v6459, 0.044715
      %v6616 = vmul.f32 %v6461, 0.044715
      %v6617 = vmul.f32 %v6342, 0.044715
      %v6618 = vmul.f32 %v6344, 0.044715
      %v6619 = vmul.f32 %v6465, 0.044715
      %v6620 = vmul.f32 %v6467, 0.044715
      %v6621 = vmul.f32 %v6346, 0.044715
      %v6622 = vmul.f32 %v6348, 0.044715
      %v6623 = vmul.f32 %v6469, 0.044715
      %v6624 = vmul.f32 %v6471, 0.044715
      %v6625 = vmul.f32 %v6352, 0.044715
      %v6626 = vmul.f32 %v6354, 0.044715
      %v6627 = vmul.f32 %v6475, 0.044715
      %v6628 = vmul.f32 %v6477, 0.044715
      %v6629 = vmul.f32 %v6356, 0.044715
      %v6630 = vmul.f32 %v6358, 0.044715
      %v6631 = vmul.f32 %v6479, 0.044715
      %v6632 = vmul.f32 %v6481, 0.044715
      %v6633 = vmul.f32 %v6362, 0.044715
      %v6634 = vmul.f32 %v6364, 0.044715
      %v6635 = vmul.f32 %v6485, 0.044715
      %v6636 = vmul.f32 %v6487, 0.044715
      %v6637 = vmul.f32 %v6366, 0.044715
      %v6638 = vmul.f32 %v6368, 0.044715
      %v6639 = vmul.f32 %v6489, 0.044715
      %v6640 = vmul.f32 %v6491, 0.044715
      %v6641 = vmul.f32 %v6372, 0.044715
      %v6642 = vmul.f32 %v6374, 0.044715
      %v6643 = vmul.f32 %v6495, 0.044715
      %v6644 = vmul.f32 %v6497, 0.044715
      %v6645 = vmul.f32 %v6376, 0.044715
      %v6646 = vmul.f32 %v6378, 0.044715
      %v6647 = vmul.f32 %v6499, 0.044715
      %v6648 = vmul.f32 %v6501, 0.044715
      %v6649 = vmul.f32 %v6382, 0.044715
      %v6650 = vmul.f32 %v6384, 0.044715
      %v6651 = vmul.f32 %v6505, 0.044715
      %v6652 = vmul.f32 %v6507, 0.044715
      %v6653 = vmul.f32 %v6386, 0.044715
      %v6654 = vmul.f32 %v6388, 0.044715
      %v6655 = vmul.f32 %v6509, 0.044715
      %v6656 = vmul.f32 %v6511, 0.044715
      %v6657 = vmul.f32 %v6585, %v6302
      %v6658 = vmul.f32 %v6586, %v6304
      %v6659 = vmul.f32 %v6587, %v6425
      %v6660 = vmul.f32 %v6588, %v6427
      %v6661 = vmul.f32 %v6589, %v6306
      %v6662 = vmul.f32 %v6590, %v6308
      %v6663 = vmul.f32 %v6591, %v6429
      %v6664 = vmul.f32 %v6592, %v6431
      %v6665 = vmul.f32 %v6593, %v6312
      %v6666 = vmul.f32 %v6594, %v6314
      %v6667 = vmul.f32 %v6595, %v6435
      %v6668 = vmul.f32 %v6596, %v6437
      %v6669 = vmul.f32 %v6597, %v6316
      %v6670 = vmul.f32 %v6598, %v6318
      %v6671 = vmul.f32 %v6599, %v6439
      %v6672 = vmul.f32 %v6600, %v6441
      %v6673 = vmul.f32 %v6601, %v6322
      %v6674 = vmul.f32 %v6602, %v6324
      %v6675 = vmul.f32 %v6603, %v6445
      %v6676 = vmul.f32 %v6604, %v6447
      %v6677 = vmul.f32 %v6605, %v6326
      %v6678 = vmul.f32 %v6606, %v6328
      %v6679 = vmul.f32 %v6607, %v6449
      %v6680 = vmul.f32 %v6608, %v6451
      %v6681 = vmul.f32 %v6609, %v6332
      %v6682 = vmul.f32 %v6610, %v6334
      %v6683 = vmul.f32 %v6611, %v6455
      %v6684 = vmul.f32 %v6612, %v6457
      %v6685 = vmul.f32 %v6613, %v6336
      %v6686 = vmul.f32 %v6614, %v6338
      %v6687 = vmul.f32 %v6615, %v6459
      %v6688 = vmul.f32 %v6616, %v6461
      %v6689 = vmul.f32 %v6617, %v6342
      %v6690 = vmul.f32 %v6618, %v6344
      %v6691 = vmul.f32 %v6619, %v6465
      %v6692 = vmul.f32 %v6620, %v6467
      %v6693 = vmul.f32 %v6621, %v6346
      %v6694 = vmul.f32 %v6622, %v6348
      %v6695 = vmul.f32 %v6623, %v6469
      %v6696 = vmul.f32 %v6624, %v6471
      %v6697 = vmul.f32 %v6625, %v6352
      %v6698 = vmul.f32 %v6626, %v6354
      %v6699 = vmul.f32 %v6627, %v6475
      %v6700 = vmul.f32 %v6628, %v6477
      %v6701 = vmul.f32 %v6629, %v6356
      %v6702 = vmul.f32 %v6630, %v6358
      %v6703 = vmul.f32 %v6631, %v6479
      %v6704 = vmul.f32 %v6632, %v6481
      %v6705 = vmul.f32 %v6633, %v6362
      %v6706 = vmul.f32 %v6634, %v6364
      %v6707 = vmul.f32 %v6635, %v6485
      %v6708 = vmul.f32 %v6636, %v6487
      %v6709 = vmul.f32 %v6637, %v6366
      %v6710 = vmul.f32 %v6638, %v6368
      %v6711 = vmul.f32 %v6639, %v6489
      %v6712 = vmul.f32 %v6640, %v6491
      %v6713 = vmul.f32 %v6641, %v6372
      %v6714 = vmul.f32 %v6642, %v6374
      %v6715 = vmul.f32 %v6643, %v6495
      %v6716 = vmul.f32 %v6644, %v6497
      %v6717 = vmul.f32 %v6645, %v6376
      %v6718 = vmul.f32 %v6646, %v6378
      %v6719 = vmul.f32 %v6647, %v6499
      %v6720 = vmul.f32 %v6648, %v6501
      %v6721 = vmul.f32 %v6649, %v6382
      %v6722 = vmul.f32 %v6650, %v6384
      %v6723 = vmul.f32 %v6651, %v6505
      %v6724 = vmul.f32 %v6652, %v6507
      %v6725 = vmul.f32 %v6653, %v6386
      %v6726 = vmul.f32 %v6654, %v6388
      %v6727 = vmul.f32 %v6655, %v6509
      %v6728 = vmul.f32 %v6656, %v6511
      %v6729 = vmul.f32 %v6657, %v6302
      %v6730 = vmul.f32 %v6658, %v6304
      %v6731 = vmul.f32 %v6659, %v6425
      %v6732 = vmul.f32 %v6660, %v6427
      %v6733 = vmul.f32 %v6661, %v6306
      %v6734 = vmul.f32 %v6662, %v6308
      %v6735 = vmul.f32 %v6663, %v6429
      %v6736 = vmul.f32 %v6664, %v6431
      %v6737 = vmul.f32 %v6665, %v6312
      %v6738 = vmul.f32 %v6666, %v6314
      %v6739 = vmul.f32 %v6667, %v6435
      %v6740 = vmul.f32 %v6668, %v6437
      %v6741 = vmul.f32 %v6669, %v6316
      %v6742 = vmul.f32 %v6670, %v6318
      %v6743 = vmul.f32 %v6671, %v6439
      %v6744 = vmul.f32 %v6672, %v6441
      %v6745 = vmul.f32 %v6673, %v6322
      %v6746 = vmul.f32 %v6674, %v6324
      %v6747 = vmul.f32 %v6675, %v6445
      %v6748 = vmul.f32 %v6676, %v6447
      %v6749 = vmul.f32 %v6677, %v6326
      %v6750 = vmul.f32 %v6678, %v6328
      %v6751 = vmul.f32 %v6679, %v6449
      %v6752 = vmul.f32 %v6680, %v6451
      %v6753 = vmul.f32 %v6681, %v6332
      %v6754 = vmul.f32 %v6682, %v6334
      %v6755 = vmul.f32 %v6683, %v6455
      %v6756 = vmul.f32 %v6684, %v6457
      %v6757 = vmul.f32 %v6685, %v6336
      %v6758 = vmul.f32 %v6686, %v6338
      %v6759 = vmul.f32 %v6687, %v6459
      %v6760 = vmul.f32 %v6688, %v6461
      %v6761 = vmul.f32 %v6689, %v6342
      %v6762 = vmul.f32 %v6690, %v6344
      %v6763 = vmul.f32 %v6691, %v6465
      %v6764 = vmul.f32 %v6692, %v6467
      %v6765 = vmul.f32 %v6693, %v6346
      %v6766 = vmul.f32 %v6694, %v6348
      %v6767 = vmul.f32 %v6695, %v6469
      %v6768 = vmul.f32 %v6696, %v6471
      %v6769 = vmul.f32 %v6697, %v6352
      %v6770 = vmul.f32 %v6698, %v6354
      %v6771 = vmul.f32 %v6699, %v6475
      %v6772 = vmul.f32 %v6700, %v6477
      %v6773 = vmul.f32 %v6701, %v6356
      %v6774 = vmul.f32 %v6702, %v6358
      %v6775 = vmul.f32 %v6703, %v6479
      %v6776 = vmul.f32 %v6704, %v6481
      %v6777 = vmul.f32 %v6705, %v6362
      %v6778 = vmul.f32 %v6706, %v6364
      %v6779 = vmul.f32 %v6707, %v6485
      %v6780 = vmul.f32 %v6708, %v6487
      %v6781 = vmul.f32 %v6709, %v6366
      %v6782 = vmul.f32 %v6710, %v6368
      %v6783 = vmul.f32 %v6711, %v6489
      %v6784 = vmul.f32 %v6712, %v6491
      %v6785 = vmul.f32 %v6713, %v6372
      %v6786 = vmul.f32 %v6714, %v6374
      %v6787 = vmul.f32 %v6715, %v6495
      %v6788 = vmul.f32 %v6716, %v6497
      %v6789 = vmul.f32 %v6717, %v6376
      %v6790 = vmul.f32 %v6718, %v6378
      %v6791 = vmul.f32 %v6719, %v6499
      %v6792 = vmul.f32 %v6720, %v6501
      %v6793 = vmul.f32 %v6721, %v6382
      %v6794 = vmul.f32 %v6722, %v6384
      %v6795 = vmul.f32 %v6723, %v6505
      %v6796 = vmul.f32 %v6724, %v6507
      %v6797 = vmul.f32 %v6725, %v6386
      %v6798 = vmul.f32 %v6726, %v6388
      %v6799 = vmul.f32 %v6727, %v6509
      %v6800 = vmul.f32 %v6728, %v6511
      %v6801 = vadd.f32 %v6302, %v6729
      %v6802 = vadd.f32 %v6304, %v6730
      %v6803 = vadd.f32 %v6425, %v6731
      %v6804 = vadd.f32 %v6427, %v6732
      %v6805 = vadd.f32 %v6306, %v6733
      %v6806 = vadd.f32 %v6308, %v6734
      %v6807 = vadd.f32 %v6429, %v6735
      %v6808 = vadd.f32 %v6431, %v6736
      %v6809 = vadd.f32 %v6312, %v6737
      %v6810 = vadd.f32 %v6314, %v6738
      %v6811 = vadd.f32 %v6435, %v6739
      %v6812 = vadd.f32 %v6437, %v6740
      %v6813 = vadd.f32 %v6316, %v6741
      %v6814 = vadd.f32 %v6318, %v6742
      %v6815 = vadd.f32 %v6439, %v6743
      %v6816 = vadd.f32 %v6441, %v6744
      %v6817 = vadd.f32 %v6322, %v6745
      %v6818 = vadd.f32 %v6324, %v6746
      %v6819 = vadd.f32 %v6445, %v6747
      %v6820 = vadd.f32 %v6447, %v6748
      %v6821 = vadd.f32 %v6326, %v6749
      %v6822 = vadd.f32 %v6328, %v6750
      %v6823 = vadd.f32 %v6449, %v6751
      %v6824 = vadd.f32 %v6451, %v6752
      %v6825 = vadd.f32 %v6332, %v6753
      %v6826 = vadd.f32 %v6334, %v6754
      %v6827 = vadd.f32 %v6455, %v6755
      %v6828 = vadd.f32 %v6457, %v6756
      %v6829 = vadd.f32 %v6336, %v6757
      %v6830 = vadd.f32 %v6338, %v6758
      %v6831 = vadd.f32 %v6459, %v6759
      %v6832 = vadd.f32 %v6461, %v6760
      %v6833 = vadd.f32 %v6342, %v6761
      %v6834 = vadd.f32 %v6344, %v6762
      %v6835 = vadd.f32 %v6465, %v6763
      %v6836 = vadd.f32 %v6467, %v6764
      %v6837 = vadd.f32 %v6346, %v6765
      %v6838 = vadd.f32 %v6348, %v6766
      %v6839 = vadd.f32 %v6469, %v6767
      %v6840 = vadd.f32 %v6471, %v6768
      %v6841 = vadd.f32 %v6352, %v6769
      %v6842 = vadd.f32 %v6354, %v6770
      %v6843 = vadd.f32 %v6475, %v6771
      %v6844 = vadd.f32 %v6477, %v6772
      %v6845 = vadd.f32 %v6356, %v6773
      %v6846 = vadd.f32 %v6358, %v6774
      %v6847 = vadd.f32 %v6479, %v6775
      %v6848 = vadd.f32 %v6481, %v6776
      %v6849 = vadd.f32 %v6362, %v6777
      %v6850 = vadd.f32 %v6364, %v6778
      %v6851 = vadd.f32 %v6485, %v6779
      %v6852 = vadd.f32 %v6487, %v6780
      %v6853 = vadd.f32 %v6366, %v6781
      %v6854 = vadd.f32 %v6368, %v6782
      %v6855 = vadd.f32 %v6489, %v6783
      %v6856 = vadd.f32 %v6491, %v6784
      %v6857 = vadd.f32 %v6372, %v6785
      %v6858 = vadd.f32 %v6374, %v6786
      %v6859 = vadd.f32 %v6495, %v6787
      %v6860 = vadd.f32 %v6497, %v6788
      %v6861 = vadd.f32 %v6376, %v6789
      %v6862 = vadd.f32 %v6378, %v6790
      %v6863 = vadd.f32 %v6499, %v6791
      %v6864 = vadd.f32 %v6501, %v6792
      %v6865 = vadd.f32 %v6382, %v6793
      %v6866 = vadd.f32 %v6384, %v6794
      %v6867 = vadd.f32 %v6505, %v6795
      %v6868 = vadd.f32 %v6507, %v6796
      %v6869 = vadd.f32 %v6386, %v6797
      %v6870 = vadd.f32 %v6388, %v6798
      %v6871 = vadd.f32 %v6509, %v6799
      %v6872 = vadd.f32 %v6511, %v6800
      %v6873 = vmul.f32 %v6801, 0.7978846
      %v6874 = vmul.f32 %v6802, 0.7978846
      %v6875 = vmul.f32 %v6803, 0.7978846
      %v6876 = vmul.f32 %v6804, 0.7978846
      %v6877 = vmul.f32 %v6805, 0.7978846
      %v6878 = vmul.f32 %v6806, 0.7978846
      %v6879 = vmul.f32 %v6807, 0.7978846
      %v6880 = vmul.f32 %v6808, 0.7978846
      %v6881 = vmul.f32 %v6809, 0.7978846
      %v6882 = vmul.f32 %v6810, 0.7978846
      %v6883 = vmul.f32 %v6811, 0.7978846
      %v6884 = vmul.f32 %v6812, 0.7978846
      %v6885 = vmul.f32 %v6813, 0.7978846
      %v6886 = vmul.f32 %v6814, 0.7978846
      %v6887 = vmul.f32 %v6815, 0.7978846
      %v6888 = vmul.f32 %v6816, 0.7978846
      %v6889 = vmul.f32 %v6817, 0.7978846
      %v6890 = vmul.f32 %v6818, 0.7978846
      %v6891 = vmul.f32 %v6819, 0.7978846
      %v6892 = vmul.f32 %v6820, 0.7978846
      %v6893 = vmul.f32 %v6821, 0.7978846
      %v6894 = vmul.f32 %v6822, 0.7978846
      %v6895 = vmul.f32 %v6823, 0.7978846
      %v6896 = vmul.f32 %v6824, 0.7978846
      %v6897 = vmul.f32 %v6825, 0.7978846
      %v6898 = vmul.f32 %v6826, 0.7978846
      %v6899 = vmul.f32 %v6827, 0.7978846
      %v6900 = vmul.f32 %v6828, 0.7978846
      %v6901 = vmul.f32 %v6829, 0.7978846
      %v6902 = vmul.f32 %v6830, 0.7978846
      %v6903 = vmul.f32 %v6831, 0.7978846
      %v6904 = vmul.f32 %v6832, 0.7978846
      %v6905 = vmul.f32 %v6833, 0.7978846
      %v6906 = vmul.f32 %v6834, 0.7978846
      %v6907 = vmul.f32 %v6835, 0.7978846
      %v6908 = vmul.f32 %v6836, 0.7978846
      %v6909 = vmul.f32 %v6837, 0.7978846
      %v6910 = vmul.f32 %v6838, 0.7978846
      %v6911 = vmul.f32 %v6839, 0.7978846
      %v6912 = vmul.f32 %v6840, 0.7978846
      %v6913 = vmul.f32 %v6841, 0.7978846
      %v6914 = vmul.f32 %v6842, 0.7978846
      %v6915 = vmul.f32 %v6843, 0.7978846
      %v6916 = vmul.f32 %v6844, 0.7978846
      %v6917 = vmul.f32 %v6845, 0.7978846
      %v6918 = vmul.f32 %v6846, 0.7978846
      %v6919 = vmul.f32 %v6847, 0.7978846
      %v6920 = vmul.f32 %v6848, 0.7978846
      %v6921 = vmul.f32 %v6849, 0.7978846
      %v6922 = vmul.f32 %v6850, 0.7978846
      %v6923 = vmul.f32 %v6851, 0.7978846
      %v6924 = vmul.f32 %v6852, 0.7978846
      %v6925 = vmul.f32 %v6853, 0.7978846
      %v6926 = vmul.f32 %v6854, 0.7978846
      %v6927 = vmul.f32 %v6855, 0.7978846
      %v6928 = vmul.f32 %v6856, 0.7978846
      %v6929 = vmul.f32 %v6857, 0.7978846
      %v6930 = vmul.f32 %v6858, 0.7978846
      %v6931 = vmul.f32 %v6859, 0.7978846
      %v6932 = vmul.f32 %v6860, 0.7978846
      %v6933 = vmul.f32 %v6861, 0.7978846
      %v6934 = vmul.f32 %v6862, 0.7978846
      %v6935 = vmul.f32 %v6863, 0.7978846
      %v6936 = vmul.f32 %v6864, 0.7978846
      %v6937 = vmul.f32 %v6865, 0.7978846
      %v6938 = vmul.f32 %v6866, 0.7978846
      %v6939 = vmul.f32 %v6867, 0.7978846
      %v6940 = vmul.f32 %v6868, 0.7978846
      %v6941 = vmul.f32 %v6869, 0.7978846
      %v6942 = vmul.f32 %v6870, 0.7978846
      %v6943 = vmul.f32 %v6871, 0.7978846
      %v6944 = vmul.f32 %v6872, 0.7978846
      %v6945 = vtanh.pop %v6873
      %v6946 = vtanh.pop %v6874
      %v6947 = vtanh.pop %v6875
      %v6948 = vtanh.pop %v6876
      %v6949 = vtanh.pop %v6877
      %v6950 = vtanh.pop %v6878
      %v6951 = vtanh.pop %v6879
      %v6952 = vtanh.pop %v6880
      %v6953 = vtanh.pop %v6881
      %v6954 = vtanh.pop %v6882
      %v6955 = vtanh.pop %v6883
      %v6956 = vtanh.pop %v6884
      %v6957 = vtanh.pop %v6885
      %v6958 = vtanh.pop %v6886
      %v6959 = vtanh.pop %v6887
      %v6960 = vtanh.pop %v6888
      %v6961 = vtanh.pop %v6889
      %v6962 = vtanh.pop %v6890
      %v6963 = vtanh.pop %v6891
      %v6964 = vtanh.pop %v6892
      %v6965 = vtanh.pop %v6893
      %v6966 = vtanh.pop %v6894
      %v6967 = vtanh.pop %v6895
      %v6968 = vtanh.pop %v6896
      %v6969 = vtanh.pop %v6897
      %v6970 = vtanh.pop %v6898
      %v6971 = vtanh.pop %v6899
      %v6972 = vtanh.pop %v6900
      %v6973 = vtanh.pop %v6901
      %v6974 = vtanh.pop %v6902
      %v6975 = vtanh.pop %v6903
      %v6976 = vtanh.pop %v6904
      %v6977 = vtanh.pop %v6905
      %v6978 = vtanh.pop %v6906
      %v6979 = vtanh.pop %v6907
      %v6980 = vtanh.pop %v6908
      %v6981 = vtanh.pop %v6909
      %v6982 = vtanh.pop %v6910
      %v6983 = vtanh.pop %v6911
      %v6984 = vtanh.pop %v6912
      %v6985 = vtanh.pop %v6913
      %v6986 = vtanh.pop %v6914
      %v6987 = vtanh.pop %v6915
      %v6988 = vtanh.pop %v6916
      %v6989 = vtanh.pop %v6917
      %v6990 = vtanh.pop %v6918
      %v6991 = vtanh.pop %v6919
      %v6992 = vtanh.pop %v6920
      %v6993 = vtanh.pop %v6921
      %v6994 = vtanh.pop %v6922
      %v6995 = vtanh.pop %v6923
      %v6996 = vtanh.pop %v6924
      %v6997 = vtanh.pop %v6925
      %v6998 = vtanh.pop %v6926
      %v6999 = vtanh.pop %v6927
      %v7000 = vtanh.pop %v6928
      %v7001 = vtanh.pop %v6929
      %v7002 = vtanh.pop %v6930
      %v7003 = vtanh.pop %v6931
      %v7004 = vtanh.pop %v6932
      %v7005 = vtanh.pop %v6933
      %v7006 = vtanh.pop %v6934
      %v7007 = vtanh.pop %v6935
      %v7008 = vtanh.pop %v6936
      %v7009 = vtanh.pop %v6937
      %v7010 = vtanh.pop %v6938
      %v7011 = vtanh.pop %v6939
      %v7012 = vtanh.pop %v6940
      %v7013 = vtanh.pop %v6941
      %v7014 = vtanh.pop %v6942
      %v7015 = vtanh.pop %v6943
      %v7016 = vtanh.pop %v6944
      %v7017 = vadd.f32 %v6945, 1.0
      %v7018 = vadd.f32 %v6946, 1.0
      %v7019 = vadd.f32 %v6947, 1.0
      %v7020 = vadd.f32 %v6948, 1.0
      %v7021 = vadd.f32 %v6949, 1.0
      %v7022 = vadd.f32 %v6950, 1.0
      %v7023 = vadd.f32 %v6951, 1.0
      %v7024 = vadd.f32 %v6952, 1.0
      %v7025 = vadd.f32 %v6953, 1.0
      %v7026 = vadd.f32 %v6954, 1.0
      %v7027 = vadd.f32 %v6955, 1.0
      %v7028 = vadd.f32 %v6956, 1.0
      %v7029 = vadd.f32 %v6957, 1.0
      %v7030 = vadd.f32 %v6958, 1.0
      %v7031 = vadd.f32 %v6959, 1.0
      %v7032 = vadd.f32 %v6960, 1.0
      %v7033 = vadd.f32 %v6961, 1.0
      %v7034 = vadd.f32 %v6962, 1.0
      %v7035 = vadd.f32 %v6963, 1.0
      %v7036 = vadd.f32 %v6964, 1.0
      %v7037 = vadd.f32 %v6965, 1.0
      %v7038 = vadd.f32 %v6966, 1.0
      %v7039 = vadd.f32 %v6967, 1.0
      %v7040 = vadd.f32 %v6968, 1.0
      %v7041 = vadd.f32 %v6969, 1.0
      %v7042 = vadd.f32 %v6970, 1.0
      %v7043 = vadd.f32 %v6971, 1.0
      %v7044 = vadd.f32 %v6972, 1.0
      %v7045 = vadd.f32 %v6973, 1.0
      %v7046 = vadd.f32 %v6974, 1.0
      %v7047 = vadd.f32 %v6975, 1.0
      %v7048 = vadd.f32 %v6976, 1.0
      %v7049 = vadd.f32 %v6977, 1.0
      %v7050 = vadd.f32 %v6978, 1.0
      %v7051 = vadd.f32 %v6979, 1.0
      %v7052 = vadd.f32 %v6980, 1.0
      %v7053 = vadd.f32 %v6981, 1.0
      %v7054 = vadd.f32 %v6982, 1.0
      %v7055 = vadd.f32 %v6983, 1.0
      %v7056 = vadd.f32 %v6984, 1.0
      %v7057 = vadd.f32 %v6985, 1.0
      %v7058 = vadd.f32 %v6986, 1.0
      %v7059 = vadd.f32 %v6987, 1.0
      %v7060 = vadd.f32 %v6988, 1.0
      %v7061 = vadd.f32 %v6989, 1.0
      %v7062 = vadd.f32 %v6990, 1.0
      %v7063 = vadd.f32 %v6991, 1.0
      %v7064 = vadd.f32 %v6992, 1.0
      %v7065 = vadd.f32 %v6993, 1.0
      %v7066 = vadd.f32 %v6994, 1.0
      %v7067 = vadd.f32 %v6995, 1.0
      %v7068 = vadd.f32 %v6996, 1.0
      %v7069 = vadd.f32 %v6997, 1.0
      %v7070 = vadd.f32 %v6998, 1.0
      %v7071 = vadd.f32 %v6999, 1.0
      %v7072 = vadd.f32 %v7000, 1.0
      %v7073 = vadd.f32 %v7001, 1.0
      %v7074 = vadd.f32 %v7002, 1.0
      %v7075 = vadd.f32 %v7003, 1.0
      %v7076 = vadd.f32 %v7004, 1.0
      %v7077 = vadd.f32 %v7005, 1.0
      %v7078 = vadd.f32 %v7006, 1.0
      %v7079 = vadd.f32 %v7007, 1.0
      %v7080 = vadd.f32 %v7008, 1.0
      %v7081 = vadd.f32 %v7009, 1.0
      %v7082 = vadd.f32 %v7010, 1.0
      %v7083 = vadd.f32 %v7011, 1.0
      %v7084 = vadd.f32 %v7012, 1.0
      %v7085 = vadd.f32 %v7013, 1.0
      %v7086 = vadd.f32 %v7014, 1.0
      %v7087 = vadd.f32 %v7015, 1.0
      %v7088 = vadd.f32 %v7016, 1.0
      %v7089 = vmul.f32 %v6513, %v7017
      %v7090 = vmul.f32 %v6514, %v7018
      %v7091 = vmul.f32 %v6515, %v7019
      %v7092 = vmul.f32 %v6516, %v7020
      %v7093 = vmul.f32 %v6517, %v7021
      %v7094 = vmul.f32 %v6518, %v7022
      %v7095 = vmul.f32 %v6519, %v7023
      %v7096 = vmul.f32 %v6520, %v7024
      %v7097 = vmul.f32 %v6521, %v7025
      %v7098 = vmul.f32 %v6522, %v7026
      %v7099 = vmul.f32 %v6523, %v7027
      %v7100 = vmul.f32 %v6524, %v7028
      %v7101 = vmul.f32 %v6525, %v7029
      %v7102 = vmul.f32 %v6526, %v7030
      %v7103 = vmul.f32 %v6527, %v7031
      %v7104 = vmul.f32 %v6528, %v7032
      %v7105 = vmul.f32 %v6529, %v7033
      %v7106 = vmul.f32 %v6530, %v7034
      %v7107 = vmul.f32 %v6531, %v7035
      %v7108 = vmul.f32 %v6532, %v7036
      %v7109 = vmul.f32 %v6533, %v7037
      %v7110 = vmul.f32 %v6534, %v7038
      %v7111 = vmul.f32 %v6535, %v7039
      %v7112 = vmul.f32 %v6536, %v7040
      %v7113 = vmul.f32 %v6537, %v7041
      %v7114 = vmul.f32 %v6538, %v7042
      %v7115 = vmul.f32 %v6539, %v7043
      %v7116 = vmul.f32 %v6540, %v7044
      %v7117 = vmul.f32 %v6541, %v7045
      %v7118 = vmul.f32 %v6542, %v7046
      %v7119 = vmul.f32 %v6543, %v7047
      %v7120 = vmul.f32 %v6544, %v7048
      %v7121 = vmul.f32 %v6545, %v7049
      %v7122 = vmul.f32 %v6546, %v7050
      %v7123 = vmul.f32 %v6547, %v7051
      %v7124 = vmul.f32 %v6548, %v7052
      %v7125 = vmul.f32 %v6549, %v7053
      %v7126 = vmul.f32 %v6550, %v7054
      %v7127 = vmul.f32 %v6551, %v7055
      %v7128 = vmul.f32 %v6552, %v7056
      %v7129 = vmul.f32 %v6553, %v7057
      %v7130 = vmul.f32 %v6554, %v7058
      %v7131 = vmul.f32 %v6555, %v7059
      %v7132 = vmul.f32 %v6556, %v7060
      %v7133 = vmul.f32 %v6557, %v7061
      %v7134 = vmul.f32 %v6558, %v7062
      %v7135 = vmul.f32 %v6559, %v7063
      %v7136 = vmul.f32 %v6560, %v7064
      %v7137 = vmul.f32 %v6561, %v7065
      %v7138 = vmul.f32 %v6562, %v7066
      %v7139 = vmul.f32 %v6563, %v7067
      %v7140 = vmul.f32 %v6564, %v7068
      %v7141 = vmul.f32 %v6565, %v7069
      %v7142 = vmul.f32 %v6566, %v7070
      %v7143 = vmul.f32 %v6567, %v7071
      %v7144 = vmul.f32 %v6568, %v7072
      %v7145 = vmul.f32 %v6569, %v7073
      %v7146 = vmul.f32 %v6570, %v7074
      %v7147 = vmul.f32 %v6571, %v7075
      %v7148 = vmul.f32 %v6572, %v7076
      %v7149 = vmul.f32 %v6573, %v7077
      %v7150 = vmul.f32 %v6574, %v7078
      %v7151 = vmul.f32 %v6575, %v7079
      %v7152 = vmul.f32 %v6576, %v7080
      %v7153 = vmul.f32 %v6577, %v7081
      %v7154 = vmul.f32 %v6578, %v7082
      %v7155 = vmul.f32 %v6579, %v7083
      %v7156 = vmul.f32 %v6580, %v7084
      %v7157 = vmul.f32 %v6581, %v7085
      %v7158 = vmul.f32 %v6582, %v7086
      %v7159 = vmul.f32 %v6583, %v7087
      %v7160 = vmul.f32 %v6584, %v7088
      %s7161 = scalar_lea.vmem %s31, 256
      %v7162 = vld [vmem:[%s7161] sm:$0xf]
      %v7163 = vld [vmem:[%s7161 + $0x4] sm:$0xf]
      %v7164 = vld [vmem:[%s7161 + $0x8] sm:$0xf]
      %v7165 = vld [vmem:[%s7161 + $0xc] sm:$0xf]
      %v7166 = vld [vmem:[%s7161 + $0x10] sm:$0xf]
      %v7167 = vld [vmem:[%s7161 + $0x14] sm:$0xf]
      %v7168 = vld [vmem:[%s7161 + $0x18] sm:$0xf]
      %v7169 = vld [vmem:[%s7161 + $0x1c] sm:$0xf]
      %v7170 = vld [vmem:[%s7161 + $0x20] sm:$0xf]
      %v7171 = vld [vmem:[%s7161 + $0x24] sm:$0xf]
      %v7172 = vld [vmem:[%s7161 + $0x28] sm:$0xf]
      %v7173 = vld [vmem:[%s7161 + $0x2c] sm:$0xf]
      %v7174 = vld [vmem:[%s7161 + $0x30] sm:$0xf]
      %v7175 = vld [vmem:[%s7161 + $0x34] sm:$0xf]
      %v7176 = vld [vmem:[%s7161 + $0x38] sm:$0xf]
      %v7177 = vld [vmem:[%s7161 + $0x3c] sm:$0xf]
      %v7178 = vld [vmem:[%s7161 + $0x40] sm:$0xf]
      %v7179 = vld [vmem:[%s7161 + $0x44] sm:$0xf]
      %v7180 = vld [vmem:[%s7161 + $0x48] sm:$0xf]
      %v7181 = vld [vmem:[%s7161 + $0x4c] sm:$0xf]
      %v7182 = vld [vmem:[%s7161 + $0x50] sm:$0xf]
      %v7183 = vld [vmem:[%s7161 + $0x54] sm:$0xf]
      %v7184 = vld [vmem:[%s7161 + $0x58] sm:$0xf]
      %v7185 = vld [vmem:[%s7161 + $0x5c] sm:$0xf]
      %v7186 = vld [vmem:[%s7161 + $0x60] sm:$0xf]
      %v7187 = vld [vmem:[%s7161 + $0x64] sm:$0xf]
      %v7188 = vld [vmem:[%s7161 + $0x68] sm:$0xf]
      %v7189 = vld [vmem:[%s7161 + $0x6c] sm:$0xf]
      %v7190 = vld [vmem:[%s7161 + $0x70] sm:$0xf]
      %v7191 = vld [vmem:[%s7161 + $0x74] sm:$0xf]
      %v7192 = vld [vmem:[%s7161 + $0x78] sm:$0xf]
      %v7193 = vld [vmem:[%s7161 + $0x7c] sm:$0xf]
      %v7194 = vld [vmem:[%s7161 + $0x80] sm:$0xf]
      %v7195 = vld [vmem:[%s7161 + $0x84] sm:$0xf]
      %v7196 = vld [vmem:[%s7161 + $0x88] sm:$0xf]
      %v7197 = vld [vmem:[%s7161 + $0x8c] sm:$0xf]
      %v7198 = vld [vmem:[%s7161 + $0x90] sm:$0xf]
      %v7199 = vld [vmem:[%s7161 + $0x94] sm:$0xf]
      %v7200 = vld [vmem:[%s7161 + $0x98] sm:$0xf]
      %v7201 = vld [vmem:[%s7161 + $0x9c] sm:$0xf]
      %v7202 = vld [vmem:[%s7161 + $0xa0] sm:$0xf]
      %v7203 = vld [vmem:[%s7161 + $0xa4] sm:$0xf]
      %v7204 = vld [vmem:[%s7161 + $0xa8] sm:$0xf]
      %v7205 = vld [vmem:[%s7161 + $0xac] sm:$0xf]
      %v7206 = vld [vmem:[%s7161 + $0xb0] sm:$0xf]
      %v7207 = vld [vmem:[%s7161 + $0xb4] sm:$0xf]
      %v7208 = vld [vmem:[%s7161 + $0xb8] sm:$0xf]
      %v7209 = vld [vmem:[%s7161 + $0xbc] sm:$0xf]
      %v7210 = vld [vmem:[%s7161 + $0xc0] sm:$0xf]
      %v7211 = vld [vmem:[%s7161 + $0xc4] sm:$0xf]
      %v7212 = vld [vmem:[%s7161 + $0xc8] sm:$0xf]
      %v7213 = vld [vmem:[%s7161 + $0xcc] sm:$0xf]
      %v7214 = vld [vmem:[%s7161 + $0xd0] sm:$0xf]
      %v7215 = vld [vmem:[%s7161 + $0xd4] sm:$0xf]
      %v7216 = vld [vmem:[%s7161 + $0xd8] sm:$0xf]
      %v7217 = vld [vmem:[%s7161 + $0xdc] sm:$0xf]
      %v7218 = vld [vmem:[%s7161 + $0xe0] sm:$0xf]
      %v7219 = vld [vmem:[%s7161 + $0xe4] sm:$0xf]
      %v7220 = vld [vmem:[%s7161 + $0xe8] sm:$0xf]
      %v7221 = vld [vmem:[%s7161 + $0xec] sm:$0xf]
      %v7222 = vld [vmem:[%s7161 + $0xf0] sm:$0xf]
      %v7223 = vld [vmem:[%s7161 + $0xf4] sm:$0xf]
      %v7224 = vld [vmem:[%s7161 + $0xf8] sm:$0xf]
      %v7225 = vld [vmem:[%s7161 + $0xfc] sm:$0xf]
      %v7226 = vpack.c.bf16 %v7093, %v7089
      %v7227 = vpack.c.bf16 %v7094, %v7090
      %v7228 = vpack.c.bf16 %v7095, %v7091
      %v7229 = vpack.c.bf16 %v7096, %v7092
      %v7230 = vpack.c.bf16 %v7101, %v7097
      %v7231 = vpack.c.bf16 %v7102, %v7098
      %v7232 = vpack.c.bf16 %v7103, %v7099
      %v7233 = vpack.c.bf16 %v7104, %v7100
      %v7234 = vpack.c.bf16 %v7109, %v7105
      %v7235 = vpack.c.bf16 %v7110, %v7106
      %v7236 = vpack.c.bf16 %v7111, %v7107
      %v7237 = vpack.c.bf16 %v7112, %v7108
      %v7238 = vpack.c.bf16 %v7117, %v7113
      %v7239 = vpack.c.bf16 %v7118, %v7114
      %v7240 = vpack.c.bf16 %v7119, %v7115
      %v7241 = vpack.c.bf16 %v7120, %v7116
      %v7242 = vpack.c.bf16 %v7125, %v7121
      %v7243 = vpack.c.bf16 %v7126, %v7122
      %v7244 = vpack.c.bf16 %v7127, %v7123
      %v7245 = vpack.c.bf16 %v7128, %v7124
      %v7246 = vpack.c.bf16 %v7133, %v7129
      %v7247 = vpack.c.bf16 %v7134, %v7130
      %v7248 = vpack.c.bf16 %v7135, %v7131
      %v7249 = vpack.c.bf16 %v7136, %v7132
      %v7250 = vpack.c.bf16 %v7141, %v7137
      %v7251 = vpack.c.bf16 %v7142, %v7138
      %v7252 = vpack.c.bf16 %v7143, %v7139
      %v7253 = vpack.c.bf16 %v7144, %v7140
      %v7254 = vpack.c.bf16 %v7149, %v7145
      %v7255 = vpack.c.bf16 %v7150, %v7146
      %v7256 = vpack.c.bf16 %v7151, %v7147
      %v7257 = vpack.c.bf16 %v7152, %v7148
      %v7258 = vpack.c.bf16 %v7157, %v7153
      %v7259 = vpack.c.bf16 %v7158, %v7154
      %v7260 = vpack.c.bf16 %v7159, %v7155
      %v7261 = vpack.c.bf16 %v7160, %v7156
      %v7326 = vunpack.c.l.b16 %v7162
      %v7327 = vunpack.c.l.b16 %v7163
      %v7328 = vunpack.c.l.b16 %v7164
      %v7329 = vunpack.c.l.b16 %v7165
      %v7330 = vunpack.c.l.b16 %v7166
      %v7331 = vunpack.c.l.b16 %v7167
      %v7332 = vunpack.c.l.b16 %v7168
      %v7333 = vunpack.c.l.b16 %v7169
      %v7334 = vunpack.c.l.b16 %v7170
      %v7335 = vunpack.c.l.b16 %v7171
      %v7336 = vunpack.c.l.b16 %v7172
      %v7337 = vunpack.c.l.b16 %v7173
      %v7338 = vunpack.c.l.b16 %v7174
      %v7339 = vunpack.c.l.b16 %v7175
      %v7340 = vunpack.c.l.b16 %v7176
      %v7341 = vunpack.c.l.b16 %v7177
      %v7342 = vunpack.c.l.b16 %v7178
      %v7343 = vunpack.c.l.b16 %v7179
      %v7344 = vunpack.c.l.b16 %v7180
      %v7345 = vunpack.c.l.b16 %v7181
      %v7346 = vunpack.c.l.b16 %v7182
      %v7347 = vunpack.c.l.b16 %v7183
      %v7348 = vunpack.c.l.b16 %v7184
      %v7349 = vunpack.c.l.b16 %v7185
      %v7350 = vunpack.c.l.b16 %v7186
      %v7351 = vunpack.c.l.b16 %v7187
      %v7352 = vunpack.c.l.b16 %v7188
      %v7353 = vunpack.c.l.b16 %v7189
      %v7354 = vunpack.c.l.b16 %v7190
      %v7355 = vunpack.c.l.b16 %v7191
      %v7356 = vunpack.c.l.b16 %v7192
      %v7357 = vunpack.c.l.b16 %v7193
      %v7358 = vunpack.c.l.b16 %v7194
      %v7359 = vunpack.c.l.b16 %v7195
      %v7360 = vunpack.c.l.b16 %v7196
      %v7361 = vunpack.c.l.b16 %v7197
      %v7362 = vunpack.c.l.b16 %v7198
      %v7363 = vunpack.c.l.b16 %v7199
      %v7364 = vunpack.c.l.b16 %v7200
      %v7365 = vunpack.c.l.b16 %v7201
      %v7366 = vunpack.c.l.b16 %v7202
      %v7367 = vunpack.c.l.b16 %v7203
      %v7368 = vunpack.c.l.b16 %v7204
      %v7369 = vunpack.c.l.b16 %v7205
      %v7370 = vunpack.c.l.b16 %v7206
      %v7371 = vunpack.c.l.b16 %v7207
      %v7372 = vunpack.c.l.b16 %v7208
      %v7373 = vunpack.c.l.b16 %v7209
      %v7374 = vunpack.c.l.b16 %v7210
      %v7375 = vunpack.c.l.b16 %v7211
      %v7376 = vunpack.c.l.b16 %v7212
      %v7377 = vunpack.c.l.b16 %v7213
      %v7378 = vunpack.c.l.b16 %v7214
      %v7379 = vunpack.c.l.b16 %v7215
      %v7380 = vunpack.c.l.b16 %v7216
      %v7381 = vunpack.c.l.b16 %v7217
      %v7382 = vunpack.c.l.b16 %v7218
      %v7383 = vunpack.c.l.b16 %v7219
      %v7384 = vunpack.c.l.b16 %v7220
      %v7385 = vunpack.c.l.b16 %v7221
      %v7386 = vunpack.c.l.b16 %v7222
      %v7387 = vunpack.c.l.b16 %v7223
      %v7388 = vunpack.c.l.b16 %v7224
      %v7389 = vunpack.c.l.b16 %v7225
      %v7390 = vpack.c.b16 %v7327, %v7326
      %v7391 = vpack.c.b16 %v7329, %v7328
      %v7392 = vpack.c.b16 %v7331, %v7330
      %v7393 = vpack.c.b16 %v7333, %v7332
      %v7394 = vpack.c.b16 %v7335, %v7334
      %v7395 = vpack.c.b16 %v7337, %v7336
      %v7396 = vpack.c.b16 %v7339, %v7338
      %v7397 = vpack.c.b16 %v7341, %v7340
      %v7398 = vpack.c.b16 %v7343, %v7342
      %v7399 = vpack.c.b16 %v7345, %v7344
      %v7400 = vpack.c.b16 %v7347, %v7346
      %v7401 = vpack.c.b16 %v7349, %v7348
      %v7402 = vpack.c.b16 %v7351, %v7350
      %v7403 = vpack.c.b16 %v7353, %v7352
      %v7404 = vpack.c.b16 %v7355, %v7354
      %v7405 = vpack.c.b16 %v7357, %v7356
      %v7406 = vpack.c.b16 %v7359, %v7358
      %v7407 = vpack.c.b16 %v7361, %v7360
      %v7408 = vpack.c.b16 %v7363, %v7362
      %v7409 = vpack.c.b16 %v7365, %v7364
      %v7410 = vpack.c.b16 %v7367, %v7366
      %v7411 = vpack.c.b16 %v7369, %v7368
      %v7412 = vpack.c.b16 %v7371, %v7370
      %v7413 = vpack.c.b16 %v7373, %v7372
      %v7414 = vpack.c.b16 %v7375, %v7374
      %v7415 = vpack.c.b16 %v7377, %v7376
      %v7416 = vpack.c.b16 %v7379, %v7378
      %v7417 = vpack.c.b16 %v7381, %v7380
      %v7418 = vpack.c.b16 %v7383, %v7382
      %v7419 = vpack.c.b16 %v7385, %v7384
      %v7420 = vpack.c.b16 %v7387, %v7386
      %v7421 = vpack.c.b16 %v7389, %v7388
      %7454 = vmatprep.subr.bf16.mxu0 0
      %7455 = vmatpush1.bf16.msra.mxu0 %v7397
      %7456 = vmatprep.subr.bf16.mxu0 0
      %7457 = vmatpush1.bf16.msra.mxu0 %v7396
      %7458 = vmatprep.subr.bf16.mxu0 0
      %7459 = vmatpush1.bf16.msra.mxu0 %v7395
      %7460 = vmatprep.subr.bf16.mxu0 0
      %7461 = vmatpush1.bf16.msra.mxu0 %v7394
      %7462 = vmatprep.subr.bf16.mxu0 0
      %7463 = vmatpush1.bf16.msra.mxu0 %v7393
      %7464 = vmatprep.subr.bf16.mxu0 0
      %7465 = vmatpush1.bf16.msra.mxu0 %v7392
      %7466 = vmatprep.subr.bf16.mxu0 0
      %7467 = vmatpush1.bf16.msra.mxu0 %v7391
      %7468 = vmatprep.subr.bf16.mxu0 0
      %7469 = vmatpush1.bf16.msra.mxu0 %v7390
      %7470 = vmatprep.subr.bf16.mxu0 0
      %7471 = vmatpush2.bf16.msra.mxu0 %v7405
      %7472 = vmatprep.subr.bf16.mxu0 0
      %7473 = vmatpush2.bf16.msra.mxu0 %v7404
      %7474 = vmatprep.subr.bf16.mxu0 0
      %7475 = vmatpush2.bf16.msra.mxu0 %v7403
      %7476 = vmatprep.subr.bf16.mxu0 0
      %7477 = vmatpush2.bf16.msra.mxu0 %v7402
      %7478 = vmatprep.subr.bf16.mxu0 0
      %7479 = vmatpush2.bf16.msra.mxu0 %v7401
      %7480 = vmatprep.subr.bf16.mxu0 0
      %7481 = vmatpush2.bf16.msra.mxu0 %v7400
      %7482 = vmatprep.subr.bf16.mxu0 0
      %7483 = vmatpush2.bf16.msra.mxu0 %v7399
      %7484 = vmatprep.subr.bf16.mxu0 0
      %7485 = vmatpush2.bf16.msra.mxu0 %v7398
      %7486 = vmatprep.mubr.bf16.mxu0 %v7227
      %7487 = vmatmul.mubr.bf16.gmra.mxu0 %v7226
      %v7488 = vpop.f32.mrf.mxu0
      %v7489 = vadd.f32 0.0, %v7488
      %v7490 = vpop.f32.mrf.mxu0
      %v7491 = vpop.f32.mrf.mxu0
      %v7492 = vadd.f32 0.0, %v7491
      %v7493 = vpop.f32.mrf.mxu0
      %7494 = vmatprep.mubr.bf16.mxu0 %v7231
      %7495 = vmatmul.mubr.bf16.gmra.mxu0 %v7230
      %v7496 = vpop.f32.mrf.mxu0
      %v7497 = vadd.f32 0.0, %v7496
      %v7498 = vpop.f32.mrf.mxu0
      %v7499 = vpop.f32.mrf.mxu0
      %v7500 = vadd.f32 0.0, %v7499
      %v7501 = vpop.f32.mrf.mxu0
      %7502 = vmatprep.mubr.bf16.mxu0 %v7235
      %7503 = vmatmul.mubr.bf16.gmra.mxu0 %v7234
      %v7504 = vpop.f32.mrf.mxu0
      %v7505 = vadd.f32 0.0, %v7504
      %v7506 = vpop.f32.mrf.mxu0
      %v7507 = vpop.f32.mrf.mxu0
      %v7508 = vadd.f32 0.0, %v7507
      %v7509 = vpop.f32.mrf.mxu0
      %7510 = vmatprep.mubr.bf16.mxu0 %v7239
      %7511 = vmatmul.mubr.bf16.gmra.mxu0 %v7238
      %v7512 = vpop.f32.mrf.mxu0
      %v7513 = vadd.f32 0.0, %v7512
      %v7514 = vpop.f32.mrf.mxu0
      %v7515 = vpop.f32.mrf.mxu0
      %v7516 = vadd.f32 0.0, %v7515
      %v7517 = vpop.f32.mrf.mxu0
      %7518 = vmatprep.mubr.bf16.mxu0 %v7243
      %7519 = vmatmul.mubr.bf16.gmra.mxu0 %v7242
      %v7520 = vpop.f32.mrf.mxu0
      %v7521 = vadd.f32 0.0, %v7520
      %v7522 = vpop.f32.mrf.mxu0
      %v7523 = vpop.f32.mrf.mxu0
      %v7524 = vadd.f32 0.0, %v7523
      %v7525 = vpop.f32.mrf.mxu0
      %7526 = vmatprep.mubr.bf16.mxu0 %v7247
      %7527 = vmatmul.mubr.bf16.gmra.mxu0 %v7246
      %v7528 = vpop.f32.mrf.mxu0
      %v7529 = vadd.f32 0.0, %v7528
      %v7530 = vpop.f32.mrf.mxu0
      %v7531 = vpop.f32.mrf.mxu0
      %v7532 = vadd.f32 0.0, %v7531
      %v7533 = vpop.f32.mrf.mxu0
      %7534 = vmatprep.mubr.bf16.mxu0 %v7251
      %7535 = vmatmul.mubr.bf16.gmra.mxu0 %v7250
      %v7536 = vpop.f32.mrf.mxu0
      %v7537 = vadd.f32 0.0, %v7536
      %v7538 = vpop.f32.mrf.mxu0
      %v7539 = vpop.f32.mrf.mxu0
      %v7540 = vadd.f32 0.0, %v7539
      %v7541 = vpop.f32.mrf.mxu0
      %7542 = vmatprep.mubr.bf16.mxu0 %v7255
      %7543 = vmatmul.mubr.bf16.gmra.mxu0 %v7254
      %v7544 = vpop.f32.mrf.mxu0
      %v7545 = vadd.f32 0.0, %v7544
      %v7546 = vpop.f32.mrf.mxu0
      %v7547 = vpop.f32.mrf.mxu0
      %v7548 = vadd.f32 0.0, %v7547
      %v7549 = vpop.f32.mrf.mxu0
      %7550 = vmatprep.mubr.bf16.mxu0 %v7259
      %7551 = vmatmul.mubr.bf16.gmra.mxu0 %v7258
      %v7552 = vpop.f32.mrf.mxu0
      %v7553 = vpop.f32.mrf.mxu0
      %v7554 = vpop.f32.mrf.mxu0
      %v7555 = vpop.f32.mrf.mxu0
      %7556 = vdwg.mxu0
      %7557 = vmatprep.subr.bf16.mxu0 0
      %7558 = vmatpush1.bf16.msra.mxu0 %v7413
      %7559 = vmatprep.subr.bf16.mxu0 0
      %7560 = vmatpush1.bf16.msra.mxu0 %v7412
      %7561 = vmatprep.subr.bf16.mxu0 0
      %7562 = vmatpush1.bf16.msra.mxu0 %v7411
      %7563 = vmatprep.subr.bf16.mxu0 0
      %7564 = vmatpush1.bf16.msra.mxu0 %v7410
      %7565 = vmatprep.subr.bf16.mxu0 0
      %7566 = vmatpush1.bf16.msra.mxu0 %v7409
      %7567 = vmatprep.subr.bf16.mxu0 0
      %7568 = vmatpush1.bf16.msra.mxu0 %v7408
      %7569 = vmatprep.subr.bf16.mxu0 0
      %7570 = vmatpush1.bf16.msra.mxu0 %v7407
      %7571 = vmatprep.subr.bf16.mxu0 0
      %7572 = vmatpush1.bf16.msra.mxu0 %v7406
      %7573 = vmatprep.subr.bf16.mxu0 0
      %7574 = vmatpush2.bf16.msra.mxu0 %v7421
      %7575 = vmatprep.subr.bf16.mxu0 0
      %7576 = vmatpush2.bf16.msra.mxu0 %v7420
      %7577 = vmatprep.subr.bf16.mxu0 0
      %7578 = vmatpush2.bf16.msra.mxu0 %v7419
      %7579 = vmatprep.subr.bf16.mxu0 0
      %7580 = vmatpush2.bf16.msra.mxu0 %v7418
      %7581 = vmatprep.subr.bf16.mxu0 0
      %7582 = vmatpush2.bf16.msra.mxu0 %v7417
      %7583 = vmatprep.subr.bf16.mxu0 0
      %7584 = vmatpush2.bf16.msra.mxu0 %v7416
      %7585 = vmatprep.subr.bf16.mxu0 0
      %7586 = vmatpush2.bf16.msra.mxu0 %v7415
      %7587 = vmatprep.subr.bf16.mxu0 0
      %7588 = vmatpush2.bf16.msra.mxu0 %v7414
      %7589 = vmatprep.mubr.bf16.mxu0 %v7229
      %7590 = vmatmul.mubr.bf16.gmra.mxu0 %v7228
      %v7591 = vpop.f32.mrf.mxu0
      %v7592 = vadd.f32 %v7489, %v7591
      %v7593 = vpop.f32.mrf.mxu0
      %v7594 = vpop.f32.mrf.mxu0
      %v7595 = vadd.f32 %v7492, %v7594
      %v7596 = vpop.f32.mrf.mxu0
      %7597 = vmatprep.mubr.bf16.mxu0 %v7233
      %7598 = vmatmul.mubr.bf16.gmra.mxu0 %v7232
      %v7599 = vpop.f32.mrf.mxu0
      %v7600 = vadd.f32 %v7497, %v7599
      %v7601 = vpop.f32.mrf.mxu0
      %v7602 = vpop.f32.mrf.mxu0
      %v7603 = vadd.f32 %v7500, %v7602
      %v7604 = vpop.f32.mrf.mxu0
      %7605 = vmatprep.mubr.bf16.mxu0 %v7237
      %7606 = vmatmul.mubr.bf16.gmra.mxu0 %v7236
      %v7607 = vpop.f32.mrf.mxu0
      %v7608 = vadd.f32 %v7505, %v7607
      %v7609 = vpop.f32.mrf.mxu0
      %v7610 = vpop.f32.mrf.mxu0
      %v7611 = vadd.f32 %v7508, %v7610
      %v7612 = vpop.f32.mrf.mxu0
      %7613 = vmatprep.mubr.bf16.mxu0 %v7241
      %7614 = vmatmul.mubr.bf16.gmra.mxu0 %v7240
      %v7615 = vpop.f32.mrf.mxu0
      %v7616 = vadd.f32 %v7513, %v7615
      %v7617 = vpop.f32.mrf.mxu0
      %v7618 = vpop.f32.mrf.mxu0
      %v7619 = vadd.f32 %v7516, %v7618
      %v7620 = vpop.f32.mrf.mxu0
      %7621 = vmatprep.mubr.bf16.mxu0 %v7245
      %7622 = vmatmul.mubr.bf16.gmra.mxu0 %v7244
      %v7623 = vpop.f32.mrf.mxu0
      %v7624 = vadd.f32 %v7521, %v7623
      %v7625 = vpop.f32.mrf.mxu0
      %v7626 = vpop.f32.mrf.mxu0
      %v7627 = vadd.f32 %v7524, %v7626
      %v7628 = vpop.f32.mrf.mxu0
      %7629 = vmatprep.mubr.bf16.mxu0 %v7249
      %7630 = vmatmul.mubr.bf16.gmra.mxu0 %v7248
      %v7631 = vpop.f32.mrf.mxu0
      %v7632 = vadd.f32 %v7529, %v7631
      %v7633 = vpop.f32.mrf.mxu0
      %v7634 = vpop.f32.mrf.mxu0
      %v7635 = vadd.f32 %v7532, %v7634
      %v7636 = vpop.f32.mrf.mxu0
      %7637 = vmatprep.mubr.bf16.mxu0 %v7253
      %7638 = vmatmul.mubr.bf16.gmra.mxu0 %v7252
      %v7639 = vpop.f32.mrf.mxu0
      %v7640 = vadd.f32 %v7537, %v7639
      %v7641 = vpop.f32.mrf.mxu0
      %v7642 = vpop.f32.mrf.mxu0
      %v7643 = vadd.f32 %v7540, %v7642
      %v7644 = vpop.f32.mrf.mxu0
      %7645 = vmatprep.mubr.bf16.mxu0 %v7257
      %7646 = vmatmul.mubr.bf16.gmra.mxu0 %v7256
      %v7647 = vpop.f32.mrf.mxu0
      %v7648 = vadd.f32 %v7545, %v7647
      %v7649 = vpop.f32.mrf.mxu0
      %v7650 = vpop.f32.mrf.mxu0
      %v7651 = vadd.f32 %v7548, %v7650
      %v7652 = vpop.f32.mrf.mxu0
      %7653 = vmatprep.mubr.bf16.mxu0 %v7261
      %7654 = vmatmul.mubr.bf16.gmra.mxu0 %v7260
      %v7655 = vpop.f32.mrf.mxu0
      %v7656 = vpop.f32.mrf.mxu0
      %v7657 = vpop.f32.mrf.mxu0
      %v7658 = vpop.f32.mrf.mxu0
      %7659 = vdwg.mxu0
      %v7660 = vadd.f32 %v6141, %v7592
      %v7661 = vadd.f32 %v6142, %v7595
      %v7662 = vadd.f32 %v6143, %v7600
      %v7663 = vadd.f32 %v6144, %v7603
      %v7664 = vadd.f32 %v6145, %v7608
      %v7665 = vadd.f32 %v6146, %v7611
      %v7666 = vadd.f32 %v6147, %v7616
      %v7667 = vadd.f32 %v6148, %v7619
      %v7668 = vadd.f32 %v6149, %v7624
      %v7669 = vadd.f32 %v6150, %v7627
      %v7670 = vadd.f32 %v6151, %v7632
      %v7671 = vadd.f32 %v6152, %v7635
      %v7672 = vadd.f32 %v6153, %v7640
      %v7673 = vadd.f32 %v6154, %v7643
      %v7674 = vadd.f32 %v6155, %v7648
      %v7675 = vadd.f32 %v6156, %v7651
      %s7676 = scalar_lea.vmem %s33, 1
      %v7677 = vld [vmem:[%s7676] sm:$0x1]
      %v7679 = vlaneseq
      %v7680 = vshrl.u32 %v7679, 7
      %v7681 = vsub.s32 0, %v7680
      %v7682 = vrot.slane %v7677, %v7681
      %v7684 = vadd.f32 %v7660, %v7682
      %v7685 = vadd.f32 %v7661, %v7682
      %v7686 = vadd.f32 %v7662, %v7682
      %v7687 = vadd.f32 %v7663, %v7682
      %v7688 = vadd.f32 %v7664, %v7682
      %v7689 = vadd.f32 %v7665, %v7682
      %v7690 = vadd.f32 %v7666, %v7682
      %v7691 = vadd.f32 %v7667, %v7682
      %v7692 = vadd.f32 %v7668, %v7682
      %v7693 = vadd.f32 %v7669, %v7682
      %v7694 = vadd.f32 %v7670, %v7682
      %v7695 = vadd.f32 %v7671, %v7682
      %v7696 = vadd.f32 %v7672, %v7682
      %v7697 = vadd.f32 %v7673, %v7682
      %v7698 = vadd.f32 %v7674, %v7682
      %v7699 = vadd.f32 %v7675, %v7682
      %s7700 = scalar_lea.vmem %s35, 1
      %v7701 = vld [vmem:[%s7700] sm:$0x1]
      %s7702 = scalar_lea.vmem %s37, 1
      %v7703 = vld [vmem:[%s7702] sm:$0x1]
      %v7704 = vsel %vm1557, %v7684, 0.0
      %7705 = vadd.xlane.f32.xlu0 %v7704
      %v7706 = vpop.xlane.xlu0 %7705
      %v7707 = vsel %vm1557, %v7685, 0.0
      %7708 = vadd.xlane.f32.xlu0 %v7707
      %v7709 = vpop.xlane.xlu0 %7708
      %v7710 = vsel %vm1557, %v7686, 0.0
      %7711 = vadd.xlane.f32.xlu0 %v7710
      %v7712 = vpop.xlane.xlu0 %7711
      %v7713 = vsel %vm1557, %v7687, 0.0
      %7714 = vadd.xlane.f32.xlu0 %v7713
      %v7715 = vpop.xlane.xlu0 %7714
      %v7716 = vsel %vm1557, %v7688, 0.0
      %7717 = vadd.xlane.f32.xlu0 %v7716
      %v7718 = vpop.xlane.xlu0 %7717
      %v7719 = vsel %vm1557, %v7689, 0.0
      %7720 = vadd.xlane.f32.xlu0 %v7719
      %v7721 = vpop.xlane.xlu0 %7720
      %v7722 = vsel %vm1557, %v7690, 0.0
      %7723 = vadd.xlane.f32.xlu0 %v7722
      %v7724 = vpop.xlane.xlu0 %7723
      %v7725 = vsel %vm1557, %v7691, 0.0
      %7726 = vadd.xlane.f32.xlu0 %v7725
      %v7727 = vpop.xlane.xlu0 %7726
      %v7728 = vsel %vm1557, %v7692, 0.0
      %7729 = vadd.xlane.f32.xlu0 %v7728
      %v7730 = vpop.xlane.xlu0 %7729
      %v7731 = vsel %vm1557, %v7693, 0.0
      %7732 = vadd.xlane.f32.xlu0 %v7731
      %v7733 = vpop.xlane.xlu0 %7732
      %v7734 = vsel %vm1557, %v7694, 0.0
      %7735 = vadd.xlane.f32.xlu0 %v7734
      %v7736 = vpop.xlane.xlu0 %7735
      %v7737 = vsel %vm1557, %v7695, 0.0
      %7738 = vadd.xlane.f32.xlu0 %v7737
      %v7739 = vpop.xlane.xlu0 %7738
      %v7740 = vsel %vm1557, %v7696, 0.0
      %7741 = vadd.xlane.f32.xlu0 %v7740
      %v7742 = vpop.xlane.xlu0 %7741
      %v7743 = vsel %vm1557, %v7697, 0.0
      %7744 = vadd.xlane.f32.xlu0 %v7743
      %v7745 = vpop.xlane.xlu0 %7744
      %v7746 = vsel %vm1557, %v7698, 0.0
      %7747 = vadd.xlane.f32.xlu0 %v7746
      %v7748 = vpop.xlane.xlu0 %7747
      %v7749 = vsel %vm1557, %v7699, 0.0
      %7750 = vadd.xlane.f32.xlu0 %v7749
      %v7751 = vpop.xlane.xlu0 %7750
      %v7752 = vmul.f32 %v7706, %v2697
      %v7753 = vmul.f32 %v7709, %v2697
      %v7754 = vmul.f32 %v7712, %v2697
      %v7755 = vmul.f32 %v7715, %v2697
      %v7756 = vmul.f32 %v7718, %v2697
      %v7757 = vmul.f32 %v7721, %v2697
      %v7758 = vmul.f32 %v7724, %v2697
      %v7759 = vmul.f32 %v7727, %v2697
      %v7760 = vmul.f32 %v7730, %v2697
      %v7761 = vmul.f32 %v7733, %v2697
      %v7762 = vmul.f32 %v7736, %v2697
      %v7763 = vmul.f32 %v7739, %v2697
      %v7764 = vmul.f32 %v7742, %v2697
      %v7765 = vmul.f32 %v7745, %v2697
      %v7766 = vmul.f32 %v7748, %v2697
      %v7767 = vmul.f32 %v7751, %v2697
      %v7768 = vsub.f32 %v7684, %v7752
      %v7769 = vsub.f32 %v7685, %v7753
      %v7770 = vsub.f32 %v7686, %v7754
      %v7771 = vsub.f32 %v7687, %v7755
      %v7772 = vsub.f32 %v7688, %v7756
      %v7773 = vsub.f32 %v7689, %v7757
      %v7774 = vsub.f32 %v7690, %v7758
      %v7775 = vsub.f32 %v7691, %v7759
      %v7776 = vsub.f32 %v7692, %v7760
      %v7777 = vsub.f32 %v7693, %v7761
      %v7778 = vsub.f32 %v7694, %v7762
      %v7779 = vsub.f32 %v7695, %v7763
      %v7780 = vsub.f32 %v7696, %v7764
      %v7781 = vsub.f32 %v7697, %v7765
      %v7782 = vsub.f32 %v7698, %v7766
      %v7783 = vsub.f32 %v7699, %v7767
      %v7784 = vmul.f32 %v7768, %v7768
      %v7785 = vmul.f32 %v7769, %v7769
      %v7786 = vmul.f32 %v7770, %v7770
      %v7787 = vmul.f32 %v7771, %v7771
      %v7788 = vmul.f32 %v7772, %v7772
      %v7789 = vmul.f32 %v7773, %v7773
      %v7790 = vmul.f32 %v7774, %v7774
      %v7791 = vmul.f32 %v7775, %v7775
      %v7792 = vmul.f32 %v7776, %v7776
      %v7793 = vmul.f32 %v7777, %v7777
      %v7794 = vmul.f32 %v7778, %v7778
      %v7795 = vmul.f32 %v7779, %v7779
      %v7796 = vmul.f32 %v7780, %v7780
      %v7797 = vmul.f32 %v7781, %v7781
      %v7798 = vmul.f32 %v7782, %v7782
      %v7799 = vmul.f32 %v7783, %v7783
      %v7800 = vsel %vm1557, %v7784, 0.0
      %7801 = vadd.xlane.f32.xlu0 %v7800
      %v7802 = vpop.xlane.xlu0 %7801
      %v7803 = vsel %vm1557, %v7785, 0.0
      %7804 = vadd.xlane.f32.xlu0 %v7803
      %v7805 = vpop.xlane.xlu0 %7804
      %v7806 = vsel %vm1557, %v7786, 0.0
      %7807 = vadd.xlane.f32.xlu0 %v7806
      %v7808 = vpop.xlane.xlu0 %7807
      %v7809 = vsel %vm1557, %v7787, 0.0
      %7810 = vadd.xlane.f32.xlu0 %v7809
      %v7811 = vpop.xlane.xlu0 %7810
      %v7812 = vsel %vm1557, %v7788, 0.0
      %7813 = vadd.xlane.f32.xlu0 %v7812
      %v7814 = vpop.xlane.xlu0 %7813
      %v7815 = vsel %vm1557, %v7789, 0.0
      %7816 = vadd.xlane.f32.xlu0 %v7815
      %v7817 = vpop.xlane.xlu0 %7816
      %v7818 = vsel %vm1557, %v7790, 0.0
      %7819 = vadd.xlane.f32.xlu0 %v7818
      %v7820 = vpop.xlane.xlu0 %7819
      %v7821 = vsel %vm1557, %v7791, 0.0
      %7822 = vadd.xlane.f32.xlu0 %v7821
      %v7823 = vpop.xlane.xlu0 %7822
      %v7824 = vsel %vm1557, %v7792, 0.0
      %7825 = vadd.xlane.f32.xlu0 %v7824
      %v7826 = vpop.xlane.xlu0 %7825
      %v7827 = vsel %vm1557, %v7793, 0.0
      %7828 = vadd.xlane.f32.xlu0 %v7827
      %v7829 = vpop.xlane.xlu0 %7828
      %v7830 = vsel %vm1557, %v7794, 0.0
      %7831 = vadd.xlane.f32.xlu0 %v7830
      %v7832 = vpop.xlane.xlu0 %7831
      %v7833 = vsel %vm1557, %v7795, 0.0
      %7834 = vadd.xlane.f32.xlu0 %v7833
      %v7835 = vpop.xlane.xlu0 %7834
      %v7836 = vsel %vm1557, %v7796, 0.0
      %7837 = vadd.xlane.f32.xlu0 %v7836
      %v7838 = vpop.xlane.xlu0 %7837
      %v7839 = vsel %vm1557, %v7797, 0.0
      %7840 = vadd.xlane.f32.xlu0 %v7839
      %v7841 = vpop.xlane.xlu0 %7840
      %v7842 = vsel %vm1557, %v7798, 0.0
      %7843 = vadd.xlane.f32.xlu0 %v7842
      %v7844 = vpop.xlane.xlu0 %7843
      %v7845 = vsel %vm1557, %v7799, 0.0
      %7846 = vadd.xlane.f32.xlu0 %v7845
      %v7847 = vpop.xlane.xlu0 %7846
      %v7848 = vmul.f32 %v7802, %v2697
      %v7849 = vmul.f32 %v7805, %v2697
      %v7850 = vmul.f32 %v7808, %v2697
      %v7851 = vmul.f32 %v7811, %v2697
      %v7852 = vmul.f32 %v7814, %v2697
      %v7853 = vmul.f32 %v7817, %v2697
      %v7854 = vmul.f32 %v7820, %v2697
      %v7855 = vmul.f32 %v7823, %v2697
      %v7856 = vmul.f32 %v7826, %v2697
      %v7857 = vmul.f32 %v7829, %v2697
      %v7858 = vmul.f32 %v7832, %v2697
      %v7859 = vmul.f32 %v7835, %v2697
      %v7860 = vmul.f32 %v7838, %v2697
      %v7861 = vmul.f32 %v7841, %v2697
      %v7862 = vmul.f32 %v7844, %v2697
      %v7863 = vmul.f32 %v7847, %v2697
      %v7864 = vadd.f32 %v7848, 1e-12
      %v7865 = vadd.f32 %v7849, 1e-12
      %v7866 = vadd.f32 %v7850, 1e-12
      %v7867 = vadd.f32 %v7851, 1e-12
      %v7868 = vadd.f32 %v7852, 1e-12
      %v7869 = vadd.f32 %v7853, 1e-12
      %v7870 = vadd.f32 %v7854, 1e-12
      %v7871 = vadd.f32 %v7855, 1e-12
      %v7872 = vadd.f32 %v7856, 1e-12
      %v7873 = vadd.f32 %v7857, 1e-12
      %v7874 = vadd.f32 %v7858, 1e-12
      %v7875 = vadd.f32 %v7859, 1e-12
      %v7876 = vadd.f32 %v7860, 1e-12
      %v7877 = vadd.f32 %v7861, 1e-12
      %v7878 = vadd.f32 %v7862, 1e-12
      %v7879 = vadd.f32 %v7863, 1e-12
      %v7880 = vrsqrt.pop %v7864
      %v7881 = vrsqrt.pop %v7865
      %v7882 = vrsqrt.pop %v7866
      %v7883 = vrsqrt.pop %v7867
      %v7884 = vrsqrt.pop %v7868
      %v7885 = vrsqrt.pop %v7869
      %v7886 = vrsqrt.pop %v7870
      %v7887 = vrsqrt.pop %v7871
      %v7888 = vrsqrt.pop %v7872
      %v7889 = vrsqrt.pop %v7873
      %v7890 = vrsqrt.pop %v7874
      %v7891 = vrsqrt.pop %v7875
      %v7892 = vrsqrt.pop %v7876
      %v7893 = vrsqrt.pop %v7877
      %v7894 = vrsqrt.pop %v7878
      %v7895 = vrsqrt.pop %v7879
      %v7896 = vmul.f32 %v7768, %v7880
      %v7897 = vmul.f32 %v7769, %v7881
      %v7898 = vmul.f32 %v7770, %v7882
      %v7899 = vmul.f32 %v7771, %v7883
      %v7900 = vmul.f32 %v7772, %v7884
      %v7901 = vmul.f32 %v7773, %v7885
      %v7902 = vmul.f32 %v7774, %v7886
      %v7903 = vmul.f32 %v7775, %v7887
      %v7904 = vmul.f32 %v7776, %v7888
      %v7905 = vmul.f32 %v7777, %v7889
      %v7906 = vmul.f32 %v7778, %v7890
      %v7907 = vmul.f32 %v7779, %v7891
      %v7908 = vmul.f32 %v7780, %v7892
      %v7909 = vmul.f32 %v7781, %v7893
      %v7910 = vmul.f32 %v7782, %v7894
      %v7911 = vmul.f32 %v7783, %v7895
      %v7913 = vlaneseq
      %v7914 = vshrl.u32 %v7913, 7
      %v7915 = vsub.s32 0, %v7914
      %v7916 = vrot.slane %v7701, %v7915
      %v7918 = vmul.f32 %v7896, %v7916
      %v7919 = vmul.f32 %v7897, %v7916
      %v7920 = vmul.f32 %v7898, %v7916
      %v7921 = vmul.f32 %v7899, %v7916
      %v7922 = vmul.f32 %v7900, %v7916
      %v7923 = vmul.f32 %v7901, %v7916
      %v7924 = vmul.f32 %v7902, %v7916
      %v7925 = vmul.f32 %v7903, %v7916
      %v7926 = vmul.f32 %v7904, %v7916
      %v7927 = vmul.f32 %v7905, %v7916
      %v7928 = vmul.f32 %v7906, %v7916
      %v7929 = vmul.f32 %v7907, %v7916
      %v7930 = vmul.f32 %v7908, %v7916
      %v7931 = vmul.f32 %v7909, %v7916
      %v7932 = vmul.f32 %v7910, %v7916
      %v7933 = vmul.f32 %v7911, %v7916
      %v7935 = vlaneseq
      %v7936 = vshrl.u32 %v7935, 7
      %v7937 = vsub.s32 0, %v7936
      %v7938 = vrot.slane %v7703, %v7937
      %v7940 = vadd.f32 %v7918, %v7938
      %v7941 = vadd.f32 %v7919, %v7938
      %v7942 = vadd.f32 %v7920, %v7938
      %v7943 = vadd.f32 %v7921, %v7938
      %v7944 = vadd.f32 %v7922, %v7938
      %v7945 = vadd.f32 %v7923, %v7938
      %v7946 = vadd.f32 %v7924, %v7938
      %v7947 = vadd.f32 %v7925, %v7938
      %v7948 = vadd.f32 %v7926, %v7938
      %v7949 = vadd.f32 %v7927, %v7938
      %v7950 = vadd.f32 %v7928, %v7938
      %v7951 = vadd.f32 %v7929, %v7938
      %v7952 = vadd.f32 %v7930, %v7938
      %v7953 = vadd.f32 %v7931, %v7938
      %v7954 = vadd.f32 %v7932, %v7938
      %v7955 = vadd.f32 %v7933, %v7938
      %v7956 = vmul.f32 %v7940, %v7940
      %v7957 = vmul.f32 %v7941, %v7941
      %v7958 = vmul.f32 %v7942, %v7942
      %v7959 = vmul.f32 %v7943, %v7943
      %v7960 = vmul.f32 %v7944, %v7944
      %v7961 = vmul.f32 %v7945, %v7945
      %v7962 = vmul.f32 %v7946, %v7946
      %v7963 = vmul.f32 %v7947, %v7947
      %v7964 = vmul.f32 %v7948, %v7948
      %v7965 = vmul.f32 %v7949, %v7949
      %v7966 = vmul.f32 %v7950, %v7950
      %v7967 = vmul.f32 %v7951, %v7951
      %v7968 = vmul.f32 %v7952, %v7952
      %v7969 = vmul.f32 %v7953, %v7953
      %v7970 = vmul.f32 %v7954, %v7954
      %v7971 = vmul.f32 %v7955, %v7955
      %v7972 = vsel %vm1557, %v7956, 0.0
      %7973 = vadd.xlane.f32.xlu0 %v7972
      %v7974 = vpop.xlane.xlu0 %7973
      %v7975 = vsel %vm1557, %v7957, 0.0
      %7976 = vadd.xlane.f32.xlu0 %v7975
      %v7977 = vpop.xlane.xlu0 %7976
      %v7978 = vsel %vm1557, %v7958, 0.0
      %7979 = vadd.xlane.f32.xlu0 %v7978
      %v7980 = vpop.xlane.xlu0 %7979
      %v7981 = vsel %vm1557, %v7959, 0.0
      %7982 = vadd.xlane.f32.xlu0 %v7981
      %v7983 = vpop.xlane.xlu0 %7982
      %v7984 = vsel %vm1557, %v7960, 0.0
      %7985 = vadd.xlane.f32.xlu0 %v7984
      %v7986 = vpop.xlane.xlu0 %7985
      %v7987 = vsel %vm1557, %v7961, 0.0
      %7988 = vadd.xlane.f32.xlu0 %v7987
      %v7989 = vpop.xlane.xlu0 %7988
      %v7990 = vsel %vm1557, %v7962, 0.0
      %7991 = vadd.xlane.f32.xlu0 %v7990
      %v7992 = vpop.xlane.xlu0 %7991
      %v7993 = vsel %vm1557, %v7963, 0.0
      %7994 = vadd.xlane.f32.xlu0 %v7993
      %v7995 = vpop.xlane.xlu0 %7994
      %v7996 = vsel %vm1557, %v7964, 0.0
      %7997 = vadd.xlane.f32.xlu0 %v7996
      %v7998 = vpop.xlane.xlu0 %7997
      %v7999 = vsel %vm1557, %v7965, 0.0
      %8000 = vadd.xlane.f32.xlu0 %v7999
      %v8001 = vpop.xlane.xlu0 %8000
      %v8002 = vsel %vm1557, %v7966, 0.0
      %8003 = vadd.xlane.f32.xlu0 %v8002
      %v8004 = vpop.xlane.xlu0 %8003
      %v8005 = vsel %vm1557, %v7967, 0.0
      %8006 = vadd.xlane.f32.xlu0 %v8005
      %v8007 = vpop.xlane.xlu0 %8006
      %v8008 = vsel %vm1557, %v7968, 0.0
      %8009 = vadd.xlane.f32.xlu0 %v8008
      %v8010 = vpop.xlane.xlu0 %8009
      %v8011 = vsel %vm1557, %v7969, 0.0
      %8012 = vadd.xlane.f32.xlu0 %v8011
      %v8013 = vpop.xlane.xlu0 %8012
      %v8014 = vsel %vm1557, %v7970, 0.0
      %8015 = vadd.xlane.f32.xlu0 %v8014
      %v8016 = vpop.xlane.xlu0 %8015
      %v8017 = vsel %vm1557, %v7971, 0.0
      %8018 = vadd.xlane.f32.xlu0 %v8017
      %v8019 = vpop.xlane.xlu0 %8018
      %v8020 = vld [vmem:[%s39] sm:$0xff]
      %v8021 = vld [vmem:[%s39 + $0x8] sm:$0xff]
      %v8022 = vld [vmem:[%s39 + $0x10] sm:$0xff]
      %v8023 = vld [vmem:[%s39 + $0x18] sm:$0xff]
      %v8024 = vld [vmem:[%s39 + $0x20] sm:$0xff]
      %v8025 = vld [vmem:[%s39 + $0x28] sm:$0xff]
      %v8026 = vld [vmem:[%s39 + $0x30] sm:$0xff]
      %v8027 = vld [vmem:[%s39 + $0x38] sm:$0xff]
      %v8029 = vsel %vm1557, %v7940, 0
      %v8032 = vsel %vm1557, %v7941, 0
      %v8035 = vsel %vm1557, %v7942, 0
      %v8038 = vsel %vm1557, %v7943, 0
      %v8041 = vsel %vm1557, %v7944, 0
      %v8044 = vsel %vm1557, %v7945, 0
      %v8047 = vsel %vm1557, %v7946, 0
      %v8050 = vsel %vm1557, %v7947, 0
      %v8053 = vsel %vm1557, %v7948, 0
      %v8056 = vsel %vm1557, %v7949, 0
      %v8059 = vsel %vm1557, %v7950, 0
      %v8062 = vsel %vm1557, %v7951, 0
      %v8065 = vsel %vm1557, %v7952, 0
      %v8068 = vsel %vm1557, %v7953, 0
      %v8071 = vsel %vm1557, %v7954, 0
      %v8074 = vsel %vm1557, %v7955, 0
      %v8077 = vsel %vm1557, %v8020, 0
      %v8080 = vsel %vm1557, %v8021, 0
      %v8083 = vsel %vm1557, %v8022, 0
      %v8086 = vsel %vm1557, %v8023, 0
      %v8089 = vsel %vm1557, %v8024, 0
      %v8092 = vsel %vm1557, %v8025, 0
      %v8095 = vsel %vm1557, %v8026, 0
      %v8098 = vsel %vm1557, %v8027, 0
      %8100 = vmatprep.subr.mxu0 0.0
      %8101 = vmatpush1.xpose.msra.mxu0 0.0
      %8102 = vmatprep.subr.mxu0 0.0
      %8103 = vmatpush1.xpose.msra.mxu0 0.0
      %8104 = vmatprep.subr.mxu0 0.0
      %8105 = vmatpush1.xpose.msra.mxu0 0.0
      %8106 = vmatprep.subr.mxu0 0.0
      %8107 = vmatpush1.xpose.msra.mxu0 0.0
      %8108 = vmatprep.subr.mxu0 0.0
      %8109 = vmatpush1.xpose.msra.mxu0 0.0
      %8110 = vmatprep.subr.mxu0 0.0
      %8111 = vmatpush1.xpose.msra.mxu0 0.0
      %8112 = vmatprep.subr.mxu0 0.0
      %8113 = vmatpush1.xpose.msra.mxu0 0.0
      %8114 = vmatprep.subr.mxu0 0.0
      %8115 = vmatpush1.xpose.msra.mxu0 0.0
      %8116 = vmatprep.subr.mxu0 0.0
      %8117 = vmatpush1.xpose.msra.mxu0 %v8098
      %8118 = vmatprep.subr.mxu0 0.0
      %8119 = vmatpush1.xpose.msra.mxu0 %v8095
      %8120 = vmatprep.subr.mxu0 0.0
      %8121 = vmatpush1.xpose.msra.mxu0 %v8092
      %8122 = vmatprep.subr.mxu0 0.0
      %8123 = vmatpush1.xpose.msra.mxu0 %v8089
      %8124 = vmatprep.subr.mxu0 0.0
      %8125 = vmatpush1.xpose.msra.mxu0 %v8086
      %8126 = vmatprep.subr.mxu0 0.0
      %8127 = vmatpush1.xpose.msra.mxu0 %v8083
      %8128 = vmatprep.subr.mxu0 0.0
      %8129 = vmatpush1.xpose.msra.mxu0 %v8080
      %8130 = vmatprep.subr.mxu0 0.0
      %8131 = vmatpush1.xpose.msra.mxu0 %v8077
      %8132 = vmatprep.subr.mxu0 0.0
      %8133 = vmatpush2.xpose.msra.mxu0 0.0
      %8134 = vmatprep.subr.mxu0 0.0
      %8135 = vmatpush2.xpose.msra.mxu0 0.0
      %8136 = vmatprep.subr.mxu0 0.0
      %8137 = vmatpush2.xpose.msra.mxu0 0.0
      %8138 = vmatprep.subr.mxu0 0.0
      %8139 = vmatpush2.xpose.msra.mxu0 0.0
      %8140 = vmatprep.subr.mxu0 0.0
      %8141 = vmatpush2.xpose.msra.mxu0 0.0
      %8142 = vmatprep.subr.mxu0 0.0
      %8143 = vmatpush2.xpose.msra.mxu0 0.0
      %8144 = vmatprep.subr.mxu0 0.0
      %8145 = vmatpush2.xpose.msra.mxu0 0.0
      %8146 = vmatprep.subr.mxu0 0.0
      %8147 = vmatpush2.xpose.msra.mxu0 0.0
      %8148 = vmatprep.subr.mxu0 0.0
      %8149 = vmatpush2.xpose.msra.mxu0 0.0
      %8150 = vmatprep.subr.mxu0 0.0
      %8151 = vmatpush2.xpose.msra.mxu0 0.0
      %8152 = vmatprep.subr.mxu0 0.0
      %8153 = vmatpush2.xpose.msra.mxu0 0.0
      %8154 = vmatprep.subr.mxu0 0.0
      %8155 = vmatpush2.xpose.msra.mxu0 0.0
      %8156 = vmatprep.subr.mxu0 0.0
      %8157 = vmatpush2.xpose.msra.mxu0 0.0
      %8158 = vmatprep.subr.mxu0 0.0
      %8159 = vmatpush2.xpose.msra.mxu0 0.0
      %8160 = vmatprep.subr.mxu0 0.0
      %8161 = vmatpush2.xpose.msra.mxu0 0.0
      %8162 = vmatprep.subr.mxu0 0.0
      %8163 = vmatpush2.xpose.msra.mxu0 0.0
      %8164 = vmatprep.mubr.f32.mxu0 0.0
      %8165 = vmatmul.mubr.f32.gmra.mxu0 %v8029
      %v8166 = vpop.f32.mrf.mxu0
      %v8167 = vadd.f32 0.0, %v8166
      %v8168 = vpop.f32.mrf.mxu0
      %8169 = vmatprep.mubr.f32.mxu0 0.0
      %8170 = vmatmul.mubr.f32.gmra.mxu0 %v8032
      %v8171 = vpop.f32.mrf.mxu0
      %v8172 = vadd.f32 0.0, %v8171
      %v8173 = vpop.f32.mrf.mxu0
      %8174 = vmatprep.mubr.f32.mxu0 0.0
      %8175 = vmatmul.mubr.f32.gmra.mxu0 %v8035
      %v8176 = vpop.f32.mrf.mxu0
      %v8177 = vadd.f32 0.0, %v8176
      %v8178 = vpop.f32.mrf.mxu0
      %8179 = vmatprep.mubr.f32.mxu0 0.0
      %8180 = vmatmul.mubr.f32.gmra.mxu0 %v8038
      %v8181 = vpop.f32.mrf.mxu0
      %v8182 = vadd.f32 0.0, %v8181
      %v8183 = vpop.f32.mrf.mxu0
      %8184 = vmatprep.mubr.f32.mxu0 0.0
      %8185 = vmatmul.mubr.f32.gmra.mxu0 %v8041
      %v8186 = vpop.f32.mrf.mxu0
      %v8187 = vadd.f32 0.0, %v8186
      %v8188 = vpop.f32.mrf.mxu0
      %8189 = vmatprep.mubr.f32.mxu0 0.0
      %8190 = vmatmul.mubr.f32.gmra.mxu0 %v8044
      %v8191 = vpop.f32.mrf.mxu0
      %v8192 = vadd.f32 0.0, %v8191
      %v8193 = vpop.f32.mrf.mxu0
      %8194 = vmatprep.mubr.f32.mxu0 0.0
      %8195 = vmatmul.mubr.f32.gmra.mxu0 %v8047
      %v8196 = vpop.f32.mrf.mxu0
      %v8197 = vadd.f32 0.0, %v8196
      %v8198 = vpop.f32.mrf.mxu0
      %8199 = vmatprep.mubr.f32.mxu0 0.0
      %8200 = vmatmul.mubr.f32.gmra.mxu0 %v8050
      %v8201 = vpop.f32.mrf.mxu0
      %v8202 = vadd.f32 0.0, %v8201
      %v8203 = vpop.f32.mrf.mxu0
      %8204 = vmatprep.mubr.f32.mxu0 0.0
      %8205 = vmatmul.mubr.f32.gmra.mxu0 %v8053
      %v8206 = vpop.f32.mrf.mxu0
      %v8207 = vadd.f32 0.0, %v8206
      %v8208 = vpop.f32.mrf.mxu0
      %8209 = vmatprep.mubr.f32.mxu0 0.0
      %8210 = vmatmul.mubr.f32.gmra.mxu0 %v8056
      %v8211 = vpop.f32.mrf.mxu0
      %v8212 = vadd.f32 0.0, %v8211
      %v8213 = vpop.f32.mrf.mxu0
      %8214 = vmatprep.mubr.f32.mxu0 0.0
      %8215 = vmatmul.mubr.f32.gmra.mxu0 %v8059
      %v8216 = vpop.f32.mrf.mxu0
      %v8217 = vadd.f32 0.0, %v8216
      %v8218 = vpop.f32.mrf.mxu0
      %8219 = vmatprep.mubr.f32.mxu0 0.0
      %8220 = vmatmul.mubr.f32.gmra.mxu0 %v8062
      %v8221 = vpop.f32.mrf.mxu0
      %v8222 = vadd.f32 0.0, %v8221
      %v8223 = vpop.f32.mrf.mxu0
      %8224 = vmatprep.mubr.f32.mxu0 0.0
      %8225 = vmatmul.mubr.f32.gmra.mxu0 %v8065
      %v8226 = vpop.f32.mrf.mxu0
      %v8227 = vadd.f32 0.0, %v8226
      %v8228 = vpop.f32.mrf.mxu0
      %8229 = vmatprep.mubr.f32.mxu0 0.0
      %8230 = vmatmul.mubr.f32.gmra.mxu0 %v8068
      %v8231 = vpop.f32.mrf.mxu0
      %v8232 = vadd.f32 0.0, %v8231
      %v8233 = vpop.f32.mrf.mxu0
      %8234 = vmatprep.mubr.f32.mxu0 0.0
      %8235 = vmatmul.mubr.f32.gmra.mxu0 %v8071
      %v8236 = vpop.f32.mrf.mxu0
      %v8237 = vadd.f32 0.0, %v8236
      %v8238 = vpop.f32.mrf.mxu0
      %8239 = vmatprep.mubr.f32.mxu0 0.0
      %8240 = vmatmul.mubr.f32.gmra.mxu0 %v8074
      %v8241 = vpop.f32.mrf.mxu0
      %v8242 = vadd.f32 0.0, %v8241
      %v8243 = vpop.f32.mrf.mxu0
      %8244 = vdwg.mxu0
      %v8245 = vld [vmem:[%s41] sm:$0x1]
      %v8247 = vlaneseq
      %v8248 = vshrl.u32 %v8247, 7
      %v8249 = vsub.s32 0, %v8248
      %v8250 = vrot.slane %v8245, %v8249
      %v8252 = vadd.f32 %v7974, %v8250
      %v8253 = vadd.f32 %v7977, %v8250
      %v8254 = vadd.f32 %v7980, %v8250
      %v8255 = vadd.f32 %v7983, %v8250
      %v8256 = vadd.f32 %v7986, %v8250
      %v8257 = vadd.f32 %v7989, %v8250
      %v8258 = vadd.f32 %v7992, %v8250
      %v8259 = vadd.f32 %v7995, %v8250
      %v8260 = vadd.f32 %v7998, %v8250
      %v8261 = vadd.f32 %v8001, %v8250
      %v8262 = vadd.f32 %v8004, %v8250
      %v8263 = vadd.f32 %v8007, %v8250
      %v8264 = vadd.f32 %v8010, %v8250
      %v8265 = vadd.f32 %v8013, %v8250
      %v8266 = vadd.f32 %v8016, %v8250
      %v8267 = vadd.f32 %v8019, %v8250
      %v8268 = vmul.f32 %v8167, 2.0
      %v8269 = vmul.f32 %v8172, 2.0
      %v8270 = vmul.f32 %v8177, 2.0
      %v8271 = vmul.f32 %v8182, 2.0
      %v8272 = vmul.f32 %v8187, 2.0
      %v8273 = vmul.f32 %v8192, 2.0
      %v8274 = vmul.f32 %v8197, 2.0
      %v8275 = vmul.f32 %v8202, 2.0
      %v8276 = vmul.f32 %v8207, 2.0
      %v8277 = vmul.f32 %v8212, 2.0
      %v8278 = vmul.f32 %v8217, 2.0
      %v8279 = vmul.f32 %v8222, 2.0
      %v8280 = vmul.f32 %v8227, 2.0
      %v8281 = vmul.f32 %v8232, 2.0
      %v8282 = vmul.f32 %v8237, 2.0
      %v8283 = vmul.f32 %v8242, 2.0
      %v8284 = vsub.f32 %v8252, %v8268
      %v8285 = vsub.f32 %v8253, %v8269
      %v8286 = vsub.f32 %v8254, %v8270
      %v8287 = vsub.f32 %v8255, %v8271
      %v8288 = vsub.f32 %v8256, %v8272
      %v8289 = vsub.f32 %v8257, %v8273
      %v8290 = vsub.f32 %v8258, %v8274
      %v8291 = vsub.f32 %v8259, %v8275
      %v8292 = vsub.f32 %v8260, %v8276
      %v8293 = vsub.f32 %v8261, %v8277
      %v8294 = vsub.f32 %v8262, %v8278
      %v8295 = vsub.f32 %v8263, %v8279
      %v8296 = vsub.f32 %v8264, %v8280
      %v8297 = vsub.f32 %v8265, %v8281
      %v8298 = vsub.f32 %v8266, %v8282
      %v8299 = vsub.f32 %v8267, %v8283
      %v8300 = vlaneseq
      %v8301 = vand.u32 %v8300, 127
      %v8302 = vcvt.s32.f32 %v8301
      %v8303 = vsel %vm1189, %v8284, inf
      %8304 = vmin.xlane.f32.xlu0 %v8303
      %v8305 = vpop.xlane.xlu0 %8304
      %v8306 = vsel %vm1189, %v8285, inf
      %8307 = vmin.xlane.f32.xlu0 %v8306
      %v8308 = vpop.xlane.xlu0 %8307
      %v8309 = vsel %vm1189, %v8286, inf
      %8310 = vmin.xlane.f32.xlu0 %v8309
      %v8311 = vpop.xlane.xlu0 %8310
      %v8312 = vsel %vm1189, %v8287, inf
      %8313 = vmin.xlane.f32.xlu0 %v8312
      %v8314 = vpop.xlane.xlu0 %8313
      %v8315 = vsel %vm1189, %v8288, inf
      %8316 = vmin.xlane.f32.xlu0 %v8315
      %v8317 = vpop.xlane.xlu0 %8316
      %v8318 = vsel %vm1189, %v8289, inf
      %8319 = vmin.xlane.f32.xlu0 %v8318
      %v8320 = vpop.xlane.xlu0 %8319
      %v8321 = vsel %vm1189, %v8290, inf
      %8322 = vmin.xlane.f32.xlu0 %v8321
      %v8323 = vpop.xlane.xlu0 %8322
      %v8324 = vsel %vm1189, %v8291, inf
      %8325 = vmin.xlane.f32.xlu0 %v8324
      %v8326 = vpop.xlane.xlu0 %8325
      %v8327 = vsel %vm1189, %v8292, inf
      %8328 = vmin.xlane.f32.xlu0 %v8327
      %v8329 = vpop.xlane.xlu0 %8328
      %v8330 = vsel %vm1189, %v8293, inf
      %8331 = vmin.xlane.f32.xlu0 %v8330
      %v8332 = vpop.xlane.xlu0 %8331
      %v8333 = vsel %vm1189, %v8294, inf
      %8334 = vmin.xlane.f32.xlu0 %v8333
      %v8335 = vpop.xlane.xlu0 %8334
      %v8336 = vsel %vm1189, %v8295, inf
      %8337 = vmin.xlane.f32.xlu0 %v8336
      %v8338 = vpop.xlane.xlu0 %8337
      %v8339 = vsel %vm1189, %v8296, inf
      %8340 = vmin.xlane.f32.xlu0 %v8339
      %v8341 = vpop.xlane.xlu0 %8340
      %v8342 = vsel %vm1189, %v8297, inf
      %8343 = vmin.xlane.f32.xlu0 %v8342
      %v8344 = vpop.xlane.xlu0 %8343
      %v8345 = vsel %vm1189, %v8298, inf
      %8346 = vmin.xlane.f32.xlu0 %v8345
      %v8347 = vpop.xlane.xlu0 %8346
      %v8348 = vsel %vm1189, %v8299, inf
      %8349 = vmin.xlane.f32.xlu0 %v8348
      %v8350 = vpop.xlane.xlu0 %8349
      %vm8351 = vcmp.eq.f32.partialorder %v8284, %v8305
      %vm8352 = vcmp.eq.f32.partialorder %v8285, %v8308
      %vm8353 = vcmp.eq.f32.partialorder %v8286, %v8311
      %vm8354 = vcmp.eq.f32.partialorder %v8287, %v8314
      %vm8355 = vcmp.eq.f32.partialorder %v8288, %v8317
      %vm8356 = vcmp.eq.f32.partialorder %v8289, %v8320
      %vm8357 = vcmp.eq.f32.partialorder %v8290, %v8323
      %vm8358 = vcmp.eq.f32.partialorder %v8291, %v8326
      %vm8359 = vcmp.eq.f32.partialorder %v8292, %v8329
      %vm8360 = vcmp.eq.f32.partialorder %v8293, %v8332
      %vm8361 = vcmp.eq.f32.partialorder %v8294, %v8335
      %vm8362 = vcmp.eq.f32.partialorder %v8295, %v8338
      %vm8363 = vcmp.eq.f32.partialorder %v8296, %v8341
      %vm8364 = vcmp.eq.f32.partialorder %v8297, %v8344
      %vm8365 = vcmp.eq.f32.partialorder %v8298, %v8347
      %vm8366 = vcmp.eq.f32.partialorder %v8299, %v8350
      %v8367 = vsel %vm8351, %v8302, 64.0
      %v8368 = vsel %vm8352, %v8302, 64.0
      %v8369 = vsel %vm8353, %v8302, 64.0
      %v8370 = vsel %vm8354, %v8302, 64.0
      %v8371 = vsel %vm8355, %v8302, 64.0
      %v8372 = vsel %vm8356, %v8302, 64.0
      %v8373 = vsel %vm8357, %v8302, 64.0
      %v8374 = vsel %vm8358, %v8302, 64.0
      %v8375 = vsel %vm8359, %v8302, 64.0
      %v8376 = vsel %vm8360, %v8302, 64.0
      %v8377 = vsel %vm8361, %v8302, 64.0
      %v8378 = vsel %vm8362, %v8302, 64.0
      %v8379 = vsel %vm8363, %v8302, 64.0
      %v8380 = vsel %vm8364, %v8302, 64.0
      %v8381 = vsel %vm8365, %v8302, 64.0
      %v8382 = vsel %vm8366, %v8302, 64.0
      %v8383 = vsel %vm1189, %v8367, inf
      %8384 = vmin.xlane.f32.xlu0 %v8383
      %v8385 = vpop.xlane.xlu0 %8384
      %v8386 = vsel %vm1189, %v8368, inf
      %8387 = vmin.xlane.f32.xlu0 %v8386
      %v8388 = vpop.xlane.xlu0 %8387
      %v8389 = vsel %vm1189, %v8369, inf
      %8390 = vmin.xlane.f32.xlu0 %v8389
      %v8391 = vpop.xlane.xlu0 %8390
      %v8392 = vsel %vm1189, %v8370, inf
      %8393 = vmin.xlane.f32.xlu0 %v8392
      %v8394 = vpop.xlane.xlu0 %8393
      %v8395 = vsel %vm1189, %v8371, inf
      %8396 = vmin.xlane.f32.xlu0 %v8395
      %v8397 = vpop.xlane.xlu0 %8396
      %v8398 = vsel %vm1189, %v8372, inf
      %8399 = vmin.xlane.f32.xlu0 %v8398
      %v8400 = vpop.xlane.xlu0 %8399
      %v8401 = vsel %vm1189, %v8373, inf
      %8402 = vmin.xlane.f32.xlu0 %v8401
      %v8403 = vpop.xlane.xlu0 %8402
      %v8404 = vsel %vm1189, %v8374, inf
      %8405 = vmin.xlane.f32.xlu0 %v8404
      %v8406 = vpop.xlane.xlu0 %8405
      %v8407 = vsel %vm1189, %v8375, inf
      %8408 = vmin.xlane.f32.xlu0 %v8407
      %v8409 = vpop.xlane.xlu0 %8408
      %v8410 = vsel %vm1189, %v8376, inf
      %8411 = vmin.xlane.f32.xlu0 %v8410
      %v8412 = vpop.xlane.xlu0 %8411
      %v8413 = vsel %vm1189, %v8377, inf
      %8414 = vmin.xlane.f32.xlu0 %v8413
      %v8415 = vpop.xlane.xlu0 %8414
      %v8416 = vsel %vm1189, %v8378, inf
      %8417 = vmin.xlane.f32.xlu0 %v8416
      %v8418 = vpop.xlane.xlu0 %8417
      %v8419 = vsel %vm1189, %v8379, inf
      %8420 = vmin.xlane.f32.xlu0 %v8419
      %v8421 = vpop.xlane.xlu0 %8420
      %v8422 = vsel %vm1189, %v8380, inf
      %8423 = vmin.xlane.f32.xlu0 %v8422
      %v8424 = vpop.xlane.xlu0 %8423
      %v8425 = vsel %vm1189, %v8381, inf
      %8426 = vmin.xlane.f32.xlu0 %v8425
      %v8427 = vpop.xlane.xlu0 %8426
      %v8428 = vsel %vm1189, %v8382, inf
      %8429 = vmin.xlane.f32.xlu0 %v8428
      %v8430 = vpop.xlane.xlu0 %8429
      %vm8431 = vcmp.eq.f32.partialorder %v8302, %v8385
      %vm8432 = vcmp.eq.f32.partialorder %v8302, %v8388
      %vm8433 = vcmp.eq.f32.partialorder %v8302, %v8391
      %vm8434 = vcmp.eq.f32.partialorder %v8302, %v8394
      %vm8435 = vcmp.eq.f32.partialorder %v8302, %v8397
      %vm8436 = vcmp.eq.f32.partialorder %v8302, %v8400
      %vm8437 = vcmp.eq.f32.partialorder %v8302, %v8403
      %vm8438 = vcmp.eq.f32.partialorder %v8302, %v8406
      %vm8439 = vcmp.eq.f32.partialorder %v8302, %v8409
      %vm8440 = vcmp.eq.f32.partialorder %v8302, %v8412
      %vm8441 = vcmp.eq.f32.partialorder %v8302, %v8415
      %vm8442 = vcmp.eq.f32.partialorder %v8302, %v8418
      %vm8443 = vcmp.eq.f32.partialorder %v8302, %v8421
      %vm8444 = vcmp.eq.f32.partialorder %v8302, %v8424
      %vm8445 = vcmp.eq.f32.partialorder %v8302, %v8427
      %vm8446 = vcmp.eq.f32.partialorder %v8302, %v8430
      %v8447 = vsel %vm8431, 1, 0
      %v8448 = vsel %vm8432, 1, 0
      %v8449 = vsel %vm8433, 1, 0
      %v8450 = vsel %vm8434, 1, 0
      %v8451 = vsel %vm8435, 1, 0
      %v8452 = vsel %vm8436, 1, 0
      %v8453 = vsel %vm8437, 1, 0
      %v8454 = vsel %vm8438, 1, 0
      %v8455 = vsel %vm8439, 1, 0
      %v8456 = vsel %vm8440, 1, 0
      %v8457 = vsel %vm8441, 1, 0
      %v8458 = vsel %vm8442, 1, 0
      %v8459 = vsel %vm8443, 1, 0
      %v8460 = vsel %vm8444, 1, 0
      %v8461 = vsel %vm8445, 1, 0
      %v8462 = vsel %vm8446, 1, 0
      %v8463 = vcvt.s32.f32 %v8447
      %v8464 = vcvt.s32.f32 %v8448
      %v8465 = vcvt.s32.f32 %v8449
      %v8466 = vcvt.s32.f32 %v8450
      %v8467 = vcvt.s32.f32 %v8451
      %v8468 = vcvt.s32.f32 %v8452
      %v8469 = vcvt.s32.f32 %v8453
      %v8470 = vcvt.s32.f32 %v8454
      %v8471 = vcvt.s32.f32 %v8455
      %v8472 = vcvt.s32.f32 %v8456
      %v8473 = vcvt.s32.f32 %v8457
      %v8474 = vcvt.s32.f32 %v8458
      %v8475 = vcvt.s32.f32 %v8459
      %v8476 = vcvt.s32.f32 %v8460
      %v8477 = vcvt.s32.f32 %v8461
      %v8478 = vcvt.s32.f32 %v8462
      %v8480 = vsel %vm1189, %v8463, 0
      %v8483 = vsel %vm1189, %v8464, 0
      %v8486 = vsel %vm1189, %v8465, 0
      %v8489 = vsel %vm1189, %v8466, 0
      %v8492 = vsel %vm1189, %v8467, 0
      %v8495 = vsel %vm1189, %v8468, 0
      %v8498 = vsel %vm1189, %v8469, 0
      %v8501 = vsel %vm1189, %v8470, 0
      %v8504 = vsel %vm1189, %v8471, 0
      %v8507 = vsel %vm1189, %v8472, 0
      %v8510 = vsel %vm1189, %v8473, 0
      %v8513 = vsel %vm1189, %v8474, 0
      %v8516 = vsel %vm1189, %v8475, 0
      %v8519 = vsel %vm1189, %v8476, 0
      %v8522 = vsel %vm1189, %v8477, 0
      %v8525 = vsel %vm1189, %v8478, 0
      %8527 = vmatprep.subr.mxu0 0.0
      %8528 = vmatpush1.msra.mxu0 0.0
      %8529 = vmatprep.subr.mxu0 0.0
      %8530 = vmatpush1.msra.mxu0 0.0
      %8531 = vmatprep.subr.mxu0 0.0
      %8532 = vmatpush1.msra.mxu0 0.0
      %8533 = vmatprep.subr.mxu0 0.0
      %8534 = vmatpush1.msra.mxu0 0.0
      %8535 = vmatprep.subr.mxu0 0.0
      %8536 = vmatpush1.msra.mxu0 0.0
      %8537 = vmatprep.subr.mxu0 0.0
      %8538 = vmatpush1.msra.mxu0 0.0
      %8539 = vmatprep.subr.mxu0 0.0
      %8540 = vmatpush1.msra.mxu0 0.0
      %8541 = vmatprep.subr.mxu0 0.0
      %8542 = vmatpush1.msra.mxu0 0.0
      %8543 = vmatprep.subr.mxu0 0.0
      %8544 = vmatpush1.msra.mxu0 %v8027
      %8545 = vmatprep.subr.mxu0 0.0
      %8546 = vmatpush1.msra.mxu0 %v8026
      %8547 = vmatprep.subr.mxu0 0.0
      %8548 = vmatpush1.msra.mxu0 %v8025
      %8549 = vmatprep.subr.mxu0 0.0
      %8550 = vmatpush1.msra.mxu0 %v8024
      %8551 = vmatprep.subr.mxu0 0.0
      %8552 = vmatpush1.msra.mxu0 %v8023
      %8553 = vmatprep.subr.mxu0 0.0
      %8554 = vmatpush1.msra.mxu0 %v8022
      %8555 = vmatprep.subr.mxu0 0.0
      %8556 = vmatpush1.msra.mxu0 %v8021
      %8557 = vmatprep.subr.mxu0 0.0
      %8558 = vmatpush1.msra.mxu0 %v8020
      %8559 = vmatprep.subr.mxu0 0.0
      %8560 = vmatpush2.msra.mxu0 0.0
      %8561 = vmatprep.subr.mxu0 0.0
      %8562 = vmatpush2.msra.mxu0 0.0
      %8563 = vmatprep.subr.mxu0 0.0
      %8564 = vmatpush2.msra.mxu0 0.0
      %8565 = vmatprep.subr.mxu0 0.0
      %8566 = vmatpush2.msra.mxu0 0.0
      %8567 = vmatprep.subr.mxu0 0.0
      %8568 = vmatpush2.msra.mxu0 0.0
      %8569 = vmatprep.subr.mxu0 0.0
      %8570 = vmatpush2.msra.mxu0 0.0
      %8571 = vmatprep.subr.mxu0 0.0
      %8572 = vmatpush2.msra.mxu0 0.0
      %8573 = vmatprep.subr.mxu0 0.0
      %8574 = vmatpush2.msra.mxu0 0.0
      %8575 = vmatprep.subr.mxu0 0.0
      %8576 = vmatpush2.msra.mxu0 0.0
      %8577 = vmatprep.subr.mxu0 0.0
      %8578 = vmatpush2.msra.mxu0 0.0
      %8579 = vmatprep.subr.mxu0 0.0
      %8580 = vmatpush2.msra.mxu0 0.0
      %8581 = vmatprep.subr.mxu0 0.0
      %8582 = vmatpush2.msra.mxu0 0.0
      %8583 = vmatprep.subr.mxu0 0.0
      %8584 = vmatpush2.msra.mxu0 0.0
      %8585 = vmatprep.subr.mxu0 0.0
      %8586 = vmatpush2.msra.mxu0 0.0
      %8587 = vmatprep.subr.mxu0 0.0
      %8588 = vmatpush2.msra.mxu0 0.0
      %8589 = vmatprep.subr.mxu0 0.0
      %8590 = vmatpush2.msra.mxu0 0.0
      %8591 = vmatprep.mubr.f32.mxu0 0.0
      %8592 = vmatmul.mubr.f32.gmra.mxu0 %v8480
      %v8593 = vpop.f32.mrf.mxu0
      %v8594 = vadd.f32 0.0, %v8593
      %v8595 = vpop.f32.mrf.mxu0
      %8596 = vmatprep.mubr.f32.mxu0 0.0
      %8597 = vmatmul.mubr.f32.gmra.mxu0 %v8483
      %v8598 = vpop.f32.mrf.mxu0
      %v8599 = vadd.f32 0.0, %v8598
      %v8600 = vpop.f32.mrf.mxu0
      %8601 = vmatprep.mubr.f32.mxu0 0.0
      %8602 = vmatmul.mubr.f32.gmra.mxu0 %v8486
      %v8603 = vpop.f32.mrf.mxu0
      %v8604 = vadd.f32 0.0, %v8603
      %v8605 = vpop.f32.mrf.mxu0
      %8606 = vmatprep.mubr.f32.mxu0 0.0
      %8607 = vmatmul.mubr.f32.gmra.mxu0 %v8489
      %v8608 = vpop.f32.mrf.mxu0
      %v8609 = vadd.f32 0.0, %v8608
      %v8610 = vpop.f32.mrf.mxu0
      %8611 = vmatprep.mubr.f32.mxu0 0.0
      %8612 = vmatmul.mubr.f32.gmra.mxu0 %v8492
      %v8613 = vpop.f32.mrf.mxu0
      %v8614 = vadd.f32 0.0, %v8613
      %v8615 = vpop.f32.mrf.mxu0
      %8616 = vmatprep.mubr.f32.mxu0 0.0
      %8617 = vmatmul.mubr.f32.gmra.mxu0 %v8495
      %v8618 = vpop.f32.mrf.mxu0
      %v8619 = vadd.f32 0.0, %v8618
      %v8620 = vpop.f32.mrf.mxu0
      %8621 = vmatprep.mubr.f32.mxu0 0.0
      %8622 = vmatmul.mubr.f32.gmra.mxu0 %v8498
      %v8623 = vpop.f32.mrf.mxu0
      %v8624 = vadd.f32 0.0, %v8623
      %v8625 = vpop.f32.mrf.mxu0
      %8626 = vmatprep.mubr.f32.mxu0 0.0
      %8627 = vmatmul.mubr.f32.gmra.mxu0 %v8501
      %v8628 = vpop.f32.mrf.mxu0
      %v8629 = vadd.f32 0.0, %v8628
      %v8630 = vpop.f32.mrf.mxu0
      %8631 = vmatprep.mubr.f32.mxu0 0.0
      %8632 = vmatmul.mubr.f32.gmra.mxu0 %v8504
      %v8633 = vpop.f32.mrf.mxu0
      %v8634 = vadd.f32 0.0, %v8633
      %v8635 = vpop.f32.mrf.mxu0
      %8636 = vmatprep.mubr.f32.mxu0 0.0
      %8637 = vmatmul.mubr.f32.gmra.mxu0 %v8507
      %v8638 = vpop.f32.mrf.mxu0
      %v8639 = vadd.f32 0.0, %v8638
      %v8640 = vpop.f32.mrf.mxu0
      %8641 = vmatprep.mubr.f32.mxu0 0.0
      %8642 = vmatmul.mubr.f32.gmra.mxu0 %v8510
      %v8643 = vpop.f32.mrf.mxu0
      %v8644 = vadd.f32 0.0, %v8643
      %v8645 = vpop.f32.mrf.mxu0
      %8646 = vmatprep.mubr.f32.mxu0 0.0
      %8647 = vmatmul.mubr.f32.gmra.mxu0 %v8513
      %v8648 = vpop.f32.mrf.mxu0
      %v8649 = vadd.f32 0.0, %v8648
      %v8650 = vpop.f32.mrf.mxu0
      %8651 = vmatprep.mubr.f32.mxu0 0.0
      %8652 = vmatmul.mubr.f32.gmra.mxu0 %v8516
      %v8653 = vpop.f32.mrf.mxu0
      %v8654 = vadd.f32 0.0, %v8653
      %v8655 = vpop.f32.mrf.mxu0
      %8656 = vmatprep.mubr.f32.mxu0 0.0
      %8657 = vmatmul.mubr.f32.gmra.mxu0 %v8519
      %v8658 = vpop.f32.mrf.mxu0
      %v8659 = vadd.f32 0.0, %v8658
      %v8660 = vpop.f32.mrf.mxu0
      %8661 = vmatprep.mubr.f32.mxu0 0.0
      %8662 = vmatmul.mubr.f32.gmra.mxu0 %v8522
      %v8663 = vpop.f32.mrf.mxu0
      %v8664 = vadd.f32 0.0, %v8663
      %v8665 = vpop.f32.mrf.mxu0
      %8666 = vmatprep.mubr.f32.mxu0 0.0
      %8667 = vmatmul.mubr.f32.gmra.mxu0 %v8525
      %v8668 = vpop.f32.mrf.mxu0
      %v8669 = vadd.f32 0.0, %v8668
      %v8670 = vpop.f32.mrf.mxu0
      %8671 = vdwg.mxu0
      %v8672 = vsub.f32 %v8594, %v7940
      %v8673 = vsub.f32 %v8599, %v7941
      %v8674 = vsub.f32 %v8604, %v7942
      %v8675 = vsub.f32 %v8609, %v7943
      %v8676 = vsub.f32 %v8614, %v7944
      %v8677 = vsub.f32 %v8619, %v7945
      %v8678 = vsub.f32 %v8624, %v7946
      %v8679 = vsub.f32 %v8629, %v7947
      %v8680 = vsub.f32 %v8634, %v7948
      %v8681 = vsub.f32 %v8639, %v7949
      %v8682 = vsub.f32 %v8644, %v7950
      %v8683 = vsub.f32 %v8649, %v7951
      %v8684 = vsub.f32 %v8654, %v7952
      %v8685 = vsub.f32 %v8659, %v7953
      %v8686 = vsub.f32 %v8664, %v7954
      %v8687 = vsub.f32 %v8669, %v7955
      %v8688 = vmul.f32 %v8672, %v8672
      %v8689 = vmul.f32 %v8673, %v8673
      %v8690 = vmul.f32 %v8674, %v8674
      %v8691 = vmul.f32 %v8675, %v8675
      %v8692 = vmul.f32 %v8676, %v8676
      %v8693 = vmul.f32 %v8677, %v8677
      %v8694 = vmul.f32 %v8678, %v8678
      %v8695 = vmul.f32 %v8679, %v8679
      %v8696 = vmul.f32 %v8680, %v8680
      %v8697 = vmul.f32 %v8681, %v8681
      %v8698 = vmul.f32 %v8682, %v8682
      %v8699 = vmul.f32 %v8683, %v8683
      %v8700 = vmul.f32 %v8684, %v8684
      %v8701 = vmul.f32 %v8685, %v8685
      %v8702 = vmul.f32 %v8686, %v8686
      %v8703 = vmul.f32 %v8687, %v8687
      %v8704 = vsel %vm1557, %v8688, 0.0
      %v8705 = vsel %vm1557, %v8689, 0.0
      %v8706 = vadd.f32 %v8704, %v8705
      %v8707 = vsel %vm1557, %v8690, 0.0
      %v8708 = vadd.f32 %v8706, %v8707
      %v8709 = vsel %vm1557, %v8691, 0.0
      %v8710 = vadd.f32 %v8708, %v8709
      %v8711 = vsel %vm1557, %v8692, 0.0
      %v8712 = vadd.f32 %v8710, %v8711
      %v8713 = vsel %vm1557, %v8693, 0.0
      %v8714 = vadd.f32 %v8712, %v8713
      %v8715 = vsel %vm1557, %v8694, 0.0
      %v8716 = vadd.f32 %v8714, %v8715
      %v8717 = vsel %vm1557, %v8695, 0.0
      %v8718 = vadd.f32 %v8716, %v8717
      %v8719 = vsel %vm1557, %v8696, 0.0
      %v8720 = vadd.f32 %v8718, %v8719
      %v8721 = vsel %vm1557, %v8697, 0.0
      %v8722 = vadd.f32 %v8720, %v8721
      %v8723 = vsel %vm1557, %v8698, 0.0
      %v8724 = vadd.f32 %v8722, %v8723
      %v8725 = vsel %vm1557, %v8699, 0.0
      %v8726 = vadd.f32 %v8724, %v8725
      %v8727 = vsel %vm1557, %v8700, 0.0
      %v8728 = vadd.f32 %v8726, %v8727
      %v8729 = vsel %vm1557, %v8701, 0.0
      %v8730 = vadd.f32 %v8728, %v8729
      %v8731 = vsel %vm1557, %v8702, 0.0
      %v8732 = vadd.f32 %v8730, %v8731
      %v8733 = vsel %vm1557, %v8703, 0.0
      %v8734 = vadd.f32 %v8732, %v8733
      %8735 = vadd.xlane.f32.xlu0 %v8734
      %v8736 = vpop.xlane.xlu0 %8735
      %v8737 = vrot.slane %v8736, 4
      %v8738 = vadd.f32 %v8736, %v8737
      %v8739 = vrot.slane %v8738, 2
      %v8740 = vadd.f32 %v8738, %v8739
      %v8741 = vrot.slane %v8740, 1
      %v8742 = vadd.f32 %v8740, %v8741
      %s8743 = vtos %v8742
      %v8744 = vld [vmem:[%s45] sm:$0xff]
      %v8745 = vld [vmem:[%s45 + $0x8] sm:$0xff]
      %v8746 = vld [vmem:[%s45 + $0x10] sm:$0xff]
      %v8747 = vld [vmem:[%s45 + $0x18] sm:$0xff]
      %v8748 = vld [vmem:[%s45 + $0x20] sm:$0xff]
      %v8749 = vld [vmem:[%s45 + $0x28] sm:$0xff]
      %v8750 = vld [vmem:[%s45 + $0x30] sm:$0xff]
      %v8751 = vld [vmem:[%s45 + $0x38] sm:$0xff]
      %v8752 = vld [vmem:[%s45 + $0x40] sm:$0xff]
      %v8753 = vld [vmem:[%s45 + $0x48] sm:$0xff]
      %v8754 = vld [vmem:[%s45 + $0x50] sm:$0xff]
      %v8755 = vld [vmem:[%s45 + $0x58] sm:$0xff]
      %v8756 = vld [vmem:[%s45 + $0x60] sm:$0xff]
      %v8757 = vld [vmem:[%s45 + $0x68] sm:$0xff]
      %v8758 = vld [vmem:[%s45 + $0x70] sm:$0xff]
      %v8759 = vld [vmem:[%s45 + $0x78] sm:$0xff]
      %v8760 = vpack.c.bf16 %v8745, %v8744
      %v8761 = vpack.c.bf16 %v8747, %v8746
      %v8762 = vpack.c.bf16 %v8749, %v8748
      %v8763 = vpack.c.bf16 %v8751, %v8750
      %v8764 = vpack.c.bf16 %v8753, %v8752
      %v8765 = vpack.c.bf16 %v8755, %v8754
      %v8766 = vpack.c.bf16 %v8757, %v8756
      %v8767 = vpack.c.bf16 %v8759, %v8758
      %v8768 = vpack.c.bf16 %v8599, %v8594
      %v8769 = vpack.c.bf16 %v8609, %v8604
      %v8770 = vpack.c.bf16 %v8619, %v8614
      %v8771 = vpack.c.bf16 %v8629, %v8624
      %v8772 = vpack.c.bf16 %v8639, %v8634
      %v8773 = vpack.c.bf16 %v8649, %v8644
      %v8774 = vpack.c.bf16 %v8659, %v8654
      %v8775 = vpack.c.bf16 %v8669, %v8664
      %v8776 = vld [vmem:[%s47] sm:$0xff]
      %v8777 = vld [vmem:[%s47 + $0x8] sm:$0xff]
      %v8778 = vld [vmem:[%s47 + $0x10] sm:$0xff]
      %v8779 = vld [vmem:[%s47 + $0x18] sm:$0xff]
      %v8780 = vld [vmem:[%s47 + $0x20] sm:$0xff]
      %v8781 = vld [vmem:[%s47 + $0x28] sm:$0xff]
      %v8782 = vld [vmem:[%s47 + $0x30] sm:$0xff]
      %v8783 = vld [vmem:[%s47 + $0x38] sm:$0xff]
      %v8784 = vld [vmem:[%s47 + $0x40] sm:$0xff]
      %v8785 = vld [vmem:[%s47 + $0x48] sm:$0xff]
      %v8786 = vld [vmem:[%s47 + $0x50] sm:$0xff]
      %v8787 = vld [vmem:[%s47 + $0x58] sm:$0xff]
      %v8788 = vld [vmem:[%s47 + $0x60] sm:$0xff]
      %v8789 = vld [vmem:[%s47 + $0x68] sm:$0xff]
      %v8790 = vld [vmem:[%s47 + $0x70] sm:$0xff]
      %v8791 = vld [vmem:[%s47 + $0x78] sm:$0xff]
      %8793 = vset.pattern.permute.xlu0 0
      %8794 = vperm.xlu0 %8793, %v8776
      %v8795 = vpop.permute.xlu0 %8794
      %8798 = vset.pattern.permute.xlu0 0
      %8799 = vperm.xlu0 %8798, %v8777
      %v8800 = vpop.permute.xlu0 %8799
      %8803 = vset.pattern.permute.xlu0 0
      %8804 = vperm.xlu0 %8803, %v8778
      %v8805 = vpop.permute.xlu0 %8804
      %8808 = vset.pattern.permute.xlu0 0
      %8809 = vperm.xlu0 %8808, %v8779
      %v8810 = vpop.permute.xlu0 %8809
      %8813 = vset.pattern.permute.xlu0 0
      %8814 = vperm.xlu0 %8813, %v8780
      %v8815 = vpop.permute.xlu0 %8814
      %8818 = vset.pattern.permute.xlu0 0
      %8819 = vperm.xlu0 %8818, %v8781
      %v8820 = vpop.permute.xlu0 %8819
      %8823 = vset.pattern.permute.xlu0 0
      %8824 = vperm.xlu0 %8823, %v8782
      %v8825 = vpop.permute.xlu0 %8824
      %8828 = vset.pattern.permute.xlu0 0
      %8829 = vperm.xlu0 %8828, %v8783
      %v8830 = vpop.permute.xlu0 %8829
      %8833 = vset.pattern.permute.xlu0 0
      %8834 = vperm.xlu0 %8833, %v8784
      %v8835 = vpop.permute.xlu0 %8834
      %8838 = vset.pattern.permute.xlu0 0
      %8839 = vperm.xlu0 %8838, %v8785
      %v8840 = vpop.permute.xlu0 %8839
      %8843 = vset.pattern.permute.xlu0 0
      %8844 = vperm.xlu0 %8843, %v8786
      %v8845 = vpop.permute.xlu0 %8844
      %8848 = vset.pattern.permute.xlu0 0
      %8849 = vperm.xlu0 %8848, %v8787
      %v8850 = vpop.permute.xlu0 %8849
      %8853 = vset.pattern.permute.xlu0 0
      %8854 = vperm.xlu0 %8853, %v8788
      %v8855 = vpop.permute.xlu0 %8854
      %8858 = vset.pattern.permute.xlu0 0
      %8859 = vperm.xlu0 %8858, %v8789
      %v8860 = vpop.permute.xlu0 %8859
      %8863 = vset.pattern.permute.xlu0 0
      %8864 = vperm.xlu0 %8863, %v8790
      %v8865 = vpop.permute.xlu0 %8864
      %8868 = vset.pattern.permute.xlu0 0
      %8869 = vperm.xlu0 %8868, %v8791
      %v8870 = vpop.permute.xlu0 %8869
      %8872 = vmatprep.subr.bf16.mxu0 0
      %8873 = vmatpush1.bf16.msra.mxu0 %v8775
      %8874 = vmatprep.subr.bf16.mxu0 0
      %8875 = vmatpush1.bf16.msra.mxu0 %v8774
      %8876 = vmatprep.subr.bf16.mxu0 0
      %8877 = vmatpush1.bf16.msra.mxu0 %v8773
      %8878 = vmatprep.subr.bf16.mxu0 0
      %8879 = vmatpush1.bf16.msra.mxu0 %v8772
      %8880 = vmatprep.subr.bf16.mxu0 0
      %8881 = vmatpush1.bf16.msra.mxu0 %v8771
      %8882 = vmatprep.subr.bf16.mxu0 0
      %8883 = vmatpush1.bf16.msra.mxu0 %v8770
      %8884 = vmatprep.subr.bf16.mxu0 0
      %8885 = vmatpush1.bf16.msra.mxu0 %v8769
      %8886 = vmatprep.subr.bf16.mxu0 0
      %8887 = vmatpush1.bf16.msra.mxu0 %v8768
      %8888 = vmatprep.subr.bf16.mxu0 0
      %8889 = vmatpush2.bf16.msra.mxu0 0
      %8890 = vmatprep.subr.bf16.mxu0 0
      %8891 = vmatpush2.bf16.msra.mxu0 0
      %8892 = vmatprep.subr.bf16.mxu0 0
      %8893 = vmatpush2.bf16.msra.mxu0 0
      %8894 = vmatprep.subr.bf16.mxu0 0
      %8895 = vmatpush2.bf16.msra.mxu0 0
      %8896 = vmatprep.subr.bf16.mxu0 0
      %8897 = vmatpush2.bf16.msra.mxu0 0
      %8898 = vmatprep.subr.bf16.mxu0 0
      %8899 = vmatpush2.bf16.msra.mxu0 0
      %8900 = vmatprep.subr.bf16.mxu0 0
      %8901 = vmatpush2.bf16.msra.mxu0 0
      %8902 = vmatprep.subr.bf16.mxu0 0
      %8903 = vmatpush2.bf16.msra.mxu0 0
      %8904 = vmatprep.mubr.bf16.mxu0 0
      %8905 = vmatmul.mubr.bf16.gmra.mxu0 %v8760
      %v8906 = vpop.f32.mrf.mxu0
      %v8907 = vadd.f32 %v8795, %v8906
      %v8908 = vpop.f32.mrf.mxu0
      %v8909 = vpop.f32.mrf.mxu0
      %v8910 = vadd.f32 %v8800, %v8909
      %v8911 = vpop.f32.mrf.mxu0
      %8912 = vmatprep.mubr.bf16.mxu0 0
      %8913 = vmatmul.mubr.bf16.gmra.mxu0 %v8761
      %v8914 = vpop.f32.mrf.mxu0
      %v8915 = vadd.f32 %v8805, %v8914
      %v8916 = vpop.f32.mrf.mxu0
      %v8917 = vpop.f32.mrf.mxu0
      %v8918 = vadd.f32 %v8810, %v8917
      %v8919 = vpop.f32.mrf.mxu0
      %8920 = vmatprep.mubr.bf16.mxu0 0
      %8921 = vmatmul.mubr.bf16.gmra.mxu0 %v8762
      %v8922 = vpop.f32.mrf.mxu0
      %v8923 = vadd.f32 %v8815, %v8922
      %v8924 = vpop.f32.mrf.mxu0
      %v8925 = vpop.f32.mrf.mxu0
      %v8926 = vadd.f32 %v8820, %v8925
      %v8927 = vpop.f32.mrf.mxu0
      %8928 = vmatprep.mubr.bf16.mxu0 0
      %8929 = vmatmul.mubr.bf16.gmra.mxu0 %v8763
      %v8930 = vpop.f32.mrf.mxu0
      %v8931 = vadd.f32 %v8825, %v8930
      %v8932 = vpop.f32.mrf.mxu0
      %v8933 = vpop.f32.mrf.mxu0
      %v8934 = vadd.f32 %v8830, %v8933
      %v8935 = vpop.f32.mrf.mxu0
      %8936 = vmatprep.mubr.bf16.mxu0 0
      %8937 = vmatmul.mubr.bf16.gmra.mxu0 %v8764
      %v8938 = vpop.f32.mrf.mxu0
      %v8939 = vadd.f32 %v8835, %v8938
      %v8940 = vpop.f32.mrf.mxu0
      %v8941 = vpop.f32.mrf.mxu0
      %v8942 = vadd.f32 %v8840, %v8941
      %v8943 = vpop.f32.mrf.mxu0
      %8944 = vmatprep.mubr.bf16.mxu0 0
      %8945 = vmatmul.mubr.bf16.gmra.mxu0 %v8765
      %v8946 = vpop.f32.mrf.mxu0
      %v8947 = vadd.f32 %v8845, %v8946
      %v8948 = vpop.f32.mrf.mxu0
      %v8949 = vpop.f32.mrf.mxu0
      %v8950 = vadd.f32 %v8850, %v8949
      %v8951 = vpop.f32.mrf.mxu0
      %8952 = vmatprep.mubr.bf16.mxu0 0
      %8953 = vmatmul.mubr.bf16.gmra.mxu0 %v8766
      %v8954 = vpop.f32.mrf.mxu0
      %v8955 = vadd.f32 %v8855, %v8954
      %v8956 = vpop.f32.mrf.mxu0
      %v8957 = vpop.f32.mrf.mxu0
      %v8958 = vadd.f32 %v8860, %v8957
      %v8959 = vpop.f32.mrf.mxu0
      %8960 = vmatprep.mubr.bf16.mxu0 0
      %8961 = vmatmul.mubr.bf16.gmra.mxu0 %v8767
      %v8962 = vpop.f32.mrf.mxu0
      %v8963 = vadd.f32 %v8865, %v8962
      %v8964 = vpop.f32.mrf.mxu0
      %v8965 = vpop.f32.mrf.mxu0
      %v8966 = vadd.f32 %v8870, %v8965
      %v8967 = vpop.f32.mrf.mxu0
      %8968 = vdwg.mxu0
      %v8969 = vld [vmem:[%s57] sm:$0xff]
      %v8970 = vld [vmem:[%s57 + $0x8] sm:$0xff]
      %v8971 = vld [vmem:[%s57 + $0x10] sm:$0xff]
      %v8972 = vld [vmem:[%s57 + $0x18] sm:$0xff]
      %v8973 = vpack.c.bf16 %v8910, %v8907
      %v8974 = vpack.c.bf16 %v8918, %v8915
      %v8975 = vpack.c.bf16 %v8926, %v8923
      %v8976 = vpack.c.bf16 %v8934, %v8931
      %v8977 = vpack.c.bf16 %v8942, %v8939
      %v8978 = vpack.c.bf16 %v8950, %v8947
      %v8979 = vpack.c.bf16 %v8958, %v8955
      %v8980 = vpack.c.bf16 %v8966, %v8963
      %v8981 = vld [vmem:[%s59] sm:$0x3]
      %v8983 = vlaneseq
      %v8984 = vshrl.u32 %v8983, 7
      %v8985 = vsub.s32 0, %v8984
      %v8986 = vrot.slane %v8981, %v8985
      %v8987 = vlaneseq
      %v8988 = vshrl.u32 %v8987, 7
      %v8989 = vsub.s32 1, %v8988
      %v8990 = vrot.slane %v8981, %v8989
      %v8997 = vunpack.c.l.b16 %v8969
      %v8998 = vunpack.c.h.b16 %v8969
      %v8999 = vunpack.c.l.b16 %v8970
      %v9000 = vunpack.c.h.b16 %v8970
      %v9001 = vunpack.c.l.b16 %v8971
      %v9002 = vunpack.c.h.b16 %v8971
      %v9003 = vunpack.c.l.b16 %v8972
      %v9004 = vunpack.c.h.b16 %v8972
      %v9005 = vpack.c.b16 %v8999, %v8997
      %v9006 = vpack.c.b16 %v9000, %v8998
      %v9007 = vpack.c.b16 %v9003, %v9001
      %v9008 = vpack.c.b16 %v9004, %v9002
      %v9014 = vsel %vm1557, %v8973, 0
      %v9017 = vsel %vm1557, %v8974, 0
      %v9020 = vsel %vm1557, %v8975, 0
      %v9023 = vsel %vm1557, %v8976, 0
      %v9026 = vsel %vm1557, %v8977, 0
      %v9029 = vsel %vm1557, %v8978, 0
      %v9032 = vsel %vm1557, %v8979, 0
      %v9035 = vsel %vm1557, %v8980, 0
      %9037 = vmatprep.subr.bf16.mxu0 0
      %9038 = vmatpush1.bf16.msra.mxu0 0
      %9039 = vmatprep.subr.bf16.mxu0 0
      %9040 = vmatpush1.bf16.msra.mxu0 0
      %9041 = vmatprep.subr.bf16.mxu0 0
      %9042 = vmatpush1.bf16.msra.mxu0 0
      %9043 = vmatprep.subr.bf16.mxu0 0
      %9044 = vmatpush1.bf16.msra.mxu0 0
      %9045 = vmatprep.subr.bf16.mxu0 0
      %9046 = vmatpush1.bf16.msra.mxu0 0
      %9047 = vmatprep.subr.bf16.mxu0 0
      %9048 = vmatpush1.bf16.msra.mxu0 0
      %9049 = vmatprep.subr.bf16.mxu0 %v9008
      %9050 = vmatpush1.bf16.msra.mxu0 %v9007
      %9051 = vmatprep.subr.bf16.mxu0 %v9006
      %9052 = vmatpush1.bf16.msra.mxu0 %v9005
      %9053 = vmatprep.subr.bf16.mxu0 0
      %9054 = vmatpush2.bf16.msra.mxu0 0
      %9055 = vmatprep.subr.bf16.mxu0 0
      %9056 = vmatpush2.bf16.msra.mxu0 0
      %9057 = vmatprep.subr.bf16.mxu0 0
      %9058 = vmatpush2.bf16.msra.mxu0 0
      %9059 = vmatprep.subr.bf16.mxu0 0
      %9060 = vmatpush2.bf16.msra.mxu0 0
      %9061 = vmatprep.subr.bf16.mxu0 0
      %9062 = vmatpush2.bf16.msra.mxu0 0
      %9063 = vmatprep.subr.bf16.mxu0 0
      %9064 = vmatpush2.bf16.msra.mxu0 0
      %9065 = vmatprep.subr.bf16.mxu0 0
      %9066 = vmatpush2.bf16.msra.mxu0 0
      %9067 = vmatprep.subr.bf16.mxu0 0
      %9068 = vmatpush2.bf16.msra.mxu0 0
      %9069 = vmatprep.mubr.bf16.mxu0 0
      %9070 = vmatmul.mubr.bf16.gmra.mxu0 %v9014
      %v9071 = vpop.f32.mrf.mxu0
      %v9072 = vadd.f32 %v8986, %v9071
      %v9073 = vpop.f32.mrf.mxu0
      %v9074 = vadd.f32 %v8990, %v9073
      %v9075 = vpop.f32.mrf.mxu0
      %v9076 = vadd.f32 %v8986, %v9075
      %v9077 = vpop.f32.mrf.mxu0
      %v9078 = vadd.f32 %v8990, %v9077
      %9079 = vmatprep.mubr.bf16.mxu0 0
      %9080 = vmatmul.mubr.bf16.gmra.mxu0 %v9017
      %v9081 = vpop.f32.mrf.mxu0
      %v9082 = vadd.f32 %v8986, %v9081
      %v9083 = vpop.f32.mrf.mxu0
      %v9084 = vadd.f32 %v8990, %v9083
      %v9085 = vpop.f32.mrf.mxu0
      %v9086 = vadd.f32 %v8986, %v9085
      %v9087 = vpop.f32.mrf.mxu0
      %v9088 = vadd.f32 %v8990, %v9087
      %9089 = vmatprep.mubr.bf16.mxu0 0
      %9090 = vmatmul.mubr.bf16.gmra.mxu0 %v9020
      %v9091 = vpop.f32.mrf.mxu0
      %v9092 = vadd.f32 %v8986, %v9091
      %v9093 = vpop.f32.mrf.mxu0
      %v9094 = vadd.f32 %v8990, %v9093
      %v9095 = vpop.f32.mrf.mxu0
      %v9096 = vadd.f32 %v8986, %v9095
      %v9097 = vpop.f32.mrf.mxu0
      %v9098 = vadd.f32 %v8990, %v9097
      %9099 = vmatprep.mubr.bf16.mxu0 0
      %9100 = vmatmul.mubr.bf16.gmra.mxu0 %v9023
      %v9101 = vpop.f32.mrf.mxu0
      %v9102 = vadd.f32 %v8986, %v9101
      %v9103 = vpop.f32.mrf.mxu0
      %v9104 = vadd.f32 %v8990, %v9103
      %v9105 = vpop.f32.mrf.mxu0
      %v9106 = vadd.f32 %v8986, %v9105
      %v9107 = vpop.f32.mrf.mxu0
      %v9108 = vadd.f32 %v8990, %v9107
      %9109 = vmatprep.mubr.bf16.mxu0 0
      %9110 = vmatmul.mubr.bf16.gmra.mxu0 %v9026
      %v9111 = vpop.f32.mrf.mxu0
      %v9112 = vadd.f32 %v8986, %v9111
      %v9113 = vpop.f32.mrf.mxu0
      %v9114 = vadd.f32 %v8990, %v9113
      %v9115 = vpop.f32.mrf.mxu0
      %v9116 = vadd.f32 %v8986, %v9115
      %v9117 = vpop.f32.mrf.mxu0
      %v9118 = vadd.f32 %v8990, %v9117
      %9119 = vmatprep.mubr.bf16.mxu0 0
      %9120 = vmatmul.mubr.bf16.gmra.mxu0 %v9029
      %v9121 = vpop.f32.mrf.mxu0
      %v9122 = vadd.f32 %v8986, %v9121
      %v9123 = vpop.f32.mrf.mxu0
      %v9124 = vadd.f32 %v8990, %v9123
      %v9125 = vpop.f32.mrf.mxu0
      %v9126 = vadd.f32 %v8986, %v9125
      %v9127 = vpop.f32.mrf.mxu0
      %v9128 = vadd.f32 %v8990, %v9127
      %9129 = vmatprep.mubr.bf16.mxu0 0
      %9130 = vmatmul.mubr.bf16.gmra.mxu0 %v9032
      %v9131 = vpop.f32.mrf.mxu0
      %v9132 = vadd.f32 %v8986, %v9131
      %v9133 = vpop.f32.mrf.mxu0
      %v9134 = vadd.f32 %v8990, %v9133
      %v9135 = vpop.f32.mrf.mxu0
      %v9136 = vadd.f32 %v8986, %v9135
      %v9137 = vpop.f32.mrf.mxu0
      %v9138 = vadd.f32 %v8990, %v9137
      %9139 = vmatprep.mubr.bf16.mxu0 0
      %9140 = vmatmul.mubr.bf16.gmra.mxu0 %v9035
      %v9141 = vpop.f32.mrf.mxu0
      %v9142 = vadd.f32 %v8986, %v9141
      %v9143 = vpop.f32.mrf.mxu0
      %v9144 = vadd.f32 %v8990, %v9143
      %v9145 = vpop.f32.mrf.mxu0
      %v9146 = vadd.f32 %v8986, %v9145
      %v9147 = vpop.f32.mrf.mxu0
      %v9148 = vadd.f32 %v8990, %v9147
      %9149 = vdwg.mxu0
      %v9150 = vsub.f32 %v9072, %v1034
      %v9151 = vsub.f32 %v9074, %v1035
      %v9152 = vsub.f32 %v9076, %v1036
      %v9153 = vsub.f32 %v9078, %v1037
      %v9154 = vsub.f32 %v9082, %v1038
      %v9155 = vsub.f32 %v9084, %v1039
      %v9156 = vsub.f32 %v9086, %v1040
      %v9157 = vsub.f32 %v9088, %v1041
      %v9158 = vsub.f32 %v9092, %v1042
      %v9159 = vsub.f32 %v9094, %v1043
      %v9160 = vsub.f32 %v9096, %v1044
      %v9161 = vsub.f32 %v9098, %v1045
      %v9162 = vsub.f32 %v9102, %v1046
      %v9163 = vsub.f32 %v9104, %v1047
      %v9164 = vsub.f32 %v9106, %v1048
      %v9165 = vsub.f32 %v9108, %v1049
      %v9166 = vsub.f32 %v9112, %v1050
      %v9167 = vsub.f32 %v9114, %v1051
      %v9168 = vsub.f32 %v9116, %v1052
      %v9169 = vsub.f32 %v9118, %v1053
      %v9170 = vsub.f32 %v9122, %v1054
      %v9171 = vsub.f32 %v9124, %v1055
      %v9172 = vsub.f32 %v9126, %v1056
      %v9173 = vsub.f32 %v9128, %v1057
      %v9174 = vsub.f32 %v9132, %v1058
      %v9175 = vsub.f32 %v9134, %v1059
      %v9176 = vsub.f32 %v9136, %v1060
      %v9177 = vsub.f32 %v9138, %v1061
      %v9178 = vsub.f32 %v9142, %v1062
      %v9179 = vsub.f32 %v9144, %v1063
      %v9180 = vsub.f32 %v9146, %v1064
      %v9181 = vsub.f32 %v9148, %v1065
      %v9182 = vmul.f32 %v9150, %v9150
      %v9183 = vmul.f32 %v9151, %v9151
      %v9184 = vmul.f32 %v9152, %v9152
      %v9185 = vmul.f32 %v9153, %v9153
      %v9186 = vmul.f32 %v9154, %v9154
      %v9187 = vmul.f32 %v9155, %v9155
      %v9188 = vmul.f32 %v9156, %v9156
      %v9189 = vmul.f32 %v9157, %v9157
      %v9190 = vmul.f32 %v9158, %v9158
      %v9191 = vmul.f32 %v9159, %v9159
      %v9192 = vmul.f32 %v9160, %v9160
      %v9193 = vmul.f32 %v9161, %v9161
      %v9194 = vmul.f32 %v9162, %v9162
      %v9195 = vmul.f32 %v9163, %v9163
      %v9196 = vmul.f32 %v9164, %v9164
      %v9197 = vmul.f32 %v9165, %v9165
      %v9198 = vmul.f32 %v9166, %v9166
      %v9199 = vmul.f32 %v9167, %v9167
      %v9200 = vmul.f32 %v9168, %v9168
      %v9201 = vmul.f32 %v9169, %v9169
      %v9202 = vmul.f32 %v9170, %v9170
      %v9203 = vmul.f32 %v9171, %v9171
      %v9204 = vmul.f32 %v9172, %v9172
      %v9205 = vmul.f32 %v9173, %v9173
      %v9206 = vmul.f32 %v9174, %v9174
      %v9207 = vmul.f32 %v9175, %v9175
      %v9208 = vmul.f32 %v9176, %v9176
      %v9209 = vmul.f32 %v9177, %v9177
      %v9210 = vmul.f32 %v9178, %v9178
      %v9211 = vmul.f32 %v9179, %v9179
      %v9212 = vmul.f32 %v9180, %v9180
      %v9213 = vmul.f32 %v9181, %v9181
      %v9214 = vsel %vm1189, %v9183, 0.0
      %v9215 = vadd.f32 %v9182, %v9214
      %v9216 = vadd.f32 %v9215, %v9184
      %v9217 = vsel %vm1189, %v9185, 0.0
      %v9218 = vadd.f32 %v9216, %v9217
      %v9219 = vadd.f32 %v9218, %v9186
      %v9220 = vsel %vm1189, %v9187, 0.0
      %v9221 = vadd.f32 %v9219, %v9220
      %v9222 = vadd.f32 %v9221, %v9188
      %v9223 = vsel %vm1189, %v9189, 0.0
      %v9224 = vadd.f32 %v9222, %v9223
      %v9225 = vadd.f32 %v9224, %v9190
      %v9226 = vsel %vm1189, %v9191, 0.0
      %v9227 = vadd.f32 %v9225, %v9226
      %v9228 = vadd.f32 %v9227, %v9192
      %v9229 = vsel %vm1189, %v9193, 0.0
      %v9230 = vadd.f32 %v9228, %v9229
      %v9231 = vadd.f32 %v9230, %v9194
      %v9232 = vsel %vm1189, %v9195, 0.0
      %v9233 = vadd.f32 %v9231, %v9232
      %v9234 = vadd.f32 %v9233, %v9196
      %v9235 = vsel %vm1189, %v9197, 0.0
      %v9236 = vadd.f32 %v9234, %v9235
      %v9237 = vadd.f32 %v9236, %v9198
      %v9238 = vsel %vm1189, %v9199, 0.0
      %v9239 = vadd.f32 %v9237, %v9238
      %v9240 = vadd.f32 %v9239, %v9200
      %v9241 = vsel %vm1189, %v9201, 0.0
      %v9242 = vadd.f32 %v9240, %v9241
      %v9243 = vadd.f32 %v9242, %v9202
      %v9244 = vsel %vm1189, %v9203, 0.0
      %v9245 = vadd.f32 %v9243, %v9244
      %v9246 = vadd.f32 %v9245, %v9204
      %v9247 = vsel %vm1189, %v9205, 0.0
      %v9248 = vadd.f32 %v9246, %v9247
      %v9249 = vadd.f32 %v9248, %v9206
      %v9250 = vsel %vm1189, %v9207, 0.0
      %v9251 = vadd.f32 %v9249, %v9250
      %v9252 = vadd.f32 %v9251, %v9208
      %v9253 = vsel %vm1189, %v9209, 0.0
      %v9254 = vadd.f32 %v9252, %v9253
      %v9255 = vadd.f32 %v9254, %v9210
      %v9256 = vsel %vm1189, %v9211, 0.0
      %v9257 = vadd.f32 %v9255, %v9256
      %v9258 = vadd.f32 %v9257, %v9212
      %v9259 = vsel %vm1189, %v9213, 0.0
      %v9260 = vadd.f32 %v9258, %v9259
      %9261 = vadd.xlane.f32.xlu0 %v9260
      %v9262 = vpop.xlane.xlu0 %9261
      %v9263 = vrot.slane %v9262, 4
      %v9264 = vadd.f32 %v9262, %v9263
      %v9265 = vrot.slane %v9264, 2
      %v9266 = vadd.f32 %v9264, %v9265
      %v9267 = vrot.slane %v9266, 1
      %v9268 = vadd.f32 %v9266, %v9267
      %s9269 = vtos %v9268
      %v9270 = vld [vmem:[%s49] sm:$0xff]
      %v9271 = vld [vmem:[%s49 + $0x8] sm:$0xff]
      %v9272 = vld [vmem:[%s49 + $0x10] sm:$0xff]
      %v9273 = vld [vmem:[%s49 + $0x18] sm:$0xff]
      %v9274 = vld [vmem:[%s49 + $0x20] sm:$0xff]
      %v9275 = vld [vmem:[%s49 + $0x28] sm:$0xff]
      %v9276 = vld [vmem:[%s49 + $0x30] sm:$0xff]
      %v9277 = vld [vmem:[%s49 + $0x38] sm:$0xff]
      %v9278 = vpack.c.bf16 %v9271, %v9270
      %v9279 = vpack.c.bf16 %v9273, %v9272
      %v9280 = vpack.c.bf16 %v9275, %v9274
      %v9281 = vpack.c.bf16 %v9277, %v9276
      %v9282 = vld [vmem:[%s51] sm:$0xff]
      %v9283 = vld [vmem:[%s51 + $0x8] sm:$0xff]
      %v9284 = vld [vmem:[%s51 + $0x10] sm:$0xff]
      %v9285 = vld [vmem:[%s51 + $0x18] sm:$0xff]
      %v9286 = vld [vmem:[%s51 + $0x20] sm:$0xff]
      %v9287 = vld [vmem:[%s51 + $0x28] sm:$0xff]
      %v9288 = vld [vmem:[%s51 + $0x30] sm:$0xff]
      %v9289 = vld [vmem:[%s51 + $0x38] sm:$0xff]
      %9291 = vset.pattern.permute.xlu0 0
      %9292 = vperm.xlu0 %9291, %v9282
      %v9293 = vpop.permute.xlu0 %9292
      %9296 = vset.pattern.permute.xlu0 0
      %9297 = vperm.xlu0 %9296, %v9283
      %v9298 = vpop.permute.xlu0 %9297
      %9301 = vset.pattern.permute.xlu0 0
      %9302 = vperm.xlu0 %9301, %v9284
      %v9303 = vpop.permute.xlu0 %9302
      %9306 = vset.pattern.permute.xlu0 0
      %9307 = vperm.xlu0 %9306, %v9285
      %v9308 = vpop.permute.xlu0 %9307
      %9311 = vset.pattern.permute.xlu0 0
      %9312 = vperm.xlu0 %9311, %v9286
      %v9313 = vpop.permute.xlu0 %9312
      %9316 = vset.pattern.permute.xlu0 0
      %9317 = vperm.xlu0 %9316, %v9287
      %v9318 = vpop.permute.xlu0 %9317
      %9321 = vset.pattern.permute.xlu0 0
      %9322 = vperm.xlu0 %9321, %v9288
      %v9323 = vpop.permute.xlu0 %9322
      %9326 = vset.pattern.permute.xlu0 0
      %9327 = vperm.xlu0 %9326, %v9289
      %v9328 = vpop.permute.xlu0 %9327
      %9330 = vmatprep.subr.bf16.mxu0 0
      %9331 = vmatpush1.bf16.msra.mxu0 %v8775
      %9332 = vmatprep.subr.bf16.mxu0 0
      %9333 = vmatpush1.bf16.msra.mxu0 %v8774
      %9334 = vmatprep.subr.bf16.mxu0 0
      %9335 = vmatpush1.bf16.msra.mxu0 %v8773
      %9336 = vmatprep.subr.bf16.mxu0 0
      %9337 = vmatpush1.bf16.msra.mxu0 %v8772
      %9338 = vmatprep.subr.bf16.mxu0 0
      %9339 = vmatpush1.bf16.msra.mxu0 %v8771
      %9340 = vmatprep.subr.bf16.mxu0 0
      %9341 = vmatpush1.bf16.msra.mxu0 %v8770
      %9342 = vmatprep.subr.bf16.mxu0 0
      %9343 = vmatpush1.bf16.msra.mxu0 %v8769
      %9344 = vmatprep.subr.bf16.mxu0 0
      %9345 = vmatpush1.bf16.msra.mxu0 %v8768
      %9346 = vmatprep.subr.bf16.mxu0 0
      %9347 = vmatpush2.bf16.msra.mxu0 0
      %9348 = vmatprep.subr.bf16.mxu0 0
      %9349 = vmatpush2.bf16.msra.mxu0 0
      %9350 = vmatprep.subr.bf16.mxu0 0
      %9351 = vmatpush2.bf16.msra.mxu0 0
      %9352 = vmatprep.subr.bf16.mxu0 0
      %9353 = vmatpush2.bf16.msra.mxu0 0
      %9354 = vmatprep.subr.bf16.mxu0 0
      %9355 = vmatpush2.bf16.msra.mxu0 0
      %9356 = vmatprep.subr.bf16.mxu0 0
      %9357 = vmatpush2.bf16.msra.mxu0 0
      %9358 = vmatprep.subr.bf16.mxu0 0
      %9359 = vmatpush2.bf16.msra.mxu0 0
      %9360 = vmatprep.subr.bf16.mxu0 0
      %9361 = vmatpush2.bf16.msra.mxu0 0
      %9362 = vmatprep.mubr.bf16.mxu0 0
      %9363 = vmatmul.mubr.bf16.gmra.mxu0 %v9278
      %v9364 = vpop.f32.mrf.mxu0
      %v9365 = vadd.f32 %v9293, %v9364
      %v9366 = vpop.f32.mrf.mxu0
      %v9367 = vpop.f32.mrf.mxu0
      %v9368 = vadd.f32 %v9298, %v9367
      %v9369 = vpop.f32.mrf.mxu0
      %9370 = vmatprep.mubr.bf16.mxu0 0
      %9371 = vmatmul.mubr.bf16.gmra.mxu0 %v9279
      %v9372 = vpop.f32.mrf.mxu0
      %v9373 = vadd.f32 %v9303, %v9372
      %v9374 = vpop.f32.mrf.mxu0
      %v9375 = vpop.f32.mrf.mxu0
      %v9376 = vadd.f32 %v9308, %v9375
      %v9377 = vpop.f32.mrf.mxu0
      %9378 = vmatprep.mubr.bf16.mxu0 0
      %9379 = vmatmul.mubr.bf16.gmra.mxu0 %v9280
      %v9380 = vpop.f32.mrf.mxu0
      %v9381 = vadd.f32 %v9313, %v9380
      %v9382 = vpop.f32.mrf.mxu0
      %v9383 = vpop.f32.mrf.mxu0
      %v9384 = vadd.f32 %v9318, %v9383
      %v9385 = vpop.f32.mrf.mxu0
      %9386 = vmatprep.mubr.bf16.mxu0 0
      %9387 = vmatmul.mubr.bf16.gmra.mxu0 %v9281
      %v9388 = vpop.f32.mrf.mxu0
      %v9389 = vadd.f32 %v9323, %v9388
      %v9390 = vpop.f32.mrf.mxu0
      %v9391 = vpop.f32.mrf.mxu0
      %v9392 = vadd.f32 %v9328, %v9391
      %v9393 = vpop.f32.mrf.mxu0
      %9394 = vdwg.mxu0
      %v9395 = vmax.f32 %v9365, 0.0
      %v9396 = vmax.f32 %v9368, 0.0
      %v9397 = vmax.f32 %v9373, 0.0
      %v9398 = vmax.f32 %v9376, 0.0
      %v9399 = vmax.f32 %v9381, 0.0
      %v9400 = vmax.f32 %v9384, 0.0
      %v9401 = vmax.f32 %v9389, 0.0
      %v9402 = vmax.f32 %v9392, 0.0
      %v9403 = vld [vmem:[%s53] sm:$0xff]
      %v9404 = vld [vmem:[%s53 + $0x8] sm:$0xff]
      %v9405 = vpack.c.bf16 %v9404, %v9403
      %v9406 = vpack.c.bf16 %v9396, %v9395
      %v9407 = vpack.c.bf16 %v9398, %v9397
      %v9408 = vpack.c.bf16 %v9400, %v9399
      %v9409 = vpack.c.bf16 %v9402, %v9401
      %v9410 = vld [vmem:[%s55] sm:$0xff]
      %v9411 = vld [vmem:[%s55 + $0x8] sm:$0xff]
      %9413 = vset.pattern.permute.xlu0 0
      %9414 = vperm.xlu0 %9413, %v9410
      %v9415 = vpop.permute.xlu0 %9414
      %9418 = vset.pattern.permute.xlu0 0
      %9419 = vperm.xlu0 %9418, %v9411
      %v9420 = vpop.permute.xlu0 %9419
      %v9423 = vsel %vm1189, %v9405, 0
      %9425 = vmatprep.subr.bf16.mxu0 0
      %9426 = vmatpush1.bf16.msra.mxu0 0
      %9427 = vmatprep.subr.bf16.mxu0 0
      %9428 = vmatpush1.bf16.msra.mxu0 0
      %9429 = vmatprep.subr.bf16.mxu0 0
      %9430 = vmatpush1.bf16.msra.mxu0 0
      %9431 = vmatprep.subr.bf16.mxu0 0
      %9432 = vmatpush1.bf16.msra.mxu0 0
      %9433 = vmatprep.subr.bf16.mxu0 0
      %9434 = vmatpush1.bf16.msra.mxu0 %v9409
      %9435 = vmatprep.subr.bf16.mxu0 0
      %9436 = vmatpush1.bf16.msra.mxu0 %v9408
      %9437 = vmatprep.subr.bf16.mxu0 0
      %9438 = vmatpush1.bf16.msra.mxu0 %v9407
      %9439 = vmatprep.subr.bf16.mxu0 0
      %9440 = vmatpush1.bf16.msra.mxu0 %v9406
      %9441 = vmatprep.subr.bf16.mxu0 0
      %9442 = vmatpush2.bf16.msra.mxu0 0
      %9443 = vmatprep.subr.bf16.mxu0 0
      %9444 = vmatpush2.bf16.msra.mxu0 0
      %9445 = vmatprep.subr.bf16.mxu0 0
      %9446 = vmatpush2.bf16.msra.mxu0 0
      %9447 = vmatprep.subr.bf16.mxu0 0
      %9448 = vmatpush2.bf16.msra.mxu0 0
      %9449 = vmatprep.subr.bf16.mxu0 0
      %9450 = vmatpush2.bf16.msra.mxu0 0
      %9451 = vmatprep.subr.bf16.mxu0 0
      %9452 = vmatpush2.bf16.msra.mxu0 0
      %9453 = vmatprep.subr.bf16.mxu0 0
      %9454 = vmatpush2.bf16.msra.mxu0 0
      %9455 = vmatprep.subr.bf16.mxu0 0
      %9456 = vmatpush2.bf16.msra.mxu0 0
      %9457 = vmatprep.mubr.bf16.mxu0 0
      %9458 = vmatmul.mubr.bf16.gmra.mxu0 %v9423
      %v9459 = vpop.f32.mrf.mxu0
      %v9460 = vadd.f32 %v9415, %v9459
      %v9461 = vpop.f32.mrf.mxu0
      %v9462 = vpop.f32.mrf.mxu0
      %v9463 = vadd.f32 %v9420, %v9462
      %v9464 = vpop.f32.mrf.mxu0
      %9465 = vdwg.mxu0
      %v9466 = vld [vmem:[%s61] sm:$0xff]
      %v9467 = vld [vmem:[%s61 + $0x8] sm:$0xff]
      %v9468 = vld [vmem:[%s61 + $0x10] sm:$0xff]
      %v9469 = vld [vmem:[%s61 + $0x18] sm:$0xff]
      %v9470 = vld [vmem:[%s61 + $0x20] sm:$0xff]
      %v9471 = vld [vmem:[%s61 + $0x28] sm:$0xff]
      %v9472 = vld [vmem:[%s61 + $0x30] sm:$0xff]
      %v9473 = vld [vmem:[%s61 + $0x38] sm:$0xff]
      %v9474 = vld [vmem:[%s61 + $0x40] sm:$0xff]
      %v9475 = vld [vmem:[%s61 + $0x48] sm:$0xff]
      %v9476 = vld [vmem:[%s61 + $0x50] sm:$0xff]
      %v9477 = vld [vmem:[%s61 + $0x58] sm:$0xff]
      %v9478 = vld [vmem:[%s61 + $0x60] sm:$0xff]
      %v9479 = vld [vmem:[%s61 + $0x68] sm:$0xff]
      %v9480 = vld [vmem:[%s61 + $0x70] sm:$0xff]
      %v9481 = vld [vmem:[%s61 + $0x78] sm:$0xff]
      %v9482 = vpack.c.bf16 %v9463, %v9460
      %v9483 = vld [vmem:[%s63] sm:$0xff]
      %v9485 = vlaneseq
      %v9486 = vshrl.u32 %v9485, 7
      %v9487 = vsub.s32 0, %v9486
      %v9488 = vrot.slane %v9483, %v9487
      %v9489 = vlaneseq
      %v9490 = vshrl.u32 %v9489, 7
      %v9491 = vsub.s32 1, %v9490
      %v9492 = vrot.slane %v9483, %v9491
      %v9493 = vlaneseq
      %v9494 = vshrl.u32 %v9493, 7
      %v9495 = vsub.s32 2, %v9494
      %v9496 = vrot.slane %v9483, %v9495
      %v9497 = vlaneseq
      %v9498 = vshrl.u32 %v9497, 7
      %v9499 = vsub.s32 3, %v9498
      %v9500 = vrot.slane %v9483, %v9499
      %v9501 = vlaneseq
      %v9502 = vshrl.u32 %v9501, 7
      %v9503 = vsub.s32 4, %v9502
      %v9504 = vrot.slane %v9483, %v9503
      %v9505 = vlaneseq
      %v9506 = vshrl.u32 %v9505, 7
      %v9507 = vsub.s32 5, %v9506
      %v9508 = vrot.slane %v9483, %v9507
      %v9509 = vlaneseq
      %v9510 = vshrl.u32 %v9509, 7
      %v9511 = vsub.s32 6, %v9510
      %v9512 = vrot.slane %v9483, %v9511
      %v9513 = vlaneseq
      %v9514 = vshrl.u32 %v9513, 7
      %v9515 = vsub.s32 7, %v9514
      %v9516 = vrot.slane %v9483, %v9515
      %v9541 = vunpack.c.l.b16 %v9466
      %v9542 = vunpack.c.h.b16 %v9466
      %v9543 = vunpack.c.l.b16 %v9467
      %v9544 = vunpack.c.h.b16 %v9467
      %v9545 = vunpack.c.l.b16 %v9468
      %v9546 = vunpack.c.h.b16 %v9468
      %v9547 = vunpack.c.l.b16 %v9469
      %v9548 = vunpack.c.h.b16 %v9469
      %v9549 = vunpack.c.l.b16 %v9470
      %v9550 = vunpack.c.h.b16 %v9470
      %v9551 = vunpack.c.l.b16 %v9471
      %v9552 = vunpack.c.h.b16 %v9471
      %v9553 = vunpack.c.l.b16 %v9472
      %v9554 = vunpack.c.h.b16 %v9472
      %v9555 = vunpack.c.l.b16 %v9473
      %v9556 = vunpack.c.h.b16 %v9473
      %v9557 = vunpack.c.l.b16 %v9474
      %v9558 = vunpack.c.h.b16 %v9474
      %v9559 = vunpack.c.l.b16 %v9475
      %v9560 = vunpack.c.h.b16 %v9475
      %v9561 = vunpack.c.l.b16 %v9476
      %v9562 = vunpack.c.h.b16 %v9476
      %v9563 = vunpack.c.l.b16 %v9477
      %v9564 = vunpack.c.h.b16 %v9477
      %v9565 = vunpack.c.l.b16 %v9478
      %v9566 = vunpack.c.h.b16 %v9478
      %v9567 = vunpack.c.l.b16 %v9479
      %v9568 = vunpack.c.h.b16 %v9479
      %v9569 = vunpack.c.l.b16 %v9480
      %v9570 = vunpack.c.h.b16 %v9480
      %v9571 = vunpack.c.l.b16 %v9481
      %v9572 = vunpack.c.h.b16 %v9481
      %v9573 = vpack.c.b16 %v9549, %v9541
      %v9574 = vpack.c.b16 %v9550, %v9542
      %v9575 = vpack.c.b16 %v9551, %v9543
      %v9576 = vpack.c.b16 %v9552, %v9544
      %v9577 = vpack.c.b16 %v9553, %v9545
      %v9578 = vpack.c.b16 %v9554, %v9546
      %v9579 = vpack.c.b16 %v9555, %v9547
      %v9580 = vpack.c.b16 %v9556, %v9548
      %v9581 = vpack.c.b16 %v9565, %v9557
      %v9582 = vpack.c.b16 %v9566, %v9558
      %v9583 = vpack.c.b16 %v9567, %v9559
      %v9584 = vpack.c.b16 %v9568, %v9560
      %v9585 = vpack.c.b16 %v9569, %v9561
      %v9586 = vpack.c.b16 %v9570, %v9562
      %v9587 = vpack.c.b16 %v9571, %v9563
      %v9588 = vpack.c.b16 %v9572, %v9564
      %v9606 = vsel %vm1557, %v9482, 0
      %9608 = vmatprep.subr.bf16.mxu0 0
      %9609 = vmatpush1.bf16.msra.mxu0 0
      %9610 = vmatprep.subr.bf16.mxu0 0
      %9611 = vmatpush1.bf16.msra.mxu0 0
      %9612 = vmatprep.subr.bf16.mxu0 0
      %9613 = vmatpush1.bf16.msra.mxu0 0
      %9614 = vmatprep.subr.bf16.mxu0 0
      %9615 = vmatpush1.bf16.msra.mxu0 0
      %9616 = vmatprep.subr.bf16.mxu0 0
      %9617 = vmatpush1.bf16.msra.mxu0 0
      %9618 = vmatprep.subr.bf16.mxu0 0
      %9619 = vmatpush1.bf16.msra.mxu0 0
      %9620 = vmatprep.subr.bf16.mxu0 %v9582
      %9621 = vmatpush1.bf16.msra.mxu0 %v9581
      %9622 = vmatprep.subr.bf16.mxu0 %v9574
      %9623 = vmatpush1.bf16.msra.mxu0 %v9573
      %9624 = vmatprep.subr.bf16.mxu0 0
      %9625 = vmatpush2.bf16.msra.mxu0 0
      %9626 = vmatprep.subr.bf16.mxu0 0
      %9627 = vmatpush2.bf16.msra.mxu0 0
      %9628 = vmatprep.subr.bf16.mxu0 0
      %9629 = vmatpush2.bf16.msra.mxu0 0
      %9630 = vmatprep.subr.bf16.mxu0 0
      %9631 = vmatpush2.bf16.msra.mxu0 0
      %9632 = vmatprep.subr.bf16.mxu0 0
      %9633 = vmatpush2.bf16.msra.mxu0 0
      %9634 = vmatprep.subr.bf16.mxu0 0
      %9635 = vmatpush2.bf16.msra.mxu0 0
      %9636 = vmatprep.subr.bf16.mxu0 0
      %9637 = vmatpush2.bf16.msra.mxu0 0
      %9638 = vmatprep.subr.bf16.mxu0 0
      %9639 = vmatpush2.bf16.msra.mxu0 0
      %9640 = vmatprep.mubr.bf16.mxu0 0
      %9641 = vmatmul.mubr.bf16.gmra.mxu0 %v9606
      %v9642 = vpop.f32.mrf.mxu0
      %v9643 = vadd.f32 %v9488, %v9642
      %v9644 = vpop.f32.mrf.mxu0
      %v9645 = vadd.f32 %v9492, %v9644
      %v9646 = vpop.f32.mrf.mxu0
      %v9647 = vadd.f32 %v9488, %v9646
      %v9648 = vpop.f32.mrf.mxu0
      %v9649 = vadd.f32 %v9492, %v9648
      %9650 = vdwg.mxu0
      %9651 = vmatprep.subr.bf16.mxu0 0
      %9652 = vmatpush1.bf16.msra.mxu0 0
      %9653 = vmatprep.subr.bf16.mxu0 0
      %9654 = vmatpush1.bf16.msra.mxu0 0
      %9655 = vmatprep.subr.bf16.mxu0 0
      %9656 = vmatpush1.bf16.msra.mxu0 0
      %9657 = vmatprep.subr.bf16.mxu0 0
      %9658 = vmatpush1.bf16.msra.mxu0 0
      %9659 = vmatprep.subr.bf16.mxu0 0
      %9660 = vmatpush1.bf16.msra.mxu0 0
      %9661 = vmatprep.subr.bf16.mxu0 0
      %9662 = vmatpush1.bf16.msra.mxu0 0
      %9663 = vmatprep.subr.bf16.mxu0 %v9584
      %9664 = vmatpush1.bf16.msra.mxu0 %v9583
      %9665 = vmatprep.subr.bf16.mxu0 %v9576
      %9666 = vmatpush1.bf16.msra.mxu0 %v9575
      %9667 = vmatprep.subr.bf16.mxu0 0
      %9668 = vmatpush2.bf16.msra.mxu0 0
      %9669 = vmatprep.subr.bf16.mxu0 0
      %9670 = vmatpush2.bf16.msra.mxu0 0
      %9671 = vmatprep.subr.bf16.mxu0 0
      %9672 = vmatpush2.bf16.msra.mxu0 0
      %9673 = vmatprep.subr.bf16.mxu0 0
      %9674 = vmatpush2.bf16.msra.mxu0 0
      %9675 = vmatprep.subr.bf16.mxu0 0
      %9676 = vmatpush2.bf16.msra.mxu0 0
      %9677 = vmatprep.subr.bf16.mxu0 0
      %9678 = vmatpush2.bf16.msra.mxu0 0
      %9679 = vmatprep.subr.bf16.mxu0 0
      %9680 = vmatpush2.bf16.msra.mxu0 0
      %9681 = vmatprep.subr.bf16.mxu0 0
      %9682 = vmatpush2.bf16.msra.mxu0 0
      %9683 = vmatprep.mubr.bf16.mxu0 0
      %9684 = vmatmul.mubr.bf16.gmra.mxu0 %v9606
      %v9685 = vpop.f32.mrf.mxu0
      %v9686 = vadd.f32 %v9496, %v9685
      %v9687 = vpop.f32.mrf.mxu0
      %v9688 = vadd.f32 %v9500, %v9687
      %v9689 = vpop.f32.mrf.mxu0
      %v9690 = vadd.f32 %v9496, %v9689
      %v9691 = vpop.f32.mrf.mxu0
      %v9692 = vadd.f32 %v9500, %v9691
      %9693 = vdwg.mxu0
      %9694 = vmatprep.subr.bf16.mxu0 0
      %9695 = vmatpush1.bf16.msra.mxu0 0
      %9696 = vmatprep.subr.bf16.mxu0 0
      %9697 = vmatpush1.bf16.msra.mxu0 0
      %9698 = vmatprep.subr.bf16.mxu0 0
      %9699 = vmatpush1.bf16.msra.mxu0 0
      %9700 = vmatprep.subr.bf16.mxu0 0
      %9701 = vmatpush1.bf16.msra.mxu0 0
      %9702 = vmatprep.subr.bf16.mxu0 0
      %9703 = vmatpush1.bf16.msra.mxu0 0
      %9704 = vmatprep.subr.bf16.mxu0 0
      %9705 = vmatpush1.bf16.msra.mxu0 0
      %9706 = vmatprep.subr.bf16.mxu0 %v9586
      %9707 = vmatpush1.bf16.msra.mxu0 %v9585
      %9708 = vmatprep.subr.bf16.mxu0 %v9578
      %9709 = vmatpush1.bf16.msra.mxu0 %v9577
      %9710 = vmatprep.subr.bf16.mxu0 0
      %9711 = vmatpush2.bf16.msra.mxu0 0
      %9712 = vmatprep.subr.bf16.mxu0 0
      %9713 = vmatpush2.bf16.msra.mxu0 0
      %9714 = vmatprep.subr.bf16.mxu0 0
      %9715 = vmatpush2.bf16.msra.mxu0 0
      %9716 = vmatprep.subr.bf16.mxu0 0
      %9717 = vmatpush2.bf16.msra.mxu0 0
      %9718 = vmatprep.subr.bf16.mxu0 0
      %9719 = vmatpush2.bf16.msra.mxu0 0
      %9720 = vmatprep.subr.bf16.mxu0 0
      %9721 = vmatpush2.bf16.msra.mxu0 0
      %9722 = vmatprep.subr.bf16.mxu0 0
      %9723 = vmatpush2.bf16.msra.mxu0 0
      %9724 = vmatprep.subr.bf16.mxu0 0
      %9725 = vmatpush2.bf16.msra.mxu0 0
      %9726 = vmatprep.mubr.bf16.mxu0 0
      %9727 = vmatmul.mubr.bf16.gmra.mxu0 %v9606
      %v9728 = vpop.f32.mrf.mxu0
      %v9729 = vadd.f32 %v9504, %v9728
      %v9730 = vpop.f32.mrf.mxu0
      %v9731 = vadd.f32 %v9508, %v9730
      %v9732 = vpop.f32.mrf.mxu0
      %v9733 = vadd.f32 %v9504, %v9732
      %v9734 = vpop.f32.mrf.mxu0
      %v9735 = vadd.f32 %v9508, %v9734
      %9736 = vdwg.mxu0
      %9737 = vmatprep.subr.bf16.mxu0 0
      %9738 = vmatpush1.bf16.msra.mxu0 0
      %9739 = vmatprep.subr.bf16.mxu0 0
      %9740 = vmatpush1.bf16.msra.mxu0 0
      %9741 = vmatprep.subr.bf16.mxu0 0
      %9742 = vmatpush1.bf16.msra.mxu0 0
      %9743 = vmatprep.subr.bf16.mxu0 0
      %9744 = vmatpush1.bf16.msra.mxu0 0
      %9745 = vmatprep.subr.bf16.mxu0 0
      %9746 = vmatpush1.bf16.msra.mxu0 0
      %9747 = vmatprep.subr.bf16.mxu0 0
      %9748 = vmatpush1.bf16.msra.mxu0 0
      %9749 = vmatprep.subr.bf16.mxu0 %v9588
      %9750 = vmatpush1.bf16.msra.mxu0 %v9587
      %9751 = vmatprep.subr.bf16.mxu0 %v9580
      %9752 = vmatpush1.bf16.msra.mxu0 %v9579
      %9753 = vmatprep.subr.bf16.mxu0 0
      %9754 = vmatpush2.bf16.msra.mxu0 0
      %9755 = vmatprep.subr.bf16.mxu0 0
      %9756 = vmatpush2.bf16.msra.mxu0 0
      %9757 = vmatprep.subr.bf16.mxu0 0
      %9758 = vmatpush2.bf16.msra.mxu0 0
      %9759 = vmatprep.subr.bf16.mxu0 0
      %9760 = vmatpush2.bf16.msra.mxu0 0
      %9761 = vmatprep.subr.bf16.mxu0 0
      %9762 = vmatpush2.bf16.msra.mxu0 0
      %9763 = vmatprep.subr.bf16.mxu0 0
      %9764 = vmatpush2.bf16.msra.mxu0 0
      %9765 = vmatprep.subr.bf16.mxu0 0
      %9766 = vmatpush2.bf16.msra.mxu0 0
      %9767 = vmatprep.subr.bf16.mxu0 0
      %9768 = vmatpush2.bf16.msra.mxu0 0
      %9769 = vmatprep.mubr.bf16.mxu0 0
      %9770 = vmatmul.mubr.bf16.gmra.mxu0 %v9606
      %v9771 = vpop.f32.mrf.mxu0
      %v9772 = vadd.f32 %v9512, %v9771
      %v9773 = vpop.f32.mrf.mxu0
      %v9774 = vadd.f32 %v9516, %v9773
      %v9775 = vpop.f32.mrf.mxu0
      %v9776 = vadd.f32 %v9512, %v9775
      %v9777 = vpop.f32.mrf.mxu0
      %v9778 = vadd.f32 %v9516, %v9777
      %9779 = vdwg.mxu0
      %v9780 = vld [vmem:[%s1029] sm:$0xff]
      %v9781 = vld [vmem:[%s1029 + $0x8] sm:$0xff]
      %v9782 = vld [vmem:[%s1029 + $0x10] sm:$0xff]
      %v9783 = vld [vmem:[%s1029 + $0x18] sm:$0xff]
      %v9784 = vld [vmem:[%s1029 + $0x20] sm:$0xff]
      %v9785 = vld [vmem:[%s1029 + $0x28] sm:$0xff]
      %v9786 = vld [vmem:[%s1029 + $0x30] sm:$0xff]
      %v9787 = vld [vmem:[%s1029 + $0x38] sm:$0xff]
      %v9788 = vld [vmem:[%s1029 + $0x40] sm:$0xff]
      %v9789 = vld [vmem:[%s1029 + $0x48] sm:$0xff]
      %v9790 = vld [vmem:[%s1029 + $0x50] sm:$0xff]
      %v9791 = vld [vmem:[%s1029 + $0x58] sm:$0xff]
      %v9792 = vld [vmem:[%s1029 + $0x60] sm:$0xff]
      %v9793 = vld [vmem:[%s1029 + $0x68] sm:$0xff]
      %v9794 = vld [vmem:[%s1029 + $0x70] sm:$0xff]
      %v9795 = vld [vmem:[%s1029 + $0x78] sm:$0xff]
      %v9796 = vcvt.s32.f32 %v9780
      %v9797 = vcvt.s32.f32 %v9781
      %v9798 = vcvt.s32.f32 %v9782
      %v9799 = vcvt.s32.f32 %v9783
      %v9800 = vcvt.s32.f32 %v9784
      %v9801 = vcvt.s32.f32 %v9785
      %v9802 = vcvt.s32.f32 %v9786
      %v9803 = vcvt.s32.f32 %v9787
      %v9804 = vcvt.s32.f32 %v9788
      %v9805 = vcvt.s32.f32 %v9789
      %v9806 = vcvt.s32.f32 %v9790
      %v9807 = vcvt.s32.f32 %v9791
      %v9808 = vcvt.s32.f32 %v9792
      %v9809 = vcvt.s32.f32 %v9793
      %v9810 = vcvt.s32.f32 %v9794
      %v9811 = vcvt.s32.f32 %v9795
      %9812 = vmax.xlane.f32.xlu0 %v9643
      %v9813 = vpop.xlane.xlu0 %9812
      %9814 = vmax.xlane.f32.xlu0 %v9647
      %v9815 = vpop.xlane.xlu0 %9814
      %9816 = vmax.xlane.f32.xlu0 %v9645
      %v9817 = vpop.xlane.xlu0 %9816
      %9818 = vmax.xlane.f32.xlu0 %v9649
      %v9819 = vpop.xlane.xlu0 %9818
      %9820 = vmax.xlane.f32.xlu0 %v9686
      %v9821 = vpop.xlane.xlu0 %9820
      %9822 = vmax.xlane.f32.xlu0 %v9690
      %v9823 = vpop.xlane.xlu0 %9822
      %9824 = vmax.xlane.f32.xlu0 %v9688
      %v9825 = vpop.xlane.xlu0 %9824
      %9826 = vmax.xlane.f32.xlu0 %v9692
      %v9827 = vpop.xlane.xlu0 %9826
      %9828 = vmax.xlane.f32.xlu0 %v9729
      %v9829 = vpop.xlane.xlu0 %9828
      %9830 = vmax.xlane.f32.xlu0 %v9733
      %v9831 = vpop.xlane.xlu0 %9830
      %9832 = vmax.xlane.f32.xlu0 %v9731
      %v9833 = vpop.xlane.xlu0 %9832
      %9834 = vmax.xlane.f32.xlu0 %v9735
      %v9835 = vpop.xlane.xlu0 %9834
      %9836 = vmax.xlane.f32.xlu0 %v9772
      %v9837 = vpop.xlane.xlu0 %9836
      %9838 = vmax.xlane.f32.xlu0 %v9776
      %v9839 = vpop.xlane.xlu0 %9838
      %9840 = vmax.xlane.f32.xlu0 %v9774
      %v9841 = vpop.xlane.xlu0 %9840
      %9842 = vmax.xlane.f32.xlu0 %v9778
      %v9843 = vpop.xlane.xlu0 %9842
      %v9844 = vsub.f32 %v9643, %v9813
      %v9845 = vsub.f32 %v9647, %v9815
      %v9846 = vsub.f32 %v9645, %v9817
      %v9847 = vsub.f32 %v9649, %v9819
      %v9848 = vsub.f32 %v9686, %v9821
      %v9849 = vsub.f32 %v9690, %v9823
      %v9850 = vsub.f32 %v9688, %v9825
      %v9851 = vsub.f32 %v9692, %v9827
      %v9852 = vsub.f32 %v9729, %v9829
      %v9853 = vsub.f32 %v9733, %v9831
      %v9854 = vsub.f32 %v9731, %v9833
      %v9855 = vsub.f32 %v9735, %v9835
      %v9856 = vsub.f32 %v9772, %v9837
      %v9857 = vsub.f32 %v9776, %v9839
      %v9858 = vsub.f32 %v9774, %v9841
      %v9859 = vsub.f32 %v9778, %v9843
      %v9860 = vmul.f32 %v9844, 1.442695
      %v9861 = vpow.pop %v9860
      %v9862 = vmul.f32 %v9845, 1.442695
      %v9863 = vpow.pop %v9862
      %v9864 = vmul.f32 %v9846, 1.442695
      %v9865 = vpow.pop %v9864
      %v9866 = vmul.f32 %v9847, 1.442695
      %v9867 = vpow.pop %v9866
      %v9868 = vmul.f32 %v9848, 1.442695
      %v9869 = vpow.pop %v9868
      %v9870 = vmul.f32 %v9849, 1.442695
      %v9871 = vpow.pop %v9870
      %v9872 = vmul.f32 %v9850, 1.442695
      %v9873 = vpow.pop %v9872
      %v9874 = vmul.f32 %v9851, 1.442695
      %v9875 = vpow.pop %v9874
      %v9876 = vmul.f32 %v9852, 1.442695
      %v9877 = vpow.pop %v9876
      %v9878 = vmul.f32 %v9853, 1.442695
      %v9879 = vpow.pop %v9878
      %v9880 = vmul.f32 %v9854, 1.442695
      %v9881 = vpow.pop %v9880
      %v9882 = vmul.f32 %v9855, 1.442695
      %v9883 = vpow.pop %v9882
      %v9884 = vmul.f32 %v9856, 1.442695
      %v9885 = vpow.pop %v9884
      %v9886 = vmul.f32 %v9857, 1.442695
      %v9887 = vpow.pop %v9886
      %v9888 = vmul.f32 %v9858, 1.442695
      %v9889 = vpow.pop %v9888
      %v9890 = vmul.f32 %v9859, 1.442695
      %v9891 = vpow.pop %v9890
      %9892 = vadd.xlane.f32.xlu0 %v9861
      %v9893 = vpop.xlane.xlu0 %9892
      %9894 = vadd.xlane.f32.xlu0 %v9863
      %v9895 = vpop.xlane.xlu0 %9894
      %9896 = vadd.xlane.f32.xlu0 %v9865
      %v9897 = vpop.xlane.xlu0 %9896
      %9898 = vadd.xlane.f32.xlu0 %v9867
      %v9899 = vpop.xlane.xlu0 %9898
      %9900 = vadd.xlane.f32.xlu0 %v9869
      %v9901 = vpop.xlane.xlu0 %9900
      %9902 = vadd.xlane.f32.xlu0 %v9871
      %v9903 = vpop.xlane.xlu0 %9902
      %9904 = vadd.xlane.f32.xlu0 %v9873
      %v9905 = vpop.xlane.xlu0 %9904
      %9906 = vadd.xlane.f32.xlu0 %v9875
      %v9907 = vpop.xlane.xlu0 %9906
      %9908 = vadd.xlane.f32.xlu0 %v9877
      %v9909 = vpop.xlane.xlu0 %9908
      %9910 = vadd.xlane.f32.xlu0 %v9879
      %v9911 = vpop.xlane.xlu0 %9910
      %9912 = vadd.xlane.f32.xlu0 %v9881
      %v9913 = vpop.xlane.xlu0 %9912
      %9914 = vadd.xlane.f32.xlu0 %v9883
      %v9915 = vpop.xlane.xlu0 %9914
      %9916 = vadd.xlane.f32.xlu0 %v9885
      %v9917 = vpop.xlane.xlu0 %9916
      %9918 = vadd.xlane.f32.xlu0 %v9887
      %v9919 = vpop.xlane.xlu0 %9918
      %9920 = vadd.xlane.f32.xlu0 %v9889
      %v9921 = vpop.xlane.xlu0 %9920
      %9922 = vadd.xlane.f32.xlu0 %v9891
      %v9923 = vpop.xlane.xlu0 %9922
      %v9924 = vlog2.pop %v9893
      %v9925 = vmul.f32 %v9924, 0.6931472
      %v9926 = vlog2.pop %v9895
      %v9927 = vmul.f32 %v9926, 0.6931472
      %v9928 = vlog2.pop %v9897
      %v9929 = vmul.f32 %v9928, 0.6931472
      %v9930 = vlog2.pop %v9899
      %v9931 = vmul.f32 %v9930, 0.6931472
      %v9932 = vlog2.pop %v9901
      %v9933 = vmul.f32 %v9932, 0.6931472
      %v9934 = vlog2.pop %v9903
      %v9935 = vmul.f32 %v9934, 0.6931472
      %v9936 = vlog2.pop %v9905
      %v9937 = vmul.f32 %v9936, 0.6931472
      %v9938 = vlog2.pop %v9907
      %v9939 = vmul.f32 %v9938, 0.6931472
      %v9940 = vlog2.pop %v9909
      %v9941 = vmul.f32 %v9940, 0.6931472
      %v9942 = vlog2.pop %v9911
      %v9943 = vmul.f32 %v9942, 0.6931472
      %v9944 = vlog2.pop %v9913
      %v9945 = vmul.f32 %v9944, 0.6931472
      %v9946 = vlog2.pop %v9915
      %v9947 = vmul.f32 %v9946, 0.6931472
      %v9948 = vlog2.pop %v9917
      %v9949 = vmul.f32 %v9948, 0.6931472
      %v9950 = vlog2.pop %v9919
      %v9951 = vmul.f32 %v9950, 0.6931472
      %v9952 = vlog2.pop %v9921
      %v9953 = vmul.f32 %v9952, 0.6931472
      %v9954 = vlog2.pop %v9923
      %v9955 = vmul.f32 %v9954, 0.6931472
      %v9956 = vadd.f32 %v9925, %v9813
      %v9957 = vadd.f32 %v9927, %v9815
      %v9958 = vadd.f32 %v9929, %v9817
      %v9959 = vadd.f32 %v9931, %v9819
      %v9960 = vadd.f32 %v9933, %v9821
      %v9961 = vadd.f32 %v9935, %v9823
      %v9962 = vadd.f32 %v9937, %v9825
      %v9963 = vadd.f32 %v9939, %v9827
      %v9964 = vadd.f32 %v9941, %v9829
      %v9965 = vadd.f32 %v9943, %v9831
      %v9966 = vadd.f32 %v9945, %v9833
      %v9967 = vadd.f32 %v9947, %v9835
      %v9968 = vadd.f32 %v9949, %v9837
      %v9969 = vadd.f32 %v9951, %v9839
      %v9970 = vadd.f32 %v9953, %v9841
      %v9971 = vadd.f32 %v9955, %v9843
      %9973 = vset.pattern.permute.xlu0 0
      %9974 = vperm.xlu0 %9973, %v9796
      %v9975 = vpop.permute.xlu0 %9974
      %9978 = vset.pattern.permute.xlu0 0
      %9979 = vperm.xlu0 %9978, %v9797
      %v9980 = vpop.permute.xlu0 %9979
      %9983 = vset.pattern.permute.xlu0 0
      %9984 = vperm.xlu0 %9983, %v9798
      %v9985 = vpop.permute.xlu0 %9984
      %9988 = vset.pattern.permute.xlu0 0
      %9989 = vperm.xlu0 %9988, %v9799
      %v9990 = vpop.permute.xlu0 %9989
      %9993 = vset.pattern.permute.xlu0 0
      %9994 = vperm.xlu0 %9993, %v9800
      %v9995 = vpop.permute.xlu0 %9994
      %9998 = vset.pattern.permute.xlu0 0
      %9999 = vperm.xlu0 %9998, %v9801
      %v10000 = vpop.permute.xlu0 %9999
      %10003 = vset.pattern.permute.xlu0 0
      %10004 = vperm.xlu0 %10003, %v9802
      %v10005 = vpop.permute.xlu0 %10004
      %10008 = vset.pattern.permute.xlu0 0
      %10009 = vperm.xlu0 %10008, %v9803
      %v10010 = vpop.permute.xlu0 %10009
      %10013 = vset.pattern.permute.xlu0 0
      %10014 = vperm.xlu0 %10013, %v9804
      %v10015 = vpop.permute.xlu0 %10014
      %10018 = vset.pattern.permute.xlu0 0
      %10019 = vperm.xlu0 %10018, %v9805
      %v10020 = vpop.permute.xlu0 %10019
      %10023 = vset.pattern.permute.xlu0 0
      %10024 = vperm.xlu0 %10023, %v9806
      %v10025 = vpop.permute.xlu0 %10024
      %10028 = vset.pattern.permute.xlu0 0
      %10029 = vperm.xlu0 %10028, %v9807
      %v10030 = vpop.permute.xlu0 %10029
      %10033 = vset.pattern.permute.xlu0 0
      %10034 = vperm.xlu0 %10033, %v9808
      %v10035 = vpop.permute.xlu0 %10034
      %10038 = vset.pattern.permute.xlu0 0
      %10039 = vperm.xlu0 %10038, %v9809
      %v10040 = vpop.permute.xlu0 %10039
      %10043 = vset.pattern.permute.xlu0 0
      %10044 = vperm.xlu0 %10043, %v9810
      %v10045 = vpop.permute.xlu0 %10044
      %10048 = vset.pattern.permute.xlu0 0
      %10049 = vperm.xlu0 %10048, %v9811
      %v10050 = vpop.permute.xlu0 %10049
      %vm10052 = vcmp.eq.f32.partialorder %v8302, %v9975
      %vm10053 = vcmp.eq.f32.partialorder %v8302, %v9980
      %vm10054 = vcmp.eq.f32.partialorder %v8302, %v9985
      %vm10055 = vcmp.eq.f32.partialorder %v8302, %v9990
      %vm10056 = vcmp.eq.f32.partialorder %v8302, %v9995
      %vm10057 = vcmp.eq.f32.partialorder %v8302, %v10000
      %vm10058 = vcmp.eq.f32.partialorder %v8302, %v10005
      %vm10059 = vcmp.eq.f32.partialorder %v8302, %v10010
      %vm10060 = vcmp.eq.f32.partialorder %v8302, %v10015
      %vm10061 = vcmp.eq.f32.partialorder %v8302, %v10020
      %vm10062 = vcmp.eq.f32.partialorder %v8302, %v10025
      %vm10063 = vcmp.eq.f32.partialorder %v8302, %v10030
      %vm10064 = vcmp.eq.f32.partialorder %v8302, %v10035
      %vm10065 = vcmp.eq.f32.partialorder %v8302, %v10040
      %vm10066 = vcmp.eq.f32.partialorder %v8302, %v10045
      %vm10067 = vcmp.eq.f32.partialorder %v8302, %v10050
      %v10068 = vsel %vm10052, %v9643, 0.0
      %v10069 = vsel %vm10053, %v9647, 0.0
      %v10070 = vsel %vm10054, %v9645, 0.0
      %v10071 = vsel %vm10055, %v9649, 0.0
      %v10072 = vsel %vm10056, %v9686, 0.0
      %v10073 = vsel %vm10057, %v9690, 0.0
      %v10074 = vsel %vm10058, %v9688, 0.0
      %v10075 = vsel %vm10059, %v9692, 0.0
      %v10076 = vsel %vm10060, %v9729, 0.0
      %v10077 = vsel %vm10061, %v9733, 0.0
      %v10078 = vsel %vm10062, %v9731, 0.0
      %v10079 = vsel %vm10063, %v9735, 0.0
      %v10080 = vsel %vm10064, %v9772, 0.0
      %v10081 = vsel %vm10065, %v9776, 0.0
      %v10082 = vsel %vm10066, %v9774, 0.0
      %v10083 = vsel %vm10067, %v9778, 0.0
      %10084 = vadd.xlane.f32.xlu0 %v10068
      %v10085 = vpop.xlane.xlu0 %10084
      %10086 = vadd.xlane.f32.xlu0 %v10069
      %v10087 = vpop.xlane.xlu0 %10086
      %10088 = vadd.xlane.f32.xlu0 %v10070
      %v10089 = vpop.xlane.xlu0 %10088
      %10090 = vadd.xlane.f32.xlu0 %v10071
      %v10091 = vpop.xlane.xlu0 %10090
      %10092 = vadd.xlane.f32.xlu0 %v10072
      %v10093 = vpop.xlane.xlu0 %10092
      %10094 = vadd.xlane.f32.xlu0 %v10073
      %v10095 = vpop.xlane.xlu0 %10094
      %10096 = vadd.xlane.f32.xlu0 %v10074
      %v10097 = vpop.xlane.xlu0 %10096
      %10098 = vadd.xlane.f32.xlu0 %v10075
      %v10099 = vpop.xlane.xlu0 %10098
      %10100 = vadd.xlane.f32.xlu0 %v10076
      %v10101 = vpop.xlane.xlu0 %10100
      %10102 = vadd.xlane.f32.xlu0 %v10077
      %v10103 = vpop.xlane.xlu0 %10102
      %10104 = vadd.xlane.f32.xlu0 %v10078
      %v10105 = vpop.xlane.xlu0 %10104
      %10106 = vadd.xlane.f32.xlu0 %v10079
      %v10107 = vpop.xlane.xlu0 %10106
      %10108 = vadd.xlane.f32.xlu0 %v10080
      %v10109 = vpop.xlane.xlu0 %10108
      %10110 = vadd.xlane.f32.xlu0 %v10081
      %v10111 = vpop.xlane.xlu0 %10110
      %10112 = vadd.xlane.f32.xlu0 %v10082
      %v10113 = vpop.xlane.xlu0 %10112
      %10114 = vadd.xlane.f32.xlu0 %v10083
      %v10115 = vpop.xlane.xlu0 %10114
      %v10116 = vsub.f32 %v9956, %v10085
      %v10117 = vsub.f32 %v9957, %v10087
      %v10118 = vsub.f32 %v9958, %v10089
      %v10119 = vsub.f32 %v9959, %v10091
      %v10120 = vsub.f32 %v9960, %v10093
      %v10121 = vsub.f32 %v9961, %v10095
      %v10122 = vsub.f32 %v9962, %v10097
      %v10123 = vsub.f32 %v9963, %v10099
      %v10124 = vsub.f32 %v9964, %v10101
      %v10125 = vsub.f32 %v9965, %v10103
      %v10126 = vsub.f32 %v9966, %v10105
      %v10127 = vsub.f32 %v9967, %v10107
      %v10128 = vsub.f32 %v9968, %v10109
      %v10129 = vsub.f32 %v9969, %v10111
      %v10130 = vsub.f32 %v9970, %v10113
      %v10131 = vsub.f32 %v9971, %v10115
      %vm10132 = vcmask 7168
      %v10133 = vsel %vm10132, %v10116, 0.0
      %v10134 = vsel %vm10132, %v10117, 0.0
      %v10135 = vadd.f32 %v10133, %v10134
      %v10136 = vsel %vm10132, %v10118, 0.0
      %v10137 = vadd.f32 %v10135, %v10136
      %v10138 = vsel %vm10132, %v10119, 0.0
      %v10139 = vadd.f32 %v10137, %v10138
      %v10140 = vsel %vm10132, %v10120, 0.0
      %v10141 = vadd.f32 %v10139, %v10140
      %v10142 = vsel %vm10132, %v10121, 0.0
      %v10143 = vadd.f32 %v10141, %v10142
      %v10144 = vsel %vm10132, %v10122, 0.0
      %v10145 = vadd.f32 %v10143, %v10144
      %v10146 = vsel %vm10132, %v10123, 0.0
      %v10147 = vadd.f32 %v10145, %v10146
      %v10148 = vsel %vm10132, %v10124, 0.0
      %v10149 = vadd.f32 %v10147, %v10148
      %v10150 = vsel %vm10132, %v10125, 0.0
      %v10151 = vadd.f32 %v10149, %v10150
      %v10152 = vsel %vm10132, %v10126, 0.0
      %v10153 = vadd.f32 %v10151, %v10152
      %v10154 = vsel %vm10132, %v10127, 0.0
      %v10155 = vadd.f32 %v10153, %v10154
      %v10156 = vsel %vm10132, %v10128, 0.0
      %v10157 = vadd.f32 %v10155, %v10156
      %v10158 = vsel %vm10132, %v10129, 0.0
      %v10159 = vadd.f32 %v10157, %v10158
      %v10160 = vsel %vm10132, %v10130, 0.0
      %v10161 = vadd.f32 %v10159, %v10160
      %v10162 = vsel %vm10132, %v10131, 0.0
      %v10163 = vadd.f32 %v10161, %v10162
      %10164 = vadd.xlane.f32.xlu0 %v10163
      %v10165 = vpop.xlane.xlu0 %10164
      %v10166 = vrot.slane %v10165, 4
      %v10167 = vadd.f32 %v10165, %v10166
      %v10168 = vrot.slane %v10167, 2
      %v10169 = vadd.f32 %v10167, %v10168
      %v10170 = vrot.slane %v10169, 1
      %v10171 = vadd.f32 %v10169, %v10170
      %s10172 = vtos %v10171
      %vm10173 = vcmp.eq.f32.partialorder %v9643, %v9813
      %vm10174 = vcmp.eq.f32.partialorder %v9647, %v9815
      %vm10175 = vcmp.eq.f32.partialorder %v9645, %v9817
      %vm10176 = vcmp.eq.f32.partialorder %v9649, %v9819
      %vm10177 = vcmp.eq.f32.partialorder %v9686, %v9821
      %vm10178 = vcmp.eq.f32.partialorder %v9690, %v9823
      %vm10179 = vcmp.eq.f32.partialorder %v9688, %v9825
      %vm10180 = vcmp.eq.f32.partialorder %v9692, %v9827
      %vm10181 = vcmp.eq.f32.partialorder %v9729, %v9829
      %vm10182 = vcmp.eq.f32.partialorder %v9733, %v9831
      %vm10183 = vcmp.eq.f32.partialorder %v9731, %v9833
      %vm10184 = vcmp.eq.f32.partialorder %v9735, %v9835
      %vm10185 = vcmp.eq.f32.partialorder %v9772, %v9837
      %vm10186 = vcmp.eq.f32.partialorder %v9776, %v9839
      %vm10187 = vcmp.eq.f32.partialorder %v9774, %v9841
      %vm10188 = vcmp.eq.f32.partialorder %v9778, %v9843
      %v10189 = vsel %vm10173, %v8302, 128.0
      %v10190 = vsel %vm10174, %v8302, 128.0
      %v10191 = vsel %vm10175, %v8302, 128.0
      %v10192 = vsel %vm10176, %v8302, 128.0
      %v10193 = vsel %vm10177, %v8302, 128.0
      %v10194 = vsel %vm10178, %v8302, 128.0
      %v10195 = vsel %vm10179, %v8302, 128.0
      %v10196 = vsel %vm10180, %v8302, 128.0
      %v10197 = vsel %vm10181, %v8302, 128.0
      %v10198 = vsel %vm10182, %v8302, 128.0
      %v10199 = vsel %vm10183, %v8302, 128.0
      %v10200 = vsel %vm10184, %v8302, 128.0
      %v10201 = vsel %vm10185, %v8302, 128.0
      %v10202 = vsel %vm10186, %v8302, 128.0
      %v10203 = vsel %vm10187, %v8302, 128.0
      %v10204 = vsel %vm10188, %v8302, 128.0
      %10205 = vmin.xlane.f32.xlu0 %v10189
      %v10206 = vpop.xlane.xlu0 %10205
      %10207 = vmin.xlane.f32.xlu0 %v10190
      %v10208 = vpop.xlane.xlu0 %10207
      %10209 = vmin.xlane.f32.xlu0 %v10191
      %v10210 = vpop.xlane.xlu0 %10209
      %10211 = vmin.xlane.f32.xlu0 %v10192
      %v10212 = vpop.xlane.xlu0 %10211
      %10213 = vmin.xlane.f32.xlu0 %v10193
      %v10214 = vpop.xlane.xlu0 %10213
      %10215 = vmin.xlane.f32.xlu0 %v10194
      %v10216 = vpop.xlane.xlu0 %10215
      %10217 = vmin.xlane.f32.xlu0 %v10195
      %v10218 = vpop.xlane.xlu0 %10217
      %10219 = vmin.xlane.f32.xlu0 %v10196
      %v10220 = vpop.xlane.xlu0 %10219
      %10221 = vmin.xlane.f32.xlu0 %v10197
      %v10222 = vpop.xlane.xlu0 %10221
      %10223 = vmin.xlane.f32.xlu0 %v10198
      %v10224 = vpop.xlane.xlu0 %10223
      %10225 = vmin.xlane.f32.xlu0 %v10199
      %v10226 = vpop.xlane.xlu0 %10225
      %10227 = vmin.xlane.f32.xlu0 %v10200
      %v10228 = vpop.xlane.xlu0 %10227
      %10229 = vmin.xlane.f32.xlu0 %v10201
      %v10230 = vpop.xlane.xlu0 %10229
      %10231 = vmin.xlane.f32.xlu0 %v10202
      %v10232 = vpop.xlane.xlu0 %10231
      %10233 = vmin.xlane.f32.xlu0 %v10203
      %v10234 = vpop.xlane.xlu0 %10233
      %10235 = vmin.xlane.f32.xlu0 %v10204
      %v10236 = vpop.xlane.xlu0 %10235
      %vm10237 = vcmp.eq.f32.partialorder %v10206, %v9796
      %vm10238 = vcmp.eq.f32.partialorder %v10208, %v9797
      %vm10239 = vcmp.eq.f32.partialorder %v10210, %v9798
      %vm10240 = vcmp.eq.f32.partialorder %v10212, %v9799
      %vm10241 = vcmp.eq.f32.partialorder %v10214, %v9800
      %vm10242 = vcmp.eq.f32.partialorder %v10216, %v9801
      %vm10243 = vcmp.eq.f32.partialorder %v10218, %v9802
      %vm10244 = vcmp.eq.f32.partialorder %v10220, %v9803
      %vm10245 = vcmp.eq.f32.partialorder %v10222, %v9804
      %vm10246 = vcmp.eq.f32.partialorder %v10224, %v9805
      %vm10247 = vcmp.eq.f32.partialorder %v10226, %v9806
      %vm10248 = vcmp.eq.f32.partialorder %v10228, %v9807
      %vm10249 = vcmp.eq.f32.partialorder %v10230, %v9808
      %vm10250 = vcmp.eq.f32.partialorder %v10232, %v9809
      %vm10251 = vcmp.eq.f32.partialorder %v10234, %v9810
      %vm10252 = vcmp.eq.f32.partialorder %v10236, %v9811
      %v10253 = vsel %vm10237, 1, 0
      %v10254 = vsel %vm10238, 1, 0
      %v10255 = vsel %vm10239, 1, 0
      %v10256 = vsel %vm10240, 1, 0
      %v10257 = vsel %vm10241, 1, 0
      %v10258 = vsel %vm10242, 1, 0
      %v10259 = vsel %vm10243, 1, 0
      %v10260 = vsel %vm10244, 1, 0
      %v10261 = vsel %vm10245, 1, 0
      %v10262 = vsel %vm10246, 1, 0
      %v10263 = vsel %vm10247, 1, 0
      %v10264 = vsel %vm10248, 1, 0
      %v10265 = vsel %vm10249, 1, 0
      %v10266 = vsel %vm10250, 1, 0
      %v10267 = vsel %vm10251, 1, 0
      %v10268 = vsel %vm10252, 1, 0
      %v10269 = vcvt.s32.f32 %v10253
      %v10270 = vcvt.s32.f32 %v10254
      %v10271 = vcvt.s32.f32 %v10255
      %v10272 = vcvt.s32.f32 %v10256
      %v10273 = vcvt.s32.f32 %v10257
      %v10274 = vcvt.s32.f32 %v10258
      %v10275 = vcvt.s32.f32 %v10259
      %v10276 = vcvt.s32.f32 %v10260
      %v10277 = vcvt.s32.f32 %v10261
      %v10278 = vcvt.s32.f32 %v10262
      %v10279 = vcvt.s32.f32 %v10263
      %v10280 = vcvt.s32.f32 %v10264
      %v10281 = vcvt.s32.f32 %v10265
      %v10282 = vcvt.s32.f32 %v10266
      %v10283 = vcvt.s32.f32 %v10267
      %v10284 = vcvt.s32.f32 %v10268
      %v10285 = vsel %vm10132, %v10269, 0.0
      %v10286 = vsel %vm10132, %v10270, 0.0
      %v10287 = vadd.f32 %v10285, %v10286
      %v10288 = vsel %vm10132, %v10271, 0.0
      %v10289 = vadd.f32 %v10287, %v10288
      %v10290 = vsel %vm10132, %v10272, 0.0
      %v10291 = vadd.f32 %v10289, %v10290
      %v10292 = vsel %vm10132, %v10273, 0.0
      %v10293 = vadd.f32 %v10291, %v10292
      %v10294 = vsel %vm10132, %v10274, 0.0
      %v10295 = vadd.f32 %v10293, %v10294
      %v10296 = vsel %vm10132, %v10275, 0.0
      %v10297 = vadd.f32 %v10295, %v10296
      %v10298 = vsel %vm10132, %v10276, 0.0
      %v10299 = vadd.f32 %v10297, %v10298
      %v10300 = vsel %vm10132, %v10277, 0.0
      %v10301 = vadd.f32 %v10299, %v10300
      %v10302 = vsel %vm10132, %v10278, 0.0
      %v10303 = vadd.f32 %v10301, %v10302
      %v10304 = vsel %vm10132, %v10279, 0.0
      %v10305 = vadd.f32 %v10303, %v10304
      %v10306 = vsel %vm10132, %v10280, 0.0
      %v10307 = vadd.f32 %v10305, %v10306
      %v10308 = vsel %vm10132, %v10281, 0.0
      %v10309 = vadd.f32 %v10307, %v10308
      %v10310 = vsel %vm10132, %v10282, 0.0
      %v10311 = vadd.f32 %v10309, %v10310
      %v10312 = vsel %vm10132, %v10283, 0.0
      %v10313 = vadd.f32 %v10311, %v10312
      %v10314 = vsel %vm10132, %v10284, 0.0
      %v10315 = vadd.f32 %v10313, %v10314
      %10316 = vadd.xlane.f32.xlu0 %v10315
      %v10317 = vpop.xlane.xlu0 %10316
      %v10318 = vrot.slane %v10317, 4
      %v10319 = vadd.f32 %v10317, %v10318
      %v10320 = vrot.slane %v10319, 2
      %v10321 = vadd.f32 %v10319, %v10320
      %v10322 = vrot.slane %v10321, 1
      %v10323 = vadd.f32 %v10321, %v10322
      %s10324 = vtos %v10323
      %vm10325 = vcmp.eq.s32.totalorder %v8301, 0
      %v10326 = vstv %s8743
      %v10327 = vsel %vm10325, %v10326, 0.0
      %vm10328 = vcmp.eq.s32.totalorder %v8301, 1
      %v10329 = vstv %s9269
      %v10330 = vsel %vm10328, %v10329, %v10327
      %vm10331 = vcmp.eq.s32.totalorder %v8301, 2
      %v10332 = vstv %s10172
      %v10333 = vsel %vm10331, %v10332, %v10330
      %vm10334 = vcmp.eq.s32.totalorder %v8301, 3
      %v10335 = vstv %s10324
      %v10336 = vsel %vm10334, %v10335, %v10333
      %vm10337 = vcmask 57344
      %10338 = vst.msk [vmem:[%s1032] sm:$0x1] %vm10337, %v10336
      %p10339 = scmp.lt.s32.totalorder %s76, 3
      %s10340 = scalar_select %p10339, %s76, 3
      %s10341 = scalar_lea.vmem %s65, %s10340
      // Predicated region
      $region149: #{forward.1} parent=147 // pred_check
        %p10342 = pneg %p781
      $region150: #{forward.1} parent=147 // pred_check_branch
        %10344 = sbr.rel (%p10342) target = $region152
      $region151: #{forward.1} parent=147 // pred_region
        _
      $region152: #{forward.1} parent=147 // pred_fallthru
        _
    $region148: #{forward.1} parent=5 // pred_fallthru
      _
    %p10345 = scmp.le.s32.totalorder 2, %s71
    // Predicated region
    $region153: #{forward.1} parent=5 // pred_check
      %p10346 = pneg %p10345
    $region154: #{forward.1} parent=5 // pred_check_branch
      %10348 = sbr.rel (%p10346) target = $region156
    $region155: #{forward.1} parent=5 // pred_region
      %s10349 = ssub.s32 %s71, 2
      // Predicated region
      $region157: #{forward.1} parent=155 // pred_check
        %p10350 = pneg %p787
      $region158: #{forward.1} parent=155 // pred_check_branch
        %10352 = sbr.rel (%p10350) target = $region160
      $region159: #{forward.1} parent=155 // pred_region
        %p10353 = scmp.lt.s32.totalorder %s77, 3
        %s10354 = scalar_select %p10353, %s77, 3
        %s10355 = scalar_lea.vmem %s65, %s10354
      $region160: #{forward.1} parent=155 // pred_fallthru
        _
    $region156: #{forward.1} parent=5 // pred_fallthru
      _
  $region6: #{forward.1} parent=0 // loop_footer
    %s75 = sadd.s32 1, %s71
  $region7: #{forward.1} parent=0 // loop_footer_branch
    %70 = sbr.rel target = $region3
  $region8: #{forward.1} parent=0 // loop_exit
    _

</llo_original>
